<compile_context>
chip_gen: v7x
topology: tpu7x:2x2x1
jax: 0.10.0
libtpu: 0.0.40
codegen_flags: <defaults>
</compile_context>

<pallas_src>
import functools
import math

import numpy as np
import jax
import jax.numpy as jnp
from jax.experimental import pallas as pl
from jax.experimental.pallas import tpu as pltpu

_LANES = 128
_BPAD = 8            # padded per-group batch rows
_NEG_INF = -1e30


def _round_up(x, m):
    return (x + m - 1) // m * m


# --------------------------- parameter packing -------------------------------

def make_packed_params(key, cfg):
    """Pack all parameters: bf16 weight slab of (128,128) tiles + f32 vector slab."""
    E, d_ff = cfg["d_model"], cfg["d_ff"]
    feat_dim, ecfp_dim = cfg["feat_dim"], cfg["ecfp_dim"]
    latent, num_tokens = cfg["latent_dim"], cfg["num_tokens"]
    d_pos = cfg["depth"] * cfg["width"]
    NL, nhead = cfg["num_layers"], cfg["nhead"]
    hd = E // nhead
    scale = 1.0 / math.sqrt(hd)

    for d in (feat_dim, ecfp_dim, d_pos, 3 * E, d_ff, 2 * latent, num_tokens):
        assert d <= _LANES, d

    keys = iter(jax.random.split(key, 256))

    def rnd(shape, fan_in):
        return np.asarray(jax.random.normal(next(keys), shape, jnp.float32)) / math.sqrt(fan_in)

    w_tiles, w_idx = [], {}
    v_rows, v_idx = [], {}

    def add_w(name, mat):
        mat = np.asarray(mat, np.float32)
        k, n = mat.shape
        tile = np.zeros((_LANES, _LANES), np.float32)
        tile[:k, :n] = mat
        w_idx[name] = len(w_tiles) * _LANES
        w_tiles.append(tile)

    def add_v(name, vecv):
        vecv = np.asarray(vecv, np.float32).reshape(-1)
        row = np.zeros((_LANES,), np.float32)
        row[:vecv.shape[0]] = vecv
        v_idx[name] = len(v_rows)
        v_rows.append(row)

    def add_linear(name, fi, fo):
        add_w(name + "_w", rnd((fi, fo), fi))
        add_v(name + "_b", np.zeros((fo,), np.float32))

    def add_composed(name, f0, f1, f2):
        # Linear(f0->f1) o Linear(f1->f2) with no nonlinearity: compose host-side.
        w0, b0 = rnd((f0, f1), f0), np.zeros((f1,), np.float32)
        w1, b1 = rnd((f1, f2), f1), np.zeros((f2,), np.float32)
        add_w(name + "_w", w0 @ w1)
        add_v(name + "_b", b0 @ w1 + b1)

    def add_ln(name, d):
        add_v(name + "_g", np.ones((d,), np.float32))
        add_v(name + "_b", np.zeros((d,), np.float32))

    def add_self_attn(prefix):
        wq, wk, wv = rnd((E, E), E), rnd((E, E), E), rnd((E, E), E)
        # fused QKV; 1/sqrt(hd) score scale folded into the Q columns (and Q bias).
        add_w(prefix + "_wqkv", np.concatenate([wq * scale, wk, wv], axis=1))
        add_v(prefix + "_bqkv", np.zeros((3 * E,), np.float32))
        add_w(prefix + "_wo", rnd((E, E), E))
        add_v(prefix + "_bo", np.zeros((E,), np.float32))

    def add_cross_attn(prefix):
        # memory length is 1 => attention weights are exactly 1.0; Q/K projections are
        # mathematically irrelevant and are not packed at all.
        add_w(prefix + "_wv", rnd((E, E), E))
        add_v(prefix + "_bv", np.zeros((E,), np.float32))
        add_w(prefix + "_wo", rnd((E, E), E))
        add_v(prefix + "_bo", np.zeros((E,), np.float32))

    add_composed("featfc", feat_dim, feat_dim // 2, E)
    add_linear("pe", d_pos, E)     # TODO(synk): TreePositionalEncoding approximated as linear.
    add_composed("ecfpfc", ecfp_dim, ecfp_dim // 2, E)
    for i in range(NL):
        add_self_attn("enc%d_sa" % i)
        add_ln("enc%d_ln1" % i, E)
        add_linear("enc%d_ff1" % i, E, d_ff)
        add_linear("enc%d_ff2" % i, d_ff, E)
        add_ln("enc%d_ln2" % i, E)
    add_composed("vae", E, latent, 2 * latent)
    add_linear("dec_ecfp0", latent, ecfp_dim // 2)
    add_linear("dec_ecfp1", ecfp_dim // 2, ecfp_dim)
    add_v("embed", np.asarray(jax.random.normal(next(keys), (E,), jnp.float32)) * 0.02)
    add_linear("memory", latent, E)
    for i in range(NL):
        add_self_attn("dec%d_sa" % i)
        add_ln("dec%d_ln1" % i, E)
        add_cross_attn("dec%d_ca" % i)
        add_ln("dec%d_ln2" % i, E)
        add_linear("dec%d_ff1" % i, E, d_ff)
        add_linear("dec%d_ff2" % i, d_ff, E)
        add_ln("dec%d_ln3" % i, E)
    add_linear("fc_dec", E, num_tokens)

    wslab = jnp.asarray(np.concatenate(w_tiles, axis=0), jnp.bfloat16)
    vrows = np.stack(v_rows, axis=0)
    pad = (-vrows.shape[0]) % 8
    if pad:
        vrows = np.concatenate([vrows, np.zeros((pad, _LANES), np.float32)], axis=0)
    fslab = jnp.asarray(vrows, jnp.float32)
    return wslab, fslab, w_idx, v_idx


# ------------------------------ fused kernel ---------------------------------

def _frattvae_kernel(w_ref, f_ref, feat_ref, pos_ref, ecfp_ref,
                     idsc_ref, idsr_ref, selb_ref, selcls_ref,
                     hvae_ref, dececfp_ref, logits_ref,
                     *, widx, vidx, cfg):
    f32 = jnp.float32
    bf16 = jnp.bfloat16
    E = cfg["d_model"]
    nhead = cfg["nhead"]
    hd = E // nhead
    NL = cfg["num_layers"]
    inv_e = 1.0 / E

    def w(name, rows=_LANES):                        # full-lane, 8-aligned weight tile read
        off = widx[name]
        return w_ref[off:off + rows, :]

    def vec(name):                                   # (1,128) f32 bias / LN / embed row
        i = vidx[name]
        return f_ref[i:i + 1, :]

    def mm(x, y):                                    # bf16 MXU operands, f32 accumulate
        return jnp.dot(x.astype(bf16), y.astype(bf16), preferred_element_type=f32)

    def mmf(x, y):                                   # exact f32 matmul (one-hot selectors)
        return jnp.dot(x, y, preferred_element_type=f32)

    def dense(x, name, act=None):
        y = mm(x, w(name + "_w")) + vec(name + "_b")
        if act == "gelu":                            # exact erf-GELU (torch activation='gelu')
            y = 0.5 * y * (1.0 + jax.lax.erf(y * (1.0 / math.sqrt(2.0))))
        elif act == "tanh":
            y = jnp.tanh(y)
        return y

    def layer_norm(x, name, eps=1e-5):
        # padded lanes are zero, so plain sums give exact d_model statistics;
        # gamma/beta are zero-padded so padded lanes stay zero after the affine.
        m = jnp.sum(x, axis=-1, keepdims=True) * inv_e
        ms = jnp.sum(x * x, axis=-1, keepdims=True) * inv_e
        return (x - m) * jax.lax.rsqrt(ms - m * m + eps) * vec(name + "_g") + vec(name + "_b")

    def softmax(s):
        s = s - jnp.max(s, axis=-1, keepdims=True)
        p = jnp.exp(s)
        return p * pl.reciprocal(jnp.sum(p, axis=-1, keepdims=True), approx=True)

    def self_attn(x, mask, prefix):
        qkv = mm(x, w(prefix + "_wqkv")) + vec(prefix + "_bqkv")     # (M,128) lanes 0:3E
        kT = jnp.transpose(qkv[:, E:2 * E])                          # ONE transpose / block
        heads = []
        for h in range(nhead):
            qh = qkv[:, h * hd:(h + 1) * hd]                         # scale already folded
            kTh = kT[h * hd:(h + 1) * hd, :]                         # 8-row aligned slice
            vh = qkv[:, 2 * E + h * hd:2 * E + (h + 1) * hd]
            p = softmax(mm(qh, kTh) + mask)
            heads.append(mm(p, vh))
        ctx = jnp.concatenate(heads, axis=1)                         # (M,E)
        return mm(ctx, w(prefix + "_wo", rows=E)) + vec(prefix + "_bo")   # ONE out-proj

    def cross_attn_value(mem, prefix):
        # memory length == 1 -> softmax over the single key is 1; the whole cross-attention
        # block reduces to out_proj(V(memory)), independent of the queries.
        vv = mm(mem, w(prefix + "_wv")) + vec(prefix + "_bv")        # (BPAD,128)
        return mm(vv, w(prefix + "_wo")) + vec(prefix + "_bo")

    # --------------------------------------------------------------- in-kernel masks
    ids_c = idsc_ref[...]                 # (M,4): [batch, pos, is_feat, is_special]
    ids_r = idsr_ref[...]                 # (2,M): [batch; pos]
    featcol = ids_c[:, 2:3]
    speccol = ids_c[:, 3:4]
    same_batch = ids_c[:, 0:1] == ids_r[0:1, :]
    enc_mask = jnp.where(same_batch, 0.0, _NEG_INF).astype(f32)
    causal = ids_r[1:2, :] <= ids_c[:, 1:2]
    dec_mask = jnp.where(jnp.logical_and(same_batch, causal), 0.0, _NEG_INF).astype(f32)

    selb = selb_ref[...]                  # (M,BPAD)  row -> its batch (one-hot)
    selcls = selcls_ref[...]              # (BPAD,M)  batch -> its token-0 row (one-hot)

    # ----------------------------------------------------------------- encode
    tok = featcol * (dense(feat_ref[...], "featfc") + dense(pos_ref[...], "pe"))
    ecfp_emb = dense(ecfp_ref[...], "ecfpfc")                        # (BPAD,128)
    x = tok + mmf(speccol * selb, ecfp_emb)                          # src = [ecfp, feat+PE]

    for i in range(NL):
        pfx = "enc%d" % i
        x = layer_norm(x + self_attn(x, enc_mask, pfx + "_sa"), pfx + "_ln1")
        ff = dense(dense(x, pfx + "_ff1", act="gelu"), pfx + "_ff2")
        x = layer_norm(x + ff, pfx + "_ln2")

    cls = mmf(selcls, x)                                             # token 0 per batch
    hvae = dense(cls, "vae")                                         # lanes: [mu | ln_var | 0]
    hvae_ref[...] = hvae

    # ----------------------------------------------------------------- decode
    # z = mu (eval-mode reparameterization).  The ln_var lanes of hvae hit zero weight rows
    # (K = latent) in every consumer, so hvae is used directly as z without slicing.
    dececfp_ref[...] = dense(dense(hvae, "dec_ecfp0", act="tanh"), "dec_ecfp1")
    mem = dense(hvae, "memory")                                      # (BPAD,128)

    xd = tok + speccol * vec("embed")                                # tgt = [root, feat+PE]
    for i in range(NL):
        pfx = "dec%d" % i
        xd = layer_norm(xd + self_attn(xd, dec_mask, pfx + "_sa"), pfx + "_ln1")
        xd = layer_norm(xd + mmf(selb, cross_attn_value(mem, pfx + "_ca")), pfx + "_ln2")
        ff = dense(dense(xd, pfx + "_ff1", act="gelu"), pfx + "_ff2")
        xd = layer_norm(xd + ff, pfx + "_ln3")

    logits_ref[...] = dense(xd, "fc_dec")                            # lane-dense (M,128)


# -------------------------------- wrapper ------------------------------------

def frattvae_forward(wslab, fslab, widx, vidx, cfg, ecfps, features, positions,
                     num_groups=1):
    """Encode + parallel (teacher-forced) decode. src_mask=None, causal tgt_mask
    (both generated inside the kernel)."""
    B, L, feat_dim = features.shape
    Lp1 = L + 1
    d_pos = positions.shape[-1]
    ecfp_dim = cfg["ecfp_dim"]
    latent = cfg["latent_dim"]
    num_tokens = cfg["num_tokens"]

    if B % num_groups != 0:
        num_groups = 1
    G = num_groups
    Bg = B // G
    assert Bg <= _BPAD
    Mg = _round_up(Bg * Lp1, 8)

    # ---- device-side input packing: batch-major rows [root_b, tok_b1..tok_bL], padded.
    def pack_rows(a3, width):
        a = jnp.pad(a3.astype(jnp.float32),
                    ((0, 0), (1, 0), (0, _LANES - width)))           # token-0 row = zeros
        a = a.reshape(G, Bg * Lp1, _LANES)
        return jnp.pad(a, ((0, 0), (0, Mg - Bg * Lp1), (0, 0)))

    feats_in = pack_rows(features, feat_dim)
    pos_in = pack_rows(positions, d_pos)
    ecfp_in = jnp.pad(ecfps.astype(jnp.float32),
                      ((0, 0), (0, _LANES - ecfp_dim))).reshape(G, Bg, _LANES)
    ecfp_in = jnp.pad(ecfp_in, ((0, 0), (0, _BPAD - Bg), (0, 0)))

    # ---- tiny per-row metadata + one-hot selectors (shape-only, built once on host).
    r = np.arange(Mg)
    real = r < Bg * Lp1
    bid = np.where(real, r // Lp1, Bg).astype(np.float32)            # pad rows -> fake batch
    pid = np.where(real, r % Lp1, 0).astype(np.float32)
    is_feat = (real & (r % Lp1 > 0)).astype(np.float32)
    is_spec = (real & (r % Lp1 == 0)).astype(np.float32)
    ids_col = np.stack([bid, pid, is_feat, is_spec], axis=1)         # (Mg,4)
    ids_row = np.stack([bid, pid], axis=0)                           # (2,Mg)
    sel_batch = np.zeros((Mg, _BPAD), np.float32)
    sel_batch[np.arange(Bg * Lp1), np.arange(Bg * Lp1) // Lp1] = 1.0
    sel_cls = np.zeros((_BPAD, Mg), np.float32)
    sel_cls[np.arange(Bg), np.arange(Bg) * Lp1] = 1.0

    def rep(a):                                                       # same metadata per group
        return jnp.asarray(np.broadcast_to(a, (G,) + a.shape).copy())

    kernel = functools.partial(_frattvae_kernel, widx=widx, vidx=vidx, cfg=cfg)

    grid_spec = pltpu.PrefetchScalarGridSpec(
        num_scalar_prefetch=0,
        grid=(G,),
        in_specs=[
            pl.BlockSpec(wslab.shape, lambda g: (0, 0)),
            pl.BlockSpec(fslab.shape, lambda g: (0, 0)),
            pl.BlockSpec((None, Mg, _LANES), lambda g: (g, 0, 0)),
            pl.BlockSpec((None, Mg, _LANES), lambda g: (g, 0, 0)),
            pl.BlockSpec((None, _BPAD, _LANES), lambda g: (g, 0, 0)),
            pl.BlockSpec((None, Mg, 4), lambda g: (g, 0, 0)),
            pl.BlockSpec((None, 2, Mg), lambda g: (g, 0, 0)),
            pl.BlockSpec((None, Mg, _BPAD), lambda g: (g, 0, 0)),
            pl.BlockSpec((None, _BPAD, Mg), lambda g: (g, 0, 0)),
        ],
        out_specs=(
            pl.BlockSpec((None, _BPAD, _LANES), lambda g: (g, 0, 0)),
            pl.BlockSpec((None, _BPAD, _LANES), lambda g: (g, 0, 0)),
            pl.BlockSpec((None, Mg, _LANES), lambda g: (g, 0, 0)),
        ),
    )
    out_shape = (
        jax.ShapeDtypeStruct((G, _BPAD, _LANES), jnp.float32),        # hvae = [mu | ln_var]
        jax.ShapeDtypeStruct((G, _BPAD, _LANES), jnp.float32),        # dec_ecfps (lane-padded)
        jax.ShapeDtypeStruct((G, Mg, _LANES), jnp.float32),           # logits (lane-padded)
    )
    hvae, dececfp, logits = pl.pallas_call(
        kernel,
        grid_spec=grid_spec,
        out_shape=out_shape,
        compiler_params=pltpu.CompilerParams(
            dimension_semantics=("parallel",),
            vmem_limit_bytes=32 * 1024 * 1024),
    )(wslab, fslab, feats_in, pos_in, ecfp_in,
      rep(ids_col), rep(ids_row), rep(sel_batch), rep(sel_cls))

    mu = hvae[:, :Bg, :latent].reshape(B, latent)
    ln_var = hvae[:, :Bg, latent:2 * latent].reshape(B, latent)
    z = mu                                                            # eval-mode reparam.
    dec_ecfps = dececfp[:, :Bg, :ecfp_dim].reshape(B, ecfp_dim)
    output = logits[:, :Bg * Lp1, :num_tokens].reshape(B, Lp1, num_tokens)
    return z, mu, ln_var, output, dec_ecfps


# --------------------------------- main ---------------------------------------

if __name__ == "__main__":
    cfg = dict(num_tokens=24, depth=2, width=4, ecfp_dim=64, feat_dim=64,
               latent_dim=16, d_model=32, d_ff=64, num_layers=2, nhead=4)
    B, L = 2, 8

    key = jax.random.PRNGKey(0)
    kp, ke, kf, kpos = jax.random.split(key, 4)
    wslab, fslab, widx, vidx = make_packed_params(kp, cfg)

    ecfps = (jax.random.uniform(ke, (B, cfg["ecfp_dim"])) < 0.3).astype(jnp.float32)
    features = jax.random.normal(kf, (B, L, cfg["feat_dim"]), jnp.float32)
    positions = (jax.random.uniform(
        kpos, (B, L, cfg["depth"] * cfg["width"])) < 0.5).astype(jnp.float32)

    # Use both TensorCores on v7x (2 TC/chip); single-shot on v5e/v6e (1 TC) to keep the
    # latency-bound serial chain from being executed twice.
    kind = jax.devices()[0].device_kind.lower()
    num_groups = 2 if ("v7" in kind and B % 2 == 0) else 1

    z, mu, ln_var, output, dec_ecfps = frattvae_forward(
        wslab, fslab, widx, vidx, cfg, ecfps, features, positions, num_groups=num_groups)
    jax.block_until_ready((z, mu, ln_var, output, dec_ecfps))

    assert z.shape == (B, cfg["latent_dim"])
    assert mu.shape == (B, cfg["latent_dim"])
    assert ln_var.shape == (B, cfg["latent_dim"])
    assert output.shape == (B, L + 1, cfg["num_tokens"])
    assert dec_ecfps.shape == (B, cfg["ecfp_dim"])
    assert bool(jnp.all(jnp.isfinite(output))) and bool(jnp.all(jnp.isfinite(z)))
    print("KERNEL_OK")
</pallas_src>

<mosaic_0001>
module attributes {stable_mosaic.version = 11 : i64} {
  func.func @_frattvae_kernel(%arg0: i32, %arg1: memref<3584x128xbf16, #tpu.memory_space<vmem>>, %arg2: memref<56x128xf32, #tpu.memory_space<vmem>>, %arg3: memref<1x24x128xf32, #tpu.memory_space<vmem>>, %arg4: memref<1x24x128xf32, #tpu.memory_space<vmem>>, %arg5: memref<1x8x128xf32, #tpu.memory_space<vmem>>, %arg6: memref<1x24x4xf32, #tpu.memory_space<vmem>>, %arg7: memref<1x2x24xf32, #tpu.memory_space<vmem>>, %arg8: memref<1x24x8xf32, #tpu.memory_space<vmem>>, %arg9: memref<1x8x24xf32, #tpu.memory_space<vmem>>, %arg10: memref<1x8x128xf32, #tpu.memory_space<vmem>>, %arg11: memref<1x8x128xf32, #tpu.memory_space<vmem>>, %arg12: memref<1x24x128xf32, #tpu.memory_space<vmem>>) attributes {dimension_semantics = [#tpu.dimension_semantics<parallel>], iteration_bounds = array<i64: 1>, scalar_prefetch = 0 : i64, scratch_operands = 0 : i64, tpu.core_type = #tpu.core_type<tc>, window_params = [{pipeline_mode = #tpu.pipeline_mode<synchronous>, transform_indices = @transform_0, window_bounds = array<i64: 3584, 128>}, {pipeline_mode = #tpu.pipeline_mode<synchronous>, transform_indices = @transform_1, window_bounds = array<i64: 56, 128>}, {transform_indices = @transform_2, window_bounds = array<i64: 1, 24, 128>}, {transform_indices = @transform_3, window_bounds = array<i64: 1, 24, 128>}, {transform_indices = @transform_4, window_bounds = array<i64: 1, 8, 128>}, {transform_indices = @transform_5, window_bounds = array<i64: 1, 24, 4>}, {transform_indices = @transform_6, window_bounds = array<i64: 1, 2, 24>}, {transform_indices = @transform_7, window_bounds = array<i64: 1, 24, 8>}, {transform_indices = @transform_8, window_bounds = array<i64: 1, 8, 24>}, {transform_indices = @transform_9, window_bounds = array<i64: 1, 8, 128>}, {transform_indices = @transform_10, window_bounds = array<i64: 1, 8, 128>}, {transform_indices = @transform_11, window_bounds = array<i64: 1, 24, 128>}]} {
    %c0 = arith.constant 0 : index
    %c0_0 = arith.constant 0 : index
    %c0_1 = arith.constant 0 : index
    %0 = vector.load %arg6[%c0, %c0_0, %c0_1] : memref<1x24x4xf32, #tpu.memory_space<vmem>>, vector<1x24x4xf32>
    %1 = vector.shape_cast %0 : vector<1x24x4xf32> to vector<24x4xf32>
    %c0_2 = arith.constant 0 : index
    %c0_3 = arith.constant 0 : index
    %c0_4 = arith.constant 0 : index
    %2 = vector.load %arg7[%c0_2, %c0_3, %c0_4] : memref<1x2x24xf32, #tpu.memory_space<vmem>>, vector<1x2x24xf32>
    %3 = vector.shape_cast %2 : vector<1x2x24xf32> to vector<2x24xf32>
    %4 = vector.extract_strided_slice %1 {offsets = [0, 2], sizes = [24, 1], strides = [1, 1]} : vector<24x4xf32> to vector<24x1xf32>
    %5 = vector.extract_strided_slice %1 {offsets = [0, 3], sizes = [24, 1], strides = [1, 1]} : vector<24x4xf32> to vector<24x1xf32>
    %6 = vector.extract_strided_slice %1 {offsets = [0, 0], sizes = [24, 1], strides = [1, 1]} : vector<24x4xf32> to vector<24x1xf32>
    %7 = vector.extract_strided_slice %3 {offsets = [0, 0], sizes = [1, 24], strides = [1, 1]} : vector<2x24xf32> to vector<1x24xf32>
    %8 = vector.broadcast %6 : vector<24x1xf32> to vector<24x24xf32>
    %9 = vector.broadcast %7 : vector<1x24xf32> to vector<24x24xf32>
    %10 = arith.cmpf oeq, %8, %9 : vector<24x24xf32>
    %cst = arith.constant 0.000000e+00 : f32
    %cst_5 = arith.constant -1.000000e+30 : f32
    %11 = vector.broadcast %cst : f32 to vector<24x24xf32>
    %12 = vector.broadcast %cst_5 : f32 to vector<24x24xf32>
    %13 = arith.select %10, %11, %12 : vector<24x24xi1>, vector<24x24xf32>
    %14 = vector.extract_strided_slice %3 {offsets = [1, 0], sizes = [1, 24], strides = [1, 1]} : vector<2x24xf32> to vector<1x24xf32>
    %15 = vector.extract_strided_slice %1 {offsets = [0, 1], sizes = [24, 1], strides = [1, 1]} : vector<24x4xf32> to vector<24x1xf32>
    %16 = vector.broadcast %14 : vector<1x24xf32> to vector<24x24xf32>
    %17 = vector.broadcast %15 : vector<24x1xf32> to vector<24x24xf32>
    %18 = arith.cmpf ole, %16, %17 : vector<24x24xf32>
    %19 = arith.andi %10, %18 : vector<24x24xi1>
    %cst_6 = arith.constant 0.000000e+00 : f32
    %cst_7 = arith.constant -1.000000e+30 : f32
    %20 = vector.broadcast %cst_6 : f32 to vector<24x24xf32>
    %21 = vector.broadcast %cst_7 : f32 to vector<24x24xf32>
    %22 = arith.select %19, %20, %21 : vector<24x24xi1>, vector<24x24xf32>
    %c0_8 = arith.constant 0 : index
    %c0_9 = arith.constant 0 : index
    %c0_10 = arith.constant 0 : index
    %23 = vector.load %arg8[%c0_8, %c0_9, %c0_10] : memref<1x24x8xf32, #tpu.memory_space<vmem>>, vector<1x24x8xf32>
    %24 = vector.shape_cast %23 : vector<1x24x8xf32> to vector<24x8xf32>
    %c0_11 = arith.constant 0 : index
    %c0_12 = arith.constant 0 : index
    %c0_13 = arith.constant 0 : index
    %25 = vector.load %arg9[%c0_11, %c0_12, %c0_13] : memref<1x8x24xf32, #tpu.memory_space<vmem>>, vector<1x8x24xf32>
    %26 = vector.shape_cast %25 : vector<1x8x24xf32> to vector<8x24xf32>
    %c0_14 = arith.constant 0 : index
    %c0_15 = arith.constant 0 : index
    %c0_16 = arith.constant 0 : index
    %27 = vector.load %arg3[%c0_14, %c0_15, %c0_16] : memref<1x24x128xf32, #tpu.memory_space<vmem>>, vector<1x24x128xf32>
    %28 = vector.shape_cast %27 : vector<1x24x128xf32> to vector<24x128xf32>
    %c0_17 = arith.constant 0 : index
    %c0_18 = arith.constant 0 : index
    %29 = vector.load %arg1[%c0_17, %c0_18] : memref<3584x128xbf16, #tpu.memory_space<vmem>>, vector<128x128xbf16>
    %30 = arith.truncf %28 : vector<24x128xf32> to vector<24x128xbf16>
    %cst_19 = arith.constant dense<0.000000e+00> : vector<24x128xf32>
    %31 = tpu.matmul %30, %29, %cst_19 {dimension_numbers = #tpu.dot_dimension_numbers<[1], [0], [0], [1], [0, 0, 1, 1], [], []>} : vector<24x128xbf16>, vector<128x128xbf16>, vector<24x128xf32> -> vector<24x128xf32>
    %c0_20 = arith.constant 0 : index
    %c0_21 = arith.constant 0 : index
    %32 = vector.load %arg2[%c0_20, %c0_21] : memref<56x128xf32, #tpu.memory_space<vmem>>, vector<1x128xf32>
    %33 = vector.broadcast %32 : vector<1x128xf32> to vector<24x128xf32>
    %34 = arith.addf %31, %33 : vector<24x128xf32>
    %c0_22 = arith.constant 0 : index
    %c0_23 = arith.constant 0 : index
    %c0_24 = arith.constant 0 : index
    %35 = vector.load %arg4[%c0_22, %c0_23, %c0_24] : memref<1x24x128xf32, #tpu.memory_space<vmem>>, vector<1x24x128xf32>
    %36 = vector.shape_cast %35 : vector<1x24x128xf32> to vector<24x128xf32>
    %c128 = arith.constant 128 : index
    %c0_25 = arith.constant 0 : index
    %37 = vector.load %arg1[%c128, %c0_25] : memref<3584x128xbf16, #tpu.memory_space<vmem>>, vector<128x128xbf16>
    %38 = arith.truncf %36 : vector<24x128xf32> to vector<24x128xbf16>
    %cst_26 = arith.constant dense<0.000000e+00> : vector<24x128xf32>
    %39 = tpu.matmul %38, %37, %cst_26 {dimension_numbers = #tpu.dot_dimension_numbers<[1], [0], [0], [1], [0, 0, 1, 1], [], []>} : vector<24x128xbf16>, vector<128x128xbf16>, vector<24x128xf32> -> vector<24x128xf32>
    %c1 = arith.constant 1 : index
    %c0_27 = arith.constant 0 : index
    %40 = vector.load %arg2[%c1, %c0_27] : memref<56x128xf32, #tpu.memory_space<vmem>>, vector<1x128xf32>
    %41 = vector.broadcast %40 : vector<1x128xf32> to vector<24x128xf32>
    %42 = arith.addf %39, %41 : vector<24x128xf32>
    %43 = arith.addf %34, %42 : vector<24x128xf32>
    %44 = vector.broadcast %4 : vector<24x1xf32> to vector<24x128xf32>
    %45 = arith.mulf %44, %43 : vector<24x128xf32>
    %c0_28 = arith.constant 0 : index
    %c0_29 = arith.constant 0 : index
    %c0_30 = arith.constant 0 : index
    %46 = vector.load %arg5[%c0_28, %c0_29, %c0_30] : memref<1x8x128xf32, #tpu.memory_space<vmem>>, vector<1x8x128xf32>
    %47 = vector.shape_cast %46 : vector<1x8x128xf32> to vector<8x128xf32>
    %c256 = arith.constant 256 : index
    %c0_31 = arith.constant 0 : index
    %48 = vector.load %arg1[%c256, %c0_31] : memref<3584x128xbf16, #tpu.memory_space<vmem>>, vector<128x128xbf16>
    %49 = arith.truncf %47 : vector<8x128xf32> to vector<8x128xbf16>
    %cst_32 = arith.constant dense<0.000000e+00> : vector<8x128xf32>
    %50 = tpu.matmul %49, %48, %cst_32 {dimension_numbers = #tpu.dot_dimension_numbers<[1], [0], [0], [1], [0, 0, 1, 1], [], []>} : vector<8x128xbf16>, vector<128x128xbf16>, vector<8x128xf32> -> vector<8x128xf32>
    %c2 = arith.constant 2 : index
    %c0_33 = arith.constant 0 : index
    %51 = vector.load %arg2[%c2, %c0_33] : memref<56x128xf32, #tpu.memory_space<vmem>>, vector<1x128xf32>
    %52 = vector.broadcast %51 : vector<1x128xf32> to vector<8x128xf32>
    %53 = arith.addf %50, %52 : vector<8x128xf32>
    %54 = vector.broadcast %5 : vector<24x1xf32> to vector<24x8xf32>
    %55 = arith.mulf %54, %24 : vector<24x8xf32>
    %cst_34 = arith.constant dense<0.000000e+00> : vector<24x128xf32>
    %56 = tpu.matmul %55, %53, %cst_34 {dimension_numbers = #tpu.dot_dimension_numbers<[1], [0], [0], [1], [0, 0, 1, 1], [], []>} : vector<24x8xf32>, vector<8x128xf32>, vector<24x128xf32> -> vector<24x128xf32>
    %57 = arith.addf %45, %56 : vector<24x128xf32>
    %c384 = arith.constant 384 : index
    %c0_35 = arith.constant 0 : index
    %58 = vector.load %arg1[%c384, %c0_35] : memref<3584x128xbf16, #tpu.memory_space<vmem>>, vector<128x128xbf16>
    %59 = arith.truncf %57 : vector<24x128xf32> to vector<24x128xbf16>
    %cst_36 = arith.constant dense<0.000000e+00> : vector<24x128xf32>
    %60 = tpu.matmul %59, %58, %cst_36 {dimension_numbers = #tpu.dot_dimension_numbers<[1], [0], [0], [1], [0, 0, 1, 1], [], []>} : vector<24x128xbf16>, vector<128x128xbf16>, vector<24x128xf32> -> vector<24x128xf32>
    %c3 = arith.constant 3 : index
    %c0_37 = arith.constant 0 : index
    %61 = vector.load %arg2[%c3, %c0_37] : memref<56x128xf32, #tpu.memory_space<vmem>>, vector<1x128xf32>
    %62 = vector.broadcast %61 : vector<1x128xf32> to vector<24x128xf32>
    %63 = arith.addf %60, %62 : vector<24x128xf32>
    %64 = vector.extract_strided_slice %63 {offsets = [0, 32], sizes = [24, 32], strides = [1, 1]} : vector<24x128xf32> to vector<24x32xf32>
    %65 = tpu.transpose %64, [1, 0] : vector<24x32xf32> -> vector<32x24xf32>
    %66 = vector.extract_strided_slice %63 {offsets = [0, 0], sizes = [24, 8], strides = [1, 1]} : vector<24x128xf32> to vector<24x8xf32>
    %67 = vector.extract_strided_slice %65 {offsets = [0, 0], sizes = [8, 24], strides = [1, 1]} : vector<32x24xf32> to vector<8x24xf32>
    %68 = vector.extract_strided_slice %63 {offsets = [0, 64], sizes = [24, 8], strides = [1, 1]} : vector<24x128xf32> to vector<24x8xf32>
    %69 = arith.truncf %66 : vector<24x8xf32> to vector<24x8xbf16>
    %70 = arith.truncf %67 : vector<8x24xf32> to vector<8x24xbf16>
    %cst_38 = arith.constant dense<0.000000e+00> : vector<24x24xf32>
    %71 = tpu.matmul %69, %70, %cst_38 {dimension_numbers = #tpu.dot_dimension_numbers<[1], [0], [0], [1], [0, 0, 1, 1], [], []>} : vector<24x8xbf16>, vector<8x24xbf16>, vector<24x24xf32> -> vector<24x24xf32>
    %72 = arith.addf %71, %13 : vector<24x24xf32>
    %cst_39 = arith.constant dense<0xFF800000> : vector<24xf32>
    %73 = vector.multi_reduction <maximumf>, %72, %cst_39 [1] : vector<24x24xf32> to vector<24xf32>
    %74 = vector.shape_cast %73 : vector<24xf32> to vector<24x1xf32>
    %75 = vector.broadcast %74 : vector<24x1xf32> to vector<24x24xf32>
    %76 = arith.subf %72, %75 : vector<24x24xf32>
    %77 = math.exp %76 : vector<24x24xf32>
    %cst_40 = arith.constant dense<0.000000e+00> : vector<24xf32>
    %78 = vector.multi_reduction <add>, %77, %cst_40 [1] : vector<24x24xf32> to vector<24xf32>
    %79 = vector.shape_cast %78 : vector<24xf32> to vector<24x1xf32>
    %80 = tpu.reciprocal %79 {approx = true} : vector<24x1xf32> -> vector<24x1xf32>
    %81 = vector.broadcast %80 : vector<24x1xf32> to vector<24x24xf32>
    %82 = arith.mulf %77, %81 : vector<24x24xf32>
    %83 = arith.truncf %82 : vector<24x24xf32> to vector<24x24xbf16>
    %84 = arith.truncf %68 : vector<24x8xf32> to vector<24x8xbf16>
    %cst_41 = arith.constant dense<0.000000e+00> : vector<24x8xf32>
    %85 = tpu.matmul %83, %84, %cst_41 {dimension_numbers = #tpu.dot_dimension_numbers<[1], [0], [0], [1], [0, 0, 1, 1], [], []>} : vector<24x24xbf16>, vector<24x8xbf16>, vector<24x8xf32> -> vector<24x8xf32>
    %86 = vector.extract_strided_slice %63 {offsets = [0, 8], sizes = [24, 8], strides = [1, 1]} : vector<24x128xf32> to vector<24x8xf32>
    %87 = vector.extract_strided_slice %65 {offsets = [8, 0], sizes = [8, 24], strides = [1, 1]} : vector<32x24xf32> to vector<8x24xf32>
    %88 = vector.extract_strided_slice %63 {offsets = [0, 72], sizes = [24, 8], strides = [1, 1]} : vector<24x128xf32> to vector<24x8xf32>
    %89 = arith.truncf %86 : vector<24x8xf32> to vector<24x8xbf16>
    %90 = arith.truncf %87 : vector<8x24xf32> to vector<8x24xbf16>
    %cst_42 = arith.constant dense<0.000000e+00> : vector<24x24xf32>
    %91 = tpu.matmul %89, %90, %cst_42 {dimension_numbers = #tpu.dot_dimension_numbers<[1], [0], [0], [1], [0, 0, 1, 1], [], []>} : vector<24x8xbf16>, vector<8x24xbf16>, vector<24x24xf32> -> vector<24x24xf32>
    %92 = arith.addf %91, %13 : vector<24x24xf32>
    %cst_43 = arith.constant dense<0xFF800000> : vector<24xf32>
    %93 = vector.multi_reduction <maximumf>, %92, %cst_43 [1] : vector<24x24xf32> to vector<24xf32>
    %94 = vector.shape_cast %93 : vector<24xf32> to vector<24x1xf32>
    %95 = vector.broadcast %94 : vector<24x1xf32> to vector<24x24xf32>
    %96 = arith.subf %92, %95 : vector<24x24xf32>
    %97 = math.exp %96 : vector<24x24xf32>
    %cst_44 = arith.constant dense<0.000000e+00> : vector<24xf32>
    %98 = vector.multi_reduction <add>, %97, %cst_44 [1] : vector<24x24xf32> to vector<24xf32>
    %99 = vector.shape_cast %98 : vector<24xf32> to vector<24x1xf32>
    %100 = tpu.reciprocal %99 {approx = true} : vector<24x1xf32> -> vector<24x1xf32>
    %101 = vector.broadcast %100 : vector<24x1xf32> to vector<24x24xf32>
    %102 = arith.mulf %97, %101 : vector<24x24xf32>
    %103 = arith.truncf %102 : vector<24x24xf32> to vector<24x24xbf16>
    %104 = arith.truncf %88 : vector<24x8xf32> to vector<24x8xbf16>
    %cst_45 = arith.constant dense<0.000000e+00> : vector<24x8xf32>
    %105 = tpu.matmul %103, %104, %cst_45 {dimension_numbers = #tpu.dot_dimension_numbers<[1], [0], [0], [1], [0, 0, 1, 1], [], []>} : vector<24x24xbf16>, vector<24x8xbf16>, vector<24x8xf32> -> vector<24x8xf32>
    %106 = vector.extract_strided_slice %63 {offsets = [0, 16], sizes = [24, 8], strides = [1, 1]} : vector<24x128xf32> to vector<24x8xf32>
    %107 = vector.extract_strided_slice %65 {offsets = [16, 0], sizes = [8, 24], strides = [1, 1]} : vector<32x24xf32> to vector<8x24xf32>
    %108 = vector.extract_strided_slice %63 {offsets = [0, 80], sizes = [24, 8], strides = [1, 1]} : vector<24x128xf32> to vector<24x8xf32>
    %109 = arith.truncf %106 : vector<24x8xf32> to vector<24x8xbf16>
    %110 = arith.truncf %107 : vector<8x24xf32> to vector<8x24xbf16>
    %cst_46 = arith.constant dense<0.000000e+00> : vector<24x24xf32>
    %111 = tpu.matmul %109, %110, %cst_46 {dimension_numbers = #tpu.dot_dimension_numbers<[1], [0], [0], [1], [0, 0, 1, 1], [], []>} : vector<24x8xbf16>, vector<8x24xbf16>, vector<24x24xf32> -> vector<24x24xf32>
    %112 = arith.addf %111, %13 : vector<24x24xf32>
    %cst_47 = arith.constant dense<0xFF800000> : vector<24xf32>
    %113 = vector.multi_reduction <maximumf>, %112, %cst_47 [1] : vector<24x24xf32> to vector<24xf32>
    %114 = vector.shape_cast %113 : vector<24xf32> to vector<24x1xf32>
    %115 = vector.broadcast %114 : vector<24x1xf32> to vector<24x24xf32>
    %116 = arith.subf %112, %115 : vector<24x24xf32>
    %117 = math.exp %116 : vector<24x24xf32>
    %cst_48 = arith.constant dense<0.000000e+00> : vector<24xf32>
    %118 = vector.multi_reduction <add>, %117, %cst_48 [1] : vector<24x24xf32> to vector<24xf32>
    %119 = vector.shape_cast %118 : vector<24xf32> to vector<24x1xf32>
    %120 = tpu.reciprocal %119 {approx = true} : vector<24x1xf32> -> vector<24x1xf32>
    %121 = vector.broadcast %120 : vector<24x1xf32> to vector<24x24xf32>
    %122 = arith.mulf %117, %121 : vector<24x24xf32>
    %123 = arith.truncf %122 : vector<24x24xf32> to vector<24x24xbf16>
    %124 = arith.truncf %108 : vector<24x8xf32> to vector<24x8xbf16>
    %cst_49 = arith.constant dense<0.000000e+00> : vector<24x8xf32>
    %125 = tpu.matmul %123, %124, %cst_49 {dimension_numbers = #tpu.dot_dimension_numbers<[1], [0], [0], [1], [0, 0, 1, 1], [], []>} : vector<24x24xbf16>, vector<24x8xbf16>, vector<24x8xf32> -> vector<24x8xf32>
    %126 = vector.extract_strided_slice %63 {offsets = [0, 24], sizes = [24, 8], strides = [1, 1]} : vector<24x128xf32> to vector<24x8xf32>
    %127 = vector.extract_strided_slice %65 {offsets = [24, 0], sizes = [8, 24], strides = [1, 1]} : vector<32x24xf32> to vector<8x24xf32>
    %128 = vector.extract_strided_slice %63 {offsets = [0, 88], sizes = [24, 8], strides = [1, 1]} : vector<24x128xf32> to vector<24x8xf32>
    %129 = arith.truncf %126 : vector<24x8xf32> to vector<24x8xbf16>
    %130 = arith.truncf %127 : vector<8x24xf32> to vector<8x24xbf16>
    %cst_50 = arith.constant dense<0.000000e+00> : vector<24x24xf32>
    %131 = tpu.matmul %129, %130, %cst_50 {dimension_numbers = #tpu.dot_dimension_numbers<[1], [0], [0], [1], [0, 0, 1, 1], [], []>} : vector<24x8xbf16>, vector<8x24xbf16>, vector<24x24xf32> -> vector<24x24xf32>
    %132 = arith.addf %131, %13 : vector<24x24xf32>
    %cst_51 = arith.constant dense<0xFF800000> : vector<24xf32>
    %133 = vector.multi_reduction <maximumf>, %132, %cst_51 [1] : vector<24x24xf32> to vector<24xf32>
    %134 = vector.shape_cast %133 : vector<24xf32> to vector<24x1xf32>
    %135 = vector.broadcast %134 : vector<24x1xf32> to vector<24x24xf32>
    %136 = arith.subf %132, %135 : vector<24x24xf32>
    %137 = math.exp %136 : vector<24x24xf32>
    %cst_52 = arith.constant dense<0.000000e+00> : vector<24xf32>
    %138 = vector.multi_reduction <add>, %137, %cst_52 [1] : vector<24x24xf32> to vector<24xf32>
    %139 = vector.shape_cast %138 : vector<24xf32> to vector<24x1xf32>
    %140 = tpu.reciprocal %139 {approx = true} : vector<24x1xf32> -> vector<24x1xf32>
    %141 = vector.broadcast %140 : vector<24x1xf32> to vector<24x24xf32>
    %142 = arith.mulf %137, %141 : vector<24x24xf32>
    %143 = arith.truncf %142 : vector<24x24xf32> to vector<24x24xbf16>
    %144 = arith.truncf %128 : vector<24x8xf32> to vector<24x8xbf16>
    %cst_53 = arith.constant dense<0.000000e+00> : vector<24x8xf32>
    %145 = tpu.matmul %143, %144, %cst_53 {dimension_numbers = #tpu.dot_dimension_numbers<[1], [0], [0], [1], [0, 0, 1, 1], [], []>} : vector<24x24xbf16>, vector<24x8xbf16>, vector<24x8xf32> -> vector<24x8xf32>
    %146 = tpu.concatenate %85, %105, %125, %145 in 1 : vector<24x8xf32>, vector<24x8xf32>, vector<24x8xf32>, vector<24x8xf32> -> vector<24x32xf32>
    %c512 = arith.constant 512 : index
    %c0_54 = arith.constant 0 : index
    %147 = vector.load %arg1[%c512, %c0_54] : memref<3584x128xbf16, #tpu.memory_space<vmem>>, vector<32x128xbf16>
    %148 = arith.truncf %146 : vector<24x32xf32> to vector<24x32xbf16>
    %cst_55 = arith.constant dense<0.000000e+00> : vector<24x128xf32>
    %149 = tpu.matmul %148, %147, %cst_55 {dimension_numbers = #tpu.dot_dimension_numbers<[1], [0], [0], [1], [0, 0, 1, 1], [], []>} : vector<24x32xbf16>, vector<32x128xbf16>, vector<24x128xf32> -> vector<24x128xf32>
    %c4 = arith.constant 4 : index
    %c0_56 = arith.constant 0 : index
    %150 = vector.load %arg2[%c4, %c0_56] : memref<56x128xf32, #tpu.memory_space<vmem>>, vector<1x128xf32>
    %151 = vector.broadcast %150 : vector<1x128xf32> to vector<24x128xf32>
    %152 = arith.addf %149, %151 : vector<24x128xf32>
    %153 = arith.addf %57, %152 : vector<24x128xf32>
    %cst_57 = arith.constant dense<0.000000e+00> : vector<24xf32>
    %154 = vector.multi_reduction <add>, %153, %cst_57 [1] : vector<24x128xf32> to vector<24xf32>
    %155 = vector.shape_cast %154 : vector<24xf32> to vector<24x1xf32>
    %cst_58 = arith.constant 3.125000e-02 : f32
    %156 = vector.broadcast %cst_58 : f32 to vector<24x1xf32>
    %157 = arith.mulf %155, %156 : vector<24x1xf32>
    %158 = arith.mulf %153, %153 : vector<24x128xf32>
    %cst_59 = arith.constant dense<0.000000e+00> : vector<24xf32>
    %159 = vector.multi_reduction <add>, %158, %cst_59 [1] : vector<24x128xf32> to vector<24xf32>
    %160 = vector.shape_cast %159 : vector<24xf32> to vector<24x1xf32>
    %cst_60 = arith.constant 3.125000e-02 : f32
    %161 = vector.broadcast %cst_60 : f32 to vector<24x1xf32>
    %162 = arith.mulf %160, %161 : vector<24x1xf32>
    %163 = vector.broadcast %157 : vector<24x1xf32> to vector<24x128xf32>
    %164 = arith.subf %153, %163 : vector<24x128xf32>
    %165 = arith.mulf %157, %157 : vector<24x1xf32>
    %166 = arith.subf %162, %165 : vector<24x1xf32>
    %cst_61 = arith.constant 9.99999974E-6 : f32
    %167 = vector.broadcast %cst_61 : f32 to vector<24x1xf32>
    %168 = arith.addf %166, %167 : vector<24x1xf32>
    %169 = math.rsqrt %168 : vector<24x1xf32>
    %170 = vector.broadcast %169 : vector<24x1xf32> to vector<24x128xf32>
    %171 = arith.mulf %164, %170 : vector<24x128xf32>
    %c5 = arith.constant 5 : index
    %c0_62 = arith.constant 0 : index
    %172 = vector.load %arg2[%c5, %c0_62] : memref<56x128xf32, #tpu.memory_space<vmem>>, vector<1x128xf32>
    %173 = vector.broadcast %172 : vector<1x128xf32> to vector<24x128xf32>
    %174 = arith.mulf %171, %173 : vector<24x128xf32>
    %c6 = arith.constant 6 : index
    %c0_63 = arith.constant 0 : index
    %175 = vector.load %arg2[%c6, %c0_63] : memref<56x128xf32, #tpu.memory_space<vmem>>, vector<1x128xf32>
    %176 = vector.broadcast %175 : vector<1x128xf32> to vector<24x128xf32>
    %177 = arith.addf %174, %176 : vector<24x128xf32>
    %c640 = arith.constant 640 : index
    %c0_64 = arith.constant 0 : index
    %178 = vector.load %arg1[%c640, %c0_64] : memref<3584x128xbf16, #tpu.memory_space<vmem>>, vector<128x128xbf16>
    %179 = arith.truncf %177 : vector<24x128xf32> to vector<24x128xbf16>
    %cst_65 = arith.constant dense<0.000000e+00> : vector<24x128xf32>
    %180 = tpu.matmul %179, %178, %cst_65 {dimension_numbers = #tpu.dot_dimension_numbers<[1], [0], [0], [1], [0, 0, 1, 1], [], []>} : vector<24x128xbf16>, vector<128x128xbf16>, vector<24x128xf32> -> vector<24x128xf32>
    %c7 = arith.constant 7 : index
    %c0_66 = arith.constant 0 : index
    %181 = vector.load %arg2[%c7, %c0_66] : memref<56x128xf32, #tpu.memory_space<vmem>>, vector<1x128xf32>
    %182 = vector.broadcast %181 : vector<1x128xf32> to vector<24x128xf32>
    %183 = arith.addf %180, %182 : vector<24x128xf32>
    %cst_67 = arith.constant 5.000000e-01 : f32
    %184 = vector.broadcast %cst_67 : f32 to vector<24x128xf32>
    %185 = arith.mulf %184, %183 : vector<24x128xf32>
    %cst_68 = arith.constant 0.707106769 : f32
    %186 = vector.broadcast %cst_68 : f32 to vector<24x128xf32>
    %187 = arith.mulf %183, %186 : vector<24x128xf32>
    %188 = math.erf %187 : vector<24x128xf32>
    %cst_69 = arith.constant 1.000000e+00 : f32
    %189 = vector.broadcast %cst_69 : f32 to vector<24x128xf32>
    %190 = arith.addf %189, %188 : vector<24x128xf32>
    %191 = arith.mulf %185, %190 : vector<24x128xf32>
    %c768 = arith.constant 768 : index
    %c0_70 = arith.constant 0 : index
    %192 = vector.load %arg1[%c768, %c0_70] : memref<3584x128xbf16, #tpu.memory_space<vmem>>, vector<128x128xbf16>
    %193 = arith.truncf %191 : vector<24x128xf32> to vector<24x128xbf16>
    %cst_71 = arith.constant dense<0.000000e+00> : vector<24x128xf32>
    %194 = tpu.matmul %193, %192, %cst_71 {dimension_numbers = #tpu.dot_dimension_numbers<[1], [0], [0], [1], [0, 0, 1, 1], [], []>} : vector<24x128xbf16>, vector<128x128xbf16>, vector<24x128xf32> -> vector<24x128xf32>
    %c8 = arith.constant 8 : index
    %c0_72 = arith.constant 0 : index
    %195 = vector.load %arg2[%c8, %c0_72] : memref<56x128xf32, #tpu.memory_space<vmem>>, vector<1x128xf32>
    %196 = vector.broadcast %195 : vector<1x128xf32> to vector<24x128xf32>
    %197 = arith.addf %194, %196 : vector<24x128xf32>
    %198 = arith.addf %177, %197 : vector<24x128xf32>
    %cst_73 = arith.constant dense<0.000000e+00> : vector<24xf32>
    %199 = vector.multi_reduction <add>, %198, %cst_73 [1] : vector<24x128xf32> to vector<24xf32>
    %200 = vector.shape_cast %199 : vector<24xf32> to vector<24x1xf32>
    %cst_74 = arith.constant 3.125000e-02 : f32
    %201 = vector.broadcast %cst_74 : f32 to vector<24x1xf32>
    %202 = arith.mulf %200, %201 : vector<24x1xf32>
    %203 = arith.mulf %198, %198 : vector<24x128xf32>
    %cst_75 = arith.constant dense<0.000000e+00> : vector<24xf32>
    %204 = vector.multi_reduction <add>, %203, %cst_75 [1] : vector<24x128xf32> to vector<24xf32>
    %205 = vector.shape_cast %204 : vector<24xf32> to vector<24x1xf32>
    %cst_76 = arith.constant 3.125000e-02 : f32
    %206 = vector.broadcast %cst_76 : f32 to vector<24x1xf32>
    %207 = arith.mulf %205, %206 : vector<24x1xf32>
    %208 = vector.broadcast %202 : vector<24x1xf32> to vector<24x128xf32>
    %209 = arith.subf %198, %208 : vector<24x128xf32>
    %210 = arith.mulf %202, %202 : vector<24x1xf32>
    %211 = arith.subf %207, %210 : vector<24x1xf32>
    %cst_77 = arith.constant 9.99999974E-6 : f32
    %212 = vector.broadcast %cst_77 : f32 to vector<24x1xf32>
    %213 = arith.addf %211, %212 : vector<24x1xf32>
    %214 = math.rsqrt %213 : vector<24x1xf32>
    %215 = vector.broadcast %214 : vector<24x1xf32> to vector<24x128xf32>
    %216 = arith.mulf %209, %215 : vector<24x128xf32>
    %c9 = arith.constant 9 : index
    %c0_78 = arith.constant 0 : index
    %217 = vector.load %arg2[%c9, %c0_78] : memref<56x128xf32, #tpu.memory_space<vmem>>, vector<1x128xf32>
    %218 = vector.broadcast %217 : vector<1x128xf32> to vector<24x128xf32>
    %219 = arith.mulf %216, %218 : vector<24x128xf32>
    %c10 = arith.constant 10 : index
    %c0_79 = arith.constant 0 : index
    %220 = vector.load %arg2[%c10, %c0_79] : memref<56x128xf32, #tpu.memory_space<vmem>>, vector<1x128xf32>
    %221 = vector.broadcast %220 : vector<1x128xf32> to vector<24x128xf32>
    %222 = arith.addf %219, %221 : vector<24x128xf32>
    %c896 = arith.constant 896 : index
    %c0_80 = arith.constant 0 : index
    %223 = vector.load %arg1[%c896, %c0_80] : memref<3584x128xbf16, #tpu.memory_space<vmem>>, vector<128x128xbf16>
    %224 = arith.truncf %222 : vector<24x128xf32> to vector<24x128xbf16>
    %cst_81 = arith.constant dense<0.000000e+00> : vector<24x128xf32>
    %225 = tpu.matmul %224, %223, %cst_81 {dimension_numbers = #tpu.dot_dimension_numbers<[1], [0], [0], [1], [0, 0, 1, 1], [], []>} : vector<24x128xbf16>, vector<128x128xbf16>, vector<24x128xf32> -> vector<24x128xf32>
    %c11 = arith.constant 11 : index
    %c0_82 = arith.constant 0 : index
    %226 = vector.load %arg2[%c11, %c0_82] : memref<56x128xf32, #tpu.memory_space<vmem>>, vector<1x128xf32>
    %227 = vector.broadcast %226 : vector<1x128xf32> to vector<24x128xf32>
    %228 = arith.addf %225, %227 : vector<24x128xf32>
    %229 = vector.extract_strided_slice %228 {offsets = [0, 32], sizes = [24, 32], strides = [1, 1]} : vector<24x128xf32> to vector<24x32xf32>
    %230 = tpu.transpose %229, [1, 0] : vector<24x32xf32> -> vector<32x24xf32>
    %231 = vector.extract_strided_slice %228 {offsets = [0, 0], sizes = [24, 8], strides = [1, 1]} : vector<24x128xf32> to vector<24x8xf32>
    %232 = vector.extract_strided_slice %230 {offsets = [0, 0], sizes = [8, 24], strides = [1, 1]} : vector<32x24xf32> to vector<8x24xf32>
    %233 = vector.extract_strided_slice %228 {offsets = [0, 64], sizes = [24, 8], strides = [1, 1]} : vector<24x128xf32> to vector<24x8xf32>
    %234 = arith.truncf %231 : vector<24x8xf32> to vector<24x8xbf16>
    %235 = arith.truncf %232 : vector<8x24xf32> to vector<8x24xbf16>
    %cst_83 = arith.constant dense<0.000000e+00> : vector<24x24xf32>
    %236 = tpu.matmul %234, %235, %cst_83 {dimension_numbers = #tpu.dot_dimension_numbers<[1], [0], [0], [1], [0, 0, 1, 1], [], []>} : vector<24x8xbf16>, vector<8x24xbf16>, vector<24x24xf32> -> vector<24x24xf32>
    %237 = arith.addf %236, %13 : vector<24x24xf32>
    %cst_84 = arith.constant dense<0xFF800000> : vector<24xf32>
    %238 = vector.multi_reduction <maximumf>, %237, %cst_84 [1] : vector<24x24xf32> to vector<24xf32>
    %239 = vector.shape_cast %238 : vector<24xf32> to vector<24x1xf32>
    %240 = vector.broadcast %239 : vector<24x1xf32> to vector<24x24xf32>
    %241 = arith.subf %237, %240 : vector<24x24xf32>
    %242 = math.exp %241 : vector<24x24xf32>
    %cst_85 = arith.constant dense<0.000000e+00> : vector<24xf32>
    %243 = vector.multi_reduction <add>, %242, %cst_85 [1] : vector<24x24xf32> to vector<24xf32>
    %244 = vector.shape_cast %243 : vector<24xf32> to vector<24x1xf32>
    %245 = tpu.reciprocal %244 {approx = true} : vector<24x1xf32> -> vector<24x1xf32>
    %246 = vector.broadcast %245 : vector<24x1xf32> to vector<24x24xf32>
    %247 = arith.mulf %242, %246 : vector<24x24xf32>
    %248 = arith.truncf %247 : vector<24x24xf32> to vector<24x24xbf16>
    %249 = arith.truncf %233 : vector<24x8xf32> to vector<24x8xbf16>
    %cst_86 = arith.constant dense<0.000000e+00> : vector<24x8xf32>
    %250 = tpu.matmul %248, %249, %cst_86 {dimension_numbers = #tpu.dot_dimension_numbers<[1], [0], [0], [1], [0, 0, 1, 1], [], []>} : vector<24x24xbf16>, vector<24x8xbf16>, vector<24x8xf32> -> vector<24x8xf32>
    %251 = vector.extract_strided_slice %228 {offsets = [0, 8], sizes = [24, 8], strides = [1, 1]} : vector<24x128xf32> to vector<24x8xf32>
    %252 = vector.extract_strided_slice %230 {offsets = [8, 0], sizes = [8, 24], strides = [1, 1]} : vector<32x24xf32> to vector<8x24xf32>
    %253 = vector.extract_strided_slice %228 {offsets = [0, 72], sizes = [24, 8], strides = [1, 1]} : vector<24x128xf32> to vector<24x8xf32>
    %254 = arith.truncf %251 : vector<24x8xf32> to vector<24x8xbf16>
    %255 = arith.truncf %252 : vector<8x24xf32> to vector<8x24xbf16>
    %cst_87 = arith.constant dense<0.000000e+00> : vector<24x24xf32>
    %256 = tpu.matmul %254, %255, %cst_87 {dimension_numbers = #tpu.dot_dimension_numbers<[1], [0], [0], [1], [0, 0, 1, 1], [], []>} : vector<24x8xbf16>, vector<8x24xbf16>, vector<24x24xf32> -> vector<24x24xf32>
    %257 = arith.addf %256, %13 : vector<24x24xf32>
    %cst_88 = arith.constant dense<0xFF800000> : vector<24xf32>
    %258 = vector.multi_reduction <maximumf>, %257, %cst_88 [1] : vector<24x24xf32> to vector<24xf32>
    %259 = vector.shape_cast %258 : vector<24xf32> to vector<24x1xf32>
    %260 = vector.broadcast %259 : vector<24x1xf32> to vector<24x24xf32>
    %261 = arith.subf %257, %260 : vector<24x24xf32>
    %262 = math.exp %261 : vector<24x24xf32>
    %cst_89 = arith.constant dense<0.000000e+00> : vector<24xf32>
    %263 = vector.multi_reduction <add>, %262, %cst_89 [1] : vector<24x24xf32> to vector<24xf32>
    %264 = vector.shape_cast %263 : vector<24xf32> to vector<24x1xf32>
    %265 = tpu.reciprocal %264 {approx = true} : vector<24x1xf32> -> vector<24x1xf32>
    %266 = vector.broadcast %265 : vector<24x1xf32> to vector<24x24xf32>
    %267 = arith.mulf %262, %266 : vector<24x24xf32>
    %268 = arith.truncf %267 : vector<24x24xf32> to vector<24x24xbf16>
    %269 = arith.truncf %253 : vector<24x8xf32> to vector<24x8xbf16>
    %cst_90 = arith.constant dense<0.000000e+00> : vector<24x8xf32>
    %270 = tpu.matmul %268, %269, %cst_90 {dimension_numbers = #tpu.dot_dimension_numbers<[1], [0], [0], [1], [0, 0, 1, 1], [], []>} : vector<24x24xbf16>, vector<24x8xbf16>, vector<24x8xf32> -> vector<24x8xf32>
    %271 = vector.extract_strided_slice %228 {offsets = [0, 16], sizes = [24, 8], strides = [1, 1]} : vector<24x128xf32> to vector<24x8xf32>
    %272 = vector.extract_strided_slice %230 {offsets = [16, 0], sizes = [8, 24], strides = [1, 1]} : vector<32x24xf32> to vector<8x24xf32>
    %273 = vector.extract_strided_slice %228 {offsets = [0, 80], sizes = [24, 8], strides = [1, 1]} : vector<24x128xf32> to vector<24x8xf32>
    %274 = arith.truncf %271 : vector<24x8xf32> to vector<24x8xbf16>
    %275 = arith.truncf %272 : vector<8x24xf32> to vector<8x24xbf16>
    %cst_91 = arith.constant dense<0.000000e+00> : vector<24x24xf32>
    %276 = tpu.matmul %274, %275, %cst_91 {dimension_numbers = #tpu.dot_dimension_numbers<[1], [0], [0], [1], [0, 0, 1, 1], [], []>} : vector<24x8xbf16>, vector<8x24xbf16>, vector<24x24xf32> -> vector<24x24xf32>
    %277 = arith.addf %276, %13 : vector<24x24xf32>
    %cst_92 = arith.constant dense<0xFF800000> : vector<24xf32>
    %278 = vector.multi_reduction <maximumf>, %277, %cst_92 [1] : vector<24x24xf32> to vector<24xf32>
    %279 = vector.shape_cast %278 : vector<24xf32> to vector<24x1xf32>
    %280 = vector.broadcast %279 : vector<24x1xf32> to vector<24x24xf32>
    %281 = arith.subf %277, %280 : vector<24x24xf32>
    %282 = math.exp %281 : vector<24x24xf32>
    %cst_93 = arith.constant dense<0.000000e+00> : vector<24xf32>
    %283 = vector.multi_reduction <add>, %282, %cst_93 [1] : vector<24x24xf32> to vector<24xf32>
    %284 = vector.shape_cast %283 : vector<24xf32> to vector<24x1xf32>
    %285 = tpu.reciprocal %284 {approx = true} : vector<24x1xf32> -> vector<24x1xf32>
    %286 = vector.broadcast %285 : vector<24x1xf32> to vector<24x24xf32>
    %287 = arith.mulf %282, %286 : vector<24x24xf32>
    %288 = arith.truncf %287 : vector<24x24xf32> to vector<24x24xbf16>
    %289 = arith.truncf %273 : vector<24x8xf32> to vector<24x8xbf16>
    %cst_94 = arith.constant dense<0.000000e+00> : vector<24x8xf32>
    %290 = tpu.matmul %288, %289, %cst_94 {dimension_numbers = #tpu.dot_dimension_numbers<[1], [0], [0], [1], [0, 0, 1, 1], [], []>} : vector<24x24xbf16>, vector<24x8xbf16>, vector<24x8xf32> -> vector<24x8xf32>
    %291 = vector.extract_strided_slice %228 {offsets = [0, 24], sizes = [24, 8], strides = [1, 1]} : vector<24x128xf32> to vector<24x8xf32>
    %292 = vector.extract_strided_slice %230 {offsets = [24, 0], sizes = [8, 24], strides = [1, 1]} : vector<32x24xf32> to vector<8x24xf32>
    %293 = vector.extract_strided_slice %228 {offsets = [0, 88], sizes = [24, 8], strides = [1, 1]} : vector<24x128xf32> to vector<24x8xf32>
    %294 = arith.truncf %291 : vector<24x8xf32> to vector<24x8xbf16>
    %295 = arith.truncf %292 : vector<8x24xf32> to vector<8x24xbf16>
    %cst_95 = arith.constant dense<0.000000e+00> : vector<24x24xf32>
    %296 = tpu.matmul %294, %295, %cst_95 {dimension_numbers = #tpu.dot_dimension_numbers<[1], [0], [0], [1], [0, 0, 1, 1], [], []>} : vector<24x8xbf16>, vector<8x24xbf16>, vector<24x24xf32> -> vector<24x24xf32>
    %297 = arith.addf %296, %13 : vector<24x24xf32>
    %cst_96 = arith.constant dense<0xFF800000> : vector<24xf32>
    %298 = vector.multi_reduction <maximumf>, %297, %cst_96 [1] : vector<24x24xf32> to vector<24xf32>
    %299 = vector.shape_cast %298 : vector<24xf32> to vector<24x1xf32>
    %300 = vector.broadcast %299 : vector<24x1xf32> to vector<24x24xf32>
    %301 = arith.subf %297, %300 : vector<24x24xf32>
    %302 = math.exp %301 : vector<24x24xf32>
    %cst_97 = arith.constant dense<0.000000e+00> : vector<24xf32>
    %303 = vector.multi_reduction <add>, %302, %cst_97 [1] : vector<24x24xf32> to vector<24xf32>
    %304 = vector.shape_cast %303 : vector<24xf32> to vector<24x1xf32>
    %305 = tpu.reciprocal %304 {approx = true} : vector<24x1xf32> -> vector<24x1xf32>
    %306 = vector.broadcast %305 : vector<24x1xf32> to vector<24x24xf32>
    %307 = arith.mulf %302, %306 : vector<24x24xf32>
    %308 = arith.truncf %307 : vector<24x24xf32> to vector<24x24xbf16>
    %309 = arith.truncf %293 : vector<24x8xf32> to vector<24x8xbf16>
    %cst_98 = arith.constant dense<0.000000e+00> : vector<24x8xf32>
    %310 = tpu.matmul %308, %309, %cst_98 {dimension_numbers = #tpu.dot_dimension_numbers<[1], [0], [0], [1], [0, 0, 1, 1], [], []>} : vector<24x24xbf16>, vector<24x8xbf16>, vector<24x8xf32> -> vector<24x8xf32>
    %311 = tpu.concatenate %250, %270, %290, %310 in 1 : vector<24x8xf32>, vector<24x8xf32>, vector<24x8xf32>, vector<24x8xf32> -> vector<24x32xf32>
    %c1024 = arith.constant 1024 : index
    %c0_99 = arith.constant 0 : index
    %312 = vector.load %arg1[%c1024, %c0_99] : memref<3584x128xbf16, #tpu.memory_space<vmem>>, vector<32x128xbf16>
    %313 = arith.truncf %311 : vector<24x32xf32> to vector<24x32xbf16>
    %cst_100 = arith.constant dense<0.000000e+00> : vector<24x128xf32>
    %314 = tpu.matmul %313, %312, %cst_100 {dimension_numbers = #tpu.dot_dimension_numbers<[1], [0], [0], [1], [0, 0, 1, 1], [], []>} : vector<24x32xbf16>, vector<32x128xbf16>, vector<24x128xf32> -> vector<24x128xf32>
    %c12 = arith.constant 12 : index
    %c0_101 = arith.constant 0 : index
    %315 = vector.load %arg2[%c12, %c0_101] : memref<56x128xf32, #tpu.memory_space<vmem>>, vector<1x128xf32>
    %316 = vector.broadcast %315 : vector<1x128xf32> to vector<24x128xf32>
    %317 = arith.addf %314, %316 : vector<24x128xf32>
    %318 = arith.addf %222, %317 : vector<24x128xf32>
    %cst_102 = arith.constant dense<0.000000e+00> : vector<24xf32>
    %319 = vector.multi_reduction <add>, %318, %cst_102 [1] : vector<24x128xf32> to vector<24xf32>
    %320 = vector.shape_cast %319 : vector<24xf32> to vector<24x1xf32>
    %cst_103 = arith.constant 3.125000e-02 : f32
    %321 = vector.broadcast %cst_103 : f32 to vector<24x1xf32>
    %322 = arith.mulf %320, %321 : vector<24x1xf32>
    %323 = arith.mulf %318, %318 : vector<24x128xf32>
    %cst_104 = arith.constant dense<0.000000e+00> : vector<24xf32>
    %324 = vector.multi_reduction <add>, %323, %cst_104 [1] : vector<24x128xf32> to vector<24xf32>
    %325 = vector.shape_cast %324 : vector<24xf32> to vector<24x1xf32>
    %cst_105 = arith.constant 3.125000e-02 : f32
    %326 = vector.broadcast %cst_105 : f32 to vector<24x1xf32>
    %327 = arith.mulf %325, %326 : vector<24x1xf32>
    %328 = vector.broadcast %322 : vector<24x1xf32> to vector<24x128xf32>
    %329 = arith.subf %318, %328 : vector<24x128xf32>
    %330 = arith.mulf %322, %322 : vector<24x1xf32>
    %331 = arith.subf %327, %330 : vector<24x1xf32>
    %cst_106 = arith.constant 9.99999974E-6 : f32
    %332 = vector.broadcast %cst_106 : f32 to vector<24x1xf32>
    %333 = arith.addf %331, %332 : vector<24x1xf32>
    %334 = math.rsqrt %333 : vector<24x1xf32>
    %335 = vector.broadcast %334 : vector<24x1xf32> to vector<24x128xf32>
    %336 = arith.mulf %329, %335 : vector<24x128xf32>
    %c13 = arith.constant 13 : index
    %c0_107 = arith.constant 0 : index
    %337 = vector.load %arg2[%c13, %c0_107] : memref<56x128xf32, #tpu.memory_space<vmem>>, vector<1x128xf32>
    %338 = vector.broadcast %337 : vector<1x128xf32> to vector<24x128xf32>
    %339 = arith.mulf %336, %338 : vector<24x128xf32>
    %c14 = arith.constant 14 : index
    %c0_108 = arith.constant 0 : index
    %340 = vector.load %arg2[%c14, %c0_108] : memref<56x128xf32, #tpu.memory_space<vmem>>, vector<1x128xf32>
    %341 = vector.broadcast %340 : vector<1x128xf32> to vector<24x128xf32>
    %342 = arith.addf %339, %341 : vector<24x128xf32>
    %c1152 = arith.constant 1152 : index
    %c0_109 = arith.constant 0 : index
    %343 = vector.load %arg1[%c1152, %c0_109] : memref<3584x128xbf16, #tpu.memory_space<vmem>>, vector<128x128xbf16>
    %344 = arith.truncf %342 : vector<24x128xf32> to vector<24x128xbf16>
    %cst_110 = arith.constant dense<0.000000e+00> : vector<24x128xf32>
    %345 = tpu.matmul %344, %343, %cst_110 {dimension_numbers = #tpu.dot_dimension_numbers<[1], [0], [0], [1], [0, 0, 1, 1], [], []>} : vector<24x128xbf16>, vector<128x128xbf16>, vector<24x128xf32> -> vector<24x128xf32>
    %c15 = arith.constant 15 : index
    %c0_111 = arith.constant 0 : index
    %346 = vector.load %arg2[%c15, %c0_111] : memref<56x128xf32, #tpu.memory_space<vmem>>, vector<1x128xf32>
    %347 = vector.broadcast %346 : vector<1x128xf32> to vector<24x128xf32>
    %348 = arith.addf %345, %347 : vector<24x128xf32>
    %cst_112 = arith.constant 5.000000e-01 : f32
    %349 = vector.broadcast %cst_112 : f32 to vector<24x128xf32>
    %350 = arith.mulf %349, %348 : vector<24x128xf32>
    %cst_113 = arith.constant 0.707106769 : f32
    %351 = vector.broadcast %cst_113 : f32 to vector<24x128xf32>
    %352 = arith.mulf %348, %351 : vector<24x128xf32>
    %353 = math.erf %352 : vector<24x128xf32>
    %cst_114 = arith.constant 1.000000e+00 : f32
    %354 = vector.broadcast %cst_114 : f32 to vector<24x128xf32>
    %355 = arith.addf %354, %353 : vector<24x128xf32>
    %356 = arith.mulf %350, %355 : vector<24x128xf32>
    %c1280 = arith.constant 1280 : index
    %c0_115 = arith.constant 0 : index
    %357 = vector.load %arg1[%c1280, %c0_115] : memref<3584x128xbf16, #tpu.memory_space<vmem>>, vector<128x128xbf16>
    %358 = arith.truncf %356 : vector<24x128xf32> to vector<24x128xbf16>
    %cst_116 = arith.constant dense<0.000000e+00> : vector<24x128xf32>
    %359 = tpu.matmul %358, %357, %cst_116 {dimension_numbers = #tpu.dot_dimension_numbers<[1], [0], [0], [1], [0, 0, 1, 1], [], []>} : vector<24x128xbf16>, vector<128x128xbf16>, vector<24x128xf32> -> vector<24x128xf32>
    %c16 = arith.constant 16 : index
    %c0_117 = arith.constant 0 : index
    %360 = vector.load %arg2[%c16, %c0_117] : memref<56x128xf32, #tpu.memory_space<vmem>>, vector<1x128xf32>
    %361 = vector.broadcast %360 : vector<1x128xf32> to vector<24x128xf32>
    %362 = arith.addf %359, %361 : vector<24x128xf32>
    %363 = arith.addf %342, %362 : vector<24x128xf32>
    %cst_118 = arith.constant dense<0.000000e+00> : vector<24xf32>
    %364 = vector.multi_reduction <add>, %363, %cst_118 [1] : vector<24x128xf32> to vector<24xf32>
    %365 = vector.shape_cast %364 : vector<24xf32> to vector<24x1xf32>
    %cst_119 = arith.constant 3.125000e-02 : f32
    %366 = vector.broadcast %cst_119 : f32 to vector<24x1xf32>
    %367 = arith.mulf %365, %366 : vector<24x1xf32>
    %368 = arith.mulf %363, %363 : vector<24x128xf32>
    %cst_120 = arith.constant dense<0.000000e+00> : vector<24xf32>
    %369 = vector.multi_reduction <add>, %368, %cst_120 [1] : vector<24x128xf32> to vector<24xf32>
    %370 = vector.shape_cast %369 : vector<24xf32> to vector<24x1xf32>
    %cst_121 = arith.constant 3.125000e-02 : f32
    %371 = vector.broadcast %cst_121 : f32 to vector<24x1xf32>
    %372 = arith.mulf %370, %371 : vector<24x1xf32>
    %373 = vector.broadcast %367 : vector<24x1xf32> to vector<24x128xf32>
    %374 = arith.subf %363, %373 : vector<24x128xf32>
    %375 = arith.mulf %367, %367 : vector<24x1xf32>
    %376 = arith.subf %372, %375 : vector<24x1xf32>
    %cst_122 = arith.constant 9.99999974E-6 : f32
    %377 = vector.broadcast %cst_122 : f32 to vector<24x1xf32>
    %378 = arith.addf %376, %377 : vector<24x1xf32>
    %379 = math.rsqrt %378 : vector<24x1xf32>
    %380 = vector.broadcast %379 : vector<24x1xf32> to vector<24x128xf32>
    %381 = arith.mulf %374, %380 : vector<24x128xf32>
    %c17 = arith.constant 17 : index
    %c0_123 = arith.constant 0 : index
    %382 = vector.load %arg2[%c17, %c0_123] : memref<56x128xf32, #tpu.memory_space<vmem>>, vector<1x128xf32>
    %383 = vector.broadcast %382 : vector<1x128xf32> to vector<24x128xf32>
    %384 = arith.mulf %381, %383 : vector<24x128xf32>
    %c18 = arith.constant 18 : index
    %c0_124 = arith.constant 0 : index
    %385 = vector.load %arg2[%c18, %c0_124] : memref<56x128xf32, #tpu.memory_space<vmem>>, vector<1x128xf32>
    %386 = vector.broadcast %385 : vector<1x128xf32> to vector<24x128xf32>
    %387 = arith.addf %384, %386 : vector<24x128xf32>
    %cst_125 = arith.constant dense<0.000000e+00> : vector<8x128xf32>
    %388 = tpu.matmul %26, %387, %cst_125 {dimension_numbers = #tpu.dot_dimension_numbers<[1], [0], [0], [1], [0, 0, 1, 1], [], []>} : vector<8x24xf32>, vector<24x128xf32>, vector<8x128xf32> -> vector<8x128xf32>
    %c1408 = arith.constant 1408 : index
    %c0_126 = arith.constant 0 : index
    %389 = vector.load %arg1[%c1408, %c0_126] : memref<3584x128xbf16, #tpu.memory_space<vmem>>, vector<128x128xbf16>
    %390 = arith.truncf %388 : vector<8x128xf32> to vector<8x128xbf16>
    %cst_127 = arith.constant dense<0.000000e+00> : vector<8x128xf32>
    %391 = tpu.matmul %390, %389, %cst_127 {dimension_numbers = #tpu.dot_dimension_numbers<[1], [0], [0], [1], [0, 0, 1, 1], [], []>} : vector<8x128xbf16>, vector<128x128xbf16>, vector<8x128xf32> -> vector<8x128xf32>
    %c19 = arith.constant 19 : index
    %c0_128 = arith.constant 0 : index
    %392 = vector.load %arg2[%c19, %c0_128] : memref<56x128xf32, #tpu.memory_space<vmem>>, vector<1x128xf32>
    %393 = vector.broadcast %392 : vector<1x128xf32> to vector<8x128xf32>
    %394 = arith.addf %391, %393 : vector<8x128xf32>
    %c0_129 = arith.constant 0 : index
    %c0_130 = arith.constant 0 : index
    %c0_131 = arith.constant 0 : index
    %395 = vector.load %arg10[%c0_129, %c0_130, %c0_131] : memref<1x8x128xf32, #tpu.memory_space<vmem>>, vector<1x8x128xf32>
    %396 = vector.shape_cast %395 : vector<1x8x128xf32> to vector<8x128xf32>
    %397 = vector.shape_cast %394 : vector<8x128xf32> to vector<1x8x128xf32>
    tpu.vector_store %arg10[%c0_129, %c0_130, %c0_131], %397 {strides = array<i32>} : memref<1x8x128xf32, #tpu.memory_space<vmem>>, vector<1x8x128xf32>,
    %c1536 = arith.constant 1536 : index
    %c0_132 = arith.constant 0 : index
    %398 = vector.load %arg1[%c1536, %c0_132] : memref<3584x128xbf16, #tpu.memory_space<vmem>>, vector<128x128xbf16>
    %399 = arith.truncf %394 : vector<8x128xf32> to vector<8x128xbf16>
    %cst_133 = arith.constant dense<0.000000e+00> : vector<8x128xf32>
    %400 = tpu.matmul %399, %398, %cst_133 {dimension_numbers = #tpu.dot_dimension_numbers<[1], [0], [0], [1], [0, 0, 1, 1], [], []>} : vector<8x128xbf16>, vector<128x128xbf16>, vector<8x128xf32> -> vector<8x128xf32>
    %c20 = arith.constant 20 : index
    %c0_134 = arith.constant 0 : index
    %401 = vector.load %arg2[%c20, %c0_134] : memref<56x128xf32, #tpu.memory_space<vmem>>, vector<1x128xf32>
    %402 = vector.broadcast %401 : vector<1x128xf32> to vector<8x128xf32>
    %403 = arith.addf %400, %402 : vector<8x128xf32>
    %404 = math.tanh %403 : vector<8x128xf32>
    %c1664 = arith.constant 1664 : index
    %c0_135 = arith.constant 0 : index
    %405 = vector.load %arg1[%c1664, %c0_135] : memref<3584x128xbf16, #tpu.memory_space<vmem>>, vector<128x128xbf16>
    %406 = arith.truncf %404 : vector<8x128xf32> to vector<8x128xbf16>
    %cst_136 = arith.constant dense<0.000000e+00> : vector<8x128xf32>
    %407 = tpu.matmul %406, %405, %cst_136 {dimension_numbers = #tpu.dot_dimension_numbers<[1], [0], [0], [1], [0, 0, 1, 1], [], []>} : vector<8x128xbf16>, vector<128x128xbf16>, vector<8x128xf32> -> vector<8x128xf32>
    %c21 = arith.constant 21 : index
    %c0_137 = arith.constant 0 : index
    %408 = vector.load %arg2[%c21, %c0_137] : memref<56x128xf32, #tpu.memory_space<vmem>>, vector<1x128xf32>
    %409 = vector.broadcast %408 : vector<1x128xf32> to vector<8x128xf32>
    %410 = arith.addf %407, %409 : vector<8x128xf32>
    %c0_138 = arith.constant 0 : index
    %c0_139 = arith.constant 0 : index
    %c0_140 = arith.constant 0 : index
    %411 = vector.load %arg11[%c0_138, %c0_139, %c0_140] : memref<1x8x128xf32, #tpu.memory_space<vmem>>, vector<1x8x128xf32>
    %412 = vector.shape_cast %411 : vector<1x8x128xf32> to vector<8x128xf32>
    %413 = vector.shape_cast %410 : vector<8x128xf32> to vector<1x8x128xf32>
    tpu.vector_store %arg11[%c0_138, %c0_139, %c0_140], %413 {strides = array<i32>} : memref<1x8x128xf32, #tpu.memory_space<vmem>>, vector<1x8x128xf32>,
    %c1792 = arith.constant 1792 : index
    %c0_141 = arith.constant 0 : index
    %414 = vector.load %arg1[%c1792, %c0_141] : memref<3584x128xbf16, #tpu.memory_space<vmem>>, vector<128x128xbf16>
    %415 = arith.truncf %394 : vector<8x128xf32> to vector<8x128xbf16>
    %cst_142 = arith.constant dense<0.000000e+00> : vector<8x128xf32>
    %416 = tpu.matmul %415, %414, %cst_142 {dimension_numbers = #tpu.dot_dimension_numbers<[1], [0], [0], [1], [0, 0, 1, 1], [], []>} : vector<8x128xbf16>, vector<128x128xbf16>, vector<8x128xf32> -> vector<8x128xf32>
    %c23 = arith.constant 23 : index
    %c0_143 = arith.constant 0 : index
    %417 = vector.load %arg2[%c23, %c0_143] : memref<56x128xf32, #tpu.memory_space<vmem>>, vector<1x128xf32>
    %418 = vector.broadcast %417 : vector<1x128xf32> to vector<8x128xf32>
    %419 = arith.addf %416, %418 : vector<8x128xf32>
    %c22 = arith.constant 22 : index
    %c0_144 = arith.constant 0 : index
    %420 = vector.load %arg2[%c22, %c0_144] : memref<56x128xf32, #tpu.memory_space<vmem>>, vector<1x128xf32>
    %421 = vector.broadcast %5 : vector<24x1xf32> to vector<24x128xf32>
    %422 = vector.broadcast %420 : vector<1x128xf32> to vector<24x128xf32>
    %423 = arith.mulf %421, %422 : vector<24x128xf32>
    %424 = arith.addf %45, %423 : vector<24x128xf32>
    %c1920 = arith.constant 1920 : index
    %c0_145 = arith.constant 0 : index
    %425 = vector.load %arg1[%c1920, %c0_145] : memref<3584x128xbf16, #tpu.memory_space<vmem>>, vector<128x128xbf16>
    %426 = arith.truncf %424 : vector<24x128xf32> to vector<24x128xbf16>
    %cst_146 = arith.constant dense<0.000000e+00> : vector<24x128xf32>
    %427 = tpu.matmul %426, %425, %cst_146 {dimension_numbers = #tpu.dot_dimension_numbers<[1], [0], [0], [1], [0, 0, 1, 1], [], []>} : vector<24x128xbf16>, vector<128x128xbf16>, vector<24x128xf32> -> vector<24x128xf32>
    %c24 = arith.constant 24 : index
    %c0_147 = arith.constant 0 : index
    %428 = vector.load %arg2[%c24, %c0_147] : memref<56x128xf32, #tpu.memory_space<vmem>>, vector<1x128xf32>
    %429 = vector.broadcast %428 : vector<1x128xf32> to vector<24x128xf32>
    %430 = arith.addf %427, %429 : vector<24x128xf32>
    %431 = vector.extract_strided_slice %430 {offsets = [0, 32], sizes = [24, 32], strides = [1, 1]} : vector<24x128xf32> to vector<24x32xf32>
    %432 = tpu.transpose %431, [1, 0] : vector<24x32xf32> -> vector<32x24xf32>
    %433 = vector.extract_strided_slice %430 {offsets = [0, 0], sizes = [24, 8], strides = [1, 1]} : vector<24x128xf32> to vector<24x8xf32>
    %434 = vector.extract_strided_slice %432 {offsets = [0, 0], sizes = [8, 24], strides = [1, 1]} : vector<32x24xf32> to vector<8x24xf32>
    %435 = vector.extract_strided_slice %430 {offsets = [0, 64], sizes = [24, 8], strides = [1, 1]} : vector<24x128xf32> to vector<24x8xf32>
    %436 = arith.truncf %433 : vector<24x8xf32> to vector<24x8xbf16>
    %437 = arith.truncf %434 : vector<8x24xf32> to vector<8x24xbf16>
    %cst_148 = arith.constant dense<0.000000e+00> : vector<24x24xf32>
    %438 = tpu.matmul %436, %437, %cst_148 {dimension_numbers = #tpu.dot_dimension_numbers<[1], [0], [0], [1], [0, 0, 1, 1], [], []>} : vector<24x8xbf16>, vector<8x24xbf16>, vector<24x24xf32> -> vector<24x24xf32>
    %439 = arith.addf %438, %22 : vector<24x24xf32>
    %cst_149 = arith.constant dense<0xFF800000> : vector<24xf32>
    %440 = vector.multi_reduction <maximumf>, %439, %cst_149 [1] : vector<24x24xf32> to vector<24xf32>
    %441 = vector.shape_cast %440 : vector<24xf32> to vector<24x1xf32>
    %442 = vector.broadcast %441 : vector<24x1xf32> to vector<24x24xf32>
    %443 = arith.subf %439, %442 : vector<24x24xf32>
    %444 = math.exp %443 : vector<24x24xf32>
    %cst_150 = arith.constant dense<0.000000e+00> : vector<24xf32>
    %445 = vector.multi_reduction <add>, %444, %cst_150 [1] : vector<24x24xf32> to vector<24xf32>
    %446 = vector.shape_cast %445 : vector<24xf32> to vector<24x1xf32>
    %447 = tpu.reciprocal %446 {approx = true} : vector<24x1xf32> -> vector<24x1xf32>
    %448 = vector.broadcast %447 : vector<24x1xf32> to vector<24x24xf32>
    %449 = arith.mulf %444, %448 : vector<24x24xf32>
    %450 = arith.truncf %449 : vector<24x24xf32> to vector<24x24xbf16>
    %451 = arith.truncf %435 : vector<24x8xf32> to vector<24x8xbf16>
    %cst_151 = arith.constant dense<0.000000e+00> : vector<24x8xf32>
    %452 = tpu.matmul %450, %451, %cst_151 {dimension_numbers = #tpu.dot_dimension_numbers<[1], [0], [0], [1], [0, 0, 1, 1], [], []>} : vector<24x24xbf16>, vector<24x8xbf16>, vector<24x8xf32> -> vector<24x8xf32>
    %453 = vector.extract_strided_slice %430 {offsets = [0, 8], sizes = [24, 8], strides = [1, 1]} : vector<24x128xf32> to vector<24x8xf32>
    %454 = vector.extract_strided_slice %432 {offsets = [8, 0], sizes = [8, 24], strides = [1, 1]} : vector<32x24xf32> to vector<8x24xf32>
    %455 = vector.extract_strided_slice %430 {offsets = [0, 72], sizes = [24, 8], strides = [1, 1]} : vector<24x128xf32> to vector<24x8xf32>
    %456 = arith.truncf %453 : vector<24x8xf32> to vector<24x8xbf16>
    %457 = arith.truncf %454 : vector<8x24xf32> to vector<8x24xbf16>
    %cst_152 = arith.constant dense<0.000000e+00> : vector<24x24xf32>
    %458 = tpu.matmul %456, %457, %cst_152 {dimension_numbers = #tpu.dot_dimension_numbers<[1], [0], [0], [1], [0, 0, 1, 1], [], []>} : vector<24x8xbf16>, vector<8x24xbf16>, vector<24x24xf32> -> vector<24x24xf32>
    %459 = arith.addf %458, %22 : vector<24x24xf32>
    %cst_153 = arith.constant dense<0xFF800000> : vector<24xf32>
    %460 = vector.multi_reduction <maximumf>, %459, %cst_153 [1] : vector<24x24xf32> to vector<24xf32>
    %461 = vector.shape_cast %460 : vector<24xf32> to vector<24x1xf32>
    %462 = vector.broadcast %461 : vector<24x1xf32> to vector<24x24xf32>
    %463 = arith.subf %459, %462 : vector<24x24xf32>
    %464 = math.exp %463 : vector<24x24xf32>
    %cst_154 = arith.constant dense<0.000000e+00> : vector<24xf32>
    %465 = vector.multi_reduction <add>, %464, %cst_154 [1] : vector<24x24xf32> to vector<24xf32>
    %466 = vector.shape_cast %465 : vector<24xf32> to vector<24x1xf32>
    %467 = tpu.reciprocal %466 {approx = true} : vector<24x1xf32> -> vector<24x1xf32>
    %468 = vector.broadcast %467 : vector<24x1xf32> to vector<24x24xf32>
    %469 = arith.mulf %464, %468 : vector<24x24xf32>
    %470 = arith.truncf %469 : vector<24x24xf32> to vector<24x24xbf16>
    %471 = arith.truncf %455 : vector<24x8xf32> to vector<24x8xbf16>
    %cst_155 = arith.constant dense<0.000000e+00> : vector<24x8xf32>
    %472 = tpu.matmul %470, %471, %cst_155 {dimension_numbers = #tpu.dot_dimension_numbers<[1], [0], [0], [1], [0, 0, 1, 1], [], []>} : vector<24x24xbf16>, vector<24x8xbf16>, vector<24x8xf32> -> vector<24x8xf32>
    %473 = vector.extract_strided_slice %430 {offsets = [0, 16], sizes = [24, 8], strides = [1, 1]} : vector<24x128xf32> to vector<24x8xf32>
    %474 = vector.extract_strided_slice %432 {offsets = [16, 0], sizes = [8, 24], strides = [1, 1]} : vector<32x24xf32> to vector<8x24xf32>
    %475 = vector.extract_strided_slice %430 {offsets = [0, 80], sizes = [24, 8], strides = [1, 1]} : vector<24x128xf32> to vector<24x8xf32>
    %476 = arith.truncf %473 : vector<24x8xf32> to vector<24x8xbf16>
    %477 = arith.truncf %474 : vector<8x24xf32> to vector<8x24xbf16>
    %cst_156 = arith.constant dense<0.000000e+00> : vector<24x24xf32>
    %478 = tpu.matmul %476, %477, %cst_156 {dimension_numbers = #tpu.dot_dimension_numbers<[1], [0], [0], [1], [0, 0, 1, 1], [], []>} : vector<24x8xbf16>, vector<8x24xbf16>, vector<24x24xf32> -> vector<24x24xf32>
    %479 = arith.addf %478, %22 : vector<24x24xf32>
    %cst_157 = arith.constant dense<0xFF800000> : vector<24xf32>
    %480 = vector.multi_reduction <maximumf>, %479, %cst_157 [1] : vector<24x24xf32> to vector<24xf32>
    %481 = vector.shape_cast %480 : vector<24xf32> to vector<24x1xf32>
    %482 = vector.broadcast %481 : vector<24x1xf32> to vector<24x24xf32>
    %483 = arith.subf %479, %482 : vector<24x24xf32>
    %484 = math.exp %483 : vector<24x24xf32>
    %cst_158 = arith.constant dense<0.000000e+00> : vector<24xf32>
    %485 = vector.multi_reduction <add>, %484, %cst_158 [1] : vector<24x24xf32> to vector<24xf32>
    %486 = vector.shape_cast %485 : vector<24xf32> to vector<24x1xf32>
    %487 = tpu.reciprocal %486 {approx = true} : vector<24x1xf32> -> vector<24x1xf32>
    %488 = vector.broadcast %487 : vector<24x1xf32> to vector<24x24xf32>
    %489 = arith.mulf %484, %488 : vector<24x24xf32>
    %490 = arith.truncf %489 : vector<24x24xf32> to vector<24x24xbf16>
    %491 = arith.truncf %475 : vector<24x8xf32> to vector<24x8xbf16>
    %cst_159 = arith.constant dense<0.000000e+00> : vector<24x8xf32>
    %492 = tpu.matmul %490, %491, %cst_159 {dimension_numbers = #tpu.dot_dimension_numbers<[1], [0], [0], [1], [0, 0, 1, 1], [], []>} : vector<24x24xbf16>, vector<24x8xbf16>, vector<24x8xf32> -> vector<24x8xf32>
    %493 = vector.extract_strided_slice %430 {offsets = [0, 24], sizes = [24, 8], strides = [1, 1]} : vector<24x128xf32> to vector<24x8xf32>
    %494 = vector.extract_strided_slice %432 {offsets = [24, 0], sizes = [8, 24], strides = [1, 1]} : vector<32x24xf32> to vector<8x24xf32>
    %495 = vector.extract_strided_slice %430 {offsets = [0, 88], sizes = [24, 8], strides = [1, 1]} : vector<24x128xf32> to vector<24x8xf32>
    %496 = arith.truncf %493 : vector<24x8xf32> to vector<24x8xbf16>
    %497 = arith.truncf %494 : vector<8x24xf32> to vector<8x24xbf16>
    %cst_160 = arith.constant dense<0.000000e+00> : vector<24x24xf32>
    %498 = tpu.matmul %496, %497, %cst_160 {dimension_numbers = #tpu.dot_dimension_numbers<[1], [0], [0], [1], [0, 0, 1, 1], [], []>} : vector<24x8xbf16>, vector<8x24xbf16>, vector<24x24xf32> -> vector<24x24xf32>
    %499 = arith.addf %498, %22 : vector<24x24xf32>
    %cst_161 = arith.constant dense<0xFF800000> : vector<24xf32>
    %500 = vector.multi_reduction <maximumf>, %499, %cst_161 [1] : vector<24x24xf32> to vector<24xf32>
    %501 = vector.shape_cast %500 : vector<24xf32> to vector<24x1xf32>
    %502 = vector.broadcast %501 : vector<24x1xf32> to vector<24x24xf32>
    %503 = arith.subf %499, %502 : vector<24x24xf32>
    %504 = math.exp %503 : vector<24x24xf32>
    %cst_162 = arith.constant dense<0.000000e+00> : vector<24xf32>
    %505 = vector.multi_reduction <add>, %504, %cst_162 [1] : vector<24x24xf32> to vector<24xf32>
    %506 = vector.shape_cast %505 : vector<24xf32> to vector<24x1xf32>
    %507 = tpu.reciprocal %506 {approx = true} : vector<24x1xf32> -> vector<24x1xf32>
    %508 = vector.broadcast %507 : vector<24x1xf32> to vector<24x24xf32>
    %509 = arith.mulf %504, %508 : vector<24x24xf32>
    %510 = arith.truncf %509 : vector<24x24xf32> to vector<24x24xbf16>
    %511 = arith.truncf %495 : vector<24x8xf32> to vector<24x8xbf16>
    %cst_163 = arith.constant dense<0.000000e+00> : vector<24x8xf32>
    %512 = tpu.matmul %510, %511, %cst_163 {dimension_numbers = #tpu.dot_dimension_numbers<[1], [0], [0], [1], [0, 0, 1, 1], [], []>} : vector<24x24xbf16>, vector<24x8xbf16>, vector<24x8xf32> -> vector<24x8xf32>
    %513 = tpu.concatenate %452, %472, %492, %512 in 1 : vector<24x8xf32>, vector<24x8xf32>, vector<24x8xf32>, vector<24x8xf32> -> vector<24x32xf32>
    %c2048 = arith.constant 2048 : index
    %c0_164 = arith.constant 0 : index
    %514 = vector.load %arg1[%c2048, %c0_164] : memref<3584x128xbf16, #tpu.memory_space<vmem>>, vector<32x128xbf16>
    %515 = arith.truncf %513 : vector<24x32xf32> to vector<24x32xbf16>
    %cst_165 = arith.constant dense<0.000000e+00> : vector<24x128xf32>
    %516 = tpu.matmul %515, %514, %cst_165 {dimension_numbers = #tpu.dot_dimension_numbers<[1], [0], [0], [1], [0, 0, 1, 1], [], []>} : vector<24x32xbf16>, vector<32x128xbf16>, vector<24x128xf32> -> vector<24x128xf32>
    %c25 = arith.constant 25 : index
    %c0_166 = arith.constant 0 : index
    %517 = vector.load %arg2[%c25, %c0_166] : memref<56x128xf32, #tpu.memory_space<vmem>>, vector<1x128xf32>
    %518 = vector.broadcast %517 : vector<1x128xf32> to vector<24x128xf32>
    %519 = arith.addf %516, %518 : vector<24x128xf32>
    %520 = arith.addf %424, %519 : vector<24x128xf32>
    %cst_167 = arith.constant dense<0.000000e+00> : vector<24xf32>
    %521 = vector.multi_reduction <add>, %520, %cst_167 [1] : vector<24x128xf32> to vector<24xf32>
    %522 = vector.shape_cast %521 : vector<24xf32> to vector<24x1xf32>
    %cst_168 = arith.constant 3.125000e-02 : f32
    %523 = vector.broadcast %cst_168 : f32 to vector<24x1xf32>
    %524 = arith.mulf %522, %523 : vector<24x1xf32>
    %525 = arith.mulf %520, %520 : vector<24x128xf32>
    %cst_169 = arith.constant dense<0.000000e+00> : vector<24xf32>
    %526 = vector.multi_reduction <add>, %525, %cst_169 [1] : vector<24x128xf32> to vector<24xf32>
    %527 = vector.shape_cast %526 : vector<24xf32> to vector<24x1xf32>
    %cst_170 = arith.constant 3.125000e-02 : f32
    %528 = vector.broadcast %cst_170 : f32 to vector<24x1xf32>
    %529 = arith.mulf %527, %528 : vector<24x1xf32>
    %530 = vector.broadcast %524 : vector<24x1xf32> to vector<24x128xf32>
    %531 = arith.subf %520, %530 : vector<24x128xf32>
    %532 = arith.mulf %524, %524 : vector<24x1xf32>
    %533 = arith.subf %529, %532 : vector<24x1xf32>
    %cst_171 = arith.constant 9.99999974E-6 : f32
    %534 = vector.broadcast %cst_171 : f32 to vector<24x1xf32>
    %535 = arith.addf %533, %534 : vector<24x1xf32>
    %536 = math.rsqrt %535 : vector<24x1xf32>
    %537 = vector.broadcast %536 : vector<24x1xf32> to vector<24x128xf32>
    %538 = arith.mulf %531, %537 : vector<24x128xf32>
    %c26 = arith.constant 26 : index
    %c0_172 = arith.constant 0 : index
    %539 = vector.load %arg2[%c26, %c0_172] : memref<56x128xf32, #tpu.memory_space<vmem>>, vector<1x128xf32>
    %540 = vector.broadcast %539 : vector<1x128xf32> to vector<24x128xf32>
    %541 = arith.mulf %538, %540 : vector<24x128xf32>
    %c27 = arith.constant 27 : index
    %c0_173 = arith.constant 0 : index
    %542 = vector.load %arg2[%c27, %c0_173] : memref<56x128xf32, #tpu.memory_space<vmem>>, vector<1x128xf32>
    %543 = vector.broadcast %542 : vector<1x128xf32> to vector<24x128xf32>
    %544 = arith.addf %541, %543 : vector<24x128xf32>
    %c2176 = arith.constant 2176 : index
    %c0_174 = arith.constant 0 : index
    %545 = vector.load %arg1[%c2176, %c0_174] : memref<3584x128xbf16, #tpu.memory_space<vmem>>, vector<128x128xbf16>
    %546 = arith.truncf %419 : vector<8x128xf32> to vector<8x128xbf16>
    %cst_175 = arith.constant dense<0.000000e+00> : vector<8x128xf32>
    %547 = tpu.matmul %546, %545, %cst_175 {dimension_numbers = #tpu.dot_dimension_numbers<[1], [0], [0], [1], [0, 0, 1, 1], [], []>} : vector<8x128xbf16>, vector<128x128xbf16>, vector<8x128xf32> -> vector<8x128xf32>
    %c28 = arith.constant 28 : index
    %c0_176 = arith.constant 0 : index
    %548 = vector.load %arg2[%c28, %c0_176] : memref<56x128xf32, #tpu.memory_space<vmem>>, vector<1x128xf32>
    %549 = vector.broadcast %548 : vector<1x128xf32> to vector<8x128xf32>
    %550 = arith.addf %547, %549 : vector<8x128xf32>
    %c2304 = arith.constant 2304 : index
    %c0_177 = arith.constant 0 : index
    %551 = vector.load %arg1[%c2304, %c0_177] : memref<3584x128xbf16, #tpu.memory_space<vmem>>, vector<128x128xbf16>
    %552 = arith.truncf %550 : vector<8x128xf32> to vector<8x128xbf16>
    %cst_178 = arith.constant dense<0.000000e+00> : vector<8x128xf32>
    %553 = tpu.matmul %552, %551, %cst_178 {dimension_numbers = #tpu.dot_dimension_numbers<[1], [0], [0], [1], [0, 0, 1, 1], [], []>} : vector<8x128xbf16>, vector<128x128xbf16>, vector<8x128xf32> -> vector<8x128xf32>
    %c29 = arith.constant 29 : index
    %c0_179 = arith.constant 0 : index
    %554 = vector.load %arg2[%c29, %c0_179] : memref<56x128xf32, #tpu.memory_space<vmem>>, vector<1x128xf32>
    %555 = vector.broadcast %554 : vector<1x128xf32> to vector<8x128xf32>
    %556 = arith.addf %553, %555 : vector<8x128xf32>
    %cst_180 = arith.constant dense<0.000000e+00> : vector<24x128xf32>
    %557 = tpu.matmul %24, %556, %cst_180 {dimension_numbers = #tpu.dot_dimension_numbers<[1], [0], [0], [1], [0, 0, 1, 1], [], []>} : vector<24x8xf32>, vector<8x128xf32>, vector<24x128xf32> -> vector<24x128xf32>
    %558 = arith.addf %544, %557 : vector<24x128xf32>
    %cst_181 = arith.constant dense<0.000000e+00> : vector<24xf32>
    %559 = vector.multi_reduction <add>, %558, %cst_181 [1] : vector<24x128xf32> to vector<24xf32>
    %560 = vector.shape_cast %559 : vector<24xf32> to vector<24x1xf32>
    %cst_182 = arith.constant 3.125000e-02 : f32
    %561 = vector.broadcast %cst_182 : f32 to vector<24x1xf32>
    %562 = arith.mulf %560, %561 : vector<24x1xf32>
    %563 = arith.mulf %558, %558 : vector<24x128xf32>
    %cst_183 = arith.constant dense<0.000000e+00> : vector<24xf32>
    %564 = vector.multi_reduction <add>, %563, %cst_183 [1] : vector<24x128xf32> to vector<24xf32>
    %565 = vector.shape_cast %564 : vector<24xf32> to vector<24x1xf32>
    %cst_184 = arith.constant 3.125000e-02 : f32
    %566 = vector.broadcast %cst_184 : f32 to vector<24x1xf32>
    %567 = arith.mulf %565, %566 : vector<24x1xf32>
    %568 = vector.broadcast %562 : vector<24x1xf32> to vector<24x128xf32>
    %569 = arith.subf %558, %568 : vector<24x128xf32>
    %570 = arith.mulf %562, %562 : vector<24x1xf32>
    %571 = arith.subf %567, %570 : vector<24x1xf32>
    %cst_185 = arith.constant 9.99999974E-6 : f32
    %572 = vector.broadcast %cst_185 : f32 to vector<24x1xf32>
    %573 = arith.addf %571, %572 : vector<24x1xf32>
    %574 = math.rsqrt %573 : vector<24x1xf32>
    %575 = vector.broadcast %574 : vector<24x1xf32> to vector<24x128xf32>
    %576 = arith.mulf %569, %575 : vector<24x128xf32>
    %c30 = arith.constant 30 : index
    %c0_186 = arith.constant 0 : index
    %577 = vector.load %arg2[%c30, %c0_186] : memref<56x128xf32, #tpu.memory_space<vmem>>, vector<1x128xf32>
    %578 = vector.broadcast %577 : vector<1x128xf32> to vector<24x128xf32>
    %579 = arith.mulf %576, %578 : vector<24x128xf32>
    %c31 = arith.constant 31 : index
    %c0_187 = arith.constant 0 : index
    %580 = vector.load %arg2[%c31, %c0_187] : memref<56x128xf32, #tpu.memory_space<vmem>>, vector<1x128xf32>
    %581 = vector.broadcast %580 : vector<1x128xf32> to vector<24x128xf32>
    %582 = arith.addf %579, %581 : vector<24x128xf32>
    %c2432 = arith.constant 2432 : index
    %c0_188 = arith.constant 0 : index
    %583 = vector.load %arg1[%c2432, %c0_188] : memref<3584x128xbf16, #tpu.memory_space<vmem>>, vector<128x128xbf16>
    %584 = arith.truncf %582 : vector<24x128xf32> to vector<24x128xbf16>
    %cst_189 = arith.constant dense<0.000000e+00> : vector<24x128xf32>
    %585 = tpu.matmul %584, %583, %cst_189 {dimension_numbers = #tpu.dot_dimension_numbers<[1], [0], [0], [1], [0, 0, 1, 1], [], []>} : vector<24x128xbf16>, vector<128x128xbf16>, vector<24x128xf32> -> vector<24x128xf32>
    %c32 = arith.constant 32 : index
    %c0_190 = arith.constant 0 : index
    %586 = vector.load %arg2[%c32, %c0_190] : memref<56x128xf32, #tpu.memory_space<vmem>>, vector<1x128xf32>
    %587 = vector.broadcast %586 : vector<1x128xf32> to vector<24x128xf32>
    %588 = arith.addf %585, %587 : vector<24x128xf32>
    %cst_191 = arith.constant 5.000000e-01 : f32
    %589 = vector.broadcast %cst_191 : f32 to vector<24x128xf32>
    %590 = arith.mulf %589, %588 : vector<24x128xf32>
    %cst_192 = arith.constant 0.707106769 : f32
    %591 = vector.broadcast %cst_192 : f32 to vector<24x128xf32>
    %592 = arith.mulf %588, %591 : vector<24x128xf32>
    %593 = math.erf %592 : vector<24x128xf32>
    %cst_193 = arith.constant 1.000000e+00 : f32
    %594 = vector.broadcast %cst_193 : f32 to vector<24x128xf32>
    %595 = arith.addf %594, %593 : vector<24x128xf32>
    %596 = arith.mulf %590, %595 : vector<24x128xf32>
    %c2560 = arith.constant 2560 : index
    %c0_194 = arith.constant 0 : index
    %597 = vector.load %arg1[%c2560, %c0_194] : memref<3584x128xbf16, #tpu.memory_space<vmem>>, vector<128x128xbf16>
    %598 = arith.truncf %596 : vector<24x128xf32> to vector<24x128xbf16>
    %cst_195 = arith.constant dense<0.000000e+00> : vector<24x128xf32>
    %599 = tpu.matmul %598, %597, %cst_195 {dimension_numbers = #tpu.dot_dimension_numbers<[1], [0], [0], [1], [0, 0, 1, 1], [], []>} : vector<24x128xbf16>, vector<128x128xbf16>, vector<24x128xf32> -> vector<24x128xf32>
    %c33 = arith.constant 33 : index
    %c0_196 = arith.constant 0 : index
    %600 = vector.load %arg2[%c33, %c0_196] : memref<56x128xf32, #tpu.memory_space<vmem>>, vector<1x128xf32>
    %601 = vector.broadcast %600 : vector<1x128xf32> to vector<24x128xf32>
    %602 = arith.addf %599, %601 : vector<24x128xf32>
    %603 = arith.addf %582, %602 : vector<24x128xf32>
    %cst_197 = arith.constant dense<0.000000e+00> : vector<24xf32>
    %604 = vector.multi_reduction <add>, %603, %cst_197 [1] : vector<24x128xf32> to vector<24xf32>
    %605 = vector.shape_cast %604 : vector<24xf32> to vector<24x1xf32>
    %cst_198 = arith.constant 3.125000e-02 : f32
    %606 = vector.broadcast %cst_198 : f32 to vector<24x1xf32>
    %607 = arith.mulf %605, %606 : vector<24x1xf32>
    %608 = arith.mulf %603, %603 : vector<24x128xf32>
    %cst_199 = arith.constant dense<0.000000e+00> : vector<24xf32>
    %609 = vector.multi_reduction <add>, %608, %cst_199 [1] : vector<24x128xf32> to vector<24xf32>
    %610 = vector.shape_cast %609 : vector<24xf32> to vector<24x1xf32>
    %cst_200 = arith.constant 3.125000e-02 : f32
    %611 = vector.broadcast %cst_200 : f32 to vector<24x1xf32>
    %612 = arith.mulf %610, %611 : vector<24x1xf32>
    %613 = vector.broadcast %607 : vector<24x1xf32> to vector<24x128xf32>
    %614 = arith.subf %603, %613 : vector<24x128xf32>
    %615 = arith.mulf %607, %607 : vector<24x1xf32>
    %616 = arith.subf %612, %615 : vector<24x1xf32>
    %cst_201 = arith.constant 9.99999974E-6 : f32
    %617 = vector.broadcast %cst_201 : f32 to vector<24x1xf32>
    %618 = arith.addf %616, %617 : vector<24x1xf32>
    %619 = math.rsqrt %618 : vector<24x1xf32>
    %620 = vector.broadcast %619 : vector<24x1xf32> to vector<24x128xf32>
    %621 = arith.mulf %614, %620 : vector<24x128xf32>
    %c34 = arith.constant 34 : index
    %c0_202 = arith.constant 0 : index
    %622 = vector.load %arg2[%c34, %c0_202] : memref<56x128xf32, #tpu.memory_space<vmem>>, vector<1x128xf32>
    %623 = vector.broadcast %622 : vector<1x128xf32> to vector<24x128xf32>
    %624 = arith.mulf %621, %623 : vector<24x128xf32>
    %c35 = arith.constant 35 : index
    %c0_203 = arith.constant 0 : index
    %625 = vector.load %arg2[%c35, %c0_203] : memref<56x128xf32, #tpu.memory_space<vmem>>, vector<1x128xf32>
    %626 = vector.broadcast %625 : vector<1x128xf32> to vector<24x128xf32>
    %627 = arith.addf %624, %626 : vector<24x128xf32>
    %c2688 = arith.constant 2688 : index
    %c0_204 = arith.constant 0 : index
    %628 = vector.load %arg1[%c2688, %c0_204] : memref<3584x128xbf16, #tpu.memory_space<vmem>>, vector<128x128xbf16>
    %629 = arith.truncf %627 : vector<24x128xf32> to vector<24x128xbf16>
    %cst_205 = arith.constant dense<0.000000e+00> : vector<24x128xf32>
    %630 = tpu.matmul %629, %628, %cst_205 {dimension_numbers = #tpu.dot_dimension_numbers<[1], [0], [0], [1], [0, 0, 1, 1], [], []>} : vector<24x128xbf16>, vector<128x128xbf16>, vector<24x128xf32> -> vector<24x128xf32>
    %c36 = arith.constant 36 : index
    %c0_206 = arith.constant 0 : index
    %631 = vector.load %arg2[%c36, %c0_206] : memref<56x128xf32, #tpu.memory_space<vmem>>, vector<1x128xf32>
    %632 = vector.broadcast %631 : vector<1x128xf32> to vector<24x128xf32>
    %633 = arith.addf %630, %632 : vector<24x128xf32>
    %634 = vector.extract_strided_slice %633 {offsets = [0, 32], sizes = [24, 32], strides = [1, 1]} : vector<24x128xf32> to vector<24x32xf32>
    %635 = tpu.transpose %634, [1, 0] : vector<24x32xf32> -> vector<32x24xf32>
    %636 = vector.extract_strided_slice %633 {offsets = [0, 0], sizes = [24, 8], strides = [1, 1]} : vector<24x128xf32> to vector<24x8xf32>
    %637 = vector.extract_strided_slice %635 {offsets = [0, 0], sizes = [8, 24], strides = [1, 1]} : vector<32x24xf32> to vector<8x24xf32>
    %638 = vector.extract_strided_slice %633 {offsets = [0, 64], sizes = [24, 8], strides = [1, 1]} : vector<24x128xf32> to vector<24x8xf32>
    %639 = arith.truncf %636 : vector<24x8xf32> to vector<24x8xbf16>
    %640 = arith.truncf %637 : vector<8x24xf32> to vector<8x24xbf16>
    %cst_207 = arith.constant dense<0.000000e+00> : vector<24x24xf32>
    %641 = tpu.matmul %639, %640, %cst_207 {dimension_numbers = #tpu.dot_dimension_numbers<[1], [0], [0], [1], [0, 0, 1, 1], [], []>} : vector<24x8xbf16>, vector<8x24xbf16>, vector<24x24xf32> -> vector<24x24xf32>
    %642 = arith.addf %641, %22 : vector<24x24xf32>
    %cst_208 = arith.constant dense<0xFF800000> : vector<24xf32>
    %643 = vector.multi_reduction <maximumf>, %642, %cst_208 [1] : vector<24x24xf32> to vector<24xf32>
    %644 = vector.shape_cast %643 : vector<24xf32> to vector<24x1xf32>
    %645 = vector.broadcast %644 : vector<24x1xf32> to vector<24x24xf32>
    %646 = arith.subf %642, %645 : vector<24x24xf32>
    %647 = math.exp %646 : vector<24x24xf32>
    %cst_209 = arith.constant dense<0.000000e+00> : vector<24xf32>
    %648 = vector.multi_reduction <add>, %647, %cst_209 [1] : vector<24x24xf32> to vector<24xf32>
    %649 = vector.shape_cast %648 : vector<24xf32> to vector<24x1xf32>
    %650 = tpu.reciprocal %649 {approx = true} : vector<24x1xf32> -> vector<24x1xf32>
    %651 = vector.broadcast %650 : vector<24x1xf32> to vector<24x24xf32>
    %652 = arith.mulf %647, %651 : vector<24x24xf32>
    %653 = arith.truncf %652 : vector<24x24xf32> to vector<24x24xbf16>
    %654 = arith.truncf %638 : vector<24x8xf32> to vector<24x8xbf16>
    %cst_210 = arith.constant dense<0.000000e+00> : vector<24x8xf32>
    %655 = tpu.matmul %653, %654, %cst_210 {dimension_numbers = #tpu.dot_dimension_numbers<[1], [0], [0], [1], [0, 0, 1, 1], [], []>} : vector<24x24xbf16>, vector<24x8xbf16>, vector<24x8xf32> -> vector<24x8xf32>
    %656 = vector.extract_strided_slice %633 {offsets = [0, 8], sizes = [24, 8], strides = [1, 1]} : vector<24x128xf32> to vector<24x8xf32>
    %657 = vector.extract_strided_slice %635 {offsets = [8, 0], sizes = [8, 24], strides = [1, 1]} : vector<32x24xf32> to vector<8x24xf32>
    %658 = vector.extract_strided_slice %633 {offsets = [0, 72], sizes = [24, 8], strides = [1, 1]} : vector<24x128xf32> to vector<24x8xf32>
    %659 = arith.truncf %656 : vector<24x8xf32> to vector<24x8xbf16>
    %660 = arith.truncf %657 : vector<8x24xf32> to vector<8x24xbf16>
    %cst_211 = arith.constant dense<0.000000e+00> : vector<24x24xf32>
    %661 = tpu.matmul %659, %660, %cst_211 {dimension_numbers = #tpu.dot_dimension_numbers<[1], [0], [0], [1], [0, 0, 1, 1], [], []>} : vector<24x8xbf16>, vector<8x24xbf16>, vector<24x24xf32> -> vector<24x24xf32>
    %662 = arith.addf %661, %22 : vector<24x24xf32>
    %cst_212 = arith.constant dense<0xFF800000> : vector<24xf32>
    %663 = vector.multi_reduction <maximumf>, %662, %cst_212 [1] : vector<24x24xf32> to vector<24xf32>
    %664 = vector.shape_cast %663 : vector<24xf32> to vector<24x1xf32>
    %665 = vector.broadcast %664 : vector<24x1xf32> to vector<24x24xf32>
    %666 = arith.subf %662, %665 : vector<24x24xf32>
    %667 = math.exp %666 : vector<24x24xf32>
    %cst_213 = arith.constant dense<0.000000e+00> : vector<24xf32>
    %668 = vector.multi_reduction <add>, %667, %cst_213 [1] : vector<24x24xf32> to vector<24xf32>
    %669 = vector.shape_cast %668 : vector<24xf32> to vector<24x1xf32>
    %670 = tpu.reciprocal %669 {approx = true} : vector<24x1xf32> -> vector<24x1xf32>
    %671 = vector.broadcast %670 : vector<24x1xf32> to vector<24x24xf32>
    %672 = arith.mulf %667, %671 : vector<24x24xf32>
    %673 = arith.truncf %672 : vector<24x24xf32> to vector<24x24xbf16>
    %674 = arith.truncf %658 : vector<24x8xf32> to vector<24x8xbf16>
    %cst_214 = arith.constant dense<0.000000e+00> : vector<24x8xf32>
    %675 = tpu.matmul %673, %674, %cst_214 {dimension_numbers = #tpu.dot_dimension_numbers<[1], [0], [0], [1], [0, 0, 1, 1], [], []>} : vector<24x24xbf16>, vector<24x8xbf16>, vector<24x8xf32> -> vector<24x8xf32>
    %676 = vector.extract_strided_slice %633 {offsets = [0, 16], sizes = [24, 8], strides = [1, 1]} : vector<24x128xf32> to vector<24x8xf32>
    %677 = vector.extract_strided_slice %635 {offsets = [16, 0], sizes = [8, 24], strides = [1, 1]} : vector<32x24xf32> to vector<8x24xf32>
    %678 = vector.extract_strided_slice %633 {offsets = [0, 80], sizes = [24, 8], strides = [1, 1]} : vector<24x128xf32> to vector<24x8xf32>
    %679 = arith.truncf %676 : vector<24x8xf32> to vector<24x8xbf16>
    %680 = arith.truncf %677 : vector<8x24xf32> to vector<8x24xbf16>
    %cst_215 = arith.constant dense<0.000000e+00> : vector<24x24xf32>
    %681 = tpu.matmul %679, %680, %cst_215 {dimension_numbers = #tpu.dot_dimension_numbers<[1], [0], [0], [1], [0, 0, 1, 1], [], []>} : vector<24x8xbf16>, vector<8x24xbf16>, vector<24x24xf32> -> vector<24x24xf32>
    %682 = arith.addf %681, %22 : vector<24x24xf32>
    %cst_216 = arith.constant dense<0xFF800000> : vector<24xf32>
    %683 = vector.multi_reduction <maximumf>, %682, %cst_216 [1] : vector<24x24xf32> to vector<24xf32>
    %684 = vector.shape_cast %683 : vector<24xf32> to vector<24x1xf32>
    %685 = vector.broadcast %684 : vector<24x1xf32> to vector<24x24xf32>
    %686 = arith.subf %682, %685 : vector<24x24xf32>
    %687 = math.exp %686 : vector<24x24xf32>
    %cst_217 = arith.constant dense<0.000000e+00> : vector<24xf32>
    %688 = vector.multi_reduction <add>, %687, %cst_217 [1] : vector<24x24xf32> to vector<24xf32>
    %689 = vector.shape_cast %688 : vector<24xf32> to vector<24x1xf32>
    %690 = tpu.reciprocal %689 {approx = true} : vector<24x1xf32> -> vector<24x1xf32>
    %691 = vector.broadcast %690 : vector<24x1xf32> to vector<24x24xf32>
    %692 = arith.mulf %687, %691 : vector<24x24xf32>
    %693 = arith.truncf %692 : vector<24x24xf32> to vector<24x24xbf16>
    %694 = arith.truncf %678 : vector<24x8xf32> to vector<24x8xbf16>
    %cst_218 = arith.constant dense<0.000000e+00> : vector<24x8xf32>
    %695 = tpu.matmul %693, %694, %cst_218 {dimension_numbers = #tpu.dot_dimension_numbers<[1], [0], [0], [1], [0, 0, 1, 1], [], []>} : vector<24x24xbf16>, vector<24x8xbf16>, vector<24x8xf32> -> vector<24x8xf32>
    %696 = vector.extract_strided_slice %633 {offsets = [0, 24], sizes = [24, 8], strides = [1, 1]} : vector<24x128xf32> to vector<24x8xf32>
    %697 = vector.extract_strided_slice %635 {offsets = [24, 0], sizes = [8, 24], strides = [1, 1]} : vector<32x24xf32> to vector<8x24xf32>
    %698 = vector.extract_strided_slice %633 {offsets = [0, 88], sizes = [24, 8], strides = [1, 1]} : vector<24x128xf32> to vector<24x8xf32>
    %699 = arith.truncf %696 : vector<24x8xf32> to vector<24x8xbf16>
    %700 = arith.truncf %697 : vector<8x24xf32> to vector<8x24xbf16>
    %cst_219 = arith.constant dense<0.000000e+00> : vector<24x24xf32>
    %701 = tpu.matmul %699, %700, %cst_219 {dimension_numbers = #tpu.dot_dimension_numbers<[1], [0], [0], [1], [0, 0, 1, 1], [], []>} : vector<24x8xbf16>, vector<8x24xbf16>, vector<24x24xf32> -> vector<24x24xf32>
    %702 = arith.addf %701, %22 : vector<24x24xf32>
    %cst_220 = arith.constant dense<0xFF800000> : vector<24xf32>
    %703 = vector.multi_reduction <maximumf>, %702, %cst_220 [1] : vector<24x24xf32> to vector<24xf32>
    %704 = vector.shape_cast %703 : vector<24xf32> to vector<24x1xf32>
    %705 = vector.broadcast %704 : vector<24x1xf32> to vector<24x24xf32>
    %706 = arith.subf %702, %705 : vector<24x24xf32>
    %707 = math.exp %706 : vector<24x24xf32>
    %cst_221 = arith.constant dense<0.000000e+00> : vector<24xf32>
    %708 = vector.multi_reduction <add>, %707, %cst_221 [1] : vector<24x24xf32> to vector<24xf32>
    %709 = vector.shape_cast %708 : vector<24xf32> to vector<24x1xf32>
    %710 = tpu.reciprocal %709 {approx = true} : vector<24x1xf32> -> vector<24x1xf32>
    %711 = vector.broadcast %710 : vector<24x1xf32> to vector<24x24xf32>
    %712 = arith.mulf %707, %711 : vector<24x24xf32>
    %713 = arith.truncf %712 : vector<24x24xf32> to vector<24x24xbf16>
    %714 = arith.truncf %698 : vector<24x8xf32> to vector<24x8xbf16>
    %cst_222 = arith.constant dense<0.000000e+00> : vector<24x8xf32>
    %715 = tpu.matmul %713, %714, %cst_222 {dimension_numbers = #tpu.dot_dimension_numbers<[1], [0], [0], [1], [0, 0, 1, 1], [], []>} : vector<24x24xbf16>, vector<24x8xbf16>, vector<24x8xf32> -> vector<24x8xf32>
    %716 = tpu.concatenate %655, %675, %695, %715 in 1 : vector<24x8xf32>, vector<24x8xf32>, vector<24x8xf32>, vector<24x8xf32> -> vector<24x32xf32>
    %c2816 = arith.constant 2816 : index
    %c0_223 = arith.constant 0 : index
    %717 = vector.load %arg1[%c2816, %c0_223] : memref<3584x128xbf16, #tpu.memory_space<vmem>>, vector<32x128xbf16>
    %718 = arith.truncf %716 : vector<24x32xf32> to vector<24x32xbf16>
    %cst_224 = arith.constant dense<0.000000e+00> : vector<24x128xf32>
    %719 = tpu.matmul %718, %717, %cst_224 {dimension_numbers = #tpu.dot_dimension_numbers<[1], [0], [0], [1], [0, 0, 1, 1], [], []>} : vector<24x32xbf16>, vector<32x128xbf16>, vector<24x128xf32> -> vector<24x128xf32>
    %c37 = arith.constant 37 : index
    %c0_225 = arith.constant 0 : index
    %720 = vector.load %arg2[%c37, %c0_225] : memref<56x128xf32, #tpu.memory_space<vmem>>, vector<1x128xf32>
    %721 = vector.broadcast %720 : vector<1x128xf32> to vector<24x128xf32>
    %722 = arith.addf %719, %721 : vector<24x128xf32>
    %723 = arith.addf %627, %722 : vector<24x128xf32>
    %cst_226 = arith.constant dense<0.000000e+00> : vector<24xf32>
    %724 = vector.multi_reduction <add>, %723, %cst_226 [1] : vector<24x128xf32> to vector<24xf32>
    %725 = vector.shape_cast %724 : vector<24xf32> to vector<24x1xf32>
    %cst_227 = arith.constant 3.125000e-02 : f32
    %726 = vector.broadcast %cst_227 : f32 to vector<24x1xf32>
    %727 = arith.mulf %725, %726 : vector<24x1xf32>
    %728 = arith.mulf %723, %723 : vector<24x128xf32>
    %cst_228 = arith.constant dense<0.000000e+00> : vector<24xf32>
    %729 = vector.multi_reduction <add>, %728, %cst_228 [1] : vector<24x128xf32> to vector<24xf32>
    %730 = vector.shape_cast %729 : vector<24xf32> to vector<24x1xf32>
    %cst_229 = arith.constant 3.125000e-02 : f32
    %731 = vector.broadcast %cst_229 : f32 to vector<24x1xf32>
    %732 = arith.mulf %730, %731 : vector<24x1xf32>
    %733 = vector.broadcast %727 : vector<24x1xf32> to vector<24x128xf32>
    %734 = arith.subf %723, %733 : vector<24x128xf32>
    %735 = arith.mulf %727, %727 : vector<24x1xf32>
    %736 = arith.subf %732, %735 : vector<24x1xf32>
    %cst_230 = arith.constant 9.99999974E-6 : f32
    %737 = vector.broadcast %cst_230 : f32 to vector<24x1xf32>
    %738 = arith.addf %736, %737 : vector<24x1xf32>
    %739 = math.rsqrt %738 : vector<24x1xf32>
    %740 = vector.broadcast %739 : vector<24x1xf32> to vector<24x128xf32>
    %741 = arith.mulf %734, %740 : vector<24x128xf32>
    %c38 = arith.constant 38 : index
    %c0_231 = arith.constant 0 : index
    %742 = vector.load %arg2[%c38, %c0_231] : memref<56x128xf32, #tpu.memory_space<vmem>>, vector<1x128xf32>
    %743 = vector.broadcast %742 : vector<1x128xf32> to vector<24x128xf32>
    %744 = arith.mulf %741, %743 : vector<24x128xf32>
    %c39 = arith.constant 39 : index
    %c0_232 = arith.constant 0 : index
    %745 = vector.load %arg2[%c39, %c0_232] : memref<56x128xf32, #tpu.memory_space<vmem>>, vector<1x128xf32>
    %746 = vector.broadcast %745 : vector<1x128xf32> to vector<24x128xf32>
    %747 = arith.addf %744, %746 : vector<24x128xf32>
    %c2944 = arith.constant 2944 : index
    %c0_233 = arith.constant 0 : index
    %748 = vector.load %arg1[%c2944, %c0_233] : memref<3584x128xbf16, #tpu.memory_space<vmem>>, vector<128x128xbf16>
    %749 = arith.truncf %419 : vector<8x128xf32> to vector<8x128xbf16>
    %cst_234 = arith.constant dense<0.000000e+00> : vector<8x128xf32>
    %750 = tpu.matmul %749, %748, %cst_234 {dimension_numbers = #tpu.dot_dimension_numbers<[1], [0], [0], [1], [0, 0, 1, 1], [], []>} : vector<8x128xbf16>, vector<128x128xbf16>, vector<8x128xf32> -> vector<8x128xf32>
    %c40 = arith.constant 40 : index
    %c0_235 = arith.constant 0 : index
    %751 = vector.load %arg2[%c40, %c0_235] : memref<56x128xf32, #tpu.memory_space<vmem>>, vector<1x128xf32>
    %752 = vector.broadcast %751 : vector<1x128xf32> to vector<8x128xf32>
    %753 = arith.addf %750, %752 : vector<8x128xf32>
    %c3072 = arith.constant 3072 : index
    %c0_236 = arith.constant 0 : index
    %754 = vector.load %arg1[%c3072, %c0_236] : memref<3584x128xbf16, #tpu.memory_space<vmem>>, vector<128x128xbf16>
    %755 = arith.truncf %753 : vector<8x128xf32> to vector<8x128xbf16>
    %cst_237 = arith.constant dense<0.000000e+00> : vector<8x128xf32>
    %756 = tpu.matmul %755, %754, %cst_237 {dimension_numbers = #tpu.dot_dimension_numbers<[1], [0], [0], [1], [0, 0, 1, 1], [], []>} : vector<8x128xbf16>, vector<128x128xbf16>, vector<8x128xf32> -> vector<8x128xf32>
    %c41 = arith.constant 41 : index
    %c0_238 = arith.constant 0 : index
    %757 = vector.load %arg2[%c41, %c0_238] : memref<56x128xf32, #tpu.memory_space<vmem>>, vector<1x128xf32>
    %758 = vector.broadcast %757 : vector<1x128xf32> to vector<8x128xf32>
    %759 = arith.addf %756, %758 : vector<8x128xf32>
    %cst_239 = arith.constant dense<0.000000e+00> : vector<24x128xf32>
    %760 = tpu.matmul %24, %759, %cst_239 {dimension_numbers = #tpu.dot_dimension_numbers<[1], [0], [0], [1], [0, 0, 1, 1], [], []>} : vector<24x8xf32>, vector<8x128xf32>, vector<24x128xf32> -> vector<24x128xf32>
    %761 = arith.addf %747, %760 : vector<24x128xf32>
    %cst_240 = arith.constant dense<0.000000e+00> : vector<24xf32>
    %762 = vector.multi_reduction <add>, %761, %cst_240 [1] : vector<24x128xf32> to vector<24xf32>
    %763 = vector.shape_cast %762 : vector<24xf32> to vector<24x1xf32>
    %cst_241 = arith.constant 3.125000e-02 : f32
    %764 = vector.broadcast %cst_241 : f32 to vector<24x1xf32>
    %765 = arith.mulf %763, %764 : vector<24x1xf32>
    %766 = arith.mulf %761, %761 : vector<24x128xf32>
    %cst_242 = arith.constant dense<0.000000e+00> : vector<24xf32>
    %767 = vector.multi_reduction <add>, %766, %cst_242 [1] : vector<24x128xf32> to vector<24xf32>
    %768 = vector.shape_cast %767 : vector<24xf32> to vector<24x1xf32>
    %cst_243 = arith.constant 3.125000e-02 : f32
    %769 = vector.broadcast %cst_243 : f32 to vector<24x1xf32>
    %770 = arith.mulf %768, %769 : vector<24x1xf32>
    %771 = vector.broadcast %765 : vector<24x1xf32> to vector<24x128xf32>
    %772 = arith.subf %761, %771 : vector<24x128xf32>
    %773 = arith.mulf %765, %765 : vector<24x1xf32>
    %774 = arith.subf %770, %773 : vector<24x1xf32>
    %cst_244 = arith.constant 9.99999974E-6 : f32
    %775 = vector.broadcast %cst_244 : f32 to vector<24x1xf32>
    %776 = arith.addf %774, %775 : vector<24x1xf32>
    %777 = math.rsqrt %776 : vector<24x1xf32>
    %778 = vector.broadcast %777 : vector<24x1xf32> to vector<24x128xf32>
    %779 = arith.mulf %772, %778 : vector<24x128xf32>
    %c42 = arith.constant 42 : index
    %c0_245 = arith.constant 0 : index
    %780 = vector.load %arg2[%c42, %c0_245] : memref<56x128xf32, #tpu.memory_space<vmem>>, vector<1x128xf32>
    %781 = vector.broadcast %780 : vector<1x128xf32> to vector<24x128xf32>
    %782 = arith.mulf %779, %781 : vector<24x128xf32>
    %c43 = arith.constant 43 : index
    %c0_246 = arith.constant 0 : index
    %783 = vector.load %arg2[%c43, %c0_246] : memref<56x128xf32, #tpu.memory_space<vmem>>, vector<1x128xf32>
    %784 = vector.broadcast %783 : vector<1x128xf32> to vector<24x128xf32>
    %785 = arith.addf %782, %784 : vector<24x128xf32>
    %c3200 = arith.constant 3200 : index
    %c0_247 = arith.constant 0 : index
    %786 = vector.load %arg1[%c3200, %c0_247] : memref<3584x128xbf16, #tpu.memory_space<vmem>>, vector<128x128xbf16>
    %787 = arith.truncf %785 : vector<24x128xf32> to vector<24x128xbf16>
    %cst_248 = arith.constant dense<0.000000e+00> : vector<24x128xf32>
    %788 = tpu.matmul %787, %786, %cst_248 {dimension_numbers = #tpu.dot_dimension_numbers<[1], [0], [0], [1], [0, 0, 1, 1], [], []>} : vector<24x128xbf16>, vector<128x128xbf16>, vector<24x128xf32> -> vector<24x128xf32>
    %c44 = arith.constant 44 : index
    %c0_249 = arith.constant 0 : index
    %789 = vector.load %arg2[%c44, %c0_249] : memref<56x128xf32, #tpu.memory_space<vmem>>, vector<1x128xf32>
    %790 = vector.broadcast %789 : vector<1x128xf32> to vector<24x128xf32>
    %791 = arith.addf %788, %790 : vector<24x128xf32>
    %cst_250 = arith.constant 5.000000e-01 : f32
    %792 = vector.broadcast %cst_250 : f32 to vector<24x128xf32>
    %793 = arith.mulf %792, %791 : vector<24x128xf32>
    %cst_251 = arith.constant 0.707106769 : f32
    %794 = vector.broadcast %cst_251 : f32 to vector<24x128xf32>
    %795 = arith.mulf %791, %794 : vector<24x128xf32>
    %796 = math.erf %795 : vector<24x128xf32>
    %cst_252 = arith.constant 1.000000e+00 : f32
    %797 = vector.broadcast %cst_252 : f32 to vector<24x128xf32>
    %798 = arith.addf %797, %796 : vector<24x128xf32>
    %799 = arith.mulf %793, %798 : vector<24x128xf32>
    %c3328 = arith.constant 3328 : index
    %c0_253 = arith.constant 0 : index
    %800 = vector.load %arg1[%c3328, %c0_253] : memref<3584x128xbf16, #tpu.memory_space<vmem>>, vector<128x128xbf16>
    %801 = arith.truncf %799 : vector<24x128xf32> to vector<24x128xbf16>
    %cst_254 = arith.constant dense<0.000000e+00> : vector<24x128xf32>
    %802 = tpu.matmul %801, %800, %cst_254 {dimension_numbers = #tpu.dot_dimension_numbers<[1], [0], [0], [1], [0, 0, 1, 1], [], []>} : vector<24x128xbf16>, vector<128x128xbf16>, vector<24x128xf32> -> vector<24x128xf32>
    %c45 = arith.constant 45 : index
    %c0_255 = arith.constant 0 : index
    %803 = vector.load %arg2[%c45, %c0_255] : memref<56x128xf32, #tpu.memory_space<vmem>>, vector<1x128xf32>
    %804 = vector.broadcast %803 : vector<1x128xf32> to vector<24x128xf32>
    %805 = arith.addf %802, %804 : vector<24x128xf32>
    %806 = arith.addf %785, %805 : vector<24x128xf32>
    %cst_256 = arith.constant dense<0.000000e+00> : vector<24xf32>
    %807 = vector.multi_reduction <add>, %806, %cst_256 [1] : vector<24x128xf32> to vector<24xf32>
    %808 = vector.shape_cast %807 : vector<24xf32> to vector<24x1xf32>
    %cst_257 = arith.constant 3.125000e-02 : f32
    %809 = vector.broadcast %cst_257 : f32 to vector<24x1xf32>
    %810 = arith.mulf %808, %809 : vector<24x1xf32>
    %811 = arith.mulf %806, %806 : vector<24x128xf32>
    %cst_258 = arith.constant dense<0.000000e+00> : vector<24xf32>
    %812 = vector.multi_reduction <add>, %811, %cst_258 [1] : vector<24x128xf32> to vector<24xf32>
    %813 = vector.shape_cast %812 : vector<24xf32> to vector<24x1xf32>
    %cst_259 = arith.constant 3.125000e-02 : f32
    %814 = vector.broadcast %cst_259 : f32 to vector<24x1xf32>
    %815 = arith.mulf %813, %814 : vector<24x1xf32>
    %816 = vector.broadcast %810 : vector<24x1xf32> to vector<24x128xf32>
    %817 = arith.subf %806, %816 : vector<24x128xf32>
    %818 = arith.mulf %810, %810 : vector<24x1xf32>
    %819 = arith.subf %815, %818 : vector<24x1xf32>
    %cst_260 = arith.constant 9.99999974E-6 : f32
    %820 = vector.broadcast %cst_260 : f32 to vector<24x1xf32>
    %821 = arith.addf %819, %820 : vector<24x1xf32>
    %822 = math.rsqrt %821 : vector<24x1xf32>
    %823 = vector.broadcast %822 : vector<24x1xf32> to vector<24x128xf32>
    %824 = arith.mulf %817, %823 : vector<24x128xf32>
    %c46 = arith.constant 46 : index
    %c0_261 = arith.constant 0 : index
    %825 = vector.load %arg2[%c46, %c0_261] : memref<56x128xf32, #tpu.memory_space<vmem>>, vector<1x128xf32>
    %826 = vector.broadcast %825 : vector<1x128xf32> to vector<24x128xf32>
    %827 = arith.mulf %824, %826 : vector<24x128xf32>
    %c47 = arith.constant 47 : index
    %c0_262 = arith.constant 0 : index
    %828 = vector.load %arg2[%c47, %c0_262] : memref<56x128xf32, #tpu.memory_space<vmem>>, vector<1x128xf32>
    %829 = vector.broadcast %828 : vector<1x128xf32> to vector<24x128xf32>
    %830 = arith.addf %827, %829 : vector<24x128xf32>
    %c3456 = arith.constant 3456 : index
    %c0_263 = arith.constant 0 : index
    %831 = vector.load %arg1[%c3456, %c0_263] : memref<3584x128xbf16, #tpu.memory_space<vmem>>, vector<128x128xbf16>
    %832 = arith.truncf %830 : vector<24x128xf32> to vector<24x128xbf16>
    %cst_264 = arith.constant dense<0.000000e+00> : vector<24x128xf32>
    %833 = tpu.matmul %832, %831, %cst_264 {dimension_numbers = #tpu.dot_dimension_numbers<[1], [0], [0], [1], [0, 0, 1, 1], [], []>} : vector<24x128xbf16>, vector<128x128xbf16>, vector<24x128xf32> -> vector<24x128xf32>
    %c48 = arith.constant 48 : index
    %c0_265 = arith.constant 0 : index
    %834 = vector.load %arg2[%c48, %c0_265] : memref<56x128xf32, #tpu.memory_space<vmem>>, vector<1x128xf32>
    %835 = vector.broadcast %834 : vector<1x128xf32> to vector<24x128xf32>
    %836 = arith.addf %833, %835 : vector<24x128xf32>
    %c0_266 = arith.constant 0 : index
    %c0_267 = arith.constant 0 : index
    %c0_268 = arith.constant 0 : index
    %837 = vector.load %arg12[%c0_266, %c0_267, %c0_268] : memref<1x24x128xf32, #tpu.memory_space<vmem>>, vector<1x24x128xf32>
    %838 = vector.shape_cast %837 : vector<1x24x128xf32> to vector<24x128xf32>
    %839 = vector.shape_cast %836 : vector<24x128xf32> to vector<1x24x128xf32>
    tpu.vector_store %arg12[%c0_266, %c0_267, %c0_268], %839 {strides = array<i32>} : memref<1x24x128xf32, #tpu.memory_space<vmem>>, vector<1x24x128xf32>,
    return
  }
  func.func @transform_0(%arg0: i32) -> (i32, i32) {
    %c0_i32 = arith.constant 0 : i32
    %c0_i32_0 = arith.constant 0 : i32
    %c0_i32_1 = arith.constant 0 : i32
    return %c0_i32, %c0_i32_0 : i32, i32
  }
  func.func @transform_1(%arg0: i32) -> (i32, i32) {
    %c0_i32 = arith.constant 0 : i32
    %c0_i32_0 = arith.constant 0 : i32
    %c0_i32_1 = arith.constant 0 : i32
    return %c0_i32, %c0_i32_0 : i32, i32
  }
  func.func @transform_2(%arg0: i32) -> (i32, i32, i32) {
    %c0_i32 = arith.constant 0 : i32
    %c0_i32_0 = arith.constant 0 : i32
    %c0_i32_1 = arith.constant 0 : i32
    return %arg0, %c0_i32, %c0_i32_0 : i32, i32, i32
  }
  func.func @transform_3(%arg0: i32) -> (i32, i32, i32) {
    %c0_i32 = arith.constant 0 : i32
    %c0_i32_0 = arith.constant 0 : i32
    %c0_i32_1 = arith.constant 0 : i32
    return %arg0, %c0_i32, %c0_i32_0 : i32, i32, i32
  }
  func.func @transform_4(%arg0: i32) -> (i32, i32, i32) {
    %c0_i32 = arith.constant 0 : i32
    %c0_i32_0 = arith.constant 0 : i32
    %c0_i32_1 = arith.constant 0 : i32
    return %arg0, %c0_i32, %c0_i32_0 : i32, i32, i32
  }
  func.func @transform_5(%arg0: i32) -> (i32, i32, i32) {
    %c0_i32 = arith.constant 0 : i32
    %c0_i32_0 = arith.constant 0 : i32
    %c0_i32_1 = arith.constant 0 : i32
    return %arg0, %c0_i32, %c0_i32_0 : i32, i32, i32
  }
  func.func @transform_6(%arg0: i32) -> (i32, i32, i32) {
    %c0_i32 = arith.constant 0 : i32
    %c0_i32_0 = arith.constant 0 : i32
    %c0_i32_1 = arith.constant 0 : i32
    return %arg0, %c0_i32, %c0_i32_0 : i32, i32, i32
  }
  func.func @transform_7(%arg0: i32) -> (i32, i32, i32) {
    %c0_i32 = arith.constant 0 : i32
    %c0_i32_0 = arith.constant 0 : i32
    %c0_i32_1 = arith.constant 0 : i32
    return %arg0, %c0_i32, %c0_i32_0 : i32, i32, i32
  }
  func.func @transform_8(%arg0: i32) -> (i32, i32, i32) {
    %c0_i32 = arith.constant 0 : i32
    %c0_i32_0 = arith.constant 0 : i32
    %c0_i32_1 = arith.constant 0 : i32
    return %arg0, %c0_i32, %c0_i32_0 : i32, i32, i32
  }
  func.func @transform_9(%arg0: i32) -> (i32, i32, i32) {
    %c0_i32 = arith.constant 0 : i32
    %c0_i32_0 = arith.constant 0 : i32
    %c0_i32_1 = arith.constant 0 : i32
    return %arg0, %c0_i32, %c0_i32_0 : i32, i32, i32
  }
  func.func @transform_10(%arg0: i32) -> (i32, i32, i32) {
    %c0_i32 = arith.constant 0 : i32
    %c0_i32_0 = arith.constant 0 : i32
    %c0_i32_1 = arith.constant 0 : i32
    return %arg0, %c0_i32, %c0_i32_0 : i32, i32, i32
  }
  func.func @transform_11(%arg0: i32) -> (i32, i32, i32) {
    %c0_i32 = arith.constant 0 : i32
    %c0_i32_0 = arith.constant 0 : i32
    %c0_i32_1 = arith.constant 0 : i32
    return %arg0, %c0_i32, %c0_i32_0 : i32, i32, i32
  }
}

</mosaic_0001>

<llo_original>
// kernel: tpu_custom_call.1
$region0: #{tpu_custom_call.1}
  #allocation0 [shape = 'u32[]', space=smem, size = 0x4, offset = 0x4, fixed_abs, tag = 'smem constant byte address 0x4 - core index']
  #allocation1 [shape = 'u32[144,128]{1,0:T(1,128)}', space=vmem, size = 0x12000, scoped, tag = 'internal scratch']
  %s0 = inlined_call_operand.hbm [shape: bf16[3584,128], index: 0, kind: input, shape index: {}]
  %s1 = inlined_call_operand.vmem [shape: f32[56,128], index: 1, kind: input, shape index: {}]
  %s2 = inlined_call_operand.hbm [shape: f32[1,24,128], index: 2, kind: input, shape index: {}]
  %s3 = inlined_call_operand.hbm [shape: f32[1,24,128], index: 3, kind: input, shape index: {}]
  %s4 = inlined_call_operand.vmem [shape: f32[1,8,128], index: 4, kind: input, shape index: {}]
  %s5 = inlined_call_operand.vmem [shape: f32[1,24,4], index: 5, kind: input, shape index: {}]
  %s6 = inlined_call_operand.vmem [shape: f32[1,2,24], index: 6, kind: input, shape index: {}]
  %s7 = inlined_call_operand.vmem [shape: f32[1,24,8], index: 7, kind: input, shape index: {}]
  %s8 = inlined_call_operand.vmem [shape: f32[1,8,24], index: 8, kind: input, shape index: {}]
  %s9 = inlined_call_operand.hbm [shape: f32[1,8,128], index: 9, kind: output, shape index: {0}]
  %s10 = inlined_call_operand.hbm [shape: f32[1,8,128], index: 10, kind: output, shape index: {1}]
  %s11 = inlined_call_operand.hbm [shape: f32[1,24,128], index: 11, kind: output, shape index: {2}]
  %12 = xla_tuple %s9, %s10, %s11
  %s13 = sld [smem:[#allocation0]]
  $region74: #{tpu_custom_call.1} parent=0
    _
  %s15 = ssub.s32 1, %s13
  %s16 = scalar_select 0, %s15, %s13
  $region1: #{tpu_custom_call.1} parent=0
    #allocation2 [shape = 'u8[917504]{0}', space=vmem, size = 0xe0000, scoped, tag = 'input window, operand 0, single buffered']
    #allocation3 [shape = 's32[1]{0}', space=sflag, size = 0x4, scoped, tag = 'scoped memory for tpu_custom_call.1']
    #allocation4 [shape = 's32[1]{0}', space=sflag, size = 0x4, scoped, tag = 'scoped memory for tpu_custom_call.1']
    #allocation5 [shape = 'u8[12288]{0}', space=vmem, size = 0x3000, scoped, tag = 'input window, operand 2, single buffered']
    #allocation6 [shape = 's32[1]{0}', space=sflag, size = 0x4, scoped, tag = 'scoped memory for tpu_custom_call.1']
    #allocation7 [shape = 'u8[12288]{0}', space=vmem, size = 0x3000, scoped, tag = 'input window, operand 3, single buffered']
    #allocation8 [shape = 'u8[4096]{0}', space=vmem, size = 0x1000, scoped, tag = 'output window, operand 0, single buffered']
    #allocation9 [shape = 'u8[4096]{0}', space=vmem, size = 0x1000, scoped, tag = 'output window, operand 1, single buffered']
    #allocation10 [shape = 's32[1]{0}', space=sflag, size = 0x4, scoped, tag = 'scoped memory for tpu_custom_call.1']
    #allocation11 [shape = 'u8[12288]{0}', space=vmem, size = 0x3000, scoped, tag = 'output window, operand 2, single buffered']
    %17 = vsyncpa [#allocation3], 0
    %18 = vsyncpa [#allocation6], 0
    %19 = vsyncpa [#allocation4], 0
    %20 = vsyncpa [#allocation10], 0
    // Predicated region
    $region2: #{tpu_custom_call.1} parent=1 // pred_check
      _
    $region3: #{tpu_custom_call.1} parent=1 // pred_check_branch
      %22 = sbr.rel (0) target = $region5
    $region4: #{tpu_custom_call.1} parent=1 // pred_region
      %s24 = ssub.s32 28672, 28672
      %25 = vsyncadd [#allocation3], %s24
      %s26 = sshll.u32 [#allocation2], 4
      %s27 = int_to_ptr.vmem [resolvable:$true] %s26
      %32 = dma.hbm_to_vmem [thread:$0]  %s0, 28672, %s27, [#allocation3], 64, 64, 4
    $region5: #{tpu_custom_call.1} parent=1 // pred_fallthru
      _
    // Predicated region
    $region6: #{tpu_custom_call.1} parent=1 // pred_check
      _
    $region7: #{tpu_custom_call.1} parent=1 // pred_check_branch
      %34 = sbr.rel (0) target = $region9
    $region8: #{tpu_custom_call.1} parent=1 // pred_region
      _
    $region9: #{tpu_custom_call.1} parent=1 // pred_fallthru
      _
    // Predicated region
    $region10: #{tpu_custom_call.1} parent=1 // pred_check
      _
    $region11: #{tpu_custom_call.1} parent=1 // pred_check_branch
      %36 = sbr.rel (0) target = $region13
    $region12: #{tpu_custom_call.1} parent=1 // pred_region
      %s38 = ssub.s32 384, 384
      %39 = vsyncadd [#allocation6], %s38
      %s40 = sshll.u32 [#allocation5], 4
      %s41 = int_to_ptr.vmem [resolvable:$true] %s40
      %46 = dma.hbm_to_vmem [thread:$0]  %s2, 384, %s41, [#allocation6], 128, 128, 8
    $region13: #{tpu_custom_call.1} parent=1 // pred_fallthru
      _
    // Predicated region
    $region14: #{tpu_custom_call.1} parent=1 // pred_check
      _
    $region15: #{tpu_custom_call.1} parent=1 // pred_check_branch
      %48 = sbr.rel (0) target = $region17
    $region16: #{tpu_custom_call.1} parent=1 // pred_region
      %s50 = ssub.s32 384, 384
      %51 = vsyncadd [#allocation6], %s50
      %s52 = sshll.u32 [#allocation7], 4
      %s53 = int_to_ptr.vmem [resolvable:$true] %s52
      %58 = dma.hbm_to_vmem [thread:$0]  %s3, 384, %s53, [#allocation6], 128, 128, 8
    $region17: #{tpu_custom_call.1} parent=1 // pred_fallthru
      _
    // Predicated region
    $region18: #{tpu_custom_call.1} parent=1 // pred_check
      _
    $region19: #{tpu_custom_call.1} parent=1 // pred_check_branch
      %60 = sbr.rel (0) target = $region21
    $region20: #{tpu_custom_call.1} parent=1 // pred_region
      _
    $region21: #{tpu_custom_call.1} parent=1 // pred_fallthru
      _
    // Predicated region
    $region22: #{tpu_custom_call.1} parent=1 // pred_check
      _
    $region23: #{tpu_custom_call.1} parent=1 // pred_check_branch
      %62 = sbr.rel (0) target = $region25
    $region24: #{tpu_custom_call.1} parent=1 // pred_region
      _
    $region25: #{tpu_custom_call.1} parent=1 // pred_fallthru
      _
    // Predicated region
    $region26: #{tpu_custom_call.1} parent=1 // pred_check
      _
    $region27: #{tpu_custom_call.1} parent=1 // pred_check_branch
      %64 = sbr.rel (0) target = $region29
    $region28: #{tpu_custom_call.1} parent=1 // pred_region
      _
    $region29: #{tpu_custom_call.1} parent=1 // pred_fallthru
      _
    // Predicated region
    $region30: #{tpu_custom_call.1} parent=1 // pred_check
      _
    $region31: #{tpu_custom_call.1} parent=1 // pred_check_branch
      %66 = sbr.rel (0) target = $region33
    $region32: #{tpu_custom_call.1} parent=1 // pred_region
      _
    $region33: #{tpu_custom_call.1} parent=1 // pred_fallthru
      _
    // Predicated region
    $region34: #{tpu_custom_call.1} parent=1 // pred_check
      _
    $region35: #{tpu_custom_call.1} parent=1 // pred_check_branch
      %68 = sbr.rel (0) target = $region37
    $region36: #{tpu_custom_call.1} parent=1 // pred_region
      _
    $region37: #{tpu_custom_call.1} parent=1 // pred_fallthru
      _
    // Predicated region
    $region38: #{tpu_custom_call.1} parent=1 // pred_check
      _
    $region39: #{tpu_custom_call.1} parent=1 // pred_check_branch
      %70 = sbr.rel (0) target = $region41
    $region40: #{tpu_custom_call.1} parent=1 // pred_region
      %71 = dma.done [#allocation3], 28672
    $region41: #{tpu_custom_call.1} parent=1 // pred_fallthru
      _
    // Predicated region
    $region42: #{tpu_custom_call.1} parent=1 // pred_check
      _
    $region43: #{tpu_custom_call.1} parent=1 // pred_check_branch
      %73 = sbr.rel (0) target = $region45
    $region44: #{tpu_custom_call.1} parent=1 // pred_region
      %74 = dma.done [#allocation6], 384
    $region45: #{tpu_custom_call.1} parent=1 // pred_fallthru
      _
    // Predicated region
    $region46: #{tpu_custom_call.1} parent=1 // pred_check
      _
    $region47: #{tpu_custom_call.1} parent=1 // pred_check_branch
      %76 = sbr.rel (0) target = $region49
    $region48: #{tpu_custom_call.1} parent=1 // pred_region
      %77 = dma.done [#allocation6], 384
    $region49: #{tpu_custom_call.1} parent=1 // pred_fallthru
      _
    %v79 = vld [vmem:[%s5] sm:$0xff]
    %v80 = vld [vmem:[%s5 + $0x8] sm:$0xff]
    %v81 = vld [vmem:[%s5 + $0x10] sm:$0xff]
    %v82 = vld [vmem:[%s6] sm:$0x3]
    %84 = vset.pattern.permute.xlu0 0
    %85 = vperm.xlu0 %84, %v79
    %v86 = vpop.permute.xlu0 %85
    %89 = vset.pattern.permute.xlu0 0
    %90 = vperm.xlu0 %89, %v80
    %v91 = vpop.permute.xlu0 %90
    %94 = vset.pattern.permute.xlu0 0
    %95 = vperm.xlu0 %94, %v81
    %v96 = vpop.permute.xlu0 %95
    %v98 = vlaneseq
    %v99 = vshrl.u32 %v98, 7
    %v100 = vsub.s32 0, %v99
    %v101 = vrot.slane %v82, %v100
    %vm102 = vcmp.eq.f32.partialorder %v86, %v101
    %vm103 = vcmp.eq.f32.partialorder %v91, %v101
    %vm104 = vcmp.eq.f32.partialorder %v96, %v101
    %v105 = vsel %vm102, 0.0, -1e+30
    %v106 = vsel %vm103, 0.0, -1e+30
    %v107 = vsel %vm104, 0.0, -1e+30
    %v108 = vlaneseq
    %v109 = vshrl.u32 %v108, 7
    %v110 = vsub.s32 1, %v109
    %v111 = vrot.slane %v82, %v110
    %112 = vset.pattern.permute.xlu0 1
    %113 = vperm.xlu0 %112, %v79
    %v114 = vpop.permute.xlu0 %113
    %116 = vset.pattern.permute.xlu0 1
    %117 = vperm.xlu0 %116, %v80
    %v118 = vpop.permute.xlu0 %117
    %120 = vset.pattern.permute.xlu0 1
    %121 = vperm.xlu0 %120, %v81
    %v122 = vpop.permute.xlu0 %121
    %vm124 = vcmp.le.f32.partialorder %v111, %v114
    %vm125 = vcmp.le.f32.partialorder %v111, %v118
    %vm126 = vcmp.le.f32.partialorder %v111, %v122
    %vm127 = vmand %vm102, %vm124
    %vm128 = vmand %vm103, %vm125
    %vm129 = vmand %vm104, %vm126
    %v130 = vsel %vm127, 0.0, -1e+30
    %v131 = vsel %vm128, 0.0, -1e+30
    %v132 = vsel %vm129, 0.0, -1e+30
    %v133 = vld [vmem:[%s7] sm:$0xff]
    %v134 = vld [vmem:[%s7 + $0x8] sm:$0xff]
    %v135 = vld [vmem:[%s7 + $0x10] sm:$0xff]
    %v136 = vld [vmem:[%s8] sm:$0xff]
    %v137 = vld [vmem:[#allocation5] sm:$0xff]
    %v138 = vld [vmem:[#allocation5 + $0x8] sm:$0xff]
    %v139 = vld [vmem:[#allocation5 + $0x10] sm:$0xff]
    %v140 = vld [vmem:[#allocation2] sm:$0xf]
    %v141 = vld [vmem:[#allocation2 + $0x4] sm:$0xf]
    %v142 = vld [vmem:[#allocation2 + $0x8] sm:$0xf]
    %v143 = vld [vmem:[#allocation2 + $0xc] sm:$0xf]
    %v144 = vld [vmem:[#allocation2 + $0x10] sm:$0xf]
    %v145 = vld [vmem:[#allocation2 + $0x14] sm:$0xf]
    %v146 = vld [vmem:[#allocation2 + $0x18] sm:$0xf]
    %v147 = vld [vmem:[#allocation2 + $0x1c] sm:$0xf]
    %v148 = vld [vmem:[#allocation2 + $0x20] sm:$0xf]
    %v149 = vld [vmem:[#allocation2 + $0x24] sm:$0xf]
    %v150 = vld [vmem:[#allocation2 + $0x28] sm:$0xf]
    %v151 = vld [vmem:[#allocation2 + $0x2c] sm:$0xf]
    %v152 = vld [vmem:[#allocation2 + $0x30] sm:$0xf]
    %v153 = vld [vmem:[#allocation2 + $0x34] sm:$0xf]
    %v154 = vld [vmem:[#allocation2 + $0x38] sm:$0xf]
    %v155 = vld [vmem:[#allocation2 + $0x3c] sm:$0xf]
    %v156 = vpack.c.bf16 %v138, %v137
    %v157 = vpack.c.bf16 %v139, %v139
    %v158 = vld [vmem:[%s1] sm:$0x1]
    %v159 = vlaneseq
    %v160 = vshrl.u32 %v159, 7
    %v161 = vsub.s32 0, %v160
    %v162 = vrot.slane %v158, %v161
    %v179 = vunpack.c.l.b16 %v140
    %v180 = vunpack.c.l.b16 %v141
    %v181 = vunpack.c.l.b16 %v142
    %v182 = vunpack.c.l.b16 %v143
    %v183 = vunpack.c.l.b16 %v144
    %v184 = vunpack.c.l.b16 %v145
    %v185 = vunpack.c.l.b16 %v146
    %v186 = vunpack.c.l.b16 %v147
    %v187 = vunpack.c.l.b16 %v148
    %v188 = vunpack.c.l.b16 %v149
    %v189 = vunpack.c.l.b16 %v150
    %v190 = vunpack.c.l.b16 %v151
    %v191 = vunpack.c.l.b16 %v152
    %v192 = vunpack.c.l.b16 %v153
    %v193 = vunpack.c.l.b16 %v154
    %v194 = vunpack.c.l.b16 %v155
    %v195 = vpack.c.b16 %v180, %v179
    %v196 = vpack.c.b16 %v182, %v181
    %v197 = vpack.c.b16 %v184, %v183
    %v198 = vpack.c.b16 %v186, %v185
    %v199 = vpack.c.b16 %v188, %v187
    %v200 = vpack.c.b16 %v190, %v189
    %v201 = vpack.c.b16 %v192, %v191
    %v202 = vpack.c.b16 %v194, %v193
    %211 = vmatprep.subr.bf16.mxu0 0
    %212 = vmatpush1.bf16.msra.mxu0 %v195
    %213 = vmatprep.subr.bf16.mxu0 0
    %214 = vmatpush1.bf16.msra.mxu0 %v196
    %215 = vmatprep.subr.bf16.mxu0 0
    %216 = vmatpush1.bf16.msra.mxu0 %v197
    %217 = vmatprep.subr.bf16.mxu0 0
    %218 = vmatpush1.bf16.msra.mxu0 %v198
    %219 = vmatprep.subr.bf16.mxu0 0
    %220 = vmatpush1.bf16.msra.mxu0 %v199
    %221 = vmatprep.subr.bf16.mxu0 0
    %222 = vmatpush1.bf16.msra.mxu0 %v200
    %223 = vmatprep.subr.bf16.mxu0 0
    %224 = vmatpush1.bf16.msra.mxu0 %v201
    %225 = vmatprep.subr.bf16.mxu0 0
    %226 = vmatpush1.bf16.msra.mxu0 %v202
    %227 = vmatprep.subr.bf16.mxu0 0
    %228 = vmatpush1.bf16.msra.mxu0 0
    %229 = vmatprep.subr.bf16.mxu0 0
    %230 = vmatpush1.bf16.msra.mxu0 0
    %231 = vmatprep.subr.bf16.mxu0 0
    %232 = vmatpush1.bf16.msra.mxu0 0
    %233 = vmatprep.subr.bf16.mxu0 0
    %234 = vmatpush1.bf16.msra.mxu0 0
    %235 = vmatprep.subr.bf16.mxu0 0
    %236 = vmatpush1.bf16.msra.mxu0 0
    %237 = vmatprep.subr.bf16.mxu0 0
    %238 = vmatpush1.bf16.msra.mxu0 0
    %239 = vmatprep.subr.bf16.mxu0 0
    %240 = vmatpush1.bf16.msra.mxu0 0
    %241 = vmatprep.subr.bf16.mxu0 0
    %242 = vmatpush1.bf16.msra.mxu0 0
    %243 = vmatprep.mubr.bf16.mxu0 0
    %244 = vmatmul.mubr.bf16.gmra.mrb[0].mxu0 %v156
    %v245 = vpop.f32.mrb[0].mxu0
    %v246 = vadd.f32 %v162, %v245
    %v247 = vpop.f32.mrb[0].mxu0
    %v248 = vpop.f32.mrb[0].mxu0
    %v249 = vadd.f32 %v162, %v248
    %v250 = vpop.f32.mrb[0].mxu0
    %251 = vmatprep.mubr.bf16.mxu0 0
    %252 = vmatmul.mubr.bf16.gmra.mrb[0].mxu0 %v157
    %v253 = vpop.f32.mrb[0].mxu0
    %v254 = vadd.f32 %v162, %v253
    %v255 = vpop.f32.mrb[0].mxu0
    %v256 = vpop.f32.mrb[0].mxu0
    %v257 = vpop.f32.mrb[0].mxu0
    %258 = vdwg.mxu0
    %v259 = vld [vmem:[#allocation7] sm:$0xff]
    %v260 = vld [vmem:[#allocation7 + $0x8] sm:$0xff]
    %v261 = vld [vmem:[#allocation7 + $0x10] sm:$0xff]
    %v262 = vld [vmem:[#allocation2 + $0x40] sm:$0xf]
    %v263 = vld [vmem:[#allocation2 + $0x44] sm:$0xf]
    %v264 = vld [vmem:[#allocation2 + $0x48] sm:$0xf]
    %v265 = vld [vmem:[#allocation2 + $0x4c] sm:$0xf]
    %v266 = vld [vmem:[#allocation2 + $0x50] sm:$0xf]
    %v267 = vld [vmem:[#allocation2 + $0x54] sm:$0xf]
    %v268 = vld [vmem:[#allocation2 + $0x58] sm:$0xf]
    %v269 = vld [vmem:[#allocation2 + $0x5c] sm:$0xf]
    %v270 = vld [vmem:[#allocation2 + $0x60] sm:$0xf]
    %v271 = vld [vmem:[#allocation2 + $0x64] sm:$0xf]
    %v272 = vld [vmem:[#allocation2 + $0x68] sm:$0xf]
    %v273 = vld [vmem:[#allocation2 + $0x6c] sm:$0xf]
    %v274 = vld [vmem:[#allocation2 + $0x70] sm:$0xf]
    %v275 = vld [vmem:[#allocation2 + $0x74] sm:$0xf]
    %v276 = vld [vmem:[#allocation2 + $0x78] sm:$0xf]
    %v277 = vld [vmem:[#allocation2 + $0x7c] sm:$0xf]
    %v278 = vpack.c.bf16 %v260, %v259
    %v279 = vpack.c.bf16 %v261, %v261
    %v280 = vld [vmem:[%s1 + $0x1] sm:$0x1]
    %v281 = vlaneseq
    %v282 = vshrl.u32 %v281, 7
    %v283 = vsub.s32 0, %v282
    %v284 = vrot.slane %v280, %v283
    %v301 = vunpack.c.l.b16 %v262
    %v302 = vunpack.c.l.b16 %v263
    %v303 = vunpack.c.l.b16 %v264
    %v304 = vunpack.c.l.b16 %v265
    %v305 = vunpack.c.l.b16 %v266
    %v306 = vunpack.c.l.b16 %v267
    %v307 = vunpack.c.l.b16 %v268
    %v308 = vunpack.c.l.b16 %v269
    %v309 = vunpack.c.l.b16 %v270
    %v310 = vunpack.c.l.b16 %v271
    %v311 = vunpack.c.l.b16 %v272
    %v312 = vunpack.c.l.b16 %v273
    %v313 = vunpack.c.l.b16 %v274
    %v314 = vunpack.c.l.b16 %v275
    %v315 = vunpack.c.l.b16 %v276
    %v316 = vunpack.c.l.b16 %v277
    %v317 = vpack.c.b16 %v302, %v301
    %v318 = vpack.c.b16 %v304, %v303
    %v319 = vpack.c.b16 %v306, %v305
    %v320 = vpack.c.b16 %v308, %v307
    %v321 = vpack.c.b16 %v310, %v309
    %v322 = vpack.c.b16 %v312, %v311
    %v323 = vpack.c.b16 %v314, %v313
    %v324 = vpack.c.b16 %v316, %v315
    %333 = vmatprep.subr.bf16.mxu0 0
    %334 = vmatpush1.bf16.msra.mxu0 %v317
    %335 = vmatprep.subr.bf16.mxu0 0
    %336 = vmatpush1.bf16.msra.mxu0 %v318
    %337 = vmatprep.subr.bf16.mxu0 0
    %338 = vmatpush1.bf16.msra.mxu0 %v319
    %339 = vmatprep.subr.bf16.mxu0 0
    %340 = vmatpush1.bf16.msra.mxu0 %v320
    %341 = vmatprep.subr.bf16.mxu0 0
    %342 = vmatpush1.bf16.msra.mxu0 %v321
    %343 = vmatprep.subr.bf16.mxu0 0
    %344 = vmatpush1.bf16.msra.mxu0 %v322
    %345 = vmatprep.subr.bf16.mxu0 0
    %346 = vmatpush1.bf16.msra.mxu0 %v323
    %347 = vmatprep.subr.bf16.mxu0 0
    %348 = vmatpush1.bf16.msra.mxu0 %v324
    %349 = vmatprep.subr.bf16.mxu0 0
    %350 = vmatpush1.bf16.msra.mxu0 0
    %351 = vmatprep.subr.bf16.mxu0 0
    %352 = vmatpush1.bf16.msra.mxu0 0
    %353 = vmatprep.subr.bf16.mxu0 0
    %354 = vmatpush1.bf16.msra.mxu0 0
    %355 = vmatprep.subr.bf16.mxu0 0
    %356 = vmatpush1.bf16.msra.mxu0 0
    %357 = vmatprep.subr.bf16.mxu0 0
    %358 = vmatpush1.bf16.msra.mxu0 0
    %359 = vmatprep.subr.bf16.mxu0 0
    %360 = vmatpush1.bf16.msra.mxu0 0
    %361 = vmatprep.subr.bf16.mxu0 0
    %362 = vmatpush1.bf16.msra.mxu0 0
    %363 = vmatprep.subr.bf16.mxu0 0
    %364 = vmatpush1.bf16.msra.mxu0 0
    %365 = vmatprep.mubr.bf16.mxu0 0
    %366 = vmatmul.mubr.bf16.gmra.mrb[0].mxu0 %v278
    %v367 = vpop.f32.mrb[0].mxu0
    %v368 = vadd.f32 %v284, %v367
    %v369 = vpop.f32.mrb[0].mxu0
    %v370 = vpop.f32.mrb[0].mxu0
    %v371 = vadd.f32 %v284, %v370
    %v372 = vpop.f32.mrb[0].mxu0
    %373 = vmatprep.mubr.bf16.mxu0 0
    %374 = vmatmul.mubr.bf16.gmra.mrb[0].mxu0 %v279
    %v375 = vpop.f32.mrb[0].mxu0
    %v376 = vadd.f32 %v284, %v375
    %v377 = vpop.f32.mrb[0].mxu0
    %v378 = vpop.f32.mrb[0].mxu0
    %v379 = vpop.f32.mrb[0].mxu0
    %380 = vdwg.mxu0
    %v381 = vadd.f32 %v246, %v368
    %v382 = vadd.f32 %v249, %v371
    %v383 = vadd.f32 %v254, %v376
    %384 = vset.pattern.permute.xlu0 2
    %385 = vperm.xlu0 %384, %v79
    %v386 = vpop.permute.xlu0 %385
    %388 = vset.pattern.permute.xlu0 2
    %389 = vperm.xlu0 %388, %v80
    %v390 = vpop.permute.xlu0 %389
    %392 = vset.pattern.permute.xlu0 2
    %393 = vperm.xlu0 %392, %v81
    %v394 = vpop.permute.xlu0 %393
    %v396 = vmul.f32 %v386, %v381
    %v397 = vmul.f32 %v390, %v382
    %v398 = vmul.f32 %v394, %v383
    %v399 = vld [vmem:[%s4] sm:$0xff]
    %v400 = vld [vmem:[#allocation2 + $0x80] sm:$0xf]
    %v401 = vld [vmem:[#allocation2 + $0x84] sm:$0xf]
    %v402 = vld [vmem:[#allocation2 + $0x88] sm:$0xf]
    %v403 = vld [vmem:[#allocation2 + $0x8c] sm:$0xf]
    %v404 = vld [vmem:[#allocation2 + $0x90] sm:$0xf]
    %v405 = vld [vmem:[#allocation2 + $0x94] sm:$0xf]
    %v406 = vld [vmem:[#allocation2 + $0x98] sm:$0xf]
    %v407 = vld [vmem:[#allocation2 + $0x9c] sm:$0xf]
    %v408 = vld [vmem:[#allocation2 + $0xa0] sm:$0xf]
    %v409 = vld [vmem:[#allocation2 + $0xa4] sm:$0xf]
    %v410 = vld [vmem:[#allocation2 + $0xa8] sm:$0xf]
    %v411 = vld [vmem:[#allocation2 + $0xac] sm:$0xf]
    %v412 = vld [vmem:[#allocation2 + $0xb0] sm:$0xf]
    %v413 = vld [vmem:[#allocation2 + $0xb4] sm:$0xf]
    %v414 = vld [vmem:[#allocation2 + $0xb8] sm:$0xf]
    %v415 = vld [vmem:[#allocation2 + $0xbc] sm:$0xf]
    %v416 = vpack.c.bf16 %v399, %v399
    %v417 = vld [vmem:[%s1 + $0x2] sm:$0x1]
    %v418 = vlaneseq
    %v419 = vshrl.u32 %v418, 7
    %v420 = vsub.s32 0, %v419
    %v421 = vrot.slane %v417, %v420
    %v438 = vunpack.c.l.b16 %v400
    %v439 = vunpack.c.l.b16 %v401
    %v440 = vunpack.c.l.b16 %v402
    %v441 = vunpack.c.l.b16 %v403
    %v442 = vunpack.c.l.b16 %v404
    %v443 = vunpack.c.l.b16 %v405
    %v444 = vunpack.c.l.b16 %v406
    %v445 = vunpack.c.l.b16 %v407
    %v446 = vunpack.c.l.b16 %v408
    %v447 = vunpack.c.l.b16 %v409
    %v448 = vunpack.c.l.b16 %v410
    %v449 = vunpack.c.l.b16 %v411
    %v450 = vunpack.c.l.b16 %v412
    %v451 = vunpack.c.l.b16 %v413
    %v452 = vunpack.c.l.b16 %v414
    %v453 = vunpack.c.l.b16 %v415
    %v454 = vpack.c.b16 %v439, %v438
    %v455 = vpack.c.b16 %v441, %v440
    %v456 = vpack.c.b16 %v443, %v442
    %v457 = vpack.c.b16 %v445, %v444
    %v458 = vpack.c.b16 %v447, %v446
    %v459 = vpack.c.b16 %v449, %v448
    %v460 = vpack.c.b16 %v451, %v450
    %v461 = vpack.c.b16 %v453, %v452
    %470 = vmatprep.subr.bf16.mxu0 0
    %471 = vmatpush1.bf16.msra.mxu0 %v454
    %472 = vmatprep.subr.bf16.mxu0 0
    %473 = vmatpush1.bf16.msra.mxu0 %v455
    %474 = vmatprep.subr.bf16.mxu0 0
    %475 = vmatpush1.bf16.msra.mxu0 %v456
    %476 = vmatprep.subr.bf16.mxu0 0
    %477 = vmatpush1.bf16.msra.mxu0 %v457
    %478 = vmatprep.subr.bf16.mxu0 0
    %479 = vmatpush1.bf16.msra.mxu0 %v458
    %480 = vmatprep.subr.bf16.mxu0 0
    %481 = vmatpush1.bf16.msra.mxu0 %v459
    %482 = vmatprep.subr.bf16.mxu0 0
    %483 = vmatpush1.bf16.msra.mxu0 %v460
    %484 = vmatprep.subr.bf16.mxu0 0
    %485 = vmatpush1.bf16.msra.mxu0 %v461
    %486 = vmatprep.subr.bf16.mxu0 0
    %487 = vmatpush1.bf16.msra.mxu0 0
    %488 = vmatprep.subr.bf16.mxu0 0
    %489 = vmatpush1.bf16.msra.mxu0 0
    %490 = vmatprep.subr.bf16.mxu0 0
    %491 = vmatpush1.bf16.msra.mxu0 0
    %492 = vmatprep.subr.bf16.mxu0 0
    %493 = vmatpush1.bf16.msra.mxu0 0
    %494 = vmatprep.subr.bf16.mxu0 0
    %495 = vmatpush1.bf16.msra.mxu0 0
    %496 = vmatprep.subr.bf16.mxu0 0
    %497 = vmatpush1.bf16.msra.mxu0 0
    %498 = vmatprep.subr.bf16.mxu0 0
    %499 = vmatpush1.bf16.msra.mxu0 0
    %500 = vmatprep.subr.bf16.mxu0 0
    %501 = vmatpush1.bf16.msra.mxu0 0
    %502 = vmatprep.mubr.bf16.mxu0 0
    %503 = vmatmul.mubr.bf16.gmra.mrb[0].mxu0 %v416
    %v504 = vpop.f32.mrb[0].mxu0
    %v505 = vadd.f32 %v421, %v504
    %v506 = vpop.f32.mrb[0].mxu0
    %v507 = vpop.f32.mrb[0].mxu0
    %v508 = vpop.f32.mrb[0].mxu0
    %509 = vdwg.mxu0
    %510 = vset.pattern.permute.xlu0 3
    %511 = vperm.xlu0 %510, %v79
    %v512 = vpop.permute.xlu0 %511
    %514 = vset.pattern.permute.xlu0 3
    %515 = vperm.xlu0 %514, %v80
    %v516 = vpop.permute.xlu0 %515
    %518 = vset.pattern.permute.xlu0 3
    %519 = vperm.xlu0 %518, %v81
    %v520 = vpop.permute.xlu0 %519
    %v522 = vmul.f32 %v512, %v133
    %v523 = vmul.f32 %v516, %v134
    %v524 = vmul.f32 %v520, %v135
    %vm525 = vcmask 64512
    %v527 = vsel %vm525, %v522, 0
    %v530 = vsel %vm525, %v523, 0
    %v533 = vsel %vm525, %v524, 0
    %535 = vmatprep.subr.mxu0 0.0
    %536 = vmatpush1.msra.mxu0 %v505
    %537 = vmatprep.subr.mxu0 0.0
    %538 = vmatpush1.msra.mxu0 0.0
    %539 = vmatprep.subr.mxu0 0.0
    %540 = vmatpush1.msra.mxu0 0.0
    %541 = vmatprep.subr.mxu0 0.0
    %542 = vmatpush1.msra.mxu0 0.0
    %543 = vmatprep.subr.mxu0 0.0
    %544 = vmatpush1.msra.mxu0 0.0
    %545 = vmatprep.subr.mxu0 0.0
    %546 = vmatpush1.msra.mxu0 0.0
    %547 = vmatprep.subr.mxu0 0.0
    %548 = vmatpush1.msra.mxu0 0.0
    %549 = vmatprep.subr.mxu0 0.0
    %550 = vmatpush1.msra.mxu0 0.0
    %551 = vmatprep.subr.mxu0 0.0
    %552 = vmatpush1.msra.mxu0 0.0
    %553 = vmatprep.subr.mxu0 0.0
    %554 = vmatpush1.msra.mxu0 0.0
    %555 = vmatprep.subr.mxu0 0.0
    %556 = vmatpush1.msra.mxu0 0.0
    %557 = vmatprep.subr.mxu0 0.0
    %558 = vmatpush1.msra.mxu0 0.0
    %559 = vmatprep.subr.mxu0 0.0
    %560 = vmatpush1.msra.mxu0 0.0
    %561 = vmatprep.subr.mxu0 0.0
    %562 = vmatpush1.msra.mxu0 0.0
    %563 = vmatprep.subr.mxu0 0.0
    %564 = vmatpush1.msra.mxu0 0.0
    %565 = vmatprep.subr.mxu0 0.0
    %566 = vmatpush1.msra.mxu0 0.0
    %567 = vmatprep.subr.mxu0 0.0
    %568 = vmatpush1.msra.mxu0 0.0
    %569 = vmatprep.subr.mxu0 0.0
    %570 = vmatpush1.msra.mxu0 0.0
    %571 = vmatprep.subr.mxu0 0.0
    %572 = vmatpush1.msra.mxu0 0.0
    %573 = vmatprep.subr.mxu0 0.0
    %574 = vmatpush1.msra.mxu0 0.0
    %575 = vmatprep.subr.mxu0 0.0
    %576 = vmatpush1.msra.mxu0 0.0
    %577 = vmatprep.subr.mxu0 0.0
    %578 = vmatpush1.msra.mxu0 0.0
    %579 = vmatprep.subr.mxu0 0.0
    %580 = vmatpush1.msra.mxu0 0.0
    %581 = vmatprep.subr.mxu0 0.0
    %582 = vmatpush1.msra.mxu0 0.0
    %583 = vmatprep.subr.mxu0 0.0
    %584 = vmatpush1.msra.mxu0 0.0
    %585 = vmatprep.subr.mxu0 0.0
    %586 = vmatpush1.msra.mxu0 0.0
    %587 = vmatprep.subr.mxu0 0.0
    %588 = vmatpush1.msra.mxu0 0.0
    %589 = vmatprep.subr.mxu0 0.0
    %590 = vmatpush1.msra.mxu0 0.0
    %591 = vmatprep.subr.mxu0 0.0
    %592 = vmatpush1.msra.mxu0 0.0
    %593 = vmatprep.subr.mxu0 0.0
    %594 = vmatpush1.msra.mxu0 0.0
    %595 = vmatprep.subr.mxu0 0.0
    %596 = vmatpush1.msra.mxu0 0.0
    %597 = vmatprep.subr.mxu0 0.0
    %598 = vmatpush1.msra.mxu0 0.0
    %599 = vmatprep.mubr.f32.mxu0 0.0
    %600 = vmatmul.mubr.f32.gmra.mrb[0].mxu0 %v527
    %v601 = vpop.f32.mrb[0].mxu0
    %v602 = vadd.f32 0.0, %v601
    %v603 = vpop.f32.mrb[0].mxu0
    %604 = vmatprep.mubr.f32.mxu0 0.0
    %605 = vmatmul.mubr.f32.gmra.mrb[0].mxu0 %v530
    %v606 = vpop.f32.mrb[0].mxu0
    %v607 = vadd.f32 0.0, %v606
    %v608 = vpop.f32.mrb[0].mxu0
    %609 = vmatprep.mubr.f32.mxu0 0.0
    %610 = vmatmul.mubr.f32.gmra.mrb[0].mxu0 %v533
    %v611 = vpop.f32.mrb[0].mxu0
    %v612 = vadd.f32 0.0, %v611
    %v613 = vpop.f32.mrb[0].mxu0
    %614 = vdwg.mxu0
    %v615 = vadd.f32 %v396, %v602
    %v616 = vadd.f32 %v397, %v607
    %v617 = vadd.f32 %v398, %v612
    %v618 = vld [vmem:[#allocation2 + $0xc0] sm:$0xf]
    %v619 = vld [vmem:[#allocation2 + $0xc4] sm:$0xf]
    %v620 = vld [vmem:[#allocation2 + $0xc8] sm:$0xf]
    %v621 = vld [vmem:[#allocation2 + $0xcc] sm:$0xf]
    %v622 = vld [vmem:[#allocation2 + $0xd0] sm:$0xf]
    %v623 = vld [vmem:[#allocation2 + $0xd4] sm:$0xf]
    %v624 = vld [vmem:[#allocation2 + $0xd8] sm:$0xf]
    %v625 = vld [vmem:[#allocation2 + $0xdc] sm:$0xf]
    %v626 = vld [vmem:[#allocation2 + $0xe0] sm:$0xf]
    %v627 = vld [vmem:[#allocation2 + $0xe4] sm:$0xf]
    %v628 = vld [vmem:[#allocation2 + $0xe8] sm:$0xf]
    %v629 = vld [vmem:[#allocation2 + $0xec] sm:$0xf]
    %v630 = vld [vmem:[#allocation2 + $0xf0] sm:$0xf]
    %v631 = vld [vmem:[#allocation2 + $0xf4] sm:$0xf]
    %v632 = vld [vmem:[#allocation2 + $0xf8] sm:$0xf]
    %v633 = vld [vmem:[#allocation2 + $0xfc] sm:$0xf]
    %v634 = vpack.c.bf16 %v616, %v615
    %v635 = vpack.c.bf16 %v617, %v617
    %v636 = vld [vmem:[%s1 + $0x3] sm:$0x1]
    %v637 = vlaneseq
    %v638 = vshrl.u32 %v637, 7
    %v639 = vsub.s32 0, %v638
    %v640 = vrot.slane %v636, %v639
    %v657 = vunpack.c.l.b16 %v618
    %v658 = vunpack.c.l.b16 %v619
    %v659 = vunpack.c.l.b16 %v620
    %v660 = vunpack.c.l.b16 %v621
    %v661 = vunpack.c.l.b16 %v622
    %v662 = vunpack.c.l.b16 %v623
    %v663 = vunpack.c.l.b16 %v624
    %v664 = vunpack.c.l.b16 %v625
    %v665 = vunpack.c.l.b16 %v626
    %v666 = vunpack.c.l.b16 %v627
    %v667 = vunpack.c.l.b16 %v628
    %v668 = vunpack.c.l.b16 %v629
    %v669 = vunpack.c.l.b16 %v630
    %v670 = vunpack.c.l.b16 %v631
    %v671 = vunpack.c.l.b16 %v632
    %v672 = vunpack.c.l.b16 %v633
    %v673 = vpack.c.b16 %v658, %v657
    %v674 = vpack.c.b16 %v660, %v659
    %v675 = vpack.c.b16 %v662, %v661
    %v676 = vpack.c.b16 %v664, %v663
    %v677 = vpack.c.b16 %v666, %v665
    %v678 = vpack.c.b16 %v668, %v667
    %v679 = vpack.c.b16 %v670, %v669
    %v680 = vpack.c.b16 %v672, %v671
    %689 = vmatprep.subr.bf16.mxu0 0
    %690 = vmatpush1.bf16.msra.mxu0 %v673
    %691 = vmatprep.subr.bf16.mxu0 0
    %692 = vmatpush1.bf16.msra.mxu0 %v674
    %693 = vmatprep.subr.bf16.mxu0 0
    %694 = vmatpush1.bf16.msra.mxu0 %v675
    %695 = vmatprep.subr.bf16.mxu0 0
    %696 = vmatpush1.bf16.msra.mxu0 %v676
    %697 = vmatprep.subr.bf16.mxu0 0
    %698 = vmatpush1.bf16.msra.mxu0 %v677
    %699 = vmatprep.subr.bf16.mxu0 0
    %700 = vmatpush1.bf16.msra.mxu0 %v678
    %701 = vmatprep.subr.bf16.mxu0 0
    %702 = vmatpush1.bf16.msra.mxu0 %v679
    %703 = vmatprep.subr.bf16.mxu0 0
    %704 = vmatpush1.bf16.msra.mxu0 %v680
    %705 = vmatprep.subr.bf16.mxu0 0
    %706 = vmatpush1.bf16.msra.mxu0 0
    %707 = vmatprep.subr.bf16.mxu0 0
    %708 = vmatpush1.bf16.msra.mxu0 0
    %709 = vmatprep.subr.bf16.mxu0 0
    %710 = vmatpush1.bf16.msra.mxu0 0
    %711 = vmatprep.subr.bf16.mxu0 0
    %712 = vmatpush1.bf16.msra.mxu0 0
    %713 = vmatprep.subr.bf16.mxu0 0
    %714 = vmatpush1.bf16.msra.mxu0 0
    %715 = vmatprep.subr.bf16.mxu0 0
    %716 = vmatpush1.bf16.msra.mxu0 0
    %717 = vmatprep.subr.bf16.mxu0 0
    %718 = vmatpush1.bf16.msra.mxu0 0
    %719 = vmatprep.subr.bf16.mxu0 0
    %720 = vmatpush1.bf16.msra.mxu0 0
    %721 = vmatprep.mubr.bf16.mxu0 0
    %722 = vmatmul.mubr.bf16.gmra.mrb[0].mxu0 %v634
    %v723 = vpop.f32.mrb[0].mxu0
    %v724 = vadd.f32 %v640, %v723
    %v725 = vpop.f32.mrb[0].mxu0
    %v726 = vpop.f32.mrb[0].mxu0
    %v727 = vadd.f32 %v640, %v726
    %v728 = vpop.f32.mrb[0].mxu0
    %729 = vmatprep.mubr.bf16.mxu0 0
    %730 = vmatmul.mubr.bf16.gmra.mrb[0].mxu0 %v635
    %v731 = vpop.f32.mrb[0].mxu0
    %v732 = vadd.f32 %v640, %v731
    %v733 = vpop.f32.mrb[0].mxu0
    %v734 = vpop.f32.mrb[0].mxu0
    %v735 = vpop.f32.mrb[0].mxu0
    %736 = vdwg.mxu0
    %740 = vrot.lane.b32.xlu0 %v724, 96
    %v741 = vpop.permute.xlu0 %740
    %742 = vrot.lane.b32.xlu0 %v727, 96
    %v743 = vpop.permute.xlu0 %742
    %744 = vrot.lane.b32.xlu0 %v732, 96
    %v745 = vpop.permute.xlu0 %744
    %749 = vxpose.xlu0.b32.start [1/16] %v741, 128
    %750 = vxpose.xlu0.b32.cont [2/16] %v743, 128
    %751 = vxpose.xlu0.b32.cont [3/16] %v745, 128
    %752 = vxpose.xlu0.b32.cont [4/16] 0.0, 128
    %753 = vxpose.xlu0.b32.cont [5/16] 0.0, 128
    %754 = vxpose.xlu0.b32.cont [6/16] 0.0, 128
    %755 = vxpose.xlu0.b32.cont [7/16] 0.0, 128
    %756 = vxpose.xlu0.b32.cont [8/16] 0.0, 128
    %757 = vxpose.xlu0.b32.cont [9/16] 0.0, 128
    %758 = vxpose.xlu0.b32.cont [10/16] 0.0, 128
    %759 = vxpose.xlu0.b32.cont [11/16] 0.0, 128
    %760 = vxpose.xlu0.b32.cont [12/16] 0.0, 128
    %761 = vxpose.xlu0.b32.cont [13/16] 0.0, 128
    %762 = vxpose.xlu0.b32.cont [14/16] 0.0, 128
    %763 = vxpose.xlu0.b32.cont [15/16] 0.0, 128
    %764 = vxpose.xlu0.b32.end [16/16] 0.0, 128
    %v765 = vpop.trf.xlu0
    %v766 = vpop.trf.xlu0
    %v767 = vpop.trf.xlu0
    %v768 = vpop.trf.xlu0
    %v769 = vpop.trf.xlu0
    %v770 = vpop.trf.xlu0
    %v771 = vpop.trf.xlu0
    %v772 = vpop.trf.xlu0
    %v773 = vpop.trf.xlu0
    %v774 = vpop.trf.xlu0
    %v775 = vpop.trf.xlu0
    %v776 = vpop.trf.xlu0
    %v777 = vpop.trf.xlu0
    %v778 = vpop.trf.xlu0
    %v779 = vpop.trf.xlu0
    %v780 = vpop.trf.xlu0
    %v781 = vpack.c.bf16 %v727, %v724
    %v782 = vpack.c.bf16 %v732, %v732
    %v783 = vpack.c.bf16 %v765, %v765
    %v785 = vsel %vm525, %v781, 0
    %v788 = vsel %vm525, %v782, 0
    %vm790 = vcmask 1043456
    %v792 = vsel %vm790, %v783, 0
    %794 = vmatprep.subr.bf16.mxu0 0
    %795 = vmatpush1.bf16.msra.mxu0 %v792
    %796 = vmatprep.subr.bf16.mxu0 0
    %797 = vmatpush1.bf16.msra.mxu0 0
    %798 = vmatprep.subr.bf16.mxu0 0
    %799 = vmatpush1.bf16.msra.mxu0 0
    %800 = vmatprep.subr.bf16.mxu0 0
    %801 = vmatpush1.bf16.msra.mxu0 0
    %802 = vmatprep.subr.bf16.mxu0 0
    %803 = vmatpush1.bf16.msra.mxu0 0
    %804 = vmatprep.subr.bf16.mxu0 0
    %805 = vmatpush1.bf16.msra.mxu0 0
    %806 = vmatprep.subr.bf16.mxu0 0
    %807 = vmatpush1.bf16.msra.mxu0 0
    %808 = vmatprep.subr.bf16.mxu0 0
    %809 = vmatpush1.bf16.msra.mxu0 0
    %810 = vmatprep.subr.bf16.mxu0 0
    %811 = vmatpush1.bf16.msra.mxu0 0
    %812 = vmatprep.subr.bf16.mxu0 0
    %813 = vmatpush1.bf16.msra.mxu0 0
    %814 = vmatprep.subr.bf16.mxu0 0
    %815 = vmatpush1.bf16.msra.mxu0 0
    %816 = vmatprep.subr.bf16.mxu0 0
    %817 = vmatpush1.bf16.msra.mxu0 0
    %818 = vmatprep.subr.bf16.mxu0 0
    %819 = vmatpush1.bf16.msra.mxu0 0
    %820 = vmatprep.subr.bf16.mxu0 0
    %821 = vmatpush1.bf16.msra.mxu0 0
    %822 = vmatprep.subr.bf16.mxu0 0
    %823 = vmatpush1.bf16.msra.mxu0 0
    %824 = vmatprep.subr.bf16.mxu0 0
    %825 = vmatpush1.bf16.msra.mxu0 0
    %826 = vmatprep.mubr.bf16.mxu0 0
    %827 = vmatmul.mubr.bf16.gmra.mrb[0].mxu0 %v785
    %v828 = vpop.f32.mrb[0].mxu0
    %v829 = vadd.f32 %v105, %v828
    %v830 = vpop.f32.mrb[0].mxu0
    %v831 = vpop.f32.mrb[0].mxu0
    %v832 = vadd.f32 %v106, %v831
    %v833 = vpop.f32.mrb[0].mxu0
    %834 = vmatprep.mubr.bf16.mxu0 0
    %835 = vmatmul.mubr.bf16.gmra.mrb[0].mxu0 %v788
    %v836 = vpop.f32.mrb[0].mxu0
    %v837 = vadd.f32 %v107, %v836
    %v838 = vpop.f32.mrb[0].mxu0
    %v839 = vpop.f32.mrb[0].mxu0
    %v840 = vpop.f32.mrb[0].mxu0
    %841 = vdwg.mxu0
    %vm842 = vcmask 195584
    %v843 = vsel %vm842, %v829, -inf
    %844 = vmax.xlane.f32.xlu0 %v843
    %v845 = vpop.xlane.xlu0 %844
    %v846 = vsel %vm842, %v832, -inf
    %847 = vmax.xlane.f32.xlu0 %v846
    %v848 = vpop.xlane.xlu0 %847
    %v849 = vsel %vm842, %v837, -inf
    %850 = vmax.xlane.f32.xlu0 %v849
    %v851 = vpop.xlane.xlu0 %850
    %v852 = vsub.f32 %v829, %v845
    %v853 = vsub.f32 %v832, %v848
    %v854 = vsub.f32 %v837, %v851
    %v855 = vmul.f32 %v852, 1.442695
    %v856 = vpow.pop %v855
    %v857 = vmul.f32 %v853, 1.442695
    %v858 = vpow.pop %v857
    %v859 = vmul.f32 %v854, 1.442695
    %v860 = vpow.pop %v859
    %v861 = vsel %vm842, %v856, 0.0
    %862 = vadd.xlane.f32.xlu0 %v861
    %v863 = vpop.xlane.xlu0 %862
    %v864 = vsel %vm842, %v858, 0.0
    %865 = vadd.xlane.f32.xlu0 %v864
    %v866 = vpop.xlane.xlu0 %865
    %v867 = vsel %vm842, %v860, 0.0
    %868 = vadd.xlane.f32.xlu0 %v867
    %v869 = vpop.xlane.xlu0 %868
    %v870 = vrcp.pop %v863
    %v871 = vrcp.pop %v866
    %v872 = vrcp.pop %v869
    %v873 = vmul.f32 %v856, %v870
    %v874 = vmul.f32 %v858, %v871
    %v875 = vmul.f32 %v860, %v872
    %v876 = vpack.c.bf16 %v874, %v873
    %v877 = vpack.c.bf16 %v875, %v875
    %880 = vrot.lane.b32.xlu0 %v781, 64
    %v881 = vpop.permute.xlu0 %880
    %882 = vrot.lane.b32.xlu0 %v782, 64
    %v883 = vpop.permute.xlu0 %882
    %v886 = vsel %vm842, %v876, 0
    %v889 = vsel %vm842, %v877, 0
    %v892 = vsel %vm790, %v883, 0
    %894 = vmatprep.subr.bf16.mxu0 0
    %895 = vmatpush1.bf16.msra.mxu0 %v881
    %896 = vmatprep.subr.bf16.mxu0 0
    %897 = vmatpush1.bf16.msra.mxu0 %v892
    %898 = vmatprep.subr.bf16.mxu0 0
    %899 = vmatpush1.bf16.msra.mxu0 0
    %900 = vmatprep.subr.bf16.mxu0 0
    %901 = vmatpush1.bf16.msra.mxu0 0
    %902 = vmatprep.subr.bf16.mxu0 0
    %903 = vmatpush1.bf16.msra.mxu0 0
    %904 = vmatprep.subr.bf16.mxu0 0
    %905 = vmatpush1.bf16.msra.mxu0 0
    %906 = vmatprep.subr.bf16.mxu0 0
    %907 = vmatpush1.bf16.msra.mxu0 0
    %908 = vmatprep.subr.bf16.mxu0 0
    %909 = vmatpush1.bf16.msra.mxu0 0
    %910 = vmatprep.subr.bf16.mxu0 0
    %911 = vmatpush1.bf16.msra.mxu0 0
    %912 = vmatprep.subr.bf16.mxu0 0
    %913 = vmatpush1.bf16.msra.mxu0 0
    %914 = vmatprep.subr.bf16.mxu0 0
    %915 = vmatpush1.bf16.msra.mxu0 0
    %916 = vmatprep.subr.bf16.mxu0 0
    %917 = vmatpush1.bf16.msra.mxu0 0
    %918 = vmatprep.subr.bf16.mxu0 0
    %919 = vmatpush1.bf16.msra.mxu0 0
    %920 = vmatprep.subr.bf16.mxu0 0
    %921 = vmatpush1.bf16.msra.mxu0 0
    %922 = vmatprep.subr.bf16.mxu0 0
    %923 = vmatpush1.bf16.msra.mxu0 0
    %924 = vmatprep.subr.bf16.mxu0 0
    %925 = vmatpush1.bf16.msra.mxu0 0
    %926 = vmatprep.mubr.bf16.mxu0 0
    %927 = vmatmul.mubr.bf16.gmra.mrb[0].mxu0 %v886
    %v928 = vpop.f32.mrb[0].mxu0
    %v929 = vadd.f32 0.0, %v928
    %v930 = vpop.f32.mrb[0].mxu0
    %v931 = vpop.f32.mrb[0].mxu0
    %v932 = vadd.f32 0.0, %v931
    %v933 = vpop.f32.mrb[0].mxu0
    %934 = vmatprep.mubr.bf16.mxu0 0
    %935 = vmatmul.mubr.bf16.gmra.mrb[0].mxu0 %v889
    %v936 = vpop.f32.mrb[0].mxu0
    %v937 = vadd.f32 0.0, %v936
    %v938 = vpop.f32.mrb[0].mxu0
    %v939 = vpop.f32.mrb[0].mxu0
    %v940 = vpop.f32.mrb[0].mxu0
    %941 = vdwg.mxu0
    %v942 = vpack.c.bf16 %v766, %v766
    %943 = vrot.lane.b32.xlu0 %v781, 120
    %v944 = vpop.permute.xlu0 %943
    %945 = vrot.lane.b32.xlu0 %v782, 120
    %v946 = vpop.permute.xlu0 %945
    %v948 = vsel %vm525, %v944, 0
    %v951 = vsel %vm525, %v946, 0
    %v954 = vsel %vm790, %v942, 0
    %956 = vmatprep.subr.bf16.mxu0 0
    %957 = vmatpush1.bf16.msra.mxu0 %v954
    %958 = vmatprep.subr.bf16.mxu0 0
    %959 = vmatpush1.bf16.msra.mxu0 0
    %960 = vmatprep.subr.bf16.mxu0 0
    %961 = vmatpush1.bf16.msra.mxu0 0
    %962 = vmatprep.subr.bf16.mxu0 0
    %963 = vmatpush1.bf16.msra.mxu0 0
    %964 = vmatprep.subr.bf16.mxu0 0
    %965 = vmatpush1.bf16.msra.mxu0 0
    %966 = vmatprep.subr.bf16.mxu0 0
    %967 = vmatpush1.bf16.msra.mxu0 0
    %968 = vmatprep.subr.bf16.mxu0 0
    %969 = vmatpush1.bf16.msra.mxu0 0
    %970 = vmatprep.subr.bf16.mxu0 0
    %971 = vmatpush1.bf16.msra.mxu0 0
    %972 = vmatprep.subr.bf16.mxu0 0
    %973 = vmatpush1.bf16.msra.mxu0 0
    %974 = vmatprep.subr.bf16.mxu0 0
    %975 = vmatpush1.bf16.msra.mxu0 0
    %976 = vmatprep.subr.bf16.mxu0 0
    %977 = vmatpush1.bf16.msra.mxu0 0
    %978 = vmatprep.subr.bf16.mxu0 0
    %979 = vmatpush1.bf16.msra.mxu0 0
    %980 = vmatprep.subr.bf16.mxu0 0
    %981 = vmatpush1.bf16.msra.mxu0 0
    %982 = vmatprep.subr.bf16.mxu0 0
    %983 = vmatpush1.bf16.msra.mxu0 0
    %984 = vmatprep.subr.bf16.mxu0 0
    %985 = vmatpush1.bf16.msra.mxu0 0
    %986 = vmatprep.subr.bf16.mxu0 0
    %987 = vmatpush1.bf16.msra.mxu0 0
    %988 = vmatprep.mubr.bf16.mxu0 0
    %989 = vmatmul.mubr.bf16.gmra.mrb[0].mxu0 %v948
    %v990 = vpop.f32.mrb[0].mxu0
    %v991 = vadd.f32 %v105, %v990
    %v992 = vpop.f32.mrb[0].mxu0
    %v993 = vpop.f32.mrb[0].mxu0
    %v994 = vadd.f32 %v106, %v993
    %v995 = vpop.f32.mrb[0].mxu0
    %996 = vmatprep.mubr.bf16.mxu0 0
    %997 = vmatmul.mubr.bf16.gmra.mrb[0].mxu0 %v951
    %v998 = vpop.f32.mrb[0].mxu0
    %v999 = vadd.f32 %v107, %v998
    %v1000 = vpop.f32.mrb[0].mxu0
    %v1001 = vpop.f32.mrb[0].mxu0
    %v1002 = vpop.f32.mrb[0].mxu0
    %1003 = vdwg.mxu0
    %v1004 = vsel %vm842, %v991, -inf
    %1005 = vmax.xlane.f32.xlu0 %v1004
    %v1006 = vpop.xlane.xlu0 %1005
    %v1007 = vsel %vm842, %v994, -inf
    %1008 = vmax.xlane.f32.xlu0 %v1007
    %v1009 = vpop.xlane.xlu0 %1008
    %v1010 = vsel %vm842, %v999, -inf
    %1011 = vmax.xlane.f32.xlu0 %v1010
    %v1012 = vpop.xlane.xlu0 %1011
    %v1013 = vsub.f32 %v991, %v1006
    %v1014 = vsub.f32 %v994, %v1009
    %v1015 = vsub.f32 %v999, %v1012
    %v1016 = vmul.f32 %v1013, 1.442695
    %v1017 = vpow.pop %v1016
    %v1018 = vmul.f32 %v1014, 1.442695
    %v1019 = vpow.pop %v1018
    %v1020 = vmul.f32 %v1015, 1.442695
    %v1021 = vpow.pop %v1020
    %v1022 = vsel %vm842, %v1017, 0.0
    %1023 = vadd.xlane.f32.xlu0 %v1022
    %v1024 = vpop.xlane.xlu0 %1023
    %v1025 = vsel %vm842, %v1019, 0.0
    %1026 = vadd.xlane.f32.xlu0 %v1025
    %v1027 = vpop.xlane.xlu0 %1026
    %v1028 = vsel %vm842, %v1021, 0.0
    %1029 = vadd.xlane.f32.xlu0 %v1028
    %v1030 = vpop.xlane.xlu0 %1029
    %v1031 = vrcp.pop %v1024
    %v1032 = vrcp.pop %v1027
    %v1033 = vrcp.pop %v1030
    %v1034 = vmul.f32 %v1017, %v1031
    %v1035 = vmul.f32 %v1019, %v1032
    %v1036 = vmul.f32 %v1021, %v1033
    %v1037 = vpack.c.bf16 %v1035, %v1034
    %v1038 = vpack.c.bf16 %v1036, %v1036
    %1039 = vrot.lane.b32.xlu0 %v781, 56
    %v1040 = vpop.permute.xlu0 %1039
    %1041 = vrot.lane.b32.xlu0 %v782, 56
    %v1042 = vpop.permute.xlu0 %1041
    %v1045 = vsel %vm842, %v1037, 0
    %v1048 = vsel %vm842, %v1038, 0
    %v1051 = vsel %vm790, %v1042, 0
    %1053 = vmatprep.subr.bf16.mxu0 0
    %1054 = vmatpush1.bf16.msra.mxu0 %v1040
    %1055 = vmatprep.subr.bf16.mxu0 0
    %1056 = vmatpush1.bf16.msra.mxu0 %v1051
    %1057 = vmatprep.subr.bf16.mxu0 0
    %1058 = vmatpush1.bf16.msra.mxu0 0
    %1059 = vmatprep.subr.bf16.mxu0 0
    %1060 = vmatpush1.bf16.msra.mxu0 0
    %1061 = vmatprep.subr.bf16.mxu0 0
    %1062 = vmatpush1.bf16.msra.mxu0 0
    %1063 = vmatprep.subr.bf16.mxu0 0
    %1064 = vmatpush1.bf16.msra.mxu0 0
    %1065 = vmatprep.subr.bf16.mxu0 0
    %1066 = vmatpush1.bf16.msra.mxu0 0
    %1067 = vmatprep.subr.bf16.mxu0 0
    %1068 = vmatpush1.bf16.msra.mxu0 0
    %1069 = vmatprep.subr.bf16.mxu0 0
    %1070 = vmatpush1.bf16.msra.mxu0 0
    %1071 = vmatprep.subr.bf16.mxu0 0
    %1072 = vmatpush1.bf16.msra.mxu0 0
    %1073 = vmatprep.subr.bf16.mxu0 0
    %1074 = vmatpush1.bf16.msra.mxu0 0
    %1075 = vmatprep.subr.bf16.mxu0 0
    %1076 = vmatpush1.bf16.msra.mxu0 0
    %1077 = vmatprep.subr.bf16.mxu0 0
    %1078 = vmatpush1.bf16.msra.mxu0 0
    %1079 = vmatprep.subr.bf16.mxu0 0
    %1080 = vmatpush1.bf16.msra.mxu0 0
    %1081 = vmatprep.subr.bf16.mxu0 0
    %1082 = vmatpush1.bf16.msra.mxu0 0
    %1083 = vmatprep.subr.bf16.mxu0 0
    %1084 = vmatpush1.bf16.msra.mxu0 0
    %1085 = vmatprep.mubr.bf16.mxu0 0
    %1086 = vmatmul.mubr.bf16.gmra.mrb[0].mxu0 %v1045
    %v1087 = vpop.f32.mrb[0].mxu0
    %v1088 = vadd.f32 0.0, %v1087
    %v1089 = vpop.f32.mrb[0].mxu0
    %v1090 = vpop.f32.mrb[0].mxu0
    %v1091 = vadd.f32 0.0, %v1090
    %v1092 = vpop.f32.mrb[0].mxu0
    %1093 = vmatprep.mubr.bf16.mxu0 0
    %1094 = vmatmul.mubr.bf16.gmra.mrb[0].mxu0 %v1048
    %v1095 = vpop.f32.mrb[0].mxu0
    %v1096 = vadd.f32 0.0, %v1095
    %v1097 = vpop.f32.mrb[0].mxu0
    %v1098 = vpop.f32.mrb[0].mxu0
    %v1099 = vpop.f32.mrb[0].mxu0
    %1100 = vdwg.mxu0
    %v1101 = vpack.c.bf16 %v767, %v767
    %1102 = vrot.lane.b32.xlu0 %v781, 112
    %v1103 = vpop.permute.xlu0 %1102
    %1104 = vrot.lane.b32.xlu0 %v782, 112
    %v1105 = vpop.permute.xlu0 %1104
    %v1107 = vsel %vm525, %v1103, 0
    %v1110 = vsel %vm525, %v1105, 0
    %v1113 = vsel %vm790, %v1101, 0
    %1115 = vmatprep.subr.bf16.mxu0 0
    %1116 = vmatpush1.bf16.msra.mxu0 %v1113
    %1117 = vmatprep.subr.bf16.mxu0 0
    %1118 = vmatpush1.bf16.msra.mxu0 0
    %1119 = vmatprep.subr.bf16.mxu0 0
    %1120 = vmatpush1.bf16.msra.mxu0 0
    %1121 = vmatprep.subr.bf16.mxu0 0
    %1122 = vmatpush1.bf16.msra.mxu0 0
    %1123 = vmatprep.subr.bf16.mxu0 0
    %1124 = vmatpush1.bf16.msra.mxu0 0
    %1125 = vmatprep.subr.bf16.mxu0 0
    %1126 = vmatpush1.bf16.msra.mxu0 0
    %1127 = vmatprep.subr.bf16.mxu0 0
    %1128 = vmatpush1.bf16.msra.mxu0 0
    %1129 = vmatprep.subr.bf16.mxu0 0
    %1130 = vmatpush1.bf16.msra.mxu0 0
    %1131 = vmatprep.subr.bf16.mxu0 0
    %1132 = vmatpush1.bf16.msra.mxu0 0
    %1133 = vmatprep.subr.bf16.mxu0 0
    %1134 = vmatpush1.bf16.msra.mxu0 0
    %1135 = vmatprep.subr.bf16.mxu0 0
    %1136 = vmatpush1.bf16.msra.mxu0 0
    %1137 = vmatprep.subr.bf16.mxu0 0
    %1138 = vmatpush1.bf16.msra.mxu0 0
    %1139 = vmatprep.subr.bf16.mxu0 0
    %1140 = vmatpush1.bf16.msra.mxu0 0
    %1141 = vmatprep.subr.bf16.mxu0 0
    %1142 = vmatpush1.bf16.msra.mxu0 0
    %1143 = vmatprep.subr.bf16.mxu0 0
    %1144 = vmatpush1.bf16.msra.mxu0 0
    %1145 = vmatprep.subr.bf16.mxu0 0
    %1146 = vmatpush1.bf16.msra.mxu0 0
    %1147 = vmatprep.mubr.bf16.mxu0 0
    %1148 = vmatmul.mubr.bf16.gmra.mrb[0].mxu0 %v1107
    %v1149 = vpop.f32.mrb[0].mxu0
    %v1150 = vadd.f32 %v105, %v1149
    %v1151 = vpop.f32.mrb[0].mxu0
    %v1152 = vpop.f32.mrb[0].mxu0
    %v1153 = vadd.f32 %v106, %v1152
    %v1154 = vpop.f32.mrb[0].mxu0
    %1155 = vmatprep.mubr.bf16.mxu0 0
    %1156 = vmatmul.mubr.bf16.gmra.mrb[0].mxu0 %v1110
    %v1157 = vpop.f32.mrb[0].mxu0
    %v1158 = vadd.f32 %v107, %v1157
    %v1159 = vpop.f32.mrb[0].mxu0
    %v1160 = vpop.f32.mrb[0].mxu0
    %v1161 = vpop.f32.mrb[0].mxu0
    %1162 = vdwg.mxu0
    %v1163 = vsel %vm842, %v1150, -inf
    %1164 = vmax.xlane.f32.xlu0 %v1163
    %v1165 = vpop.xlane.xlu0 %1164
    %v1166 = vsel %vm842, %v1153, -inf
    %1167 = vmax.xlane.f32.xlu0 %v1166
    %v1168 = vpop.xlane.xlu0 %1167
    %v1169 = vsel %vm842, %v1158, -inf
    %1170 = vmax.xlane.f32.xlu0 %v1169
    %v1171 = vpop.xlane.xlu0 %1170
    %v1172 = vsub.f32 %v1150, %v1165
    %v1173 = vsub.f32 %v1153, %v1168
    %v1174 = vsub.f32 %v1158, %v1171
    %v1175 = vmul.f32 %v1172, 1.442695
    %v1176 = vpow.pop %v1175
    %v1177 = vmul.f32 %v1173, 1.442695
    %v1178 = vpow.pop %v1177
    %v1179 = vmul.f32 %v1174, 1.442695
    %v1180 = vpow.pop %v1179
    %v1181 = vsel %vm842, %v1176, 0.0
    %1182 = vadd.xlane.f32.xlu0 %v1181
    %v1183 = vpop.xlane.xlu0 %1182
    %v1184 = vsel %vm842, %v1178, 0.0
    %1185 = vadd.xlane.f32.xlu0 %v1184
    %v1186 = vpop.xlane.xlu0 %1185
    %v1187 = vsel %vm842, %v1180, 0.0
    %1188 = vadd.xlane.f32.xlu0 %v1187
    %v1189 = vpop.xlane.xlu0 %1188
    %v1190 = vrcp.pop %v1183
    %v1191 = vrcp.pop %v1186
    %v1192 = vrcp.pop %v1189
    %v1193 = vmul.f32 %v1176, %v1190
    %v1194 = vmul.f32 %v1178, %v1191
    %v1195 = vmul.f32 %v1180, %v1192
    %v1196 = vpack.c.bf16 %v1194, %v1193
    %v1197 = vpack.c.bf16 %v1195, %v1195
    %1198 = vrot.lane.b32.xlu0 %v781, 48
    %v1199 = vpop.permute.xlu0 %1198
    %1200 = vrot.lane.b32.xlu0 %v782, 48
    %v1201 = vpop.permute.xlu0 %1200
    %v1204 = vsel %vm842, %v1196, 0
    %v1207 = vsel %vm842, %v1197, 0
    %v1210 = vsel %vm790, %v1201, 0
    %1212 = vmatprep.subr.bf16.mxu0 0
    %1213 = vmatpush1.bf16.msra.mxu0 %v1199
    %1214 = vmatprep.subr.bf16.mxu0 0
    %1215 = vmatpush1.bf16.msra.mxu0 %v1210
    %1216 = vmatprep.subr.bf16.mxu0 0
    %1217 = vmatpush1.bf16.msra.mxu0 0
    %1218 = vmatprep.subr.bf16.mxu0 0
    %1219 = vmatpush1.bf16.msra.mxu0 0
    %1220 = vmatprep.subr.bf16.mxu0 0
    %1221 = vmatpush1.bf16.msra.mxu0 0
    %1222 = vmatprep.subr.bf16.mxu0 0
    %1223 = vmatpush1.bf16.msra.mxu0 0
    %1224 = vmatprep.subr.bf16.mxu0 0
    %1225 = vmatpush1.bf16.msra.mxu0 0
    %1226 = vmatprep.subr.bf16.mxu0 0
    %1227 = vmatpush1.bf16.msra.mxu0 0
    %1228 = vmatprep.subr.bf16.mxu0 0
    %1229 = vmatpush1.bf16.msra.mxu0 0
    %1230 = vmatprep.subr.bf16.mxu0 0
    %1231 = vmatpush1.bf16.msra.mxu0 0
    %1232 = vmatprep.subr.bf16.mxu0 0
    %1233 = vmatpush1.bf16.msra.mxu0 0
    %1234 = vmatprep.subr.bf16.mxu0 0
    %1235 = vmatpush1.bf16.msra.mxu0 0
    %1236 = vmatprep.subr.bf16.mxu0 0
    %1237 = vmatpush1.bf16.msra.mxu0 0
    %1238 = vmatprep.subr.bf16.mxu0 0
    %1239 = vmatpush1.bf16.msra.mxu0 0
    %1240 = vmatprep.subr.bf16.mxu0 0
    %1241 = vmatpush1.bf16.msra.mxu0 0
    %1242 = vmatprep.subr.bf16.mxu0 0
    %1243 = vmatpush1.bf16.msra.mxu0 0
    %1244 = vmatprep.mubr.bf16.mxu0 0
    %1245 = vmatmul.mubr.bf16.gmra.mrb[0].mxu0 %v1204
    %v1246 = vpop.f32.mrb[0].mxu0
    %v1247 = vadd.f32 0.0, %v1246
    %v1248 = vpop.f32.mrb[0].mxu0
    %v1249 = vpop.f32.mrb[0].mxu0
    %v1250 = vadd.f32 0.0, %v1249
    %v1251 = vpop.f32.mrb[0].mxu0
    %1252 = vmatprep.mubr.bf16.mxu0 0
    %1253 = vmatmul.mubr.bf16.gmra.mrb[0].mxu0 %v1207
    %v1254 = vpop.f32.mrb[0].mxu0
    %v1255 = vadd.f32 0.0, %v1254
    %v1256 = vpop.f32.mrb[0].mxu0
    %v1257 = vpop.f32.mrb[0].mxu0
    %v1258 = vpop.f32.mrb[0].mxu0
    %1259 = vdwg.mxu0
    %v1260 = vpack.c.bf16 %v768, %v768
    %1261 = vrot.lane.b32.xlu0 %v781, 104
    %v1262 = vpop.permute.xlu0 %1261
    %1263 = vrot.lane.b32.xlu0 %v782, 104
    %v1264 = vpop.permute.xlu0 %1263
    %v1266 = vsel %vm525, %v1262, 0
    %v1269 = vsel %vm525, %v1264, 0
    %v1272 = vsel %vm790, %v1260, 0
    %1274 = vmatprep.subr.bf16.mxu0 0
    %1275 = vmatpush1.bf16.msra.mxu0 %v1272
    %1276 = vmatprep.subr.bf16.mxu0 0
    %1277 = vmatpush1.bf16.msra.mxu0 0
    %1278 = vmatprep.subr.bf16.mxu0 0
    %1279 = vmatpush1.bf16.msra.mxu0 0
    %1280 = vmatprep.subr.bf16.mxu0 0
    %1281 = vmatpush1.bf16.msra.mxu0 0
    %1282 = vmatprep.subr.bf16.mxu0 0
    %1283 = vmatpush1.bf16.msra.mxu0 0
    %1284 = vmatprep.subr.bf16.mxu0 0
    %1285 = vmatpush1.bf16.msra.mxu0 0
    %1286 = vmatprep.subr.bf16.mxu0 0
    %1287 = vmatpush1.bf16.msra.mxu0 0
    %1288 = vmatprep.subr.bf16.mxu0 0
    %1289 = vmatpush1.bf16.msra.mxu0 0
    %1290 = vmatprep.subr.bf16.mxu0 0
    %1291 = vmatpush1.bf16.msra.mxu0 0
    %1292 = vmatprep.subr.bf16.mxu0 0
    %1293 = vmatpush1.bf16.msra.mxu0 0
    %1294 = vmatprep.subr.bf16.mxu0 0
    %1295 = vmatpush1.bf16.msra.mxu0 0
    %1296 = vmatprep.subr.bf16.mxu0 0
    %1297 = vmatpush1.bf16.msra.mxu0 0
    %1298 = vmatprep.subr.bf16.mxu0 0
    %1299 = vmatpush1.bf16.msra.mxu0 0
    %1300 = vmatprep.subr.bf16.mxu0 0
    %1301 = vmatpush1.bf16.msra.mxu0 0
    %1302 = vmatprep.subr.bf16.mxu0 0
    %1303 = vmatpush1.bf16.msra.mxu0 0
    %1304 = vmatprep.subr.bf16.mxu0 0
    %1305 = vmatpush1.bf16.msra.mxu0 0
    %1306 = vmatprep.mubr.bf16.mxu0 0
    %1307 = vmatmul.mubr.bf16.gmra.mrb[0].mxu0 %v1266
    %v1308 = vpop.f32.mrb[0].mxu0
    %v1309 = vadd.f32 %v105, %v1308
    %v1310 = vpop.f32.mrb[0].mxu0
    %v1311 = vpop.f32.mrb[0].mxu0
    %v1312 = vadd.f32 %v106, %v1311
    %v1313 = vpop.f32.mrb[0].mxu0
    %1314 = vmatprep.mubr.bf16.mxu0 0
    %1315 = vmatmul.mubr.bf16.gmra.mrb[0].mxu0 %v1269
    %v1316 = vpop.f32.mrb[0].mxu0
    %v1317 = vadd.f32 %v107, %v1316
    %v1318 = vpop.f32.mrb[0].mxu0
    %v1319 = vpop.f32.mrb[0].mxu0
    %v1320 = vpop.f32.mrb[0].mxu0
    %1321 = vdwg.mxu0
    %v1322 = vsel %vm842, %v1309, -inf
    %1323 = vmax.xlane.f32.xlu0 %v1322
    %v1324 = vpop.xlane.xlu0 %1323
    %v1325 = vsel %vm842, %v1312, -inf
    %1326 = vmax.xlane.f32.xlu0 %v1325
    %v1327 = vpop.xlane.xlu0 %1326
    %v1328 = vsel %vm842, %v1317, -inf
    %1329 = vmax.xlane.f32.xlu0 %v1328
    %v1330 = vpop.xlane.xlu0 %1329
    %v1331 = vsub.f32 %v1309, %v1324
    %v1332 = vsub.f32 %v1312, %v1327
    %v1333 = vsub.f32 %v1317, %v1330
    %v1334 = vmul.f32 %v1331, 1.442695
    %v1335 = vpow.pop %v1334
    %v1336 = vmul.f32 %v1332, 1.442695
    %v1337 = vpow.pop %v1336
    %v1338 = vmul.f32 %v1333, 1.442695
    %v1339 = vpow.pop %v1338
    %v1340 = vsel %vm842, %v1335, 0.0
    %1341 = vadd.xlane.f32.xlu0 %v1340
    %v1342 = vpop.xlane.xlu0 %1341
    %v1343 = vsel %vm842, %v1337, 0.0
    %1344 = vadd.xlane.f32.xlu0 %v1343
    %v1345 = vpop.xlane.xlu0 %1344
    %v1346 = vsel %vm842, %v1339, 0.0
    %1347 = vadd.xlane.f32.xlu0 %v1346
    %v1348 = vpop.xlane.xlu0 %1347
    %v1349 = vrcp.pop %v1342
    %v1350 = vrcp.pop %v1345
    %v1351 = vrcp.pop %v1348
    %v1352 = vmul.f32 %v1335, %v1349
    %v1353 = vmul.f32 %v1337, %v1350
    %v1354 = vmul.f32 %v1339, %v1351
    %v1355 = vpack.c.bf16 %v1353, %v1352
    %v1356 = vpack.c.bf16 %v1354, %v1354
    %1357 = vrot.lane.b32.xlu0 %v781, 40
    %v1358 = vpop.permute.xlu0 %1357
    %1359 = vrot.lane.b32.xlu0 %v782, 40
    %v1360 = vpop.permute.xlu0 %1359
    %v1363 = vsel %vm842, %v1355, 0
    %v1366 = vsel %vm842, %v1356, 0
    %v1369 = vsel %vm790, %v1360, 0
    %1371 = vmatprep.subr.bf16.mxu0 0
    %1372 = vmatpush1.bf16.msra.mxu0 %v1358
    %1373 = vmatprep.subr.bf16.mxu0 0
    %1374 = vmatpush1.bf16.msra.mxu0 %v1369
    %1375 = vmatprep.subr.bf16.mxu0 0
    %1376 = vmatpush1.bf16.msra.mxu0 0
    %1377 = vmatprep.subr.bf16.mxu0 0
    %1378 = vmatpush1.bf16.msra.mxu0 0
    %1379 = vmatprep.subr.bf16.mxu0 0
    %1380 = vmatpush1.bf16.msra.mxu0 0
    %1381 = vmatprep.subr.bf16.mxu0 0
    %1382 = vmatpush1.bf16.msra.mxu0 0
    %1383 = vmatprep.subr.bf16.mxu0 0
    %1384 = vmatpush1.bf16.msra.mxu0 0
    %1385 = vmatprep.subr.bf16.mxu0 0
    %1386 = vmatpush1.bf16.msra.mxu0 0
    %1387 = vmatprep.subr.bf16.mxu0 0
    %1388 = vmatpush1.bf16.msra.mxu0 0
    %1389 = vmatprep.subr.bf16.mxu0 0
    %1390 = vmatpush1.bf16.msra.mxu0 0
    %1391 = vmatprep.subr.bf16.mxu0 0
    %1392 = vmatpush1.bf16.msra.mxu0 0
    %1393 = vmatprep.subr.bf16.mxu0 0
    %1394 = vmatpush1.bf16.msra.mxu0 0
    %1395 = vmatprep.subr.bf16.mxu0 0
    %1396 = vmatpush1.bf16.msra.mxu0 0
    %1397 = vmatprep.subr.bf16.mxu0 0
    %1398 = vmatpush1.bf16.msra.mxu0 0
    %1399 = vmatprep.subr.bf16.mxu0 0
    %1400 = vmatpush1.bf16.msra.mxu0 0
    %1401 = vmatprep.subr.bf16.mxu0 0
    %1402 = vmatpush1.bf16.msra.mxu0 0
    %1403 = vmatprep.mubr.bf16.mxu0 0
    %1404 = vmatmul.mubr.bf16.gmra.mrb[0].mxu0 %v1363
    %v1405 = vpop.f32.mrb[0].mxu0
    %v1406 = vadd.f32 0.0, %v1405
    %v1407 = vpop.f32.mrb[0].mxu0
    %v1408 = vpop.f32.mrb[0].mxu0
    %v1409 = vadd.f32 0.0, %v1408
    %v1410 = vpop.f32.mrb[0].mxu0
    %1411 = vmatprep.mubr.bf16.mxu0 0
    %1412 = vmatmul.mubr.bf16.gmra.mrb[0].mxu0 %v1366
    %v1413 = vpop.f32.mrb[0].mxu0
    %v1414 = vadd.f32 0.0, %v1413
    %v1415 = vpop.f32.mrb[0].mxu0
    %v1416 = vpop.f32.mrb[0].mxu0
    %v1417 = vpop.f32.mrb[0].mxu0
    %1418 = vdwg.mxu0
    %1422 = vrot.lane.b32.xlu0 %v1088, 8
    %v1423 = vpop.permute.xlu0 %1422
    %1424 = vrot.lane.b32.xlu0 %v1091, 8
    %v1425 = vpop.permute.xlu0 %1424
    %1426 = vrot.lane.b32.xlu0 %v1096, 8
    %v1427 = vpop.permute.xlu0 %1426
    %1434 = vrot.lane.b32.xlu0 %v1247, 16
    %v1435 = vpop.permute.xlu0 %1434
    %1436 = vrot.lane.b32.xlu0 %v1250, 16
    %v1437 = vpop.permute.xlu0 %1436
    %1438 = vrot.lane.b32.xlu0 %v1255, 16
    %v1439 = vpop.permute.xlu0 %1438
    %1446 = vrot.lane.b32.xlu0 %v1406, 24
    %v1447 = vpop.permute.xlu0 %1446
    %1448 = vrot.lane.b32.xlu0 %v1409, 24
    %v1449 = vpop.permute.xlu0 %1448
    %1450 = vrot.lane.b32.xlu0 %v1414, 24
    %v1451 = vpop.permute.xlu0 %1450
    %v1455 = vsel %vm525, %v929, %v1423
    %v1456 = vsel %vm525, %v932, %v1425
    %v1457 = vsel %vm525, %v937, %v1427
    %vm1458 = vcmask 130048
    %v1459 = vsel %vm1458, %v1455, %v1435
    %v1460 = vsel %vm1458, %v1456, %v1437
    %v1461 = vsel %vm1458, %v1457, %v1439
    %v1462 = vsel %vm842, %v1459, %v1447
    %v1463 = vsel %vm842, %v1460, %v1449
    %v1464 = vsel %vm842, %v1461, %v1451
    %v1465 = vld [vmem:[#allocation2 + $0x100] sm:$0xf]
    %v1466 = vld [vmem:[#allocation2 + $0x104] sm:$0xf]
    %v1467 = vld [vmem:[#allocation2 + $0x108] sm:$0xf]
    %v1468 = vld [vmem:[#allocation2 + $0x10c] sm:$0xf]
    %v1469 = vpack.c.bf16 %v1463, %v1462
    %v1470 = vpack.c.bf16 %v1464, %v1464
    %v1471 = vld [vmem:[%s1 + $0x4] sm:$0x1]
    %v1472 = vlaneseq
    %v1473 = vshrl.u32 %v1472, 7
    %v1474 = vsub.s32 0, %v1473
    %v1475 = vrot.slane %v1471, %v1474
    %v1480 = vunpack.c.l.b16 %v1465
    %v1481 = vunpack.c.l.b16 %v1466
    %v1482 = vunpack.c.l.b16 %v1467
    %v1483 = vunpack.c.l.b16 %v1468
    %v1484 = vpack.c.b16 %v1481, %v1480
    %v1485 = vpack.c.b16 %v1483, %v1482
    %vm1488 = vcmask 261120
    %v1490 = vsel %vm1488, %v1469, 0
    %v1493 = vsel %vm1488, %v1470, 0
    %1495 = vmatprep.subr.bf16.mxu0 0
    %1496 = vmatpush1.bf16.msra.mxu0 %v1484
    %1497 = vmatprep.subr.bf16.mxu0 0
    %1498 = vmatpush1.bf16.msra.mxu0 %v1485
    %1499 = vmatprep.subr.bf16.mxu0 0
    %1500 = vmatpush1.bf16.msra.mxu0 0
    %1501 = vmatprep.subr.bf16.mxu0 0
    %1502 = vmatpush1.bf16.msra.mxu0 0
    %1503 = vmatprep.subr.bf16.mxu0 0
    %1504 = vmatpush1.bf16.msra.mxu0 0
    %1505 = vmatprep.subr.bf16.mxu0 0
    %1506 = vmatpush1.bf16.msra.mxu0 0
    %1507 = vmatprep.subr.bf16.mxu0 0
    %1508 = vmatpush1.bf16.msra.mxu0 0
    %1509 = vmatprep.subr.bf16.mxu0 0
    %1510 = vmatpush1.bf16.msra.mxu0 0
    %1511 = vmatprep.subr.bf16.mxu0 0
    %1512 = vmatpush1.bf16.msra.mxu0 0
    %1513 = vmatprep.subr.bf16.mxu0 0
    %1514 = vmatpush1.bf16.msra.mxu0 0
    %1515 = vmatprep.subr.bf16.mxu0 0
    %1516 = vmatpush1.bf16.msra.mxu0 0
    %1517 = vmatprep.subr.bf16.mxu0 0
    %1518 = vmatpush1.bf16.msra.mxu0 0
    %1519 = vmatprep.subr.bf16.mxu0 0
    %1520 = vmatpush1.bf16.msra.mxu0 0
    %1521 = vmatprep.subr.bf16.mxu0 0
    %1522 = vmatpush1.bf16.msra.mxu0 0
    %1523 = vmatprep.subr.bf16.mxu0 0
    %1524 = vmatpush1.bf16.msra.mxu0 0
    %1525 = vmatprep.subr.bf16.mxu0 0
    %1526 = vmatpush1.bf16.msra.mxu0 0
    %1527 = vmatprep.mubr.bf16.mxu0 0
    %1528 = vmatmul.mubr.bf16.gmra.mrb[0].mxu0 %v1490
    %v1529 = vpop.f32.mrb[0].mxu0
    %v1530 = vadd.f32 %v1475, %v1529
    %v1531 = vpop.f32.mrb[0].mxu0
    %v1532 = vpop.f32.mrb[0].mxu0
    %v1533 = vadd.f32 %v1475, %v1532
    %v1534 = vpop.f32.mrb[0].mxu0
    %1535 = vmatprep.mubr.bf16.mxu0 0
    %1536 = vmatmul.mubr.bf16.gmra.mrb[0].mxu0 %v1493
    %v1537 = vpop.f32.mrb[0].mxu0
    %v1538 = vadd.f32 %v1475, %v1537
    %v1539 = vpop.f32.mrb[0].mxu0
    %v1540 = vpop.f32.mrb[0].mxu0
    %v1541 = vpop.f32.mrb[0].mxu0
    %1542 = vdwg.mxu0
    %v1543 = vadd.f32 %v615, %v1530
    %v1544 = vadd.f32 %v616, %v1533
    %v1545 = vadd.f32 %v617, %v1538
    %1546 = vadd.xlane.f32.xlu0 %v1543
    %v1547 = vpop.xlane.xlu0 %1546
    %1548 = vadd.xlane.f32.xlu0 %v1544
    %v1549 = vpop.xlane.xlu0 %1548
    %1550 = vadd.xlane.f32.xlu0 %v1545
    %v1551 = vpop.xlane.xlu0 %1550
    %v1552 = vmul.f32 %v1547, 0.03125
    %v1553 = vmul.f32 %v1549, 0.03125
    %v1554 = vmul.f32 %v1551, 0.03125
    %v1555 = vmul.f32 %v1543, %v1543
    %v1556 = vmul.f32 %v1544, %v1544
    %v1557 = vmul.f32 %v1545, %v1545
    %1558 = vadd.xlane.f32.xlu0 %v1555
    %v1559 = vpop.xlane.xlu0 %1558
    %1560 = vadd.xlane.f32.xlu0 %v1556
    %v1561 = vpop.xlane.xlu0 %1560
    %1562 = vadd.xlane.f32.xlu0 %v1557
    %v1563 = vpop.xlane.xlu0 %1562
    %v1564 = vmul.f32 %v1559, 0.03125
    %v1565 = vmul.f32 %v1561, 0.03125
    %v1566 = vmul.f32 %v1563, 0.03125
    %v1567 = vsub.f32 %v1543, %v1552
    %v1568 = vsub.f32 %v1544, %v1553
    %v1569 = vsub.f32 %v1545, %v1554
    %v1570 = vmul.f32 %v1552, %v1552
    %v1571 = vmul.f32 %v1553, %v1553
    %v1572 = vmul.f32 %v1554, %v1554
    %v1573 = vsub.f32 %v1564, %v1570
    %v1574 = vsub.f32 %v1565, %v1571
    %v1575 = vsub.f32 %v1566, %v1572
    %v1576 = vadd.f32 %v1573, 1e-05
    %v1577 = vadd.f32 %v1574, 1e-05
    %v1578 = vadd.f32 %v1575, 1e-05
    %v1579 = vrsqrt.pop %v1576
    %v1580 = vrsqrt.pop %v1577
    %v1581 = vrsqrt.pop %v1578
    %v1582 = vmul.f32 %v1567, %v1579
    %v1583 = vmul.f32 %v1568, %v1580
    %v1584 = vmul.f32 %v1569, %v1581
    %v1585 = vld [vmem:[%s1 + $0x5] sm:$0x1]
    %v1586 = vlaneseq
    %v1587 = vshrl.u32 %v1586, 7
    %v1588 = vsub.s32 0, %v1587
    %v1589 = vrot.slane %v1585, %v1588
    %v1590 = vmul.f32 %v1582, %v1589
    %v1591 = vmul.f32 %v1583, %v1589
    %v1592 = vmul.f32 %v1584, %v1589
    %v1593 = vld [vmem:[%s1 + $0x6] sm:$0x1]
    %v1594 = vlaneseq
    %v1595 = vshrl.u32 %v1594, 7
    %v1596 = vsub.s32 0, %v1595
    %v1597 = vrot.slane %v1593, %v1596
    %v1598 = vadd.f32 %v1590, %v1597
    %v1599 = vadd.f32 %v1591, %v1597
    %v1600 = vadd.f32 %v1592, %v1597
    %v1601 = vld [vmem:[#allocation2 + $0x140] sm:$0xf]
    %v1602 = vld [vmem:[#allocation2 + $0x144] sm:$0xf]
    %v1603 = vld [vmem:[#allocation2 + $0x148] sm:$0xf]
    %v1604 = vld [vmem:[#allocation2 + $0x14c] sm:$0xf]
    %v1605 = vld [vmem:[#allocation2 + $0x150] sm:$0xf]
    %v1606 = vld [vmem:[#allocation2 + $0x154] sm:$0xf]
    %v1607 = vld [vmem:[#allocation2 + $0x158] sm:$0xf]
    %v1608 = vld [vmem:[#allocation2 + $0x15c] sm:$0xf]
    %v1609 = vld [vmem:[#allocation2 + $0x160] sm:$0xf]
    %v1610 = vld [vmem:[#allocation2 + $0x164] sm:$0xf]
    %v1611 = vld [vmem:[#allocation2 + $0x168] sm:$0xf]
    %v1612 = vld [vmem:[#allocation2 + $0x16c] sm:$0xf]
    %v1613 = vld [vmem:[#allocation2 + $0x170] sm:$0xf]
    %v1614 = vld [vmem:[#allocation2 + $0x174] sm:$0xf]
    %v1615 = vld [vmem:[#allocation2 + $0x178] sm:$0xf]
    %v1616 = vld [vmem:[#allocation2 + $0x17c] sm:$0xf]
    %v1617 = vpack.c.bf16 %v1599, %v1598
    %v1618 = vpack.c.bf16 %v1600, %v1600
    %v1619 = vld [vmem:[%s1 + $0x7] sm:$0x1]
    %v1620 = vlaneseq
    %v1621 = vshrl.u32 %v1620, 7
    %v1622 = vsub.s32 0, %v1621
    %v1623 = vrot.slane %v1619, %v1622
    %v1640 = vunpack.c.l.b16 %v1601
    %v1641 = vunpack.c.l.b16 %v1602
    %v1642 = vunpack.c.l.b16 %v1603
    %v1643 = vunpack.c.l.b16 %v1604
    %v1644 = vunpack.c.l.b16 %v1605
    %v1645 = vunpack.c.l.b16 %v1606
    %v1646 = vunpack.c.l.b16 %v1607
    %v1647 = vunpack.c.l.b16 %v1608
    %v1648 = vunpack.c.l.b16 %v1609
    %v1649 = vunpack.c.l.b16 %v1610
    %v1650 = vunpack.c.l.b16 %v1611
    %v1651 = vunpack.c.l.b16 %v1612
    %v1652 = vunpack.c.l.b16 %v1613
    %v1653 = vunpack.c.l.b16 %v1614
    %v1654 = vunpack.c.l.b16 %v1615
    %v1655 = vunpack.c.l.b16 %v1616
    %v1656 = vpack.c.b16 %v1641, %v1640
    %v1657 = vpack.c.b16 %v1643, %v1642
    %v1658 = vpack.c.b16 %v1645, %v1644
    %v1659 = vpack.c.b16 %v1647, %v1646
    %v1660 = vpack.c.b16 %v1649, %v1648
    %v1661 = vpack.c.b16 %v1651, %v1650
    %v1662 = vpack.c.b16 %v1653, %v1652
    %v1663 = vpack.c.b16 %v1655, %v1654
    %1672 = vmatprep.subr.bf16.mxu0 0
    %1673 = vmatpush1.bf16.msra.mxu0 %v1656
    %1674 = vmatprep.subr.bf16.mxu0 0
    %1675 = vmatpush1.bf16.msra.mxu0 %v1657
    %1676 = vmatprep.subr.bf16.mxu0 0
    %1677 = vmatpush1.bf16.msra.mxu0 %v1658
    %1678 = vmatprep.subr.bf16.mxu0 0
    %1679 = vmatpush1.bf16.msra.mxu0 %v1659
    %1680 = vmatprep.subr.bf16.mxu0 0
    %1681 = vmatpush1.bf16.msra.mxu0 %v1660
    %1682 = vmatprep.subr.bf16.mxu0 0
    %1683 = vmatpush1.bf16.msra.mxu0 %v1661
    %1684 = vmatprep.subr.bf16.mxu0 0
    %1685 = vmatpush1.bf16.msra.mxu0 %v1662
    %1686 = vmatprep.subr.bf16.mxu0 0
    %1687 = vmatpush1.bf16.msra.mxu0 %v1663
    %1688 = vmatprep.subr.bf16.mxu0 0
    %1689 = vmatpush1.bf16.msra.mxu0 0
    %1690 = vmatprep.subr.bf16.mxu0 0
    %1691 = vmatpush1.bf16.msra.mxu0 0
    %1692 = vmatprep.subr.bf16.mxu0 0
    %1693 = vmatpush1.bf16.msra.mxu0 0
    %1694 = vmatprep.subr.bf16.mxu0 0
    %1695 = vmatpush1.bf16.msra.mxu0 0
    %1696 = vmatprep.subr.bf16.mxu0 0
    %1697 = vmatpush1.bf16.msra.mxu0 0
    %1698 = vmatprep.subr.bf16.mxu0 0
    %1699 = vmatpush1.bf16.msra.mxu0 0
    %1700 = vmatprep.subr.bf16.mxu0 0
    %1701 = vmatpush1.bf16.msra.mxu0 0
    %1702 = vmatprep.subr.bf16.mxu0 0
    %1703 = vmatpush1.bf16.msra.mxu0 0
    %1704 = vmatprep.mubr.bf16.mxu0 0
    %1705 = vmatmul.mubr.bf16.gmra.mrb[0].mxu0 %v1617
    %v1706 = vpop.f32.mrb[0].mxu0
    %v1707 = vadd.f32 %v1623, %v1706
    %v1708 = vpop.f32.mrb[0].mxu0
    %v1709 = vpop.f32.mrb[0].mxu0
    %v1710 = vadd.f32 %v1623, %v1709
    %v1711 = vpop.f32.mrb[0].mxu0
    %1712 = vmatprep.mubr.bf16.mxu0 0
    %1713 = vmatmul.mubr.bf16.gmra.mrb[0].mxu0 %v1618
    %v1714 = vpop.f32.mrb[0].mxu0
    %v1715 = vadd.f32 %v1623, %v1714
    %v1716 = vpop.f32.mrb[0].mxu0
    %v1717 = vpop.f32.mrb[0].mxu0
    %v1718 = vpop.f32.mrb[0].mxu0
    %1719 = vdwg.mxu0
    %v1720 = vmul.f32 %v1707, 0.5
    %v1721 = vmul.f32 %v1710, 0.5
    %v1722 = vmul.f32 %v1715, 0.5
    %v1723 = vmul.f32 %v1707, 0.70710677
    %v1724 = vmul.f32 %v1710, 0.70710677
    %v1725 = vmul.f32 %v1715, 0.70710677
    %v1726 = verf.f32.pop %v1723
    %v1727 = verf.f32.pop %v1724
    %v1728 = verf.f32.pop %v1725
    %v1729 = vadd.f32 %v1726, 1.0
    %v1730 = vadd.f32 %v1727, 1.0
    %v1731 = vadd.f32 %v1728, 1.0
    %v1732 = vmul.f32 %v1720, %v1729
    %v1733 = vmul.f32 %v1721, %v1730
    %v1734 = vmul.f32 %v1722, %v1731
    %v1735 = vld [vmem:[#allocation2 + $0x180] sm:$0xf]
    %v1736 = vld [vmem:[#allocation2 + $0x184] sm:$0xf]
    %v1737 = vld [vmem:[#allocation2 + $0x188] sm:$0xf]
    %v1738 = vld [vmem:[#allocation2 + $0x18c] sm:$0xf]
    %v1739 = vld [vmem:[#allocation2 + $0x190] sm:$0xf]
    %v1740 = vld [vmem:[#allocation2 + $0x194] sm:$0xf]
    %v1741 = vld [vmem:[#allocation2 + $0x198] sm:$0xf]
    %v1742 = vld [vmem:[#allocation2 + $0x19c] sm:$0xf]
    %v1743 = vld [vmem:[#allocation2 + $0x1a0] sm:$0xf]
    %v1744 = vld [vmem:[#allocation2 + $0x1a4] sm:$0xf]
    %v1745 = vld [vmem:[#allocation2 + $0x1a8] sm:$0xf]
    %v1746 = vld [vmem:[#allocation2 + $0x1ac] sm:$0xf]
    %v1747 = vld [vmem:[#allocation2 + $0x1b0] sm:$0xf]
    %v1748 = vld [vmem:[#allocation2 + $0x1b4] sm:$0xf]
    %v1749 = vld [vmem:[#allocation2 + $0x1b8] sm:$0xf]
    %v1750 = vld [vmem:[#allocation2 + $0x1bc] sm:$0xf]
    %v1751 = vpack.c.bf16 %v1733, %v1732
    %v1752 = vpack.c.bf16 %v1734, %v1734
    %v1753 = vld [vmem:[%s1 + $0x8] sm:$0x1]
    %v1754 = vlaneseq
    %v1755 = vshrl.u32 %v1754, 7
    %v1756 = vsub.s32 0, %v1755
    %v1757 = vrot.slane %v1753, %v1756
    %v1774 = vunpack.c.l.b16 %v1735
    %v1775 = vunpack.c.l.b16 %v1736
    %v1776 = vunpack.c.l.b16 %v1737
    %v1777 = vunpack.c.l.b16 %v1738
    %v1778 = vunpack.c.l.b16 %v1739
    %v1779 = vunpack.c.l.b16 %v1740
    %v1780 = vunpack.c.l.b16 %v1741
    %v1781 = vunpack.c.l.b16 %v1742
    %v1782 = vunpack.c.l.b16 %v1743
    %v1783 = vunpack.c.l.b16 %v1744
    %v1784 = vunpack.c.l.b16 %v1745
    %v1785 = vunpack.c.l.b16 %v1746
    %v1786 = vunpack.c.l.b16 %v1747
    %v1787 = vunpack.c.l.b16 %v1748
    %v1788 = vunpack.c.l.b16 %v1749
    %v1789 = vunpack.c.l.b16 %v1750
    %v1790 = vpack.c.b16 %v1775, %v1774
    %v1791 = vpack.c.b16 %v1777, %v1776
    %v1792 = vpack.c.b16 %v1779, %v1778
    %v1793 = vpack.c.b16 %v1781, %v1780
    %v1794 = vpack.c.b16 %v1783, %v1782
    %v1795 = vpack.c.b16 %v1785, %v1784
    %v1796 = vpack.c.b16 %v1787, %v1786
    %v1797 = vpack.c.b16 %v1789, %v1788
    %1806 = vmatprep.subr.bf16.mxu0 0
    %1807 = vmatpush1.bf16.msra.mxu0 %v1790
    %1808 = vmatprep.subr.bf16.mxu0 0
    %1809 = vmatpush1.bf16.msra.mxu0 %v1791
    %1810 = vmatprep.subr.bf16.mxu0 0
    %1811 = vmatpush1.bf16.msra.mxu0 %v1792
    %1812 = vmatprep.subr.bf16.mxu0 0
    %1813 = vmatpush1.bf16.msra.mxu0 %v1793
    %1814 = vmatprep.subr.bf16.mxu0 0
    %1815 = vmatpush1.bf16.msra.mxu0 %v1794
    %1816 = vmatprep.subr.bf16.mxu0 0
    %1817 = vmatpush1.bf16.msra.mxu0 %v1795
    %1818 = vmatprep.subr.bf16.mxu0 0
    %1819 = vmatpush1.bf16.msra.mxu0 %v1796
    %1820 = vmatprep.subr.bf16.mxu0 0
    %1821 = vmatpush1.bf16.msra.mxu0 %v1797
    %1822 = vmatprep.subr.bf16.mxu0 0
    %1823 = vmatpush1.bf16.msra.mxu0 0
    %1824 = vmatprep.subr.bf16.mxu0 0
    %1825 = vmatpush1.bf16.msra.mxu0 0
    %1826 = vmatprep.subr.bf16.mxu0 0
    %1827 = vmatpush1.bf16.msra.mxu0 0
    %1828 = vmatprep.subr.bf16.mxu0 0
    %1829 = vmatpush1.bf16.msra.mxu0 0
    %1830 = vmatprep.subr.bf16.mxu0 0
    %1831 = vmatpush1.bf16.msra.mxu0 0
    %1832 = vmatprep.subr.bf16.mxu0 0
    %1833 = vmatpush1.bf16.msra.mxu0 0
    %1834 = vmatprep.subr.bf16.mxu0 0
    %1835 = vmatpush1.bf16.msra.mxu0 0
    %1836 = vmatprep.subr.bf16.mxu0 0
    %1837 = vmatpush1.bf16.msra.mxu0 0
    %1838 = vmatprep.mubr.bf16.mxu0 0
    %1839 = vmatmul.mubr.bf16.gmra.mrb[0].mxu0 %v1751
    %v1840 = vpop.f32.mrb[0].mxu0
    %v1841 = vadd.f32 %v1757, %v1840
    %v1842 = vpop.f32.mrb[0].mxu0
    %v1843 = vpop.f32.mrb[0].mxu0
    %v1844 = vadd.f32 %v1757, %v1843
    %v1845 = vpop.f32.mrb[0].mxu0
    %1846 = vmatprep.mubr.bf16.mxu0 0
    %1847 = vmatmul.mubr.bf16.gmra.mrb[0].mxu0 %v1752
    %v1848 = vpop.f32.mrb[0].mxu0
    %v1849 = vadd.f32 %v1757, %v1848
    %v1850 = vpop.f32.mrb[0].mxu0
    %v1851 = vpop.f32.mrb[0].mxu0
    %v1852 = vpop.f32.mrb[0].mxu0
    %1853 = vdwg.mxu0
    %v1854 = vadd.f32 %v1598, %v1841
    %v1855 = vadd.f32 %v1599, %v1844
    %v1856 = vadd.f32 %v1600, %v1849
    %1857 = vadd.xlane.f32.xlu0 %v1854
    %v1858 = vpop.xlane.xlu0 %1857
    %1859 = vadd.xlane.f32.xlu0 %v1855
    %v1860 = vpop.xlane.xlu0 %1859
    %1861 = vadd.xlane.f32.xlu0 %v1856
    %v1862 = vpop.xlane.xlu0 %1861
    %v1863 = vmul.f32 %v1858, 0.03125
    %v1864 = vmul.f32 %v1860, 0.03125
    %v1865 = vmul.f32 %v1862, 0.03125
    %v1866 = vmul.f32 %v1854, %v1854
    %v1867 = vmul.f32 %v1855, %v1855
    %v1868 = vmul.f32 %v1856, %v1856
    %1869 = vadd.xlane.f32.xlu0 %v1866
    %v1870 = vpop.xlane.xlu0 %1869
    %1871 = vadd.xlane.f32.xlu0 %v1867
    %v1872 = vpop.xlane.xlu0 %1871
    %1873 = vadd.xlane.f32.xlu0 %v1868
    %v1874 = vpop.xlane.xlu0 %1873
    %v1875 = vmul.f32 %v1870, 0.03125
    %v1876 = vmul.f32 %v1872, 0.03125
    %v1877 = vmul.f32 %v1874, 0.03125
    %v1878 = vsub.f32 %v1854, %v1863
    %v1879 = vsub.f32 %v1855, %v1864
    %v1880 = vsub.f32 %v1856, %v1865
    %v1881 = vmul.f32 %v1863, %v1863
    %v1882 = vmul.f32 %v1864, %v1864
    %v1883 = vmul.f32 %v1865, %v1865
    %v1884 = vsub.f32 %v1875, %v1881
    %v1885 = vsub.f32 %v1876, %v1882
    %v1886 = vsub.f32 %v1877, %v1883
    %v1887 = vadd.f32 %v1884, 1e-05
    %v1888 = vadd.f32 %v1885, 1e-05
    %v1889 = vadd.f32 %v1886, 1e-05
    %v1890 = vrsqrt.pop %v1887
    %v1891 = vrsqrt.pop %v1888
    %v1892 = vrsqrt.pop %v1889
    %v1893 = vmul.f32 %v1878, %v1890
    %v1894 = vmul.f32 %v1879, %v1891
    %v1895 = vmul.f32 %v1880, %v1892
    %v1896 = vld [vmem:[%s1 + $0x9] sm:$0x1]
    %v1897 = vlaneseq
    %v1898 = vshrl.u32 %v1897, 7
    %v1899 = vsub.s32 0, %v1898
    %v1900 = vrot.slane %v1896, %v1899
    %v1901 = vmul.f32 %v1893, %v1900
    %v1902 = vmul.f32 %v1894, %v1900
    %v1903 = vmul.f32 %v1895, %v1900
    %v1904 = vld [vmem:[%s1 + $0xa] sm:$0x1]
    %v1905 = vlaneseq
    %v1906 = vshrl.u32 %v1905, 7
    %v1907 = vsub.s32 0, %v1906
    %v1908 = vrot.slane %v1904, %v1907
    %v1909 = vadd.f32 %v1901, %v1908
    %v1910 = vadd.f32 %v1902, %v1908
    %v1911 = vadd.f32 %v1903, %v1908
    %v1912 = vld [vmem:[#allocation2 + $0x1c0] sm:$0xf]
    %v1913 = vld [vmem:[#allocation2 + $0x1c4] sm:$0xf]
    %v1914 = vld [vmem:[#allocation2 + $0x1c8] sm:$0xf]
    %v1915 = vld [vmem:[#allocation2 + $0x1cc] sm:$0xf]
    %v1916 = vld [vmem:[#allocation2 + $0x1d0] sm:$0xf]
    %v1917 = vld [vmem:[#allocation2 + $0x1d4] sm:$0xf]
    %v1918 = vld [vmem:[#allocation2 + $0x1d8] sm:$0xf]
    %v1919 = vld [vmem:[#allocation2 + $0x1dc] sm:$0xf]
    %v1920 = vld [vmem:[#allocation2 + $0x1e0] sm:$0xf]
    %v1921 = vld [vmem:[#allocation2 + $0x1e4] sm:$0xf]
    %v1922 = vld [vmem:[#allocation2 + $0x1e8] sm:$0xf]
    %v1923 = vld [vmem:[#allocation2 + $0x1ec] sm:$0xf]
    %v1924 = vld [vmem:[#allocation2 + $0x1f0] sm:$0xf]
    %v1925 = vld [vmem:[#allocation2 + $0x1f4] sm:$0xf]
    %v1926 = vld [vmem:[#allocation2 + $0x1f8] sm:$0xf]
    %v1927 = vld [vmem:[#allocation2 + $0x1fc] sm:$0xf]
    %v1928 = vpack.c.bf16 %v1910, %v1909
    %v1929 = vpack.c.bf16 %v1911, %v1911
    %v1930 = vld [vmem:[%s1 + $0xb] sm:$0x1]
    %v1931 = vlaneseq
    %v1932 = vshrl.u32 %v1931, 7
    %v1933 = vsub.s32 0, %v1932
    %v1934 = vrot.slane %v1930, %v1933
    %v1951 = vunpack.c.l.b16 %v1912
    %v1952 = vunpack.c.l.b16 %v1913
    %v1953 = vunpack.c.l.b16 %v1914
    %v1954 = vunpack.c.l.b16 %v1915
    %v1955 = vunpack.c.l.b16 %v1916
    %v1956 = vunpack.c.l.b16 %v1917
    %v1957 = vunpack.c.l.b16 %v1918
    %v1958 = vunpack.c.l.b16 %v1919
    %v1959 = vunpack.c.l.b16 %v1920
    %v1960 = vunpack.c.l.b16 %v1921
    %v1961 = vunpack.c.l.b16 %v1922
    %v1962 = vunpack.c.l.b16 %v1923
    %v1963 = vunpack.c.l.b16 %v1924
    %v1964 = vunpack.c.l.b16 %v1925
    %v1965 = vunpack.c.l.b16 %v1926
    %v1966 = vunpack.c.l.b16 %v1927
    %v1967 = vpack.c.b16 %v1952, %v1951
    %v1968 = vpack.c.b16 %v1954, %v1953
    %v1969 = vpack.c.b16 %v1956, %v1955
    %v1970 = vpack.c.b16 %v1958, %v1957
    %v1971 = vpack.c.b16 %v1960, %v1959
    %v1972 = vpack.c.b16 %v1962, %v1961
    %v1973 = vpack.c.b16 %v1964, %v1963
    %v1974 = vpack.c.b16 %v1966, %v1965
    %1983 = vmatprep.subr.bf16.mxu0 0
    %1984 = vmatpush1.bf16.msra.mxu0 %v1967
    %1985 = vmatprep.subr.bf16.mxu0 0
    %1986 = vmatpush1.bf16.msra.mxu0 %v1968
    %1987 = vmatprep.subr.bf16.mxu0 0
    %1988 = vmatpush1.bf16.msra.mxu0 %v1969
    %1989 = vmatprep.subr.bf16.mxu0 0
    %1990 = vmatpush1.bf16.msra.mxu0 %v1970
    %1991 = vmatprep.subr.bf16.mxu0 0
    %1992 = vmatpush1.bf16.msra.mxu0 %v1971
    %1993 = vmatprep.subr.bf16.mxu0 0
    %1994 = vmatpush1.bf16.msra.mxu0 %v1972
    %1995 = vmatprep.subr.bf16.mxu0 0
    %1996 = vmatpush1.bf16.msra.mxu0 %v1973
    %1997 = vmatprep.subr.bf16.mxu0 0
    %1998 = vmatpush1.bf16.msra.mxu0 %v1974
    %1999 = vmatprep.subr.bf16.mxu0 0
    %2000 = vmatpush1.bf16.msra.mxu0 0
    %2001 = vmatprep.subr.bf16.mxu0 0
    %2002 = vmatpush1.bf16.msra.mxu0 0
    %2003 = vmatprep.subr.bf16.mxu0 0
    %2004 = vmatpush1.bf16.msra.mxu0 0
    %2005 = vmatprep.subr.bf16.mxu0 0
    %2006 = vmatpush1.bf16.msra.mxu0 0
    %2007 = vmatprep.subr.bf16.mxu0 0
    %2008 = vmatpush1.bf16.msra.mxu0 0
    %2009 = vmatprep.subr.bf16.mxu0 0
    %2010 = vmatpush1.bf16.msra.mxu0 0
    %2011 = vmatprep.subr.bf16.mxu0 0
    %2012 = vmatpush1.bf16.msra.mxu0 0
    %2013 = vmatprep.subr.bf16.mxu0 0
    %2014 = vmatpush1.bf16.msra.mxu0 0
    %2015 = vmatprep.mubr.bf16.mxu0 0
    %2016 = vmatmul.mubr.bf16.gmra.mrb[0].mxu0 %v1928
    %v2017 = vpop.f32.mrb[0].mxu0
    %v2018 = vadd.f32 %v1934, %v2017
    %v2019 = vpop.f32.mrb[0].mxu0
    %v2020 = vpop.f32.mrb[0].mxu0
    %v2021 = vadd.f32 %v1934, %v2020
    %v2022 = vpop.f32.mrb[0].mxu0
    %2023 = vmatprep.mubr.bf16.mxu0 0
    %2024 = vmatmul.mubr.bf16.gmra.mrb[0].mxu0 %v1929
    %v2025 = vpop.f32.mrb[0].mxu0
    %v2026 = vadd.f32 %v1934, %v2025
    %v2027 = vpop.f32.mrb[0].mxu0
    %v2028 = vpop.f32.mrb[0].mxu0
    %v2029 = vpop.f32.mrb[0].mxu0
    %2030 = vdwg.mxu0
    %2034 = vrot.lane.b32.xlu0 %v2018, 96
    %v2035 = vpop.permute.xlu0 %2034
    %2036 = vrot.lane.b32.xlu0 %v2021, 96
    %v2037 = vpop.permute.xlu0 %2036
    %2038 = vrot.lane.b32.xlu0 %v2026, 96
    %v2039 = vpop.permute.xlu0 %2038
    %2043 = vxpose.xlu0.b32.start [1/16] %v2035, 128
    %2044 = vxpose.xlu0.b32.cont [2/16] %v2037, 128
    %2045 = vxpose.xlu0.b32.cont [3/16] %v2039, 128
    %2046 = vxpose.xlu0.b32.cont [4/16] 0.0, 128
    %2047 = vxpose.xlu0.b32.cont [5/16] 0.0, 128
    %2048 = vxpose.xlu0.b32.cont [6/16] 0.0, 128
    %2049 = vxpose.xlu0.b32.cont [7/16] 0.0, 128
    %2050 = vxpose.xlu0.b32.cont [8/16] 0.0, 128
    %2051 = vxpose.xlu0.b32.cont [9/16] 0.0, 128
    %2052 = vxpose.xlu0.b32.cont [10/16] 0.0, 128
    %2053 = vxpose.xlu0.b32.cont [11/16] 0.0, 128
    %2054 = vxpose.xlu0.b32.cont [12/16] 0.0, 128
    %2055 = vxpose.xlu0.b32.cont [13/16] 0.0, 128
    %2056 = vxpose.xlu0.b32.cont [14/16] 0.0, 128
    %2057 = vxpose.xlu0.b32.cont [15/16] 0.0, 128
    %2058 = vxpose.xlu0.b32.end [16/16] 0.0, 128
    %v2059 = vpop.trf.xlu0
    %v2060 = vpop.trf.xlu0
    %v2061 = vpop.trf.xlu0
    %v2062 = vpop.trf.xlu0
    %v2063 = vpop.trf.xlu0
    %v2064 = vpop.trf.xlu0
    %v2065 = vpop.trf.xlu0
    %v2066 = vpop.trf.xlu0
    %v2067 = vpop.trf.xlu0
    %v2068 = vpop.trf.xlu0
    %v2069 = vpop.trf.xlu0
    %v2070 = vpop.trf.xlu0
    %v2071 = vpop.trf.xlu0
    %v2072 = vpop.trf.xlu0
    %v2073 = vpop.trf.xlu0
    %v2074 = vpop.trf.xlu0
    %v2075 = vpack.c.bf16 %v2021, %v2018
    %v2076 = vpack.c.bf16 %v2026, %v2026
    %v2077 = vpack.c.bf16 %v2059, %v2059
    %v2079 = vsel %vm525, %v2075, 0
    %v2082 = vsel %vm525, %v2076, 0
    %v2085 = vsel %vm790, %v2077, 0
    %2087 = vmatprep.subr.bf16.mxu0 0
    %2088 = vmatpush1.bf16.msra.mxu0 %v2085
    %2089 = vmatprep.subr.bf16.mxu0 0
    %2090 = vmatpush1.bf16.msra.mxu0 0
    %2091 = vmatprep.subr.bf16.mxu0 0
    %2092 = vmatpush1.bf16.msra.mxu0 0
    %2093 = vmatprep.subr.bf16.mxu0 0
    %2094 = vmatpush1.bf16.msra.mxu0 0
    %2095 = vmatprep.subr.bf16.mxu0 0
    %2096 = vmatpush1.bf16.msra.mxu0 0
    %2097 = vmatprep.subr.bf16.mxu0 0
    %2098 = vmatpush1.bf16.msra.mxu0 0
    %2099 = vmatprep.subr.bf16.mxu0 0
    %2100 = vmatpush1.bf16.msra.mxu0 0
    %2101 = vmatprep.subr.bf16.mxu0 0
    %2102 = vmatpush1.bf16.msra.mxu0 0
    %2103 = vmatprep.subr.bf16.mxu0 0
    %2104 = vmatpush1.bf16.msra.mxu0 0
    %2105 = vmatprep.subr.bf16.mxu0 0
    %2106 = vmatpush1.bf16.msra.mxu0 0
    %2107 = vmatprep.subr.bf16.mxu0 0
    %2108 = vmatpush1.bf16.msra.mxu0 0
    %2109 = vmatprep.subr.bf16.mxu0 0
    %2110 = vmatpush1.bf16.msra.mxu0 0
    %2111 = vmatprep.subr.bf16.mxu0 0
    %2112 = vmatpush1.bf16.msra.mxu0 0
    %2113 = vmatprep.subr.bf16.mxu0 0
    %2114 = vmatpush1.bf16.msra.mxu0 0
    %2115 = vmatprep.subr.bf16.mxu0 0
    %2116 = vmatpush1.bf16.msra.mxu0 0
    %2117 = vmatprep.subr.bf16.mxu0 0
    %2118 = vmatpush1.bf16.msra.mxu0 0
    %2119 = vmatprep.mubr.bf16.mxu0 0
    %2120 = vmatmul.mubr.bf16.gmra.mrb[0].mxu0 %v2079
    %v2121 = vpop.f32.mrb[0].mxu0
    %v2122 = vadd.f32 %v105, %v2121
    %v2123 = vpop.f32.mrb[0].mxu0
    %v2124 = vpop.f32.mrb[0].mxu0
    %v2125 = vadd.f32 %v106, %v2124
    %v2126 = vpop.f32.mrb[0].mxu0
    %2127 = vmatprep.mubr.bf16.mxu0 0
    %2128 = vmatmul.mubr.bf16.gmra.mrb[0].mxu0 %v2082
    %v2129 = vpop.f32.mrb[0].mxu0
    %v2130 = vadd.f32 %v107, %v2129
    %v2131 = vpop.f32.mrb[0].mxu0
    %v2132 = vpop.f32.mrb[0].mxu0
    %v2133 = vpop.f32.mrb[0].mxu0
    %2134 = vdwg.mxu0
    %v2135 = vsel %vm842, %v2122, -inf
    %2136 = vmax.xlane.f32.xlu0 %v2135
    %v2137 = vpop.xlane.xlu0 %2136
    %v2138 = vsel %vm842, %v2125, -inf
    %2139 = vmax.xlane.f32.xlu0 %v2138
    %v2140 = vpop.xlane.xlu0 %2139
    %v2141 = vsel %vm842, %v2130, -inf
    %2142 = vmax.xlane.f32.xlu0 %v2141
    %v2143 = vpop.xlane.xlu0 %2142
    %v2144 = vsub.f32 %v2122, %v2137
    %v2145 = vsub.f32 %v2125, %v2140
    %v2146 = vsub.f32 %v2130, %v2143
    %v2147 = vmul.f32 %v2144, 1.442695
    %v2148 = vpow.pop %v2147
    %v2149 = vmul.f32 %v2145, 1.442695
    %v2150 = vpow.pop %v2149
    %v2151 = vmul.f32 %v2146, 1.442695
    %v2152 = vpow.pop %v2151
    %v2153 = vsel %vm842, %v2148, 0.0
    %2154 = vadd.xlane.f32.xlu0 %v2153
    %v2155 = vpop.xlane.xlu0 %2154
    %v2156 = vsel %vm842, %v2150, 0.0
    %2157 = vadd.xlane.f32.xlu0 %v2156
    %v2158 = vpop.xlane.xlu0 %2157
    %v2159 = vsel %vm842, %v2152, 0.0
    %2160 = vadd.xlane.f32.xlu0 %v2159
    %v2161 = vpop.xlane.xlu0 %2160
    %v2162 = vrcp.pop %v2155
    %v2163 = vrcp.pop %v2158
    %v2164 = vrcp.pop %v2161
    %v2165 = vmul.f32 %v2148, %v2162
    %v2166 = vmul.f32 %v2150, %v2163
    %v2167 = vmul.f32 %v2152, %v2164
    %v2168 = vpack.c.bf16 %v2166, %v2165
    %v2169 = vpack.c.bf16 %v2167, %v2167
    %2172 = vrot.lane.b32.xlu0 %v2075, 64
    %v2173 = vpop.permute.xlu0 %2172
    %2174 = vrot.lane.b32.xlu0 %v2076, 64
    %v2175 = vpop.permute.xlu0 %2174
    %v2178 = vsel %vm842, %v2168, 0
    %v2181 = vsel %vm842, %v2169, 0
    %v2184 = vsel %vm790, %v2175, 0
    %2186 = vmatprep.subr.bf16.mxu0 0
    %2187 = vmatpush1.bf16.msra.mxu0 %v2173
    %2188 = vmatprep.subr.bf16.mxu0 0
    %2189 = vmatpush1.bf16.msra.mxu0 %v2184
    %2190 = vmatprep.subr.bf16.mxu0 0
    %2191 = vmatpush1.bf16.msra.mxu0 0
    %2192 = vmatprep.subr.bf16.mxu0 0
    %2193 = vmatpush1.bf16.msra.mxu0 0
    %2194 = vmatprep.subr.bf16.mxu0 0
    %2195 = vmatpush1.bf16.msra.mxu0 0
    %2196 = vmatprep.subr.bf16.mxu0 0
    %2197 = vmatpush1.bf16.msra.mxu0 0
    %2198 = vmatprep.subr.bf16.mxu0 0
    %2199 = vmatpush1.bf16.msra.mxu0 0
    %2200 = vmatprep.subr.bf16.mxu0 0
    %2201 = vmatpush1.bf16.msra.mxu0 0
    %2202 = vmatprep.subr.bf16.mxu0 0
    %2203 = vmatpush1.bf16.msra.mxu0 0
    %2204 = vmatprep.subr.bf16.mxu0 0
    %2205 = vmatpush1.bf16.msra.mxu0 0
    %2206 = vmatprep.subr.bf16.mxu0 0
    %2207 = vmatpush1.bf16.msra.mxu0 0
    %2208 = vmatprep.subr.bf16.mxu0 0
    %2209 = vmatpush1.bf16.msra.mxu0 0
    %2210 = vmatprep.subr.bf16.mxu0 0
    %2211 = vmatpush1.bf16.msra.mxu0 0
    %2212 = vmatprep.subr.bf16.mxu0 0
    %2213 = vmatpush1.bf16.msra.mxu0 0
    %2214 = vmatprep.subr.bf16.mxu0 0
    %2215 = vmatpush1.bf16.msra.mxu0 0
    %2216 = vmatprep.subr.bf16.mxu0 0
    %2217 = vmatpush1.bf16.msra.mxu0 0
    %2218 = vmatprep.mubr.bf16.mxu0 0
    %2219 = vmatmul.mubr.bf16.gmra.mrb[0].mxu0 %v2178
    %v2220 = vpop.f32.mrb[0].mxu0
    %v2221 = vadd.f32 0.0, %v2220
    %v2222 = vpop.f32.mrb[0].mxu0
    %v2223 = vpop.f32.mrb[0].mxu0
    %v2224 = vadd.f32 0.0, %v2223
    %v2225 = vpop.f32.mrb[0].mxu0
    %2226 = vmatprep.mubr.bf16.mxu0 0
    %2227 = vmatmul.mubr.bf16.gmra.mrb[0].mxu0 %v2181
    %v2228 = vpop.f32.mrb[0].mxu0
    %v2229 = vadd.f32 0.0, %v2228
    %v2230 = vpop.f32.mrb[0].mxu0
    %v2231 = vpop.f32.mrb[0].mxu0
    %v2232 = vpop.f32.mrb[0].mxu0
    %2233 = vdwg.mxu0
    %v2234 = vpack.c.bf16 %v2060, %v2060
    %2235 = vrot.lane.b32.xlu0 %v2075, 120
    %v2236 = vpop.permute.xlu0 %2235
    %2237 = vrot.lane.b32.xlu0 %v2076, 120
    %v2238 = vpop.permute.xlu0 %2237
    %v2240 = vsel %vm525, %v2236, 0
    %v2243 = vsel %vm525, %v2238, 0
    %v2246 = vsel %vm790, %v2234, 0
    %2248 = vmatprep.subr.bf16.mxu0 0
    %2249 = vmatpush1.bf16.msra.mxu0 %v2246
    %2250 = vmatprep.subr.bf16.mxu0 0
    %2251 = vmatpush1.bf16.msra.mxu0 0
    %2252 = vmatprep.subr.bf16.mxu0 0
    %2253 = vmatpush1.bf16.msra.mxu0 0
    %2254 = vmatprep.subr.bf16.mxu0 0
    %2255 = vmatpush1.bf16.msra.mxu0 0
    %2256 = vmatprep.subr.bf16.mxu0 0
    %2257 = vmatpush1.bf16.msra.mxu0 0
    %2258 = vmatprep.subr.bf16.mxu0 0
    %2259 = vmatpush1.bf16.msra.mxu0 0
    %2260 = vmatprep.subr.bf16.mxu0 0
    %2261 = vmatpush1.bf16.msra.mxu0 0
    %2262 = vmatprep.subr.bf16.mxu0 0
    %2263 = vmatpush1.bf16.msra.mxu0 0
    %2264 = vmatprep.subr.bf16.mxu0 0
    %2265 = vmatpush1.bf16.msra.mxu0 0
    %2266 = vmatprep.subr.bf16.mxu0 0
    %2267 = vmatpush1.bf16.msra.mxu0 0
    %2268 = vmatprep.subr.bf16.mxu0 0
    %2269 = vmatpush1.bf16.msra.mxu0 0
    %2270 = vmatprep.subr.bf16.mxu0 0
    %2271 = vmatpush1.bf16.msra.mxu0 0
    %2272 = vmatprep.subr.bf16.mxu0 0
    %2273 = vmatpush1.bf16.msra.mxu0 0
    %2274 = vmatprep.subr.bf16.mxu0 0
    %2275 = vmatpush1.bf16.msra.mxu0 0
    %2276 = vmatprep.subr.bf16.mxu0 0
    %2277 = vmatpush1.bf16.msra.mxu0 0
    %2278 = vmatprep.subr.bf16.mxu0 0
    %2279 = vmatpush1.bf16.msra.mxu0 0
    %2280 = vmatprep.mubr.bf16.mxu0 0
    %2281 = vmatmul.mubr.bf16.gmra.mrb[0].mxu0 %v2240
    %v2282 = vpop.f32.mrb[0].mxu0
    %v2283 = vadd.f32 %v105, %v2282
    %v2284 = vpop.f32.mrb[0].mxu0
    %v2285 = vpop.f32.mrb[0].mxu0
    %v2286 = vadd.f32 %v106, %v2285
    %v2287 = vpop.f32.mrb[0].mxu0
    %2288 = vmatprep.mubr.bf16.mxu0 0
    %2289 = vmatmul.mubr.bf16.gmra.mrb[0].mxu0 %v2243
    %v2290 = vpop.f32.mrb[0].mxu0
    %v2291 = vadd.f32 %v107, %v2290
    %v2292 = vpop.f32.mrb[0].mxu0
    %v2293 = vpop.f32.mrb[0].mxu0
    %v2294 = vpop.f32.mrb[0].mxu0
    %2295 = vdwg.mxu0
    %v2296 = vsel %vm842, %v2283, -inf
    %2297 = vmax.xlane.f32.xlu0 %v2296
    %v2298 = vpop.xlane.xlu0 %2297
    %v2299 = vsel %vm842, %v2286, -inf
    %2300 = vmax.xlane.f32.xlu0 %v2299
    %v2301 = vpop.xlane.xlu0 %2300
    %v2302 = vsel %vm842, %v2291, -inf
    %2303 = vmax.xlane.f32.xlu0 %v2302
    %v2304 = vpop.xlane.xlu0 %2303
    %v2305 = vsub.f32 %v2283, %v2298
    %v2306 = vsub.f32 %v2286, %v2301
    %v2307 = vsub.f32 %v2291, %v2304
    %v2308 = vmul.f32 %v2305, 1.442695
    %v2309 = vpow.pop %v2308
    %v2310 = vmul.f32 %v2306, 1.442695
    %v2311 = vpow.pop %v2310
    %v2312 = vmul.f32 %v2307, 1.442695
    %v2313 = vpow.pop %v2312
    %v2314 = vsel %vm842, %v2309, 0.0
    %2315 = vadd.xlane.f32.xlu0 %v2314
    %v2316 = vpop.xlane.xlu0 %2315
    %v2317 = vsel %vm842, %v2311, 0.0
    %2318 = vadd.xlane.f32.xlu0 %v2317
    %v2319 = vpop.xlane.xlu0 %2318
    %v2320 = vsel %vm842, %v2313, 0.0
    %2321 = vadd.xlane.f32.xlu0 %v2320
    %v2322 = vpop.xlane.xlu0 %2321
    %v2323 = vrcp.pop %v2316
    %v2324 = vrcp.pop %v2319
    %v2325 = vrcp.pop %v2322
    %v2326 = vmul.f32 %v2309, %v2323
    %v2327 = vmul.f32 %v2311, %v2324
    %v2328 = vmul.f32 %v2313, %v2325
    %v2329 = vpack.c.bf16 %v2327, %v2326
    %v2330 = vpack.c.bf16 %v2328, %v2328
    %2331 = vrot.lane.b32.xlu0 %v2075, 56
    %v2332 = vpop.permute.xlu0 %2331
    %2333 = vrot.lane.b32.xlu0 %v2076, 56
    %v2334 = vpop.permute.xlu0 %2333
    %v2337 = vsel %vm842, %v2329, 0
    %v2340 = vsel %vm842, %v2330, 0
    %v2343 = vsel %vm790, %v2334, 0
    %2345 = vmatprep.subr.bf16.mxu0 0
    %2346 = vmatpush1.bf16.msra.mxu0 %v2332
    %2347 = vmatprep.subr.bf16.mxu0 0
    %2348 = vmatpush1.bf16.msra.mxu0 %v2343
    %2349 = vmatprep.subr.bf16.mxu0 0
    %2350 = vmatpush1.bf16.msra.mxu0 0
    %2351 = vmatprep.subr.bf16.mxu0 0
    %2352 = vmatpush1.bf16.msra.mxu0 0
    %2353 = vmatprep.subr.bf16.mxu0 0
    %2354 = vmatpush1.bf16.msra.mxu0 0
    %2355 = vmatprep.subr.bf16.mxu0 0
    %2356 = vmatpush1.bf16.msra.mxu0 0
    %2357 = vmatprep.subr.bf16.mxu0 0
    %2358 = vmatpush1.bf16.msra.mxu0 0
    %2359 = vmatprep.subr.bf16.mxu0 0
    %2360 = vmatpush1.bf16.msra.mxu0 0
    %2361 = vmatprep.subr.bf16.mxu0 0
    %2362 = vmatpush1.bf16.msra.mxu0 0
    %2363 = vmatprep.subr.bf16.mxu0 0
    %2364 = vmatpush1.bf16.msra.mxu0 0
    %2365 = vmatprep.subr.bf16.mxu0 0
    %2366 = vmatpush1.bf16.msra.mxu0 0
    %2367 = vmatprep.subr.bf16.mxu0 0
    %2368 = vmatpush1.bf16.msra.mxu0 0
    %2369 = vmatprep.subr.bf16.mxu0 0
    %2370 = vmatpush1.bf16.msra.mxu0 0
    %2371 = vmatprep.subr.bf16.mxu0 0
    %2372 = vmatpush1.bf16.msra.mxu0 0
    %2373 = vmatprep.subr.bf16.mxu0 0
    %2374 = vmatpush1.bf16.msra.mxu0 0
    %2375 = vmatprep.subr.bf16.mxu0 0
    %2376 = vmatpush1.bf16.msra.mxu0 0
    %2377 = vmatprep.mubr.bf16.mxu0 0
    %2378 = vmatmul.mubr.bf16.gmra.mrb[0].mxu0 %v2337
    %v2379 = vpop.f32.mrb[0].mxu0
    %v2380 = vadd.f32 0.0, %v2379
    %v2381 = vpop.f32.mrb[0].mxu0
    %v2382 = vpop.f32.mrb[0].mxu0
    %v2383 = vadd.f32 0.0, %v2382
    %v2384 = vpop.f32.mrb[0].mxu0
    %2385 = vmatprep.mubr.bf16.mxu0 0
    %2386 = vmatmul.mubr.bf16.gmra.mrb[0].mxu0 %v2340
    %v2387 = vpop.f32.mrb[0].mxu0
    %v2388 = vadd.f32 0.0, %v2387
    %v2389 = vpop.f32.mrb[0].mxu0
    %v2390 = vpop.f32.mrb[0].mxu0
    %v2391 = vpop.f32.mrb[0].mxu0
    %2392 = vdwg.mxu0
    %v2393 = vpack.c.bf16 %v2061, %v2061
    %2394 = vrot.lane.b32.xlu0 %v2075, 112
    %v2395 = vpop.permute.xlu0 %2394
    %2396 = vrot.lane.b32.xlu0 %v2076, 112
    %v2397 = vpop.permute.xlu0 %2396
    %v2399 = vsel %vm525, %v2395, 0
    %v2402 = vsel %vm525, %v2397, 0
    %v2405 = vsel %vm790, %v2393, 0
    %2407 = vmatprep.subr.bf16.mxu0 0
    %2408 = vmatpush1.bf16.msra.mxu0 %v2405
    %2409 = vmatprep.subr.bf16.mxu0 0
    %2410 = vmatpush1.bf16.msra.mxu0 0
    %2411 = vmatprep.subr.bf16.mxu0 0
    %2412 = vmatpush1.bf16.msra.mxu0 0
    %2413 = vmatprep.subr.bf16.mxu0 0
    %2414 = vmatpush1.bf16.msra.mxu0 0
    %2415 = vmatprep.subr.bf16.mxu0 0
    %2416 = vmatpush1.bf16.msra.mxu0 0
    %2417 = vmatprep.subr.bf16.mxu0 0
    %2418 = vmatpush1.bf16.msra.mxu0 0
    %2419 = vmatprep.subr.bf16.mxu0 0
    %2420 = vmatpush1.bf16.msra.mxu0 0
    %2421 = vmatprep.subr.bf16.mxu0 0
    %2422 = vmatpush1.bf16.msra.mxu0 0
    %2423 = vmatprep.subr.bf16.mxu0 0
    %2424 = vmatpush1.bf16.msra.mxu0 0
    %2425 = vmatprep.subr.bf16.mxu0 0
    %2426 = vmatpush1.bf16.msra.mxu0 0
    %2427 = vmatprep.subr.bf16.mxu0 0
    %2428 = vmatpush1.bf16.msra.mxu0 0
    %2429 = vmatprep.subr.bf16.mxu0 0
    %2430 = vmatpush1.bf16.msra.mxu0 0
    %2431 = vmatprep.subr.bf16.mxu0 0
    %2432 = vmatpush1.bf16.msra.mxu0 0
    %2433 = vmatprep.subr.bf16.mxu0 0
    %2434 = vmatpush1.bf16.msra.mxu0 0
    %2435 = vmatprep.subr.bf16.mxu0 0
    %2436 = vmatpush1.bf16.msra.mxu0 0
    %2437 = vmatprep.subr.bf16.mxu0 0
    %2438 = vmatpush1.bf16.msra.mxu0 0
    %2439 = vmatprep.mubr.bf16.mxu0 0
    %2440 = vmatmul.mubr.bf16.gmra.mrb[0].mxu0 %v2399
    %v2441 = vpop.f32.mrb[0].mxu0
    %v2442 = vadd.f32 %v105, %v2441
    %v2443 = vpop.f32.mrb[0].mxu0
    %v2444 = vpop.f32.mrb[0].mxu0
    %v2445 = vadd.f32 %v106, %v2444
    %v2446 = vpop.f32.mrb[0].mxu0
    %2447 = vmatprep.mubr.bf16.mxu0 0
    %2448 = vmatmul.mubr.bf16.gmra.mrb[0].mxu0 %v2402
    %v2449 = vpop.f32.mrb[0].mxu0
    %v2450 = vadd.f32 %v107, %v2449
    %v2451 = vpop.f32.mrb[0].mxu0
    %v2452 = vpop.f32.mrb[0].mxu0
    %v2453 = vpop.f32.mrb[0].mxu0
    %2454 = vdwg.mxu0
    %v2455 = vsel %vm842, %v2442, -inf
    %2456 = vmax.xlane.f32.xlu0 %v2455
    %v2457 = vpop.xlane.xlu0 %2456
    %v2458 = vsel %vm842, %v2445, -inf
    %2459 = vmax.xlane.f32.xlu0 %v2458
    %v2460 = vpop.xlane.xlu0 %2459
    %v2461 = vsel %vm842, %v2450, -inf
    %2462 = vmax.xlane.f32.xlu0 %v2461
    %v2463 = vpop.xlane.xlu0 %2462
    %v2464 = vsub.f32 %v2442, %v2457
    %v2465 = vsub.f32 %v2445, %v2460
    %v2466 = vsub.f32 %v2450, %v2463
    %v2467 = vmul.f32 %v2464, 1.442695
    %v2468 = vpow.pop %v2467
    %v2469 = vmul.f32 %v2465, 1.442695
    %v2470 = vpow.pop %v2469
    %v2471 = vmul.f32 %v2466, 1.442695
    %v2472 = vpow.pop %v2471
    %v2473 = vsel %vm842, %v2468, 0.0
    %2474 = vadd.xlane.f32.xlu0 %v2473
    %v2475 = vpop.xlane.xlu0 %2474
    %v2476 = vsel %vm842, %v2470, 0.0
    %2477 = vadd.xlane.f32.xlu0 %v2476
    %v2478 = vpop.xlane.xlu0 %2477
    %v2479 = vsel %vm842, %v2472, 0.0
    %2480 = vadd.xlane.f32.xlu0 %v2479
    %v2481 = vpop.xlane.xlu0 %2480
    %v2482 = vrcp.pop %v2475
    %v2483 = vrcp.pop %v2478
    %v2484 = vrcp.pop %v2481
    %v2485 = vmul.f32 %v2468, %v2482
    %v2486 = vmul.f32 %v2470, %v2483
    %v2487 = vmul.f32 %v2472, %v2484
    %v2488 = vpack.c.bf16 %v2486, %v2485
    %v2489 = vpack.c.bf16 %v2487, %v2487
    %2490 = vrot.lane.b32.xlu0 %v2075, 48
    %v2491 = vpop.permute.xlu0 %2490
    %2492 = vrot.lane.b32.xlu0 %v2076, 48
    %v2493 = vpop.permute.xlu0 %2492
    %v2496 = vsel %vm842, %v2488, 0
    %v2499 = vsel %vm842, %v2489, 0
    %v2502 = vsel %vm790, %v2493, 0
    %2504 = vmatprep.subr.bf16.mxu0 0
    %2505 = vmatpush1.bf16.msra.mxu0 %v2491
    %2506 = vmatprep.subr.bf16.mxu0 0
    %2507 = vmatpush1.bf16.msra.mxu0 %v2502
    %2508 = vmatprep.subr.bf16.mxu0 0
    %2509 = vmatpush1.bf16.msra.mxu0 0
    %2510 = vmatprep.subr.bf16.mxu0 0
    %2511 = vmatpush1.bf16.msra.mxu0 0
    %2512 = vmatprep.subr.bf16.mxu0 0
    %2513 = vmatpush1.bf16.msra.mxu0 0
    %2514 = vmatprep.subr.bf16.mxu0 0
    %2515 = vmatpush1.bf16.msra.mxu0 0
    %2516 = vmatprep.subr.bf16.mxu0 0
    %2517 = vmatpush1.bf16.msra.mxu0 0
    %2518 = vmatprep.subr.bf16.mxu0 0
    %2519 = vmatpush1.bf16.msra.mxu0 0
    %2520 = vmatprep.subr.bf16.mxu0 0
    %2521 = vmatpush1.bf16.msra.mxu0 0
    %2522 = vmatprep.subr.bf16.mxu0 0
    %2523 = vmatpush1.bf16.msra.mxu0 0
    %2524 = vmatprep.subr.bf16.mxu0 0
    %2525 = vmatpush1.bf16.msra.mxu0 0
    %2526 = vmatprep.subr.bf16.mxu0 0
    %2527 = vmatpush1.bf16.msra.mxu0 0
    %2528 = vmatprep.subr.bf16.mxu0 0
    %2529 = vmatpush1.bf16.msra.mxu0 0
    %2530 = vmatprep.subr.bf16.mxu0 0
    %2531 = vmatpush1.bf16.msra.mxu0 0
    %2532 = vmatprep.subr.bf16.mxu0 0
    %2533 = vmatpush1.bf16.msra.mxu0 0
    %2534 = vmatprep.subr.bf16.mxu0 0
    %2535 = vmatpush1.bf16.msra.mxu0 0
    %2536 = vmatprep.mubr.bf16.mxu0 0
    %2537 = vmatmul.mubr.bf16.gmra.mrb[0].mxu0 %v2496
    %v2538 = vpop.f32.mrb[0].mxu0
    %v2539 = vadd.f32 0.0, %v2538
    %v2540 = vpop.f32.mrb[0].mxu0
    %v2541 = vpop.f32.mrb[0].mxu0
    %v2542 = vadd.f32 0.0, %v2541
    %v2543 = vpop.f32.mrb[0].mxu0
    %2544 = vmatprep.mubr.bf16.mxu0 0
    %2545 = vmatmul.mubr.bf16.gmra.mrb[0].mxu0 %v2499
    %v2546 = vpop.f32.mrb[0].mxu0
    %v2547 = vadd.f32 0.0, %v2546
    %v2548 = vpop.f32.mrb[0].mxu0
    %v2549 = vpop.f32.mrb[0].mxu0
    %v2550 = vpop.f32.mrb[0].mxu0
    %2551 = vdwg.mxu0
    %v2552 = vpack.c.bf16 %v2062, %v2062
    %2553 = vrot.lane.b32.xlu0 %v2075, 104
    %v2554 = vpop.permute.xlu0 %2553
    %2555 = vrot.lane.b32.xlu0 %v2076, 104
    %v2556 = vpop.permute.xlu0 %2555
    %v2558 = vsel %vm525, %v2554, 0
    %v2561 = vsel %vm525, %v2556, 0
    %v2564 = vsel %vm790, %v2552, 0
    %2566 = vmatprep.subr.bf16.mxu0 0
    %2567 = vmatpush1.bf16.msra.mxu0 %v2564
    %2568 = vmatprep.subr.bf16.mxu0 0
    %2569 = vmatpush1.bf16.msra.mxu0 0
    %2570 = vmatprep.subr.bf16.mxu0 0
    %2571 = vmatpush1.bf16.msra.mxu0 0
    %2572 = vmatprep.subr.bf16.mxu0 0
    %2573 = vmatpush1.bf16.msra.mxu0 0
    %2574 = vmatprep.subr.bf16.mxu0 0
    %2575 = vmatpush1.bf16.msra.mxu0 0
    %2576 = vmatprep.subr.bf16.mxu0 0
    %2577 = vmatpush1.bf16.msra.mxu0 0
    %2578 = vmatprep.subr.bf16.mxu0 0
    %2579 = vmatpush1.bf16.msra.mxu0 0
    %2580 = vmatprep.subr.bf16.mxu0 0
    %2581 = vmatpush1.bf16.msra.mxu0 0
    %2582 = vmatprep.subr.bf16.mxu0 0
    %2583 = vmatpush1.bf16.msra.mxu0 0
    %2584 = vmatprep.subr.bf16.mxu0 0
    %2585 = vmatpush1.bf16.msra.mxu0 0
    %2586 = vmatprep.subr.bf16.mxu0 0
    %2587 = vmatpush1.bf16.msra.mxu0 0
    %2588 = vmatprep.subr.bf16.mxu0 0
    %2589 = vmatpush1.bf16.msra.mxu0 0
    %2590 = vmatprep.subr.bf16.mxu0 0
    %2591 = vmatpush1.bf16.msra.mxu0 0
    %2592 = vmatprep.subr.bf16.mxu0 0
    %2593 = vmatpush1.bf16.msra.mxu0 0
    %2594 = vmatprep.subr.bf16.mxu0 0
    %2595 = vmatpush1.bf16.msra.mxu0 0
    %2596 = vmatprep.subr.bf16.mxu0 0
    %2597 = vmatpush1.bf16.msra.mxu0 0
    %2598 = vmatprep.mubr.bf16.mxu0 0
    %2599 = vmatmul.mubr.bf16.gmra.mrb[0].mxu0 %v2558
    %v2600 = vpop.f32.mrb[0].mxu0
    %v2601 = vadd.f32 %v105, %v2600
    %v2602 = vpop.f32.mrb[0].mxu0
    %v2603 = vpop.f32.mrb[0].mxu0
    %v2604 = vadd.f32 %v106, %v2603
    %v2605 = vpop.f32.mrb[0].mxu0
    %2606 = vmatprep.mubr.bf16.mxu0 0
    %2607 = vmatmul.mubr.bf16.gmra.mrb[0].mxu0 %v2561
    %v2608 = vpop.f32.mrb[0].mxu0
    %v2609 = vadd.f32 %v107, %v2608
    %v2610 = vpop.f32.mrb[0].mxu0
    %v2611 = vpop.f32.mrb[0].mxu0
    %v2612 = vpop.f32.mrb[0].mxu0
    %2613 = vdwg.mxu0
    %v2614 = vsel %vm842, %v2601, -inf
    %2615 = vmax.xlane.f32.xlu0 %v2614
    %v2616 = vpop.xlane.xlu0 %2615
    %v2617 = vsel %vm842, %v2604, -inf
    %2618 = vmax.xlane.f32.xlu0 %v2617
    %v2619 = vpop.xlane.xlu0 %2618
    %v2620 = vsel %vm842, %v2609, -inf
    %2621 = vmax.xlane.f32.xlu0 %v2620
    %v2622 = vpop.xlane.xlu0 %2621
    %v2623 = vsub.f32 %v2601, %v2616
    %v2624 = vsub.f32 %v2604, %v2619
    %v2625 = vsub.f32 %v2609, %v2622
    %v2626 = vmul.f32 %v2623, 1.442695
    %v2627 = vpow.pop %v2626
    %v2628 = vmul.f32 %v2624, 1.442695
    %v2629 = vpow.pop %v2628
    %v2630 = vmul.f32 %v2625, 1.442695
    %v2631 = vpow.pop %v2630
    %v2632 = vsel %vm842, %v2627, 0.0
    %2633 = vadd.xlane.f32.xlu0 %v2632
    %v2634 = vpop.xlane.xlu0 %2633
    %v2635 = vsel %vm842, %v2629, 0.0
    %2636 = vadd.xlane.f32.xlu0 %v2635
    %v2637 = vpop.xlane.xlu0 %2636
    %v2638 = vsel %vm842, %v2631, 0.0
    %2639 = vadd.xlane.f32.xlu0 %v2638
    %v2640 = vpop.xlane.xlu0 %2639
    %v2641 = vrcp.pop %v2634
    %v2642 = vrcp.pop %v2637
    %v2643 = vrcp.pop %v2640
    %v2644 = vmul.f32 %v2627, %v2641
    %v2645 = vmul.f32 %v2629, %v2642
    %v2646 = vmul.f32 %v2631, %v2643
    %v2647 = vpack.c.bf16 %v2645, %v2644
    %v2648 = vpack.c.bf16 %v2646, %v2646
    %2649 = vrot.lane.b32.xlu0 %v2075, 40
    %v2650 = vpop.permute.xlu0 %2649
    %2651 = vrot.lane.b32.xlu0 %v2076, 40
    %v2652 = vpop.permute.xlu0 %2651
    %v2655 = vsel %vm842, %v2647, 0
    %v2658 = vsel %vm842, %v2648, 0
    %v2661 = vsel %vm790, %v2652, 0
    %2663 = vmatprep.subr.bf16.mxu0 0
    %2664 = vmatpush1.bf16.msra.mxu0 %v2650
    %2665 = vmatprep.subr.bf16.mxu0 0
    %2666 = vmatpush1.bf16.msra.mxu0 %v2661
    %2667 = vmatprep.subr.bf16.mxu0 0
    %2668 = vmatpush1.bf16.msra.mxu0 0
    %2669 = vmatprep.subr.bf16.mxu0 0
    %2670 = vmatpush1.bf16.msra.mxu0 0
    %2671 = vmatprep.subr.bf16.mxu0 0
    %2672 = vmatpush1.bf16.msra.mxu0 0
    %2673 = vmatprep.subr.bf16.mxu0 0
    %2674 = vmatpush1.bf16.msra.mxu0 0
    %2675 = vmatprep.subr.bf16.mxu0 0
    %2676 = vmatpush1.bf16.msra.mxu0 0
    %2677 = vmatprep.subr.bf16.mxu0 0
    %2678 = vmatpush1.bf16.msra.mxu0 0
    %2679 = vmatprep.subr.bf16.mxu0 0
    %2680 = vmatpush1.bf16.msra.mxu0 0
    %2681 = vmatprep.subr.bf16.mxu0 0
    %2682 = vmatpush1.bf16.msra.mxu0 0
    %2683 = vmatprep.subr.bf16.mxu0 0
    %2684 = vmatpush1.bf16.msra.mxu0 0
    %2685 = vmatprep.subr.bf16.mxu0 0
    %2686 = vmatpush1.bf16.msra.mxu0 0
    %2687 = vmatprep.subr.bf16.mxu0 0
    %2688 = vmatpush1.bf16.msra.mxu0 0
    %2689 = vmatprep.subr.bf16.mxu0 0
    %2690 = vmatpush1.bf16.msra.mxu0 0
    %2691 = vmatprep.subr.bf16.mxu0 0
    %2692 = vmatpush1.bf16.msra.mxu0 0
    %2693 = vmatprep.subr.bf16.mxu0 0
    %2694 = vmatpush1.bf16.msra.mxu0 0
    %2695 = vmatprep.mubr.bf16.mxu0 0
    %2696 = vmatmul.mubr.bf16.gmra.mrb[0].mxu0 %v2655
    %v2697 = vpop.f32.mrb[0].mxu0
    %v2698 = vadd.f32 0.0, %v2697
    %v2699 = vpop.f32.mrb[0].mxu0
    %v2700 = vpop.f32.mrb[0].mxu0
    %v2701 = vadd.f32 0.0, %v2700
    %v2702 = vpop.f32.mrb[0].mxu0
    %2703 = vmatprep.mubr.bf16.mxu0 0
    %2704 = vmatmul.mubr.bf16.gmra.mrb[0].mxu0 %v2658
    %v2705 = vpop.f32.mrb[0].mxu0
    %v2706 = vadd.f32 0.0, %v2705
    %v2707 = vpop.f32.mrb[0].mxu0
    %v2708 = vpop.f32.mrb[0].mxu0
    %v2709 = vpop.f32.mrb[0].mxu0
    %2710 = vdwg.mxu0
    %2714 = vrot.lane.b32.xlu0 %v2380, 8
    %v2715 = vpop.permute.xlu0 %2714
    %2716 = vrot.lane.b32.xlu0 %v2383, 8
    %v2717 = vpop.permute.xlu0 %2716
    %2718 = vrot.lane.b32.xlu0 %v2388, 8
    %v2719 = vpop.permute.xlu0 %2718
    %2726 = vrot.lane.b32.xlu0 %v2539, 16
    %v2727 = vpop.permute.xlu0 %2726
    %2728 = vrot.lane.b32.xlu0 %v2542, 16
    %v2729 = vpop.permute.xlu0 %2728
    %2730 = vrot.lane.b32.xlu0 %v2547, 16
    %v2731 = vpop.permute.xlu0 %2730
    %2738 = vrot.lane.b32.xlu0 %v2698, 24
    %v2739 = vpop.permute.xlu0 %2738
    %2740 = vrot.lane.b32.xlu0 %v2701, 24
    %v2741 = vpop.permute.xlu0 %2740
    %2742 = vrot.lane.b32.xlu0 %v2706, 24
    %v2743 = vpop.permute.xlu0 %2742
    %v2747 = vsel %vm525, %v2221, %v2715
    %v2748 = vsel %vm525, %v2224, %v2717
    %v2749 = vsel %vm525, %v2229, %v2719
    %v2750 = vsel %vm1458, %v2747, %v2727
    %v2751 = vsel %vm1458, %v2748, %v2729
    %v2752 = vsel %vm1458, %v2749, %v2731
    %v2753 = vsel %vm842, %v2750, %v2739
    %v2754 = vsel %vm842, %v2751, %v2741
    %v2755 = vsel %vm842, %v2752, %v2743
    %v2756 = vld [vmem:[#allocation2 + $0x200] sm:$0xf]
    %v2757 = vld [vmem:[#allocation2 + $0x204] sm:$0xf]
    %v2758 = vld [vmem:[#allocation2 + $0x208] sm:$0xf]
    %v2759 = vld [vmem:[#allocation2 + $0x20c] sm:$0xf]
    %v2760 = vpack.c.bf16 %v2754, %v2753
    %v2761 = vpack.c.bf16 %v2755, %v2755
    %v2762 = vld [vmem:[%s1 + $0xc] sm:$0x1]
    %v2763 = vlaneseq
    %v2764 = vshrl.u32 %v2763, 7
    %v2765 = vsub.s32 0, %v2764
    %v2766 = vrot.slane %v2762, %v2765
    %v2771 = vunpack.c.l.b16 %v2756
    %v2772 = vunpack.c.l.b16 %v2757
    %v2773 = vunpack.c.l.b16 %v2758
    %v2774 = vunpack.c.l.b16 %v2759
    %v2775 = vpack.c.b16 %v2772, %v2771
    %v2776 = vpack.c.b16 %v2774, %v2773
    %v2780 = vsel %vm1488, %v2760, 0
    %v2783 = vsel %vm1488, %v2761, 0
    %2785 = vmatprep.subr.bf16.mxu0 0
    %2786 = vmatpush1.bf16.msra.mxu0 %v2775
    %2787 = vmatprep.subr.bf16.mxu0 0
    %2788 = vmatpush1.bf16.msra.mxu0 %v2776
    %2789 = vmatprep.subr.bf16.mxu0 0
    %2790 = vmatpush1.bf16.msra.mxu0 0
    %2791 = vmatprep.subr.bf16.mxu0 0
    %2792 = vmatpush1.bf16.msra.mxu0 0
    %2793 = vmatprep.subr.bf16.mxu0 0
    %2794 = vmatpush1.bf16.msra.mxu0 0
    %2795 = vmatprep.subr.bf16.mxu0 0
    %2796 = vmatpush1.bf16.msra.mxu0 0
    %2797 = vmatprep.subr.bf16.mxu0 0
    %2798 = vmatpush1.bf16.msra.mxu0 0
    %2799 = vmatprep.subr.bf16.mxu0 0
    %2800 = vmatpush1.bf16.msra.mxu0 0
    %2801 = vmatprep.subr.bf16.mxu0 0
    %2802 = vmatpush1.bf16.msra.mxu0 0
    %2803 = vmatprep.subr.bf16.mxu0 0
    %2804 = vmatpush1.bf16.msra.mxu0 0
    %2805 = vmatprep.subr.bf16.mxu0 0
    %2806 = vmatpush1.bf16.msra.mxu0 0
    %2807 = vmatprep.subr.bf16.mxu0 0
    %2808 = vmatpush1.bf16.msra.mxu0 0
    %2809 = vmatprep.subr.bf16.mxu0 0
    %2810 = vmatpush1.bf16.msra.mxu0 0
    %2811 = vmatprep.subr.bf16.mxu0 0
    %2812 = vmatpush1.bf16.msra.mxu0 0
    %2813 = vmatprep.subr.bf16.mxu0 0
    %2814 = vmatpush1.bf16.msra.mxu0 0
    %2815 = vmatprep.subr.bf16.mxu0 0
    %2816 = vmatpush1.bf16.msra.mxu0 0
    %2817 = vmatprep.mubr.bf16.mxu0 0
    %2818 = vmatmul.mubr.bf16.gmra.mrb[0].mxu0 %v2780
    %v2819 = vpop.f32.mrb[0].mxu0
    %v2820 = vadd.f32 %v2766, %v2819
    %v2821 = vpop.f32.mrb[0].mxu0
    %v2822 = vpop.f32.mrb[0].mxu0
    %v2823 = vadd.f32 %v2766, %v2822
    %v2824 = vpop.f32.mrb[0].mxu0
    %2825 = vmatprep.mubr.bf16.mxu0 0
    %2826 = vmatmul.mubr.bf16.gmra.mrb[0].mxu0 %v2783
    %v2827 = vpop.f32.mrb[0].mxu0
    %v2828 = vadd.f32 %v2766, %v2827
    %v2829 = vpop.f32.mrb[0].mxu0
    %v2830 = vpop.f32.mrb[0].mxu0
    %v2831 = vpop.f32.mrb[0].mxu0
    %2832 = vdwg.mxu0
    %v2833 = vadd.f32 %v1909, %v2820
    %v2834 = vadd.f32 %v1910, %v2823
    %v2835 = vadd.f32 %v1911, %v2828
    %2836 = vadd.xlane.f32.xlu0 %v2833
    %v2837 = vpop.xlane.xlu0 %2836
    %2838 = vadd.xlane.f32.xlu0 %v2834
    %v2839 = vpop.xlane.xlu0 %2838
    %2840 = vadd.xlane.f32.xlu0 %v2835
    %v2841 = vpop.xlane.xlu0 %2840
    %v2842 = vmul.f32 %v2837, 0.03125
    %v2843 = vmul.f32 %v2839, 0.03125
    %v2844 = vmul.f32 %v2841, 0.03125
    %v2845 = vmul.f32 %v2833, %v2833
    %v2846 = vmul.f32 %v2834, %v2834
    %v2847 = vmul.f32 %v2835, %v2835
    %2848 = vadd.xlane.f32.xlu0 %v2845
    %v2849 = vpop.xlane.xlu0 %2848
    %2850 = vadd.xlane.f32.xlu0 %v2846
    %v2851 = vpop.xlane.xlu0 %2850
    %2852 = vadd.xlane.f32.xlu0 %v2847
    %v2853 = vpop.xlane.xlu0 %2852
    %v2854 = vmul.f32 %v2849, 0.03125
    %v2855 = vmul.f32 %v2851, 0.03125
    %v2856 = vmul.f32 %v2853, 0.03125
    %v2857 = vsub.f32 %v2833, %v2842
    %v2858 = vsub.f32 %v2834, %v2843
    %v2859 = vsub.f32 %v2835, %v2844
    %v2860 = vmul.f32 %v2842, %v2842
    %v2861 = vmul.f32 %v2843, %v2843
    %v2862 = vmul.f32 %v2844, %v2844
    %v2863 = vsub.f32 %v2854, %v2860
    %v2864 = vsub.f32 %v2855, %v2861
    %v2865 = vsub.f32 %v2856, %v2862
    %v2866 = vadd.f32 %v2863, 1e-05
    %v2867 = vadd.f32 %v2864, 1e-05
    %v2868 = vadd.f32 %v2865, 1e-05
    %v2869 = vrsqrt.pop %v2866
    %v2870 = vrsqrt.pop %v2867
    %v2871 = vrsqrt.pop %v2868
    %v2872 = vmul.f32 %v2857, %v2869
    %v2873 = vmul.f32 %v2858, %v2870
    %v2874 = vmul.f32 %v2859, %v2871
    %v2875 = vld [vmem:[%s1 + $0xd] sm:$0x1]
    %v2876 = vlaneseq
    %v2877 = vshrl.u32 %v2876, 7
    %v2878 = vsub.s32 0, %v2877
    %v2879 = vrot.slane %v2875, %v2878
    %v2880 = vmul.f32 %v2872, %v2879
    %v2881 = vmul.f32 %v2873, %v2879
    %v2882 = vmul.f32 %v2874, %v2879
    %v2883 = vld [vmem:[%s1 + $0xe] sm:$0x1]
    %v2884 = vlaneseq
    %v2885 = vshrl.u32 %v2884, 7
    %v2886 = vsub.s32 0, %v2885
    %v2887 = vrot.slane %v2883, %v2886
    %v2888 = vadd.f32 %v2880, %v2887
    %v2889 = vadd.f32 %v2881, %v2887
    %v2890 = vadd.f32 %v2882, %v2887
    %v2891 = vld [vmem:[#allocation2 + $0x240] sm:$0xf]
    %v2892 = vld [vmem:[#allocation2 + $0x244] sm:$0xf]
    %v2893 = vld [vmem:[#allocation2 + $0x248] sm:$0xf]
    %v2894 = vld [vmem:[#allocation2 + $0x24c] sm:$0xf]
    %v2895 = vld [vmem:[#allocation2 + $0x250] sm:$0xf]
    %v2896 = vld [vmem:[#allocation2 + $0x254] sm:$0xf]
    %v2897 = vld [vmem:[#allocation2 + $0x258] sm:$0xf]
    %v2898 = vld [vmem:[#allocation2 + $0x25c] sm:$0xf]
    %v2899 = vld [vmem:[#allocation2 + $0x260] sm:$0xf]
    %v2900 = vld [vmem:[#allocation2 + $0x264] sm:$0xf]
    %v2901 = vld [vmem:[#allocation2 + $0x268] sm:$0xf]
    %v2902 = vld [vmem:[#allocation2 + $0x26c] sm:$0xf]
    %v2903 = vld [vmem:[#allocation2 + $0x270] sm:$0xf]
    %v2904 = vld [vmem:[#allocation2 + $0x274] sm:$0xf]
    %v2905 = vld [vmem:[#allocation2 + $0x278] sm:$0xf]
    %v2906 = vld [vmem:[#allocation2 + $0x27c] sm:$0xf]
    %v2907 = vpack.c.bf16 %v2889, %v2888
    %v2908 = vpack.c.bf16 %v2890, %v2890
    %v2909 = vld [vmem:[%s1 + $0xf] sm:$0x1]
    %v2910 = vlaneseq
    %v2911 = vshrl.u32 %v2910, 7
    %v2912 = vsub.s32 0, %v2911
    %v2913 = vrot.slane %v2909, %v2912
    %v2930 = vunpack.c.l.b16 %v2891
    %v2931 = vunpack.c.l.b16 %v2892
    %v2932 = vunpack.c.l.b16 %v2893
    %v2933 = vunpack.c.l.b16 %v2894
    %v2934 = vunpack.c.l.b16 %v2895
    %v2935 = vunpack.c.l.b16 %v2896
    %v2936 = vunpack.c.l.b16 %v2897
    %v2937 = vunpack.c.l.b16 %v2898
    %v2938 = vunpack.c.l.b16 %v2899
    %v2939 = vunpack.c.l.b16 %v2900
    %v2940 = vunpack.c.l.b16 %v2901
    %v2941 = vunpack.c.l.b16 %v2902
    %v2942 = vunpack.c.l.b16 %v2903
    %v2943 = vunpack.c.l.b16 %v2904
    %v2944 = vunpack.c.l.b16 %v2905
    %v2945 = vunpack.c.l.b16 %v2906
    %v2946 = vpack.c.b16 %v2931, %v2930
    %v2947 = vpack.c.b16 %v2933, %v2932
    %v2948 = vpack.c.b16 %v2935, %v2934
    %v2949 = vpack.c.b16 %v2937, %v2936
    %v2950 = vpack.c.b16 %v2939, %v2938
    %v2951 = vpack.c.b16 %v2941, %v2940
    %v2952 = vpack.c.b16 %v2943, %v2942
    %v2953 = vpack.c.b16 %v2945, %v2944
    %2962 = vmatprep.subr.bf16.mxu0 0
    %2963 = vmatpush1.bf16.msra.mxu0 %v2946
    %2964 = vmatprep.subr.bf16.mxu0 0
    %2965 = vmatpush1.bf16.msra.mxu0 %v2947
    %2966 = vmatprep.subr.bf16.mxu0 0
    %2967 = vmatpush1.bf16.msra.mxu0 %v2948
    %2968 = vmatprep.subr.bf16.mxu0 0
    %2969 = vmatpush1.bf16.msra.mxu0 %v2949
    %2970 = vmatprep.subr.bf16.mxu0 0
    %2971 = vmatpush1.bf16.msra.mxu0 %v2950
    %2972 = vmatprep.subr.bf16.mxu0 0
    %2973 = vmatpush1.bf16.msra.mxu0 %v2951
    %2974 = vmatprep.subr.bf16.mxu0 0
    %2975 = vmatpush1.bf16.msra.mxu0 %v2952
    %2976 = vmatprep.subr.bf16.mxu0 0
    %2977 = vmatpush1.bf16.msra.mxu0 %v2953
    %2978 = vmatprep.subr.bf16.mxu0 0
    %2979 = vmatpush1.bf16.msra.mxu0 0
    %2980 = vmatprep.subr.bf16.mxu0 0
    %2981 = vmatpush1.bf16.msra.mxu0 0
    %2982 = vmatprep.subr.bf16.mxu0 0
    %2983 = vmatpush1.bf16.msra.mxu0 0
    %2984 = vmatprep.subr.bf16.mxu0 0
    %2985 = vmatpush1.bf16.msra.mxu0 0
    %2986 = vmatprep.subr.bf16.mxu0 0
    %2987 = vmatpush1.bf16.msra.mxu0 0
    %2988 = vmatprep.subr.bf16.mxu0 0
    %2989 = vmatpush1.bf16.msra.mxu0 0
    %2990 = vmatprep.subr.bf16.mxu0 0
    %2991 = vmatpush1.bf16.msra.mxu0 0
    %2992 = vmatprep.subr.bf16.mxu0 0
    %2993 = vmatpush1.bf16.msra.mxu0 0
    %2994 = vmatprep.mubr.bf16.mxu0 0
    %2995 = vmatmul.mubr.bf16.gmra.mrb[0].mxu0 %v2907
    %v2996 = vpop.f32.mrb[0].mxu0
    %v2997 = vadd.f32 %v2913, %v2996
    %v2998 = vpop.f32.mrb[0].mxu0
    %v2999 = vpop.f32.mrb[0].mxu0
    %v3000 = vadd.f32 %v2913, %v2999
    %v3001 = vpop.f32.mrb[0].mxu0
    %3002 = vmatprep.mubr.bf16.mxu0 0
    %3003 = vmatmul.mubr.bf16.gmra.mrb[0].mxu0 %v2908
    %v3004 = vpop.f32.mrb[0].mxu0
    %v3005 = vadd.f32 %v2913, %v3004
    %v3006 = vpop.f32.mrb[0].mxu0
    %v3007 = vpop.f32.mrb[0].mxu0
    %v3008 = vpop.f32.mrb[0].mxu0
    %3009 = vdwg.mxu0
    %v3010 = vmul.f32 %v2997, 0.5
    %v3011 = vmul.f32 %v3000, 0.5
    %v3012 = vmul.f32 %v3005, 0.5
    %v3013 = vmul.f32 %v2997, 0.70710677
    %v3014 = vmul.f32 %v3000, 0.70710677
    %v3015 = vmul.f32 %v3005, 0.70710677
    %v3016 = verf.f32.pop %v3013
    %v3017 = verf.f32.pop %v3014
    %v3018 = verf.f32.pop %v3015
    %v3019 = vadd.f32 %v3016, 1.0
    %v3020 = vadd.f32 %v3017, 1.0
    %v3021 = vadd.f32 %v3018, 1.0
    %v3022 = vmul.f32 %v3010, %v3019
    %v3023 = vmul.f32 %v3011, %v3020
    %v3024 = vmul.f32 %v3012, %v3021
    %v3025 = vld [vmem:[#allocation2 + $0x280] sm:$0xf]
    %v3026 = vld [vmem:[#allocation2 + $0x284] sm:$0xf]
    %v3027 = vld [vmem:[#allocation2 + $0x288] sm:$0xf]
    %v3028 = vld [vmem:[#allocation2 + $0x28c] sm:$0xf]
    %v3029 = vld [vmem:[#allocation2 + $0x290] sm:$0xf]
    %v3030 = vld [vmem:[#allocation2 + $0x294] sm:$0xf]
    %v3031 = vld [vmem:[#allocation2 + $0x298] sm:$0xf]
    %v3032 = vld [vmem:[#allocation2 + $0x29c] sm:$0xf]
    %v3033 = vld [vmem:[#allocation2 + $0x2a0] sm:$0xf]
    %v3034 = vld [vmem:[#allocation2 + $0x2a4] sm:$0xf]
    %v3035 = vld [vmem:[#allocation2 + $0x2a8] sm:$0xf]
    %v3036 = vld [vmem:[#allocation2 + $0x2ac] sm:$0xf]
    %v3037 = vld [vmem:[#allocation2 + $0x2b0] sm:$0xf]
    %v3038 = vld [vmem:[#allocation2 + $0x2b4] sm:$0xf]
    %v3039 = vld [vmem:[#allocation2 + $0x2b8] sm:$0xf]
    %v3040 = vld [vmem:[#allocation2 + $0x2bc] sm:$0xf]
    %v3041 = vpack.c.bf16 %v3023, %v3022
    %v3042 = vpack.c.bf16 %v3024, %v3024
    %v3043 = vld [vmem:[%s1 + $0x10] sm:$0x1]
    %v3044 = vlaneseq
    %v3045 = vshrl.u32 %v3044, 7
    %v3046 = vsub.s32 0, %v3045
    %v3047 = vrot.slane %v3043, %v3046
    %v3064 = vunpack.c.l.b16 %v3025
    %v3065 = vunpack.c.l.b16 %v3026
    %v3066 = vunpack.c.l.b16 %v3027
    %v3067 = vunpack.c.l.b16 %v3028
    %v3068 = vunpack.c.l.b16 %v3029
    %v3069 = vunpack.c.l.b16 %v3030
    %v3070 = vunpack.c.l.b16 %v3031
    %v3071 = vunpack.c.l.b16 %v3032
    %v3072 = vunpack.c.l.b16 %v3033
    %v3073 = vunpack.c.l.b16 %v3034
    %v3074 = vunpack.c.l.b16 %v3035
    %v3075 = vunpack.c.l.b16 %v3036
    %v3076 = vunpack.c.l.b16 %v3037
    %v3077 = vunpack.c.l.b16 %v3038
    %v3078 = vunpack.c.l.b16 %v3039
    %v3079 = vunpack.c.l.b16 %v3040
    %v3080 = vpack.c.b16 %v3065, %v3064
    %v3081 = vpack.c.b16 %v3067, %v3066
    %v3082 = vpack.c.b16 %v3069, %v3068
    %v3083 = vpack.c.b16 %v3071, %v3070
    %v3084 = vpack.c.b16 %v3073, %v3072
    %v3085 = vpack.c.b16 %v3075, %v3074
    %v3086 = vpack.c.b16 %v3077, %v3076
    %v3087 = vpack.c.b16 %v3079, %v3078
    %3096 = vmatprep.subr.bf16.mxu0 0
    %3097 = vmatpush1.bf16.msra.mxu0 %v3080
    %3098 = vmatprep.subr.bf16.mxu0 0
    %3099 = vmatpush1.bf16.msra.mxu0 %v3081
    %3100 = vmatprep.subr.bf16.mxu0 0
    %3101 = vmatpush1.bf16.msra.mxu0 %v3082
    %3102 = vmatprep.subr.bf16.mxu0 0
    %3103 = vmatpush1.bf16.msra.mxu0 %v3083
    %3104 = vmatprep.subr.bf16.mxu0 0
    %3105 = vmatpush1.bf16.msra.mxu0 %v3084
    %3106 = vmatprep.subr.bf16.mxu0 0
    %3107 = vmatpush1.bf16.msra.mxu0 %v3085
    %3108 = vmatprep.subr.bf16.mxu0 0
    %3109 = vmatpush1.bf16.msra.mxu0 %v3086
    %3110 = vmatprep.subr.bf16.mxu0 0
    %3111 = vmatpush1.bf16.msra.mxu0 %v3087
    %3112 = vmatprep.subr.bf16.mxu0 0
    %3113 = vmatpush1.bf16.msra.mxu0 0
    %3114 = vmatprep.subr.bf16.mxu0 0
    %3115 = vmatpush1.bf16.msra.mxu0 0
    %3116 = vmatprep.subr.bf16.mxu0 0
    %3117 = vmatpush1.bf16.msra.mxu0 0
    %3118 = vmatprep.subr.bf16.mxu0 0
    %3119 = vmatpush1.bf16.msra.mxu0 0
    %3120 = vmatprep.subr.bf16.mxu0 0
    %3121 = vmatpush1.bf16.msra.mxu0 0
    %3122 = vmatprep.subr.bf16.mxu0 0
    %3123 = vmatpush1.bf16.msra.mxu0 0
    %3124 = vmatprep.subr.bf16.mxu0 0
    %3125 = vmatpush1.bf16.msra.mxu0 0
    %3126 = vmatprep.subr.bf16.mxu0 0
    %3127 = vmatpush1.bf16.msra.mxu0 0
    %3128 = vmatprep.mubr.bf16.mxu0 0
    %3129 = vmatmul.mubr.bf16.gmra.mrb[0].mxu0 %v3041
    %v3130 = vpop.f32.mrb[0].mxu0
    %v3131 = vadd.f32 %v3047, %v3130
    %v3132 = vpop.f32.mrb[0].mxu0
    %v3133 = vpop.f32.mrb[0].mxu0
    %v3134 = vadd.f32 %v3047, %v3133
    %v3135 = vpop.f32.mrb[0].mxu0
    %3136 = vmatprep.mubr.bf16.mxu0 0
    %3137 = vmatmul.mubr.bf16.gmra.mrb[0].mxu0 %v3042
    %v3138 = vpop.f32.mrb[0].mxu0
    %v3139 = vadd.f32 %v3047, %v3138
    %v3140 = vpop.f32.mrb[0].mxu0
    %v3141 = vpop.f32.mrb[0].mxu0
    %v3142 = vpop.f32.mrb[0].mxu0
    %3143 = vdwg.mxu0
    %v3144 = vadd.f32 %v2888, %v3131
    %v3145 = vadd.f32 %v2889, %v3134
    %v3146 = vadd.f32 %v2890, %v3139
    %3147 = vadd.xlane.f32.xlu0 %v3144
    %v3148 = vpop.xlane.xlu0 %3147
    %3149 = vadd.xlane.f32.xlu0 %v3145
    %v3150 = vpop.xlane.xlu0 %3149
    %3151 = vadd.xlane.f32.xlu0 %v3146
    %v3152 = vpop.xlane.xlu0 %3151
    %v3153 = vmul.f32 %v3148, 0.03125
    %v3154 = vmul.f32 %v3150, 0.03125
    %v3155 = vmul.f32 %v3152, 0.03125
    %v3156 = vmul.f32 %v3144, %v3144
    %v3157 = vmul.f32 %v3145, %v3145
    %v3158 = vmul.f32 %v3146, %v3146
    %3159 = vadd.xlane.f32.xlu0 %v3156
    %v3160 = vpop.xlane.xlu0 %3159
    %3161 = vadd.xlane.f32.xlu0 %v3157
    %v3162 = vpop.xlane.xlu0 %3161
    %3163 = vadd.xlane.f32.xlu0 %v3158
    %v3164 = vpop.xlane.xlu0 %3163
    %v3165 = vmul.f32 %v3160, 0.03125
    %v3166 = vmul.f32 %v3162, 0.03125
    %v3167 = vmul.f32 %v3164, 0.03125
    %v3168 = vsub.f32 %v3144, %v3153
    %v3169 = vsub.f32 %v3145, %v3154
    %v3170 = vsub.f32 %v3146, %v3155
    %v3171 = vmul.f32 %v3153, %v3153
    %v3172 = vmul.f32 %v3154, %v3154
    %v3173 = vmul.f32 %v3155, %v3155
    %v3174 = vsub.f32 %v3165, %v3171
    %v3175 = vsub.f32 %v3166, %v3172
    %v3176 = vsub.f32 %v3167, %v3173
    %v3177 = vadd.f32 %v3174, 1e-05
    %v3178 = vadd.f32 %v3175, 1e-05
    %v3179 = vadd.f32 %v3176, 1e-05
    %v3180 = vrsqrt.pop %v3177
    %v3181 = vrsqrt.pop %v3178
    %v3182 = vrsqrt.pop %v3179
    %v3183 = vmul.f32 %v3168, %v3180
    %v3184 = vmul.f32 %v3169, %v3181
    %v3185 = vmul.f32 %v3170, %v3182
    %v3186 = vld [vmem:[%s1 + $0x11] sm:$0x1]
    %v3187 = vlaneseq
    %v3188 = vshrl.u32 %v3187, 7
    %v3189 = vsub.s32 0, %v3188
    %v3190 = vrot.slane %v3186, %v3189
    %v3191 = vmul.f32 %v3183, %v3190
    %v3192 = vmul.f32 %v3184, %v3190
    %v3193 = vmul.f32 %v3185, %v3190
    %v3194 = vld [vmem:[%s1 + $0x12] sm:$0x1]
    %v3195 = vlaneseq
    %v3196 = vshrl.u32 %v3195, 7
    %v3197 = vsub.s32 0, %v3196
    %v3198 = vrot.slane %v3194, %v3197
    %v3199 = vadd.f32 %v3191, %v3198
    %v3200 = vadd.f32 %v3192, %v3198
    %v3201 = vadd.f32 %v3193, %v3198
    %v3203 = vsel %vm842, %v136, 0
    %3205 = vmatprep.subr.mxu0 0.0
    %3206 = vmatpush1.msra.mxu0 %v3199
    %3207 = vmatprep.subr.mxu0 0.0
    %3208 = vmatpush1.msra.mxu0 %v3200
    %3209 = vmatprep.subr.mxu0 0.0
    %3210 = vmatpush1.msra.mxu0 %v3201
    %3211 = vmatprep.subr.mxu0 0.0
    %3212 = vmatpush1.msra.mxu0 0.0
    %3213 = vmatprep.subr.mxu0 0.0
    %3214 = vmatpush1.msra.mxu0 0.0
    %3215 = vmatprep.subr.mxu0 0.0
    %3216 = vmatpush1.msra.mxu0 0.0
    %3217 = vmatprep.subr.mxu0 0.0
    %3218 = vmatpush1.msra.mxu0 0.0
    %3219 = vmatprep.subr.mxu0 0.0
    %3220 = vmatpush1.msra.mxu0 0.0
    %3221 = vmatprep.subr.mxu0 0.0
    %3222 = vmatpush1.msra.mxu0 0.0
    %3223 = vmatprep.subr.mxu0 0.0
    %3224 = vmatpush1.msra.mxu0 0.0
    %3225 = vmatprep.subr.mxu0 0.0
    %3226 = vmatpush1.msra.mxu0 0.0
    %3227 = vmatprep.subr.mxu0 0.0
    %3228 = vmatpush1.msra.mxu0 0.0
    %3229 = vmatprep.subr.mxu0 0.0
    %3230 = vmatpush1.msra.mxu0 0.0
    %3231 = vmatprep.subr.mxu0 0.0
    %3232 = vmatpush1.msra.mxu0 0.0
    %3233 = vmatprep.subr.mxu0 0.0
    %3234 = vmatpush1.msra.mxu0 0.0
    %3235 = vmatprep.subr.mxu0 0.0
    %3236 = vmatpush1.msra.mxu0 0.0
    %3237 = vmatprep.subr.mxu0 0.0
    %3238 = vmatpush1.msra.mxu0 0.0
    %3239 = vmatprep.subr.mxu0 0.0
    %3240 = vmatpush1.msra.mxu0 0.0
    %3241 = vmatprep.subr.mxu0 0.0
    %3242 = vmatpush1.msra.mxu0 0.0
    %3243 = vmatprep.subr.mxu0 0.0
    %3244 = vmatpush1.msra.mxu0 0.0
    %3245 = vmatprep.subr.mxu0 0.0
    %3246 = vmatpush1.msra.mxu0 0.0
    %3247 = vmatprep.subr.mxu0 0.0
    %3248 = vmatpush1.msra.mxu0 0.0
    %3249 = vmatprep.subr.mxu0 0.0
    %3250 = vmatpush1.msra.mxu0 0.0
    %3251 = vmatprep.subr.mxu0 0.0
    %3252 = vmatpush1.msra.mxu0 0.0
    %3253 = vmatprep.subr.mxu0 0.0
    %3254 = vmatpush1.msra.mxu0 0.0
    %3255 = vmatprep.subr.mxu0 0.0
    %3256 = vmatpush1.msra.mxu0 0.0
    %3257 = vmatprep.subr.mxu0 0.0
    %3258 = vmatpush1.msra.mxu0 0.0
    %3259 = vmatprep.subr.mxu0 0.0
    %3260 = vmatpush1.msra.mxu0 0.0
    %3261 = vmatprep.subr.mxu0 0.0
    %3262 = vmatpush1.msra.mxu0 0.0
    %3263 = vmatprep.subr.mxu0 0.0
    %3264 = vmatpush1.msra.mxu0 0.0
    %3265 = vmatprep.subr.mxu0 0.0
    %3266 = vmatpush1.msra.mxu0 0.0
    %3267 = vmatprep.subr.mxu0 0.0
    %3268 = vmatpush1.msra.mxu0 0.0
    %3269 = vmatprep.mubr.f32.mxu0 0.0
    %3270 = vmatmul.mubr.f32.gmra.mrb[0].mxu0 %v3203
    %v3271 = vpop.f32.mrb[0].mxu0
    %v3272 = vadd.f32 0.0, %v3271
    %v3273 = vpop.f32.mrb[0].mxu0
    %3274 = vdwg.mxu0
    %v3275 = vld [vmem:[#allocation2 + $0x2c0] sm:$0xf]
    %v3276 = vld [vmem:[#allocation2 + $0x2c4] sm:$0xf]
    %v3277 = vld [vmem:[#allocation2 + $0x2c8] sm:$0xf]
    %v3278 = vld [vmem:[#allocation2 + $0x2cc] sm:$0xf]
    %v3279 = vld [vmem:[#allocation2 + $0x2d0] sm:$0xf]
    %v3280 = vld [vmem:[#allocation2 + $0x2d4] sm:$0xf]
    %v3281 = vld [vmem:[#allocation2 + $0x2d8] sm:$0xf]
    %v3282 = vld [vmem:[#allocation2 + $0x2dc] sm:$0xf]
    %v3283 = vld [vmem:[#allocation2 + $0x2e0] sm:$0xf]
    %v3284 = vld [vmem:[#allocation2 + $0x2e4] sm:$0xf]
    %v3285 = vld [vmem:[#allocation2 + $0x2e8] sm:$0xf]
    %v3286 = vld [vmem:[#allocation2 + $0x2ec] sm:$0xf]
    %v3287 = vld [vmem:[#allocation2 + $0x2f0] sm:$0xf]
    %v3288 = vld [vmem:[#allocation2 + $0x2f4] sm:$0xf]
    %v3289 = vld [vmem:[#allocation2 + $0x2f8] sm:$0xf]
    %v3290 = vld [vmem:[#allocation2 + $0x2fc] sm:$0xf]
    %v3291 = vpack.c.bf16 %v3272, %v3272
    %v3292 = vld [vmem:[%s1 + $0x13] sm:$0x1]
    %v3293 = vlaneseq
    %v3294 = vshrl.u32 %v3293, 7
    %v3295 = vsub.s32 0, %v3294
    %v3296 = vrot.slane %v3292, %v3295
    %v3313 = vunpack.c.l.b16 %v3275
    %v3314 = vunpack.c.l.b16 %v3276
    %v3315 = vunpack.c.l.b16 %v3277
    %v3316 = vunpack.c.l.b16 %v3278
    %v3317 = vunpack.c.l.b16 %v3279
    %v3318 = vunpack.c.l.b16 %v3280
    %v3319 = vunpack.c.l.b16 %v3281
    %v3320 = vunpack.c.l.b16 %v3282
    %v3321 = vunpack.c.l.b16 %v3283
    %v3322 = vunpack.c.l.b16 %v3284
    %v3323 = vunpack.c.l.b16 %v3285
    %v3324 = vunpack.c.l.b16 %v3286
    %v3325 = vunpack.c.l.b16 %v3287
    %v3326 = vunpack.c.l.b16 %v3288
    %v3327 = vunpack.c.l.b16 %v3289
    %v3328 = vunpack.c.l.b16 %v3290
    %v3329 = vpack.c.b16 %v3314, %v3313
    %v3330 = vpack.c.b16 %v3316, %v3315
    %v3331 = vpack.c.b16 %v3318, %v3317
    %v3332 = vpack.c.b16 %v3320, %v3319
    %v3333 = vpack.c.b16 %v3322, %v3321
    %v3334 = vpack.c.b16 %v3324, %v3323
    %v3335 = vpack.c.b16 %v3326, %v3325
    %v3336 = vpack.c.b16 %v3328, %v3327
    %3345 = vmatprep.subr.bf16.mxu0 0
    %3346 = vmatpush1.bf16.msra.mxu0 %v3329
    %3347 = vmatprep.subr.bf16.mxu0 0
    %3348 = vmatpush1.bf16.msra.mxu0 %v3330
    %3349 = vmatprep.subr.bf16.mxu0 0
    %3350 = vmatpush1.bf16.msra.mxu0 %v3331
    %3351 = vmatprep.subr.bf16.mxu0 0
    %3352 = vmatpush1.bf16.msra.mxu0 %v3332
    %3353 = vmatprep.subr.bf16.mxu0 0
    %3354 = vmatpush1.bf16.msra.mxu0 %v3333
    %3355 = vmatprep.subr.bf16.mxu0 0
    %3356 = vmatpush1.bf16.msra.mxu0 %v3334
    %3357 = vmatprep.subr.bf16.mxu0 0
    %3358 = vmatpush1.bf16.msra.mxu0 %v3335
    %3359 = vmatprep.subr.bf16.mxu0 0
    %3360 = vmatpush1.bf16.msra.mxu0 %v3336
    %3361 = vmatprep.subr.bf16.mxu0 0
    %3362 = vmatpush1.bf16.msra.mxu0 0
    %3363 = vmatprep.subr.bf16.mxu0 0
    %3364 = vmatpush1.bf16.msra.mxu0 0
    %3365 = vmatprep.subr.bf16.mxu0 0
    %3366 = vmatpush1.bf16.msra.mxu0 0
    %3367 = vmatprep.subr.bf16.mxu0 0
    %3368 = vmatpush1.bf16.msra.mxu0 0
    %3369 = vmatprep.subr.bf16.mxu0 0
    %3370 = vmatpush1.bf16.msra.mxu0 0
    %3371 = vmatprep.subr.bf16.mxu0 0
    %3372 = vmatpush1.bf16.msra.mxu0 0
    %3373 = vmatprep.subr.bf16.mxu0 0
    %3374 = vmatpush1.bf16.msra.mxu0 0
    %3375 = vmatprep.subr.bf16.mxu0 0
    %3376 = vmatpush1.bf16.msra.mxu0 0
    %3377 = vmatprep.mubr.bf16.mxu0 0
    %3378 = vmatmul.mubr.bf16.gmra.mrb[0].mxu0 %v3291
    %v3379 = vpop.f32.mrb[0].mxu0
    %v3380 = vadd.f32 %v3296, %v3379
    %v3381 = vpop.f32.mrb[0].mxu0
    %v3382 = vpop.f32.mrb[0].mxu0
    %v3383 = vpop.f32.mrb[0].mxu0
    %3384 = vdwg.mxu0
    %3385 = vst [vmem:[#allocation8] sm:$0xff] %v3380
    %v3386 = vld [vmem:[#allocation2 + $0x300] sm:$0xf]
    %v3387 = vld [vmem:[#allocation2 + $0x304] sm:$0xf]
    %v3388 = vld [vmem:[#allocation2 + $0x308] sm:$0xf]
    %v3389 = vld [vmem:[#allocation2 + $0x30c] sm:$0xf]
    %v3390 = vld [vmem:[#allocation2 + $0x310] sm:$0xf]
    %v3391 = vld [vmem:[#allocation2 + $0x314] sm:$0xf]
    %v3392 = vld [vmem:[#allocation2 + $0x318] sm:$0xf]
    %v3393 = vld [vmem:[#allocation2 + $0x31c] sm:$0xf]
    %v3394 = vld [vmem:[#allocation2 + $0x320] sm:$0xf]
    %v3395 = vld [vmem:[#allocation2 + $0x324] sm:$0xf]
    %v3396 = vld [vmem:[#allocation2 + $0x328] sm:$0xf]
    %v3397 = vld [vmem:[#allocation2 + $0x32c] sm:$0xf]
    %v3398 = vld [vmem:[#allocation2 + $0x330] sm:$0xf]
    %v3399 = vld [vmem:[#allocation2 + $0x334] sm:$0xf]
    %v3400 = vld [vmem:[#allocation2 + $0x338] sm:$0xf]
    %v3401 = vld [vmem:[#allocation2 + $0x33c] sm:$0xf]
    %v3402 = vpack.c.bf16 %v3380, %v3380
    %v3403 = vld [vmem:[%s1 + $0x14] sm:$0x1]
    %v3404 = vlaneseq
    %v3405 = vshrl.u32 %v3404, 7
    %v3406 = vsub.s32 0, %v3405
    %v3407 = vrot.slane %v3403, %v3406
    %v3424 = vunpack.c.l.b16 %v3386
    %v3425 = vunpack.c.l.b16 %v3387
    %v3426 = vunpack.c.l.b16 %v3388
    %v3427 = vunpack.c.l.b16 %v3389
    %v3428 = vunpack.c.l.b16 %v3390
    %v3429 = vunpack.c.l.b16 %v3391
    %v3430 = vunpack.c.l.b16 %v3392
    %v3431 = vunpack.c.l.b16 %v3393
    %v3432 = vunpack.c.l.b16 %v3394
    %v3433 = vunpack.c.l.b16 %v3395
    %v3434 = vunpack.c.l.b16 %v3396
    %v3435 = vunpack.c.l.b16 %v3397
    %v3436 = vunpack.c.l.b16 %v3398
    %v3437 = vunpack.c.l.b16 %v3399
    %v3438 = vunpack.c.l.b16 %v3400
    %v3439 = vunpack.c.l.b16 %v3401
    %v3440 = vpack.c.b16 %v3425, %v3424
    %v3441 = vpack.c.b16 %v3427, %v3426
    %v3442 = vpack.c.b16 %v3429, %v3428
    %v3443 = vpack.c.b16 %v3431, %v3430
    %v3444 = vpack.c.b16 %v3433, %v3432
    %v3445 = vpack.c.b16 %v3435, %v3434
    %v3446 = vpack.c.b16 %v3437, %v3436
    %v3447 = vpack.c.b16 %v3439, %v3438
    %3456 = vmatprep.subr.bf16.mxu0 0
    %3457 = vmatpush1.bf16.msra.mxu0 %v3440
    %3458 = vmatprep.subr.bf16.mxu0 0
    %3459 = vmatpush1.bf16.msra.mxu0 %v3441
    %3460 = vmatprep.subr.bf16.mxu0 0
    %3461 = vmatpush1.bf16.msra.mxu0 %v3442
    %3462 = vmatprep.subr.bf16.mxu0 0
    %3463 = vmatpush1.bf16.msra.mxu0 %v3443
    %3464 = vmatprep.subr.bf16.mxu0 0
    %3465 = vmatpush1.bf16.msra.mxu0 %v3444
    %3466 = vmatprep.subr.bf16.mxu0 0
    %3467 = vmatpush1.bf16.msra.mxu0 %v3445
    %3468 = vmatprep.subr.bf16.mxu0 0
    %3469 = vmatpush1.bf16.msra.mxu0 %v3446
    %3470 = vmatprep.subr.bf16.mxu0 0
    %3471 = vmatpush1.bf16.msra.mxu0 %v3447
    %3472 = vmatprep.subr.bf16.mxu0 0
    %3473 = vmatpush1.bf16.msra.mxu0 0
    %3474 = vmatprep.subr.bf16.mxu0 0
    %3475 = vmatpush1.bf16.msra.mxu0 0
    %3476 = vmatprep.subr.bf16.mxu0 0
    %3477 = vmatpush1.bf16.msra.mxu0 0
    %3478 = vmatprep.subr.bf16.mxu0 0
    %3479 = vmatpush1.bf16.msra.mxu0 0
    %3480 = vmatprep.subr.bf16.mxu0 0
    %3481 = vmatpush1.bf16.msra.mxu0 0
    %3482 = vmatprep.subr.bf16.mxu0 0
    %3483 = vmatpush1.bf16.msra.mxu0 0
    %3484 = vmatprep.subr.bf16.mxu0 0
    %3485 = vmatpush1.bf16.msra.mxu0 0
    %3486 = vmatprep.subr.bf16.mxu0 0
    %3487 = vmatpush1.bf16.msra.mxu0 0
    %3488 = vmatprep.mubr.bf16.mxu0 0
    %3489 = vmatmul.mubr.bf16.gmra.mrb[0].mxu0 %v3402
    %v3490 = vpop.f32.mrb[0].mxu0
    %v3491 = vadd.f32 %v3407, %v3490
    %v3492 = vpop.f32.mrb[0].mxu0
    %v3493 = vpop.f32.mrb[0].mxu0
    %v3494 = vpop.f32.mrb[0].mxu0
    %3495 = vdwg.mxu0
    %v3496 = vtanh.pop %v3491
    %v3497 = vld [vmem:[#allocation2 + $0x340] sm:$0xf]
    %v3498 = vld [vmem:[#allocation2 + $0x344] sm:$0xf]
    %v3499 = vld [vmem:[#allocation2 + $0x348] sm:$0xf]
    %v3500 = vld [vmem:[#allocation2 + $0x34c] sm:$0xf]
    %v3501 = vld [vmem:[#allocation2 + $0x350] sm:$0xf]
    %v3502 = vld [vmem:[#allocation2 + $0x354] sm:$0xf]
    %v3503 = vld [vmem:[#allocation2 + $0x358] sm:$0xf]
    %v3504 = vld [vmem:[#allocation2 + $0x35c] sm:$0xf]
    %v3505 = vld [vmem:[#allocation2 + $0x360] sm:$0xf]
    %v3506 = vld [vmem:[#allocation2 + $0x364] sm:$0xf]
    %v3507 = vld [vmem:[#allocation2 + $0x368] sm:$0xf]
    %v3508 = vld [vmem:[#allocation2 + $0x36c] sm:$0xf]
    %v3509 = vld [vmem:[#allocation2 + $0x370] sm:$0xf]
    %v3510 = vld [vmem:[#allocation2 + $0x374] sm:$0xf]
    %v3511 = vld [vmem:[#allocation2 + $0x378] sm:$0xf]
    %v3512 = vld [vmem:[#allocation2 + $0x37c] sm:$0xf]
    %v3513 = vpack.c.bf16 %v3496, %v3496
    %v3514 = vld [vmem:[%s1 + $0x15] sm:$0x1]
    %v3515 = vlaneseq
    %v3516 = vshrl.u32 %v3515, 7
    %v3517 = vsub.s32 0, %v3516
    %v3518 = vrot.slane %v3514, %v3517
    %v3535 = vunpack.c.l.b16 %v3497
    %v3536 = vunpack.c.l.b16 %v3498
    %v3537 = vunpack.c.l.b16 %v3499
    %v3538 = vunpack.c.l.b16 %v3500
    %v3539 = vunpack.c.l.b16 %v3501
    %v3540 = vunpack.c.l.b16 %v3502
    %v3541 = vunpack.c.l.b16 %v3503
    %v3542 = vunpack.c.l.b16 %v3504
    %v3543 = vunpack.c.l.b16 %v3505
    %v3544 = vunpack.c.l.b16 %v3506
    %v3545 = vunpack.c.l.b16 %v3507
    %v3546 = vunpack.c.l.b16 %v3508
    %v3547 = vunpack.c.l.b16 %v3509
    %v3548 = vunpack.c.l.b16 %v3510
    %v3549 = vunpack.c.l.b16 %v3511
    %v3550 = vunpack.c.l.b16 %v3512
    %v3551 = vpack.c.b16 %v3536, %v3535
    %v3552 = vpack.c.b16 %v3538, %v3537
    %v3553 = vpack.c.b16 %v3540, %v3539
    %v3554 = vpack.c.b16 %v3542, %v3541
    %v3555 = vpack.c.b16 %v3544, %v3543
    %v3556 = vpack.c.b16 %v3546, %v3545
    %v3557 = vpack.c.b16 %v3548, %v3547
    %v3558 = vpack.c.b16 %v3550, %v3549
    %3567 = vmatprep.subr.bf16.mxu0 0
    %3568 = vmatpush1.bf16.msra.mxu0 %v3551
    %3569 = vmatprep.subr.bf16.mxu0 0
    %3570 = vmatpush1.bf16.msra.mxu0 %v3552
    %3571 = vmatprep.subr.bf16.mxu0 0
    %3572 = vmatpush1.bf16.msra.mxu0 %v3553
    %3573 = vmatprep.subr.bf16.mxu0 0
    %3574 = vmatpush1.bf16.msra.mxu0 %v3554
    %3575 = vmatprep.subr.bf16.mxu0 0
    %3576 = vmatpush1.bf16.msra.mxu0 %v3555
    %3577 = vmatprep.subr.bf16.mxu0 0
    %3578 = vmatpush1.bf16.msra.mxu0 %v3556
    %3579 = vmatprep.subr.bf16.mxu0 0
    %3580 = vmatpush1.bf16.msra.mxu0 %v3557
    %3581 = vmatprep.subr.bf16.mxu0 0
    %3582 = vmatpush1.bf16.msra.mxu0 %v3558
    %3583 = vmatprep.subr.bf16.mxu0 0
    %3584 = vmatpush1.bf16.msra.mxu0 0
    %3585 = vmatprep.subr.bf16.mxu0 0
    %3586 = vmatpush1.bf16.msra.mxu0 0
    %3587 = vmatprep.subr.bf16.mxu0 0
    %3588 = vmatpush1.bf16.msra.mxu0 0
    %3589 = vmatprep.subr.bf16.mxu0 0
    %3590 = vmatpush1.bf16.msra.mxu0 0
    %3591 = vmatprep.subr.bf16.mxu0 0
    %3592 = vmatpush1.bf16.msra.mxu0 0
    %3593 = vmatprep.subr.bf16.mxu0 0
    %3594 = vmatpush1.bf16.msra.mxu0 0
    %3595 = vmatprep.subr.bf16.mxu0 0
    %3596 = vmatpush1.bf16.msra.mxu0 0
    %3597 = vmatprep.subr.bf16.mxu0 0
    %3598 = vmatpush1.bf16.msra.mxu0 0
    %3599 = vmatprep.mubr.bf16.mxu0 0
    %3600 = vmatmul.mubr.bf16.gmra.mrb[0].mxu0 %v3513
    %v3601 = vpop.f32.mrb[0].mxu0
    %v3602 = vadd.f32 %v3518, %v3601
    %v3603 = vpop.f32.mrb[0].mxu0
    %v3604 = vpop.f32.mrb[0].mxu0
    %v3605 = vpop.f32.mrb[0].mxu0
    %3606 = vdwg.mxu0
    %3607 = vst [vmem:[#allocation9] sm:$0xff] %v3602
    %v3608 = vld [vmem:[#allocation2 + $0x380] sm:$0xf]
    %v3609 = vld [vmem:[#allocation2 + $0x384] sm:$0xf]
    %v3610 = vld [vmem:[#allocation2 + $0x388] sm:$0xf]
    %v3611 = vld [vmem:[#allocation2 + $0x38c] sm:$0xf]
    %v3612 = vld [vmem:[#allocation2 + $0x390] sm:$0xf]
    %v3613 = vld [vmem:[#allocation2 + $0x394] sm:$0xf]
    %v3614 = vld [vmem:[#allocation2 + $0x398] sm:$0xf]
    %v3615 = vld [vmem:[#allocation2 + $0x39c] sm:$0xf]
    %v3616 = vld [vmem:[#allocation2 + $0x3a0] sm:$0xf]
    %v3617 = vld [vmem:[#allocation2 + $0x3a4] sm:$0xf]
    %v3618 = vld [vmem:[#allocation2 + $0x3a8] sm:$0xf]
    %v3619 = vld [vmem:[#allocation2 + $0x3ac] sm:$0xf]
    %v3620 = vld [vmem:[#allocation2 + $0x3b0] sm:$0xf]
    %v3621 = vld [vmem:[#allocation2 + $0x3b4] sm:$0xf]
    %v3622 = vld [vmem:[#allocation2 + $0x3b8] sm:$0xf]
    %v3623 = vld [vmem:[#allocation2 + $0x3bc] sm:$0xf]
    %v3624 = vld [vmem:[%s1 + $0x17] sm:$0x1]
    %v3625 = vlaneseq
    %v3626 = vshrl.u32 %v3625, 7
    %v3627 = vsub.s32 0, %v3626
    %v3628 = vrot.slane %v3624, %v3627
    %v3645 = vunpack.c.l.b16 %v3608
    %v3646 = vunpack.c.l.b16 %v3609
    %v3647 = vunpack.c.l.b16 %v3610
    %v3648 = vunpack.c.l.b16 %v3611
    %v3649 = vunpack.c.l.b16 %v3612
    %v3650 = vunpack.c.l.b16 %v3613
    %v3651 = vunpack.c.l.b16 %v3614
    %v3652 = vunpack.c.l.b16 %v3615
    %v3653 = vunpack.c.l.b16 %v3616
    %v3654 = vunpack.c.l.b16 %v3617
    %v3655 = vunpack.c.l.b16 %v3618
    %v3656 = vunpack.c.l.b16 %v3619
    %v3657 = vunpack.c.l.b16 %v3620
    %v3658 = vunpack.c.l.b16 %v3621
    %v3659 = vunpack.c.l.b16 %v3622
    %v3660 = vunpack.c.l.b16 %v3623
    %v3661 = vpack.c.b16 %v3646, %v3645
    %v3662 = vpack.c.b16 %v3648, %v3647
    %v3663 = vpack.c.b16 %v3650, %v3649
    %v3664 = vpack.c.b16 %v3652, %v3651
    %v3665 = vpack.c.b16 %v3654, %v3653
    %v3666 = vpack.c.b16 %v3656, %v3655
    %v3667 = vpack.c.b16 %v3658, %v3657
    %v3668 = vpack.c.b16 %v3660, %v3659
    %3677 = vmatprep.subr.bf16.mxu0 0
    %3678 = vmatpush1.bf16.msra.mxu0 %v3661
    %3679 = vmatprep.subr.bf16.mxu0 0
    %3680 = vmatpush1.bf16.msra.mxu0 %v3662
    %3681 = vmatprep.subr.bf16.mxu0 0
    %3682 = vmatpush1.bf16.msra.mxu0 %v3663
    %3683 = vmatprep.subr.bf16.mxu0 0
    %3684 = vmatpush1.bf16.msra.mxu0 %v3664
    %3685 = vmatprep.subr.bf16.mxu0 0
    %3686 = vmatpush1.bf16.msra.mxu0 %v3665
    %3687 = vmatprep.subr.bf16.mxu0 0
    %3688 = vmatpush1.bf16.msra.mxu0 %v3666
    %3689 = vmatprep.subr.bf16.mxu0 0
    %3690 = vmatpush1.bf16.msra.mxu0 %v3667
    %3691 = vmatprep.subr.bf16.mxu0 0
    %3692 = vmatpush1.bf16.msra.mxu0 %v3668
    %3693 = vmatprep.subr.bf16.mxu0 0
    %3694 = vmatpush1.bf16.msra.mxu0 0
    %3695 = vmatprep.subr.bf16.mxu0 0
    %3696 = vmatpush1.bf16.msra.mxu0 0
    %3697 = vmatprep.subr.bf16.mxu0 0
    %3698 = vmatpush1.bf16.msra.mxu0 0
    %3699 = vmatprep.subr.bf16.mxu0 0
    %3700 = vmatpush1.bf16.msra.mxu0 0
    %3701 = vmatprep.subr.bf16.mxu0 0
    %3702 = vmatpush1.bf16.msra.mxu0 0
    %3703 = vmatprep.subr.bf16.mxu0 0
    %3704 = vmatpush1.bf16.msra.mxu0 0
    %3705 = vmatprep.subr.bf16.mxu0 0
    %3706 = vmatpush1.bf16.msra.mxu0 0
    %3707 = vmatprep.subr.bf16.mxu0 0
    %3708 = vmatpush1.bf16.msra.mxu0 0
    %3709 = vmatprep.mubr.bf16.mxu0 0
    %3710 = vmatmul.mubr.bf16.gmra.mrb[0].mxu0 %v3402
    %v3711 = vpop.f32.mrb[0].mxu0
    %v3712 = vadd.f32 %v3628, %v3711
    %v3713 = vpop.f32.mrb[0].mxu0
    %v3714 = vpop.f32.mrb[0].mxu0
    %v3715 = vpop.f32.mrb[0].mxu0
    %3716 = vdwg.mxu0
    %v3717 = vld [vmem:[%s1 + $0x16] sm:$0x1]
    %v3718 = vlaneseq
    %v3719 = vshrl.u32 %v3718, 7
    %v3720 = vsub.s32 0, %v3719
    %v3721 = vrot.slane %v3717, %v3720
    %v3722 = vmul.f32 %v512, %v3721
    %v3723 = vmul.f32 %v516, %v3721
    %v3724 = vmul.f32 %v520, %v3721
    %v3725 = vadd.f32 %v396, %v3722
    %v3726 = vadd.f32 %v397, %v3723
    %v3727 = vadd.f32 %v398, %v3724
    %v3728 = vld [vmem:[#allocation2 + $0x3c0] sm:$0xf]
    %v3729 = vld [vmem:[#allocation2 + $0x3c4] sm:$0xf]
    %v3730 = vld [vmem:[#allocation2 + $0x3c8] sm:$0xf]
    %v3731 = vld [vmem:[#allocation2 + $0x3cc] sm:$0xf]
    %v3732 = vld [vmem:[#allocation2 + $0x3d0] sm:$0xf]
    %v3733 = vld [vmem:[#allocation2 + $0x3d4] sm:$0xf]
    %v3734 = vld [vmem:[#allocation2 + $0x3d8] sm:$0xf]
    %v3735 = vld [vmem:[#allocation2 + $0x3dc] sm:$0xf]
    %v3736 = vld [vmem:[#allocation2 + $0x3e0] sm:$0xf]
    %v3737 = vld [vmem:[#allocation2 + $0x3e4] sm:$0xf]
    %v3738 = vld [vmem:[#allocation2 + $0x3e8] sm:$0xf]
    %v3739 = vld [vmem:[#allocation2 + $0x3ec] sm:$0xf]
    %v3740 = vld [vmem:[#allocation2 + $0x3f0] sm:$0xf]
    %v3741 = vld [vmem:[#allocation2 + $0x3f4] sm:$0xf]
    %v3742 = vld [vmem:[#allocation2 + $0x3f8] sm:$0xf]
    %v3743 = vld [vmem:[#allocation2 + $0x3fc] sm:$0xf]
    %v3744 = vpack.c.bf16 %v3726, %v3725
    %v3745 = vpack.c.bf16 %v3727, %v3727
    %v3746 = vld [vmem:[%s1 + $0x18] sm:$0x1]
    %v3747 = vlaneseq
    %v3748 = vshrl.u32 %v3747, 7
    %v3749 = vsub.s32 0, %v3748
    %v3750 = vrot.slane %v3746, %v3749
    %v3767 = vunpack.c.l.b16 %v3728
    %v3768 = vunpack.c.l.b16 %v3729
    %v3769 = vunpack.c.l.b16 %v3730
    %v3770 = vunpack.c.l.b16 %v3731
    %v3771 = vunpack.c.l.b16 %v3732
    %v3772 = vunpack.c.l.b16 %v3733
    %v3773 = vunpack.c.l.b16 %v3734
    %v3774 = vunpack.c.l.b16 %v3735
    %v3775 = vunpack.c.l.b16 %v3736
    %v3776 = vunpack.c.l.b16 %v3737
    %v3777 = vunpack.c.l.b16 %v3738
    %v3778 = vunpack.c.l.b16 %v3739
    %v3779 = vunpack.c.l.b16 %v3740
    %v3780 = vunpack.c.l.b16 %v3741
    %v3781 = vunpack.c.l.b16 %v3742
    %v3782 = vunpack.c.l.b16 %v3743
    %v3783 = vpack.c.b16 %v3768, %v3767
    %v3784 = vpack.c.b16 %v3770, %v3769
    %v3785 = vpack.c.b16 %v3772, %v3771
    %v3786 = vpack.c.b16 %v3774, %v3773
    %v3787 = vpack.c.b16 %v3776, %v3775
    %v3788 = vpack.c.b16 %v3778, %v3777
    %v3789 = vpack.c.b16 %v3780, %v3779
    %v3790 = vpack.c.b16 %v3782, %v3781
    %3799 = vmatprep.subr.bf16.mxu0 0
    %3800 = vmatpush1.bf16.msra.mxu0 %v3783
    %3801 = vmatprep.subr.bf16.mxu0 0
    %3802 = vmatpush1.bf16.msra.mxu0 %v3784
    %3803 = vmatprep.subr.bf16.mxu0 0
    %3804 = vmatpush1.bf16.msra.mxu0 %v3785
    %3805 = vmatprep.subr.bf16.mxu0 0
    %3806 = vmatpush1.bf16.msra.mxu0 %v3786
    %3807 = vmatprep.subr.bf16.mxu0 0
    %3808 = vmatpush1.bf16.msra.mxu0 %v3787
    %3809 = vmatprep.subr.bf16.mxu0 0
    %3810 = vmatpush1.bf16.msra.mxu0 %v3788
    %3811 = vmatprep.subr.bf16.mxu0 0
    %3812 = vmatpush1.bf16.msra.mxu0 %v3789
    %3813 = vmatprep.subr.bf16.mxu0 0
    %3814 = vmatpush1.bf16.msra.mxu0 %v3790
    %3815 = vmatprep.subr.bf16.mxu0 0
    %3816 = vmatpush1.bf16.msra.mxu0 0
    %3817 = vmatprep.subr.bf16.mxu0 0
    %3818 = vmatpush1.bf16.msra.mxu0 0
    %3819 = vmatprep.subr.bf16.mxu0 0
    %3820 = vmatpush1.bf16.msra.mxu0 0
    %3821 = vmatprep.subr.bf16.mxu0 0
    %3822 = vmatpush1.bf16.msra.mxu0 0
    %3823 = vmatprep.subr.bf16.mxu0 0
    %3824 = vmatpush1.bf16.msra.mxu0 0
    %3825 = vmatprep.subr.bf16.mxu0 0
    %3826 = vmatpush1.bf16.msra.mxu0 0
    %3827 = vmatprep.subr.bf16.mxu0 0
    %3828 = vmatpush1.bf16.msra.mxu0 0
    %3829 = vmatprep.subr.bf16.mxu0 0
    %3830 = vmatpush1.bf16.msra.mxu0 0
    %3831 = vmatprep.mubr.bf16.mxu0 0
    %3832 = vmatmul.mubr.bf16.gmra.mrb[0].mxu0 %v3744
    %v3833 = vpop.f32.mrb[0].mxu0
    %v3834 = vadd.f32 %v3750, %v3833
    %v3835 = vpop.f32.mrb[0].mxu0
    %v3836 = vpop.f32.mrb[0].mxu0
    %v3837 = vadd.f32 %v3750, %v3836
    %v3838 = vpop.f32.mrb[0].mxu0
    %3839 = vmatprep.mubr.bf16.mxu0 0
    %3840 = vmatmul.mubr.bf16.gmra.mrb[0].mxu0 %v3745
    %v3841 = vpop.f32.mrb[0].mxu0
    %v3842 = vadd.f32 %v3750, %v3841
    %v3843 = vpop.f32.mrb[0].mxu0
    %v3844 = vpop.f32.mrb[0].mxu0
    %v3845 = vpop.f32.mrb[0].mxu0
    %3846 = vdwg.mxu0
    %3850 = vrot.lane.b32.xlu0 %v3834, 96
    %v3851 = vpop.permute.xlu0 %3850
    %3852 = vrot.lane.b32.xlu0 %v3837, 96
    %v3853 = vpop.permute.xlu0 %3852
    %3854 = vrot.lane.b32.xlu0 %v3842, 96
    %v3855 = vpop.permute.xlu0 %3854
    %3859 = vxpose.xlu0.b32.start [1/16] %v3851, 128
    %3860 = vxpose.xlu0.b32.cont [2/16] %v3853, 128
    %3861 = vxpose.xlu0.b32.cont [3/16] %v3855, 128
    %3862 = vxpose.xlu0.b32.cont [4/16] 0.0, 128
    %3863 = vxpose.xlu0.b32.cont [5/16] 0.0, 128
    %3864 = vxpose.xlu0.b32.cont [6/16] 0.0, 128
    %3865 = vxpose.xlu0.b32.cont [7/16] 0.0, 128
    %3866 = vxpose.xlu0.b32.cont [8/16] 0.0, 128
    %3867 = vxpose.xlu0.b32.cont [9/16] 0.0, 128
    %3868 = vxpose.xlu0.b32.cont [10/16] 0.0, 128
    %3869 = vxpose.xlu0.b32.cont [11/16] 0.0, 128
    %3870 = vxpose.xlu0.b32.cont [12/16] 0.0, 128
    %3871 = vxpose.xlu0.b32.cont [13/16] 0.0, 128
    %3872 = vxpose.xlu0.b32.cont [14/16] 0.0, 128
    %3873 = vxpose.xlu0.b32.cont [15/16] 0.0, 128
    %3874 = vxpose.xlu0.b32.end [16/16] 0.0, 128
    %v3875 = vpop.trf.xlu0
    %v3876 = vpop.trf.xlu0
    %v3877 = vpop.trf.xlu0
    %v3878 = vpop.trf.xlu0
    %v3879 = vpop.trf.xlu0
    %v3880 = vpop.trf.xlu0
    %v3881 = vpop.trf.xlu0
    %v3882 = vpop.trf.xlu0
    %v3883 = vpop.trf.xlu0
    %v3884 = vpop.trf.xlu0
    %v3885 = vpop.trf.xlu0
    %v3886 = vpop.trf.xlu0
    %v3887 = vpop.trf.xlu0
    %v3888 = vpop.trf.xlu0
    %v3889 = vpop.trf.xlu0
    %v3890 = vpop.trf.xlu0
    %v3891 = vpack.c.bf16 %v3837, %v3834
    %v3892 = vpack.c.bf16 %v3842, %v3842
    %v3893 = vpack.c.bf16 %v3875, %v3875
    %v3895 = vsel %vm525, %v3891, 0
    %v3898 = vsel %vm525, %v3892, 0
    %v3901 = vsel %vm790, %v3893, 0
    %3903 = vmatprep.subr.bf16.mxu0 0
    %3904 = vmatpush1.bf16.msra.mxu0 %v3901
    %3905 = vmatprep.subr.bf16.mxu0 0
    %3906 = vmatpush1.bf16.msra.mxu0 0
    %3907 = vmatprep.subr.bf16.mxu0 0
    %3908 = vmatpush1.bf16.msra.mxu0 0
    %3909 = vmatprep.subr.bf16.mxu0 0
    %3910 = vmatpush1.bf16.msra.mxu0 0
    %3911 = vmatprep.subr.bf16.mxu0 0
    %3912 = vmatpush1.bf16.msra.mxu0 0
    %3913 = vmatprep.subr.bf16.mxu0 0
    %3914 = vmatpush1.bf16.msra.mxu0 0
    %3915 = vmatprep.subr.bf16.mxu0 0
    %3916 = vmatpush1.bf16.msra.mxu0 0
    %3917 = vmatprep.subr.bf16.mxu0 0
    %3918 = vmatpush1.bf16.msra.mxu0 0
    %3919 = vmatprep.subr.bf16.mxu0 0
    %3920 = vmatpush1.bf16.msra.mxu0 0
    %3921 = vmatprep.subr.bf16.mxu0 0
    %3922 = vmatpush1.bf16.msra.mxu0 0
    %3923 = vmatprep.subr.bf16.mxu0 0
    %3924 = vmatpush1.bf16.msra.mxu0 0
    %3925 = vmatprep.subr.bf16.mxu0 0
    %3926 = vmatpush1.bf16.msra.mxu0 0
    %3927 = vmatprep.subr.bf16.mxu0 0
    %3928 = vmatpush1.bf16.msra.mxu0 0
    %3929 = vmatprep.subr.bf16.mxu0 0
    %3930 = vmatpush1.bf16.msra.mxu0 0
    %3931 = vmatprep.subr.bf16.mxu0 0
    %3932 = vmatpush1.bf16.msra.mxu0 0
    %3933 = vmatprep.subr.bf16.mxu0 0
    %3934 = vmatpush1.bf16.msra.mxu0 0
    %3935 = vmatprep.mubr.bf16.mxu0 0
    %3936 = vmatmul.mubr.bf16.gmra.mrb[0].mxu0 %v3895
    %v3937 = vpop.f32.mrb[0].mxu0
    %v3938 = vadd.f32 %v130, %v3937
    %v3939 = vpop.f32.mrb[0].mxu0
    %v3940 = vpop.f32.mrb[0].mxu0
    %v3941 = vadd.f32 %v131, %v3940
    %v3942 = vpop.f32.mrb[0].mxu0
    %3943 = vmatprep.mubr.bf16.mxu0 0
    %3944 = vmatmul.mubr.bf16.gmra.mrb[0].mxu0 %v3898
    %v3945 = vpop.f32.mrb[0].mxu0
    %v3946 = vadd.f32 %v132, %v3945
    %v3947 = vpop.f32.mrb[0].mxu0
    %v3948 = vpop.f32.mrb[0].mxu0
    %v3949 = vpop.f32.mrb[0].mxu0
    %3950 = vdwg.mxu0
    %v3951 = vsel %vm842, %v3938, -inf
    %3952 = vmax.xlane.f32.xlu0 %v3951
    %v3953 = vpop.xlane.xlu0 %3952
    %v3954 = vsel %vm842, %v3941, -inf
    %3955 = vmax.xlane.f32.xlu0 %v3954
    %v3956 = vpop.xlane.xlu0 %3955
    %v3957 = vsel %vm842, %v3946, -inf
    %3958 = vmax.xlane.f32.xlu0 %v3957
    %v3959 = vpop.xlane.xlu0 %3958
    %v3960 = vsub.f32 %v3938, %v3953
    %v3961 = vsub.f32 %v3941, %v3956
    %v3962 = vsub.f32 %v3946, %v3959
    %v3963 = vmul.f32 %v3960, 1.442695
    %v3964 = vpow.pop %v3963
    %v3965 = vmul.f32 %v3961, 1.442695
    %v3966 = vpow.pop %v3965
    %v3967 = vmul.f32 %v3962, 1.442695
    %v3968 = vpow.pop %v3967
    %v3969 = vsel %vm842, %v3964, 0.0
    %3970 = vadd.xlane.f32.xlu0 %v3969
    %v3971 = vpop.xlane.xlu0 %3970
    %v3972 = vsel %vm842, %v3966, 0.0
    %3973 = vadd.xlane.f32.xlu0 %v3972
    %v3974 = vpop.xlane.xlu0 %3973
    %v3975 = vsel %vm842, %v3968, 0.0
    %3976 = vadd.xlane.f32.xlu0 %v3975
    %v3977 = vpop.xlane.xlu0 %3976
    %v3978 = vrcp.pop %v3971
    %v3979 = vrcp.pop %v3974
    %v3980 = vrcp.pop %v3977
    %v3981 = vmul.f32 %v3964, %v3978
    %v3982 = vmul.f32 %v3966, %v3979
    %v3983 = vmul.f32 %v3968, %v3980
    %v3984 = vpack.c.bf16 %v3982, %v3981
    %v3985 = vpack.c.bf16 %v3983, %v3983
    %3988 = vrot.lane.b32.xlu0 %v3891, 64
    %v3989 = vpop.permute.xlu0 %3988
    %3990 = vrot.lane.b32.xlu0 %v3892, 64
    %v3991 = vpop.permute.xlu0 %3990
    %v3994 = vsel %vm842, %v3984, 0
    %v3997 = vsel %vm842, %v3985, 0
    %v4000 = vsel %vm790, %v3991, 0
    %4002 = vmatprep.subr.bf16.mxu0 0
    %4003 = vmatpush1.bf16.msra.mxu0 %v3989
    %4004 = vmatprep.subr.bf16.mxu0 0
    %4005 = vmatpush1.bf16.msra.mxu0 %v4000
    %4006 = vmatprep.subr.bf16.mxu0 0
    %4007 = vmatpush1.bf16.msra.mxu0 0
    %4008 = vmatprep.subr.bf16.mxu0 0
    %4009 = vmatpush1.bf16.msra.mxu0 0
    %4010 = vmatprep.subr.bf16.mxu0 0
    %4011 = vmatpush1.bf16.msra.mxu0 0
    %4012 = vmatprep.subr.bf16.mxu0 0
    %4013 = vmatpush1.bf16.msra.mxu0 0
    %4014 = vmatprep.subr.bf16.mxu0 0
    %4015 = vmatpush1.bf16.msra.mxu0 0
    %4016 = vmatprep.subr.bf16.mxu0 0
    %4017 = vmatpush1.bf16.msra.mxu0 0
    %4018 = vmatprep.subr.bf16.mxu0 0
    %4019 = vmatpush1.bf16.msra.mxu0 0
    %4020 = vmatprep.subr.bf16.mxu0 0
    %4021 = vmatpush1.bf16.msra.mxu0 0
    %4022 = vmatprep.subr.bf16.mxu0 0
    %4023 = vmatpush1.bf16.msra.mxu0 0
    %4024 = vmatprep.subr.bf16.mxu0 0
    %4025 = vmatpush1.bf16.msra.mxu0 0
    %4026 = vmatprep.subr.bf16.mxu0 0
    %4027 = vmatpush1.bf16.msra.mxu0 0
    %4028 = vmatprep.subr.bf16.mxu0 0
    %4029 = vmatpush1.bf16.msra.mxu0 0
    %4030 = vmatprep.subr.bf16.mxu0 0
    %4031 = vmatpush1.bf16.msra.mxu0 0
    %4032 = vmatprep.subr.bf16.mxu0 0
    %4033 = vmatpush1.bf16.msra.mxu0 0
    %4034 = vmatprep.mubr.bf16.mxu0 0
    %4035 = vmatmul.mubr.bf16.gmra.mrb[0].mxu0 %v3994
    %v4036 = vpop.f32.mrb[0].mxu0
    %v4037 = vadd.f32 0.0, %v4036
    %v4038 = vpop.f32.mrb[0].mxu0
    %v4039 = vpop.f32.mrb[0].mxu0
    %v4040 = vadd.f32 0.0, %v4039
    %v4041 = vpop.f32.mrb[0].mxu0
    %4042 = vmatprep.mubr.bf16.mxu0 0
    %4043 = vmatmul.mubr.bf16.gmra.mrb[0].mxu0 %v3997
    %v4044 = vpop.f32.mrb[0].mxu0
    %v4045 = vadd.f32 0.0, %v4044
    %v4046 = vpop.f32.mrb[0].mxu0
    %v4047 = vpop.f32.mrb[0].mxu0
    %v4048 = vpop.f32.mrb[0].mxu0
    %4049 = vdwg.mxu0
    %v4050 = vpack.c.bf16 %v3876, %v3876
    %4051 = vrot.lane.b32.xlu0 %v3891, 120
    %v4052 = vpop.permute.xlu0 %4051
    %4053 = vrot.lane.b32.xlu0 %v3892, 120
    %v4054 = vpop.permute.xlu0 %4053
    %v4056 = vsel %vm525, %v4052, 0
    %v4059 = vsel %vm525, %v4054, 0
    %v4062 = vsel %vm790, %v4050, 0
    %4064 = vmatprep.subr.bf16.mxu0 0
    %4065 = vmatpush1.bf16.msra.mxu0 %v4062
    %4066 = vmatprep.subr.bf16.mxu0 0
    %4067 = vmatpush1.bf16.msra.mxu0 0
    %4068 = vmatprep.subr.bf16.mxu0 0
    %4069 = vmatpush1.bf16.msra.mxu0 0
    %4070 = vmatprep.subr.bf16.mxu0 0
    %4071 = vmatpush1.bf16.msra.mxu0 0
    %4072 = vmatprep.subr.bf16.mxu0 0
    %4073 = vmatpush1.bf16.msra.mxu0 0
    %4074 = vmatprep.subr.bf16.mxu0 0
    %4075 = vmatpush1.bf16.msra.mxu0 0
    %4076 = vmatprep.subr.bf16.mxu0 0
    %4077 = vmatpush1.bf16.msra.mxu0 0
    %4078 = vmatprep.subr.bf16.mxu0 0
    %4079 = vmatpush1.bf16.msra.mxu0 0
    %4080 = vmatprep.subr.bf16.mxu0 0
    %4081 = vmatpush1.bf16.msra.mxu0 0
    %4082 = vmatprep.subr.bf16.mxu0 0
    %4083 = vmatpush1.bf16.msra.mxu0 0
    %4084 = vmatprep.subr.bf16.mxu0 0
    %4085 = vmatpush1.bf16.msra.mxu0 0
    %4086 = vmatprep.subr.bf16.mxu0 0
    %4087 = vmatpush1.bf16.msra.mxu0 0
    %4088 = vmatprep.subr.bf16.mxu0 0
    %4089 = vmatpush1.bf16.msra.mxu0 0
    %4090 = vmatprep.subr.bf16.mxu0 0
    %4091 = vmatpush1.bf16.msra.mxu0 0
    %4092 = vmatprep.subr.bf16.mxu0 0
    %4093 = vmatpush1.bf16.msra.mxu0 0
    %4094 = vmatprep.subr.bf16.mxu0 0
    %4095 = vmatpush1.bf16.msra.mxu0 0
    %4096 = vmatprep.mubr.bf16.mxu0 0
    %4097 = vmatmul.mubr.bf16.gmra.mrb[0].mxu0 %v4056
    %v4098 = vpop.f32.mrb[0].mxu0
    %v4099 = vadd.f32 %v130, %v4098
    %v4100 = vpop.f32.mrb[0].mxu0
    %v4101 = vpop.f32.mrb[0].mxu0
    %v4102 = vadd.f32 %v131, %v4101
    %v4103 = vpop.f32.mrb[0].mxu0
    %4104 = vmatprep.mubr.bf16.mxu0 0
    %4105 = vmatmul.mubr.bf16.gmra.mrb[0].mxu0 %v4059
    %v4106 = vpop.f32.mrb[0].mxu0
    %v4107 = vadd.f32 %v132, %v4106
    %v4108 = vpop.f32.mrb[0].mxu0
    %v4109 = vpop.f32.mrb[0].mxu0
    %v4110 = vpop.f32.mrb[0].mxu0
    %4111 = vdwg.mxu0
    %v4112 = vsel %vm842, %v4099, -inf
    %4113 = vmax.xlane.f32.xlu0 %v4112
    %v4114 = vpop.xlane.xlu0 %4113
    %v4115 = vsel %vm842, %v4102, -inf
    %4116 = vmax.xlane.f32.xlu0 %v4115
    %v4117 = vpop.xlane.xlu0 %4116
    %v4118 = vsel %vm842, %v4107, -inf
    %4119 = vmax.xlane.f32.xlu0 %v4118
    %v4120 = vpop.xlane.xlu0 %4119
    %v4121 = vsub.f32 %v4099, %v4114
    %v4122 = vsub.f32 %v4102, %v4117
    %v4123 = vsub.f32 %v4107, %v4120
    %v4124 = vmul.f32 %v4121, 1.442695
    %v4125 = vpow.pop %v4124
    %v4126 = vmul.f32 %v4122, 1.442695
    %v4127 = vpow.pop %v4126
    %v4128 = vmul.f32 %v4123, 1.442695
    %v4129 = vpow.pop %v4128
    %v4130 = vsel %vm842, %v4125, 0.0
    %4131 = vadd.xlane.f32.xlu0 %v4130
    %v4132 = vpop.xlane.xlu0 %4131
    %v4133 = vsel %vm842, %v4127, 0.0
    %4134 = vadd.xlane.f32.xlu0 %v4133
    %v4135 = vpop.xlane.xlu0 %4134
    %v4136 = vsel %vm842, %v4129, 0.0
    %4137 = vadd.xlane.f32.xlu0 %v4136
    %v4138 = vpop.xlane.xlu0 %4137
    %v4139 = vrcp.pop %v4132
    %v4140 = vrcp.pop %v4135
    %v4141 = vrcp.pop %v4138
    %v4142 = vmul.f32 %v4125, %v4139
    %v4143 = vmul.f32 %v4127, %v4140
    %v4144 = vmul.f32 %v4129, %v4141
    %v4145 = vpack.c.bf16 %v4143, %v4142
    %v4146 = vpack.c.bf16 %v4144, %v4144
    %4147 = vrot.lane.b32.xlu0 %v3891, 56
    %v4148 = vpop.permute.xlu0 %4147
    %4149 = vrot.lane.b32.xlu0 %v3892, 56
    %v4150 = vpop.permute.xlu0 %4149
    %v4153 = vsel %vm842, %v4145, 0
    %v4156 = vsel %vm842, %v4146, 0
    %v4159 = vsel %vm790, %v4150, 0
    %4161 = vmatprep.subr.bf16.mxu0 0
    %4162 = vmatpush1.bf16.msra.mxu0 %v4148
    %4163 = vmatprep.subr.bf16.mxu0 0
    %4164 = vmatpush1.bf16.msra.mxu0 %v4159
    %4165 = vmatprep.subr.bf16.mxu0 0
    %4166 = vmatpush1.bf16.msra.mxu0 0
    %4167 = vmatprep.subr.bf16.mxu0 0
    %4168 = vmatpush1.bf16.msra.mxu0 0
    %4169 = vmatprep.subr.bf16.mxu0 0
    %4170 = vmatpush1.bf16.msra.mxu0 0
    %4171 = vmatprep.subr.bf16.mxu0 0
    %4172 = vmatpush1.bf16.msra.mxu0 0
    %4173 = vmatprep.subr.bf16.mxu0 0
    %4174 = vmatpush1.bf16.msra.mxu0 0
    %4175 = vmatprep.subr.bf16.mxu0 0
    %4176 = vmatpush1.bf16.msra.mxu0 0
    %4177 = vmatprep.subr.bf16.mxu0 0
    %4178 = vmatpush1.bf16.msra.mxu0 0
    %4179 = vmatprep.subr.bf16.mxu0 0
    %4180 = vmatpush1.bf16.msra.mxu0 0
    %4181 = vmatprep.subr.bf16.mxu0 0
    %4182 = vmatpush1.bf16.msra.mxu0 0
    %4183 = vmatprep.subr.bf16.mxu0 0
    %4184 = vmatpush1.bf16.msra.mxu0 0
    %4185 = vmatprep.subr.bf16.mxu0 0
    %4186 = vmatpush1.bf16.msra.mxu0 0
    %4187 = vmatprep.subr.bf16.mxu0 0
    %4188 = vmatpush1.bf16.msra.mxu0 0
    %4189 = vmatprep.subr.bf16.mxu0 0
    %4190 = vmatpush1.bf16.msra.mxu0 0
    %4191 = vmatprep.subr.bf16.mxu0 0
    %4192 = vmatpush1.bf16.msra.mxu0 0
    %4193 = vmatprep.mubr.bf16.mxu0 0
    %4194 = vmatmul.mubr.bf16.gmra.mrb[0].mxu0 %v4153
    %v4195 = vpop.f32.mrb[0].mxu0
    %v4196 = vadd.f32 0.0, %v4195
    %v4197 = vpop.f32.mrb[0].mxu0
    %v4198 = vpop.f32.mrb[0].mxu0
    %v4199 = vadd.f32 0.0, %v4198
    %v4200 = vpop.f32.mrb[0].mxu0
    %4201 = vmatprep.mubr.bf16.mxu0 0
    %4202 = vmatmul.mubr.bf16.gmra.mrb[0].mxu0 %v4156
    %v4203 = vpop.f32.mrb[0].mxu0
    %v4204 = vadd.f32 0.0, %v4203
    %v4205 = vpop.f32.mrb[0].mxu0
    %v4206 = vpop.f32.mrb[0].mxu0
    %v4207 = vpop.f32.mrb[0].mxu0
    %4208 = vdwg.mxu0
    %v4209 = vpack.c.bf16 %v3877, %v3877
    %4210 = vrot.lane.b32.xlu0 %v3891, 112
    %v4211 = vpop.permute.xlu0 %4210
    %4212 = vrot.lane.b32.xlu0 %v3892, 112
    %v4213 = vpop.permute.xlu0 %4212
    %v4215 = vsel %vm525, %v4211, 0
    %v4218 = vsel %vm525, %v4213, 0
    %v4221 = vsel %vm790, %v4209, 0
    %4223 = vmatprep.subr.bf16.mxu0 0
    %4224 = vmatpush1.bf16.msra.mxu0 %v4221
    %4225 = vmatprep.subr.bf16.mxu0 0
    %4226 = vmatpush1.bf16.msra.mxu0 0
    %4227 = vmatprep.subr.bf16.mxu0 0
    %4228 = vmatpush1.bf16.msra.mxu0 0
    %4229 = vmatprep.subr.bf16.mxu0 0
    %4230 = vmatpush1.bf16.msra.mxu0 0
    %4231 = vmatprep.subr.bf16.mxu0 0
    %4232 = vmatpush1.bf16.msra.mxu0 0
    %4233 = vmatprep.subr.bf16.mxu0 0
    %4234 = vmatpush1.bf16.msra.mxu0 0
    %4235 = vmatprep.subr.bf16.mxu0 0
    %4236 = vmatpush1.bf16.msra.mxu0 0
    %4237 = vmatprep.subr.bf16.mxu0 0
    %4238 = vmatpush1.bf16.msra.mxu0 0
    %4239 = vmatprep.subr.bf16.mxu0 0
    %4240 = vmatpush1.bf16.msra.mxu0 0
    %4241 = vmatprep.subr.bf16.mxu0 0
    %4242 = vmatpush1.bf16.msra.mxu0 0
    %4243 = vmatprep.subr.bf16.mxu0 0
    %4244 = vmatpush1.bf16.msra.mxu0 0
    %4245 = vmatprep.subr.bf16.mxu0 0
    %4246 = vmatpush1.bf16.msra.mxu0 0
    %4247 = vmatprep.subr.bf16.mxu0 0
    %4248 = vmatpush1.bf16.msra.mxu0 0
    %4249 = vmatprep.subr.bf16.mxu0 0
    %4250 = vmatpush1.bf16.msra.mxu0 0
    %4251 = vmatprep.subr.bf16.mxu0 0
    %4252 = vmatpush1.bf16.msra.mxu0 0
    %4253 = vmatprep.subr.bf16.mxu0 0
    %4254 = vmatpush1.bf16.msra.mxu0 0
    %4255 = vmatprep.mubr.bf16.mxu0 0
    %4256 = vmatmul.mubr.bf16.gmra.mrb[0].mxu0 %v4215
    %v4257 = vpop.f32.mrb[0].mxu0
    %v4258 = vadd.f32 %v130, %v4257
    %v4259 = vpop.f32.mrb[0].mxu0
    %v4260 = vpop.f32.mrb[0].mxu0
    %v4261 = vadd.f32 %v131, %v4260
    %v4262 = vpop.f32.mrb[0].mxu0
    %4263 = vmatprep.mubr.bf16.mxu0 0
    %4264 = vmatmul.mubr.bf16.gmra.mrb[0].mxu0 %v4218
    %v4265 = vpop.f32.mrb[0].mxu0
    %v4266 = vadd.f32 %v132, %v4265
    %v4267 = vpop.f32.mrb[0].mxu0
    %v4268 = vpop.f32.mrb[0].mxu0
    %v4269 = vpop.f32.mrb[0].mxu0
    %4270 = vdwg.mxu0
    %v4271 = vsel %vm842, %v4258, -inf
    %4272 = vmax.xlane.f32.xlu0 %v4271
    %v4273 = vpop.xlane.xlu0 %4272
    %v4274 = vsel %vm842, %v4261, -inf
    %4275 = vmax.xlane.f32.xlu0 %v4274
    %v4276 = vpop.xlane.xlu0 %4275
    %v4277 = vsel %vm842, %v4266, -inf
    %4278 = vmax.xlane.f32.xlu0 %v4277
    %v4279 = vpop.xlane.xlu0 %4278
    %v4280 = vsub.f32 %v4258, %v4273
    %v4281 = vsub.f32 %v4261, %v4276
    %v4282 = vsub.f32 %v4266, %v4279
    %v4283 = vmul.f32 %v4280, 1.442695
    %v4284 = vpow.pop %v4283
    %v4285 = vmul.f32 %v4281, 1.442695
    %v4286 = vpow.pop %v4285
    %v4287 = vmul.f32 %v4282, 1.442695
    %v4288 = vpow.pop %v4287
    %v4289 = vsel %vm842, %v4284, 0.0
    %4290 = vadd.xlane.f32.xlu0 %v4289
    %v4291 = vpop.xlane.xlu0 %4290
    %v4292 = vsel %vm842, %v4286, 0.0
    %4293 = vadd.xlane.f32.xlu0 %v4292
    %v4294 = vpop.xlane.xlu0 %4293
    %v4295 = vsel %vm842, %v4288, 0.0
    %4296 = vadd.xlane.f32.xlu0 %v4295
    %v4297 = vpop.xlane.xlu0 %4296
    %v4298 = vrcp.pop %v4291
    %v4299 = vrcp.pop %v4294
    %v4300 = vrcp.pop %v4297
    %v4301 = vmul.f32 %v4284, %v4298
    %v4302 = vmul.f32 %v4286, %v4299
    %v4303 = vmul.f32 %v4288, %v4300
    %v4304 = vpack.c.bf16 %v4302, %v4301
    %v4305 = vpack.c.bf16 %v4303, %v4303
    %4306 = vrot.lane.b32.xlu0 %v3891, 48
    %v4307 = vpop.permute.xlu0 %4306
    %4308 = vrot.lane.b32.xlu0 %v3892, 48
    %v4309 = vpop.permute.xlu0 %4308
    %v4312 = vsel %vm842, %v4304, 0
    %v4315 = vsel %vm842, %v4305, 0
    %v4318 = vsel %vm790, %v4309, 0
    %4320 = vmatprep.subr.bf16.mxu0 0
    %4321 = vmatpush1.bf16.msra.mxu0 %v4307
    %4322 = vmatprep.subr.bf16.mxu0 0
    %4323 = vmatpush1.bf16.msra.mxu0 %v4318
    %4324 = vmatprep.subr.bf16.mxu0 0
    %4325 = vmatpush1.bf16.msra.mxu0 0
    %4326 = vmatprep.subr.bf16.mxu0 0
    %4327 = vmatpush1.bf16.msra.mxu0 0
    %4328 = vmatprep.subr.bf16.mxu0 0
    %4329 = vmatpush1.bf16.msra.mxu0 0
    %4330 = vmatprep.subr.bf16.mxu0 0
    %4331 = vmatpush1.bf16.msra.mxu0 0
    %4332 = vmatprep.subr.bf16.mxu0 0
    %4333 = vmatpush1.bf16.msra.mxu0 0
    %4334 = vmatprep.subr.bf16.mxu0 0
    %4335 = vmatpush1.bf16.msra.mxu0 0
    %4336 = vmatprep.subr.bf16.mxu0 0
    %4337 = vmatpush1.bf16.msra.mxu0 0
    %4338 = vmatprep.subr.bf16.mxu0 0
    %4339 = vmatpush1.bf16.msra.mxu0 0
    %4340 = vmatprep.subr.bf16.mxu0 0
    %4341 = vmatpush1.bf16.msra.mxu0 0
    %4342 = vmatprep.subr.bf16.mxu0 0
    %4343 = vmatpush1.bf16.msra.mxu0 0
    %4344 = vmatprep.subr.bf16.mxu0 0
    %4345 = vmatpush1.bf16.msra.mxu0 0
    %4346 = vmatprep.subr.bf16.mxu0 0
    %4347 = vmatpush1.bf16.msra.mxu0 0
    %4348 = vmatprep.subr.bf16.mxu0 0
    %4349 = vmatpush1.bf16.msra.mxu0 0
    %4350 = vmatprep.subr.bf16.mxu0 0
    %4351 = vmatpush1.bf16.msra.mxu0 0
    %4352 = vmatprep.mubr.bf16.mxu0 0
    %4353 = vmatmul.mubr.bf16.gmra.mrb[0].mxu0 %v4312
    %v4354 = vpop.f32.mrb[0].mxu0
    %v4355 = vadd.f32 0.0, %v4354
    %v4356 = vpop.f32.mrb[0].mxu0
    %v4357 = vpop.f32.mrb[0].mxu0
    %v4358 = vadd.f32 0.0, %v4357
    %v4359 = vpop.f32.mrb[0].mxu0
    %4360 = vmatprep.mubr.bf16.mxu0 0
    %4361 = vmatmul.mubr.bf16.gmra.mrb[0].mxu0 %v4315
    %v4362 = vpop.f32.mrb[0].mxu0
    %v4363 = vadd.f32 0.0, %v4362
    %v4364 = vpop.f32.mrb[0].mxu0
    %v4365 = vpop.f32.mrb[0].mxu0
    %v4366 = vpop.f32.mrb[0].mxu0
    %4367 = vdwg.mxu0
    %v4368 = vpack.c.bf16 %v3878, %v3878
    %4369 = vrot.lane.b32.xlu0 %v3891, 104
    %v4370 = vpop.permute.xlu0 %4369
    %4371 = vrot.lane.b32.xlu0 %v3892, 104
    %v4372 = vpop.permute.xlu0 %4371
    %v4374 = vsel %vm525, %v4370, 0
    %v4377 = vsel %vm525, %v4372, 0
    %v4380 = vsel %vm790, %v4368, 0
    %4382 = vmatprep.subr.bf16.mxu0 0
    %4383 = vmatpush1.bf16.msra.mxu0 %v4380
    %4384 = vmatprep.subr.bf16.mxu0 0
    %4385 = vmatpush1.bf16.msra.mxu0 0
    %4386 = vmatprep.subr.bf16.mxu0 0
    %4387 = vmatpush1.bf16.msra.mxu0 0
    %4388 = vmatprep.subr.bf16.mxu0 0
    %4389 = vmatpush1.bf16.msra.mxu0 0
    %4390 = vmatprep.subr.bf16.mxu0 0
    %4391 = vmatpush1.bf16.msra.mxu0 0
    %4392 = vmatprep.subr.bf16.mxu0 0
    %4393 = vmatpush1.bf16.msra.mxu0 0
    %4394 = vmatprep.subr.bf16.mxu0 0
    %4395 = vmatpush1.bf16.msra.mxu0 0
    %4396 = vmatprep.subr.bf16.mxu0 0
    %4397 = vmatpush1.bf16.msra.mxu0 0
    %4398 = vmatprep.subr.bf16.mxu0 0
    %4399 = vmatpush1.bf16.msra.mxu0 0
    %4400 = vmatprep.subr.bf16.mxu0 0
    %4401 = vmatpush1.bf16.msra.mxu0 0
    %4402 = vmatprep.subr.bf16.mxu0 0
    %4403 = vmatpush1.bf16.msra.mxu0 0
    %4404 = vmatprep.subr.bf16.mxu0 0
    %4405 = vmatpush1.bf16.msra.mxu0 0
    %4406 = vmatprep.subr.bf16.mxu0 0
    %4407 = vmatpush1.bf16.msra.mxu0 0
    %4408 = vmatprep.subr.bf16.mxu0 0
    %4409 = vmatpush1.bf16.msra.mxu0 0
    %4410 = vmatprep.subr.bf16.mxu0 0
    %4411 = vmatpush1.bf16.msra.mxu0 0
    %4412 = vmatprep.subr.bf16.mxu0 0
    %4413 = vmatpush1.bf16.msra.mxu0 0
    %4414 = vmatprep.mubr.bf16.mxu0 0
    %4415 = vmatmul.mubr.bf16.gmra.mrb[0].mxu0 %v4374
    %v4416 = vpop.f32.mrb[0].mxu0
    %v4417 = vadd.f32 %v130, %v4416
    %v4418 = vpop.f32.mrb[0].mxu0
    %v4419 = vpop.f32.mrb[0].mxu0
    %v4420 = vadd.f32 %v131, %v4419
    %v4421 = vpop.f32.mrb[0].mxu0
    %4422 = vmatprep.mubr.bf16.mxu0 0
    %4423 = vmatmul.mubr.bf16.gmra.mrb[0].mxu0 %v4377
    %v4424 = vpop.f32.mrb[0].mxu0
    %v4425 = vadd.f32 %v132, %v4424
    %v4426 = vpop.f32.mrb[0].mxu0
    %v4427 = vpop.f32.mrb[0].mxu0
    %v4428 = vpop.f32.mrb[0].mxu0
    %4429 = vdwg.mxu0
    %v4430 = vsel %vm842, %v4417, -inf
    %4431 = vmax.xlane.f32.xlu0 %v4430
    %v4432 = vpop.xlane.xlu0 %4431
    %v4433 = vsel %vm842, %v4420, -inf
    %4434 = vmax.xlane.f32.xlu0 %v4433
    %v4435 = vpop.xlane.xlu0 %4434
    %v4436 = vsel %vm842, %v4425, -inf
    %4437 = vmax.xlane.f32.xlu0 %v4436
    %v4438 = vpop.xlane.xlu0 %4437
    %v4439 = vsub.f32 %v4417, %v4432
    %v4440 = vsub.f32 %v4420, %v4435
    %v4441 = vsub.f32 %v4425, %v4438
    %v4442 = vmul.f32 %v4439, 1.442695
    %v4443 = vpow.pop %v4442
    %v4444 = vmul.f32 %v4440, 1.442695
    %v4445 = vpow.pop %v4444
    %v4446 = vmul.f32 %v4441, 1.442695
    %v4447 = vpow.pop %v4446
    %v4448 = vsel %vm842, %v4443, 0.0
    %4449 = vadd.xlane.f32.xlu0 %v4448
    %v4450 = vpop.xlane.xlu0 %4449
    %v4451 = vsel %vm842, %v4445, 0.0
    %4452 = vadd.xlane.f32.xlu0 %v4451
    %v4453 = vpop.xlane.xlu0 %4452
    %v4454 = vsel %vm842, %v4447, 0.0
    %4455 = vadd.xlane.f32.xlu0 %v4454
    %v4456 = vpop.xlane.xlu0 %4455
    %v4457 = vrcp.pop %v4450
    %v4458 = vrcp.pop %v4453
    %v4459 = vrcp.pop %v4456
    %v4460 = vmul.f32 %v4443, %v4457
    %v4461 = vmul.f32 %v4445, %v4458
    %v4462 = vmul.f32 %v4447, %v4459
    %v4463 = vpack.c.bf16 %v4461, %v4460
    %v4464 = vpack.c.bf16 %v4462, %v4462
    %4465 = vrot.lane.b32.xlu0 %v3891, 40
    %v4466 = vpop.permute.xlu0 %4465
    %4467 = vrot.lane.b32.xlu0 %v3892, 40
    %v4468 = vpop.permute.xlu0 %4467
    %v4471 = vsel %vm842, %v4463, 0
    %v4474 = vsel %vm842, %v4464, 0
    %v4477 = vsel %vm790, %v4468, 0
    %4479 = vmatprep.subr.bf16.mxu0 0
    %4480 = vmatpush1.bf16.msra.mxu0 %v4466
    %4481 = vmatprep.subr.bf16.mxu0 0
    %4482 = vmatpush1.bf16.msra.mxu0 %v4477
    %4483 = vmatprep.subr.bf16.mxu0 0
    %4484 = vmatpush1.bf16.msra.mxu0 0
    %4485 = vmatprep.subr.bf16.mxu0 0
    %4486 = vmatpush1.bf16.msra.mxu0 0
    %4487 = vmatprep.subr.bf16.mxu0 0
    %4488 = vmatpush1.bf16.msra.mxu0 0
    %4489 = vmatprep.subr.bf16.mxu0 0
    %4490 = vmatpush1.bf16.msra.mxu0 0
    %4491 = vmatprep.subr.bf16.mxu0 0
    %4492 = vmatpush1.bf16.msra.mxu0 0
    %4493 = vmatprep.subr.bf16.mxu0 0
    %4494 = vmatpush1.bf16.msra.mxu0 0
    %4495 = vmatprep.subr.bf16.mxu0 0
    %4496 = vmatpush1.bf16.msra.mxu0 0
    %4497 = vmatprep.subr.bf16.mxu0 0
    %4498 = vmatpush1.bf16.msra.mxu0 0
    %4499 = vmatprep.subr.bf16.mxu0 0
    %4500 = vmatpush1.bf16.msra.mxu0 0
    %4501 = vmatprep.subr.bf16.mxu0 0
    %4502 = vmatpush1.bf16.msra.mxu0 0
    %4503 = vmatprep.subr.bf16.mxu0 0
    %4504 = vmatpush1.bf16.msra.mxu0 0
    %4505 = vmatprep.subr.bf16.mxu0 0
    %4506 = vmatpush1.bf16.msra.mxu0 0
    %4507 = vmatprep.subr.bf16.mxu0 0
    %4508 = vmatpush1.bf16.msra.mxu0 0
    %4509 = vmatprep.subr.bf16.mxu0 0
    %4510 = vmatpush1.bf16.msra.mxu0 0
    %4511 = vmatprep.mubr.bf16.mxu0 0
    %4512 = vmatmul.mubr.bf16.gmra.mrb[0].mxu0 %v4471
    %v4513 = vpop.f32.mrb[0].mxu0
    %v4514 = vadd.f32 0.0, %v4513
    %v4515 = vpop.f32.mrb[0].mxu0
    %v4516 = vpop.f32.mrb[0].mxu0
    %v4517 = vadd.f32 0.0, %v4516
    %v4518 = vpop.f32.mrb[0].mxu0
    %4519 = vmatprep.mubr.bf16.mxu0 0
    %4520 = vmatmul.mubr.bf16.gmra.mrb[0].mxu0 %v4474
    %v4521 = vpop.f32.mrb[0].mxu0
    %v4522 = vadd.f32 0.0, %v4521
    %v4523 = vpop.f32.mrb[0].mxu0
    %v4524 = vpop.f32.mrb[0].mxu0
    %v4525 = vpop.f32.mrb[0].mxu0
    %4526 = vdwg.mxu0
    %4530 = vrot.lane.b32.xlu0 %v4196, 8
    %v4531 = vpop.permute.xlu0 %4530
    %4532 = vrot.lane.b32.xlu0 %v4199, 8
    %v4533 = vpop.permute.xlu0 %4532
    %4534 = vrot.lane.b32.xlu0 %v4204, 8
    %v4535 = vpop.permute.xlu0 %4534
    %4542 = vrot.lane.b32.xlu0 %v4355, 16
    %v4543 = vpop.permute.xlu0 %4542
    %4544 = vrot.lane.b32.xlu0 %v4358, 16
    %v4545 = vpop.permute.xlu0 %4544
    %4546 = vrot.lane.b32.xlu0 %v4363, 16
    %v4547 = vpop.permute.xlu0 %4546
    %4554 = vrot.lane.b32.xlu0 %v4514, 24
    %v4555 = vpop.permute.xlu0 %4554
    %4556 = vrot.lane.b32.xlu0 %v4517, 24
    %v4557 = vpop.permute.xlu0 %4556
    %4558 = vrot.lane.b32.xlu0 %v4522, 24
    %v4559 = vpop.permute.xlu0 %4558
    %v4563 = vsel %vm525, %v4037, %v4531
    %v4564 = vsel %vm525, %v4040, %v4533
    %v4565 = vsel %vm525, %v4045, %v4535
    %v4566 = vsel %vm1458, %v4563, %v4543
    %v4567 = vsel %vm1458, %v4564, %v4545
    %v4568 = vsel %vm1458, %v4565, %v4547
    %v4569 = vsel %vm842, %v4566, %v4555
    %v4570 = vsel %vm842, %v4567, %v4557
    %v4571 = vsel %vm842, %v4568, %v4559
    %v4572 = vld [vmem:[#allocation2 + $0x400] sm:$0xf]
    %v4573 = vld [vmem:[#allocation2 + $0x404] sm:$0xf]
    %v4574 = vld [vmem:[#allocation2 + $0x408] sm:$0xf]
    %v4575 = vld [vmem:[#allocation2 + $0x40c] sm:$0xf]
    %v4576 = vpack.c.bf16 %v4570, %v4569
    %v4577 = vpack.c.bf16 %v4571, %v4571
    %v4578 = vld [vmem:[%s1 + $0x19] sm:$0x1]
    %v4579 = vlaneseq
    %v4580 = vshrl.u32 %v4579, 7
    %v4581 = vsub.s32 0, %v4580
    %v4582 = vrot.slane %v4578, %v4581
    %v4587 = vunpack.c.l.b16 %v4572
    %v4588 = vunpack.c.l.b16 %v4573
    %v4589 = vunpack.c.l.b16 %v4574
    %v4590 = vunpack.c.l.b16 %v4575
    %v4591 = vpack.c.b16 %v4588, %v4587
    %v4592 = vpack.c.b16 %v4590, %v4589
    %v4596 = vsel %vm1488, %v4576, 0
    %v4599 = vsel %vm1488, %v4577, 0
    %4601 = vmatprep.subr.bf16.mxu0 0
    %4602 = vmatpush1.bf16.msra.mxu0 %v4591
    %4603 = vmatprep.subr.bf16.mxu0 0
    %4604 = vmatpush1.bf16.msra.mxu0 %v4592
    %4605 = vmatprep.subr.bf16.mxu0 0
    %4606 = vmatpush1.bf16.msra.mxu0 0
    %4607 = vmatprep.subr.bf16.mxu0 0
    %4608 = vmatpush1.bf16.msra.mxu0 0
    %4609 = vmatprep.subr.bf16.mxu0 0
    %4610 = vmatpush1.bf16.msra.mxu0 0
    %4611 = vmatprep.subr.bf16.mxu0 0
    %4612 = vmatpush1.bf16.msra.mxu0 0
    %4613 = vmatprep.subr.bf16.mxu0 0
    %4614 = vmatpush1.bf16.msra.mxu0 0
    %4615 = vmatprep.subr.bf16.mxu0 0
    %4616 = vmatpush1.bf16.msra.mxu0 0
    %4617 = vmatprep.subr.bf16.mxu0 0
    %4618 = vmatpush1.bf16.msra.mxu0 0
    %4619 = vmatprep.subr.bf16.mxu0 0
    %4620 = vmatpush1.bf16.msra.mxu0 0
    %4621 = vmatprep.subr.bf16.mxu0 0
    %4622 = vmatpush1.bf16.msra.mxu0 0
    %4623 = vmatprep.subr.bf16.mxu0 0
    %4624 = vmatpush1.bf16.msra.mxu0 0
    %4625 = vmatprep.subr.bf16.mxu0 0
    %4626 = vmatpush1.bf16.msra.mxu0 0
    %4627 = vmatprep.subr.bf16.mxu0 0
    %4628 = vmatpush1.bf16.msra.mxu0 0
    %4629 = vmatprep.subr.bf16.mxu0 0
    %4630 = vmatpush1.bf16.msra.mxu0 0
    %4631 = vmatprep.subr.bf16.mxu0 0
    %4632 = vmatpush1.bf16.msra.mxu0 0
    %4633 = vmatprep.mubr.bf16.mxu0 0
    %4634 = vmatmul.mubr.bf16.gmra.mrb[0].mxu0 %v4596
    %v4635 = vpop.f32.mrb[0].mxu0
    %v4636 = vadd.f32 %v4582, %v4635
    %v4637 = vpop.f32.mrb[0].mxu0
    %v4638 = vpop.f32.mrb[0].mxu0
    %v4639 = vadd.f32 %v4582, %v4638
    %v4640 = vpop.f32.mrb[0].mxu0
    %4641 = vmatprep.mubr.bf16.mxu0 0
    %4642 = vmatmul.mubr.bf16.gmra.mrb[0].mxu0 %v4599
    %v4643 = vpop.f32.mrb[0].mxu0
    %v4644 = vadd.f32 %v4582, %v4643
    %v4645 = vpop.f32.mrb[0].mxu0
    %v4646 = vpop.f32.mrb[0].mxu0
    %v4647 = vpop.f32.mrb[0].mxu0
    %4648 = vdwg.mxu0
    %v4649 = vadd.f32 %v3725, %v4636
    %v4650 = vadd.f32 %v3726, %v4639
    %v4651 = vadd.f32 %v3727, %v4644
    %4652 = vadd.xlane.f32.xlu0 %v4649
    %v4653 = vpop.xlane.xlu0 %4652
    %4654 = vadd.xlane.f32.xlu0 %v4650
    %v4655 = vpop.xlane.xlu0 %4654
    %4656 = vadd.xlane.f32.xlu0 %v4651
    %v4657 = vpop.xlane.xlu0 %4656
    %v4658 = vmul.f32 %v4653, 0.03125
    %v4659 = vmul.f32 %v4655, 0.03125
    %v4660 = vmul.f32 %v4657, 0.03125
    %v4661 = vmul.f32 %v4649, %v4649
    %v4662 = vmul.f32 %v4650, %v4650
    %v4663 = vmul.f32 %v4651, %v4651
    %4664 = vadd.xlane.f32.xlu0 %v4661
    %v4665 = vpop.xlane.xlu0 %4664
    %4666 = vadd.xlane.f32.xlu0 %v4662
    %v4667 = vpop.xlane.xlu0 %4666
    %4668 = vadd.xlane.f32.xlu0 %v4663
    %v4669 = vpop.xlane.xlu0 %4668
    %v4670 = vmul.f32 %v4665, 0.03125
    %v4671 = vmul.f32 %v4667, 0.03125
    %v4672 = vmul.f32 %v4669, 0.03125
    %v4673 = vsub.f32 %v4649, %v4658
    %v4674 = vsub.f32 %v4650, %v4659
    %v4675 = vsub.f32 %v4651, %v4660
    %v4676 = vmul.f32 %v4658, %v4658
    %v4677 = vmul.f32 %v4659, %v4659
    %v4678 = vmul.f32 %v4660, %v4660
    %v4679 = vsub.f32 %v4670, %v4676
    %v4680 = vsub.f32 %v4671, %v4677
    %v4681 = vsub.f32 %v4672, %v4678
    %v4682 = vadd.f32 %v4679, 1e-05
    %v4683 = vadd.f32 %v4680, 1e-05
    %v4684 = vadd.f32 %v4681, 1e-05
    %v4685 = vrsqrt.pop %v4682
    %v4686 = vrsqrt.pop %v4683
    %v4687 = vrsqrt.pop %v4684
    %v4688 = vmul.f32 %v4673, %v4685
    %v4689 = vmul.f32 %v4674, %v4686
    %v4690 = vmul.f32 %v4675, %v4687
    %v4691 = vld [vmem:[%s1 + $0x1a] sm:$0x1]
    %v4692 = vlaneseq
    %v4693 = vshrl.u32 %v4692, 7
    %v4694 = vsub.s32 0, %v4693
    %v4695 = vrot.slane %v4691, %v4694
    %v4696 = vmul.f32 %v4688, %v4695
    %v4697 = vmul.f32 %v4689, %v4695
    %v4698 = vmul.f32 %v4690, %v4695
    %v4699 = vld [vmem:[%s1 + $0x1b] sm:$0x1]
    %v4700 = vlaneseq
    %v4701 = vshrl.u32 %v4700, 7
    %v4702 = vsub.s32 0, %v4701
    %v4703 = vrot.slane %v4699, %v4702
    %v4704 = vadd.f32 %v4696, %v4703
    %v4705 = vadd.f32 %v4697, %v4703
    %v4706 = vadd.f32 %v4698, %v4703
    %v4707 = vld [vmem:[#allocation2 + $0x440] sm:$0xf]
    %v4708 = vld [vmem:[#allocation2 + $0x444] sm:$0xf]
    %v4709 = vld [vmem:[#allocation2 + $0x448] sm:$0xf]
    %v4710 = vld [vmem:[#allocation2 + $0x44c] sm:$0xf]
    %v4711 = vld [vmem:[#allocation2 + $0x450] sm:$0xf]
    %v4712 = vld [vmem:[#allocation2 + $0x454] sm:$0xf]
    %v4713 = vld [vmem:[#allocation2 + $0x458] sm:$0xf]
    %v4714 = vld [vmem:[#allocation2 + $0x45c] sm:$0xf]
    %v4715 = vld [vmem:[#allocation2 + $0x460] sm:$0xf]
    %v4716 = vld [vmem:[#allocation2 + $0x464] sm:$0xf]
    %v4717 = vld [vmem:[#allocation2 + $0x468] sm:$0xf]
    %v4718 = vld [vmem:[#allocation2 + $0x46c] sm:$0xf]
    %v4719 = vld [vmem:[#allocation2 + $0x470] sm:$0xf]
    %v4720 = vld [vmem:[#allocation2 + $0x474] sm:$0xf]
    %v4721 = vld [vmem:[#allocation2 + $0x478] sm:$0xf]
    %v4722 = vld [vmem:[#allocation2 + $0x47c] sm:$0xf]
    %v4723 = vpack.c.bf16 %v3712, %v3712
    %v4724 = vld [vmem:[%s1 + $0x1c] sm:$0x1]
    %v4725 = vlaneseq
    %v4726 = vshrl.u32 %v4725, 7
    %v4727 = vsub.s32 0, %v4726
    %v4728 = vrot.slane %v4724, %v4727
    %v4745 = vunpack.c.l.b16 %v4707
    %v4746 = vunpack.c.l.b16 %v4708
    %v4747 = vunpack.c.l.b16 %v4709
    %v4748 = vunpack.c.l.b16 %v4710
    %v4749 = vunpack.c.l.b16 %v4711
    %v4750 = vunpack.c.l.b16 %v4712
    %v4751 = vunpack.c.l.b16 %v4713
    %v4752 = vunpack.c.l.b16 %v4714
    %v4753 = vunpack.c.l.b16 %v4715
    %v4754 = vunpack.c.l.b16 %v4716
    %v4755 = vunpack.c.l.b16 %v4717
    %v4756 = vunpack.c.l.b16 %v4718
    %v4757 = vunpack.c.l.b16 %v4719
    %v4758 = vunpack.c.l.b16 %v4720
    %v4759 = vunpack.c.l.b16 %v4721
    %v4760 = vunpack.c.l.b16 %v4722
    %v4761 = vpack.c.b16 %v4746, %v4745
    %v4762 = vpack.c.b16 %v4748, %v4747
    %v4763 = vpack.c.b16 %v4750, %v4749
    %v4764 = vpack.c.b16 %v4752, %v4751
    %v4765 = vpack.c.b16 %v4754, %v4753
    %v4766 = vpack.c.b16 %v4756, %v4755
    %v4767 = vpack.c.b16 %v4758, %v4757
    %v4768 = vpack.c.b16 %v4760, %v4759
    %4777 = vmatprep.subr.bf16.mxu0 0
    %4778 = vmatpush1.bf16.msra.mxu0 %v4761
    %4779 = vmatprep.subr.bf16.mxu0 0
    %4780 = vmatpush1.bf16.msra.mxu0 %v4762
    %4781 = vmatprep.subr.bf16.mxu0 0
    %4782 = vmatpush1.bf16.msra.mxu0 %v4763
    %4783 = vmatprep.subr.bf16.mxu0 0
    %4784 = vmatpush1.bf16.msra.mxu0 %v4764
    %4785 = vmatprep.subr.bf16.mxu0 0
    %4786 = vmatpush1.bf16.msra.mxu0 %v4765
    %4787 = vmatprep.subr.bf16.mxu0 0
    %4788 = vmatpush1.bf16.msra.mxu0 %v4766
    %4789 = vmatprep.subr.bf16.mxu0 0
    %4790 = vmatpush1.bf16.msra.mxu0 %v4767
    %4791 = vmatprep.subr.bf16.mxu0 0
    %4792 = vmatpush1.bf16.msra.mxu0 %v4768
    %4793 = vmatprep.subr.bf16.mxu0 0
    %4794 = vmatpush1.bf16.msra.mxu0 0
    %4795 = vmatprep.subr.bf16.mxu0 0
    %4796 = vmatpush1.bf16.msra.mxu0 0
    %4797 = vmatprep.subr.bf16.mxu0 0
    %4798 = vmatpush1.bf16.msra.mxu0 0
    %4799 = vmatprep.subr.bf16.mxu0 0
    %4800 = vmatpush1.bf16.msra.mxu0 0
    %4801 = vmatprep.subr.bf16.mxu0 0
    %4802 = vmatpush1.bf16.msra.mxu0 0
    %4803 = vmatprep.subr.bf16.mxu0 0
    %4804 = vmatpush1.bf16.msra.mxu0 0
    %4805 = vmatprep.subr.bf16.mxu0 0
    %4806 = vmatpush1.bf16.msra.mxu0 0
    %4807 = vmatprep.subr.bf16.mxu0 0
    %4808 = vmatpush1.bf16.msra.mxu0 0
    %4809 = vmatprep.mubr.bf16.mxu0 0
    %4810 = vmatmul.mubr.bf16.gmra.mrb[0].mxu0 %v4723
    %v4811 = vpop.f32.mrb[0].mxu0
    %v4812 = vadd.f32 %v4728, %v4811
    %v4813 = vpop.f32.mrb[0].mxu0
    %v4814 = vpop.f32.mrb[0].mxu0
    %v4815 = vpop.f32.mrb[0].mxu0
    %4816 = vdwg.mxu0
    %v4817 = vld [vmem:[#allocation2 + $0x480] sm:$0xf]
    %v4818 = vld [vmem:[#allocation2 + $0x484] sm:$0xf]
    %v4819 = vld [vmem:[#allocation2 + $0x488] sm:$0xf]
    %v4820 = vld [vmem:[#allocation2 + $0x48c] sm:$0xf]
    %v4821 = vld [vmem:[#allocation2 + $0x490] sm:$0xf]
    %v4822 = vld [vmem:[#allocation2 + $0x494] sm:$0xf]
    %v4823 = vld [vmem:[#allocation2 + $0x498] sm:$0xf]
    %v4824 = vld [vmem:[#allocation2 + $0x49c] sm:$0xf]
    %v4825 = vld [vmem:[#allocation2 + $0x4a0] sm:$0xf]
    %v4826 = vld [vmem:[#allocation2 + $0x4a4] sm:$0xf]
    %v4827 = vld [vmem:[#allocation2 + $0x4a8] sm:$0xf]
    %v4828 = vld [vmem:[#allocation2 + $0x4ac] sm:$0xf]
    %v4829 = vld [vmem:[#allocation2 + $0x4b0] sm:$0xf]
    %v4830 = vld [vmem:[#allocation2 + $0x4b4] sm:$0xf]
    %v4831 = vld [vmem:[#allocation2 + $0x4b8] sm:$0xf]
    %v4832 = vld [vmem:[#allocation2 + $0x4bc] sm:$0xf]
    %v4833 = vpack.c.bf16 %v4812, %v4812
    %v4834 = vld [vmem:[%s1 + $0x1d] sm:$0x1]
    %v4835 = vlaneseq
    %v4836 = vshrl.u32 %v4835, 7
    %v4837 = vsub.s32 0, %v4836
    %v4838 = vrot.slane %v4834, %v4837
    %v4855 = vunpack.c.l.b16 %v4817
    %v4856 = vunpack.c.l.b16 %v4818
    %v4857 = vunpack.c.l.b16 %v4819
    %v4858 = vunpack.c.l.b16 %v4820
    %v4859 = vunpack.c.l.b16 %v4821
    %v4860 = vunpack.c.l.b16 %v4822
    %v4861 = vunpack.c.l.b16 %v4823
    %v4862 = vunpack.c.l.b16 %v4824
    %v4863 = vunpack.c.l.b16 %v4825
    %v4864 = vunpack.c.l.b16 %v4826
    %v4865 = vunpack.c.l.b16 %v4827
    %v4866 = vunpack.c.l.b16 %v4828
    %v4867 = vunpack.c.l.b16 %v4829
    %v4868 = vunpack.c.l.b16 %v4830
    %v4869 = vunpack.c.l.b16 %v4831
    %v4870 = vunpack.c.l.b16 %v4832
    %v4871 = vpack.c.b16 %v4856, %v4855
    %v4872 = vpack.c.b16 %v4858, %v4857
    %v4873 = vpack.c.b16 %v4860, %v4859
    %v4874 = vpack.c.b16 %v4862, %v4861
    %v4875 = vpack.c.b16 %v4864, %v4863
    %v4876 = vpack.c.b16 %v4866, %v4865
    %v4877 = vpack.c.b16 %v4868, %v4867
    %v4878 = vpack.c.b16 %v4870, %v4869
    %4887 = vmatprep.subr.bf16.mxu0 0
    %4888 = vmatpush1.bf16.msra.mxu0 %v4871
    %4889 = vmatprep.subr.bf16.mxu0 0
    %4890 = vmatpush1.bf16.msra.mxu0 %v4872
    %4891 = vmatprep.subr.bf16.mxu0 0
    %4892 = vmatpush1.bf16.msra.mxu0 %v4873
    %4893 = vmatprep.subr.bf16.mxu0 0
    %4894 = vmatpush1.bf16.msra.mxu0 %v4874
    %4895 = vmatprep.subr.bf16.mxu0 0
    %4896 = vmatpush1.bf16.msra.mxu0 %v4875
    %4897 = vmatprep.subr.bf16.mxu0 0
    %4898 = vmatpush1.bf16.msra.mxu0 %v4876
    %4899 = vmatprep.subr.bf16.mxu0 0
    %4900 = vmatpush1.bf16.msra.mxu0 %v4877
    %4901 = vmatprep.subr.bf16.mxu0 0
    %4902 = vmatpush1.bf16.msra.mxu0 %v4878
    %4903 = vmatprep.subr.bf16.mxu0 0
    %4904 = vmatpush1.bf16.msra.mxu0 0
    %4905 = vmatprep.subr.bf16.mxu0 0
    %4906 = vmatpush1.bf16.msra.mxu0 0
    %4907 = vmatprep.subr.bf16.mxu0 0
    %4908 = vmatpush1.bf16.msra.mxu0 0
    %4909 = vmatprep.subr.bf16.mxu0 0
    %4910 = vmatpush1.bf16.msra.mxu0 0
    %4911 = vmatprep.subr.bf16.mxu0 0
    %4912 = vmatpush1.bf16.msra.mxu0 0
    %4913 = vmatprep.subr.bf16.mxu0 0
    %4914 = vmatpush1.bf16.msra.mxu0 0
    %4915 = vmatprep.subr.bf16.mxu0 0
    %4916 = vmatpush1.bf16.msra.mxu0 0
    %4917 = vmatprep.subr.bf16.mxu0 0
    %4918 = vmatpush1.bf16.msra.mxu0 0
    %4919 = vmatprep.mubr.bf16.mxu0 0
    %4920 = vmatmul.mubr.bf16.gmra.mrb[0].mxu0 %v4833
    %v4921 = vpop.f32.mrb[0].mxu0
    %v4922 = vadd.f32 %v4838, %v4921
    %v4923 = vpop.f32.mrb[0].mxu0
    %v4924 = vpop.f32.mrb[0].mxu0
    %v4925 = vpop.f32.mrb[0].mxu0
    %4926 = vdwg.mxu0
    %v4928 = vsel %vm525, %v133, 0
    %v4931 = vsel %vm525, %v134, 0
    %v4934 = vsel %vm525, %v135, 0
    %4936 = vmatprep.subr.mxu0 0.0
    %4937 = vmatpush1.msra.mxu0 %v4922
    %4938 = vmatprep.subr.mxu0 0.0
    %4939 = vmatpush1.msra.mxu0 0.0
    %4940 = vmatprep.subr.mxu0 0.0
    %4941 = vmatpush1.msra.mxu0 0.0
    %4942 = vmatprep.subr.mxu0 0.0
    %4943 = vmatpush1.msra.mxu0 0.0
    %4944 = vmatprep.subr.mxu0 0.0
    %4945 = vmatpush1.msra.mxu0 0.0
    %4946 = vmatprep.subr.mxu0 0.0
    %4947 = vmatpush1.msra.mxu0 0.0
    %4948 = vmatprep.subr.mxu0 0.0
    %4949 = vmatpush1.msra.mxu0 0.0
    %4950 = vmatprep.subr.mxu0 0.0
    %4951 = vmatpush1.msra.mxu0 0.0
    %4952 = vmatprep.subr.mxu0 0.0
    %4953 = vmatpush1.msra.mxu0 0.0
    %4954 = vmatprep.subr.mxu0 0.0
    %4955 = vmatpush1.msra.mxu0 0.0
    %4956 = vmatprep.subr.mxu0 0.0
    %4957 = vmatpush1.msra.mxu0 0.0
    %4958 = vmatprep.subr.mxu0 0.0
    %4959 = vmatpush1.msra.mxu0 0.0
    %4960 = vmatprep.subr.mxu0 0.0
    %4961 = vmatpush1.msra.mxu0 0.0
    %4962 = vmatprep.subr.mxu0 0.0
    %4963 = vmatpush1.msra.mxu0 0.0
    %4964 = vmatprep.subr.mxu0 0.0
    %4965 = vmatpush1.msra.mxu0 0.0
    %4966 = vmatprep.subr.mxu0 0.0
    %4967 = vmatpush1.msra.mxu0 0.0
    %4968 = vmatprep.subr.mxu0 0.0
    %4969 = vmatpush1.msra.mxu0 0.0
    %4970 = vmatprep.subr.mxu0 0.0
    %4971 = vmatpush1.msra.mxu0 0.0
    %4972 = vmatprep.subr.mxu0 0.0
    %4973 = vmatpush1.msra.mxu0 0.0
    %4974 = vmatprep.subr.mxu0 0.0
    %4975 = vmatpush1.msra.mxu0 0.0
    %4976 = vmatprep.subr.mxu0 0.0
    %4977 = vmatpush1.msra.mxu0 0.0
    %4978 = vmatprep.subr.mxu0 0.0
    %4979 = vmatpush1.msra.mxu0 0.0
    %4980 = vmatprep.subr.mxu0 0.0
    %4981 = vmatpush1.msra.mxu0 0.0
    %4982 = vmatprep.subr.mxu0 0.0
    %4983 = vmatpush1.msra.mxu0 0.0
    %4984 = vmatprep.subr.mxu0 0.0
    %4985 = vmatpush1.msra.mxu0 0.0
    %4986 = vmatprep.subr.mxu0 0.0
    %4987 = vmatpush1.msra.mxu0 0.0
    %4988 = vmatprep.subr.mxu0 0.0
    %4989 = vmatpush1.msra.mxu0 0.0
    %4990 = vmatprep.subr.mxu0 0.0
    %4991 = vmatpush1.msra.mxu0 0.0
    %4992 = vmatprep.subr.mxu0 0.0
    %4993 = vmatpush1.msra.mxu0 0.0
    %4994 = vmatprep.subr.mxu0 0.0
    %4995 = vmatpush1.msra.mxu0 0.0
    %4996 = vmatprep.subr.mxu0 0.0
    %4997 = vmatpush1.msra.mxu0 0.0
    %4998 = vmatprep.subr.mxu0 0.0
    %4999 = vmatpush1.msra.mxu0 0.0
    %5000 = vmatprep.mubr.f32.mxu0 0.0
    %5001 = vmatmul.mubr.f32.gmra.mrb[0].mxu0 %v4928
    %v5002 = vpop.f32.mrb[0].mxu0
    %v5003 = vadd.f32 0.0, %v5002
    %v5004 = vpop.f32.mrb[0].mxu0
    %5005 = vmatprep.mubr.f32.mxu0 0.0
    %5006 = vmatmul.mubr.f32.gmra.mrb[0].mxu0 %v4931
    %v5007 = vpop.f32.mrb[0].mxu0
    %v5008 = vadd.f32 0.0, %v5007
    %v5009 = vpop.f32.mrb[0].mxu0
    %5010 = vmatprep.mubr.f32.mxu0 0.0
    %5011 = vmatmul.mubr.f32.gmra.mrb[0].mxu0 %v4934
    %v5012 = vpop.f32.mrb[0].mxu0
    %v5013 = vadd.f32 0.0, %v5012
    %v5014 = vpop.f32.mrb[0].mxu0
    %5015 = vdwg.mxu0
    %v5016 = vadd.f32 %v4704, %v5003
    %v5017 = vadd.f32 %v4705, %v5008
    %v5018 = vadd.f32 %v4706, %v5013
    %5019 = vadd.xlane.f32.xlu0 %v5016
    %v5020 = vpop.xlane.xlu0 %5019
    %5021 = vadd.xlane.f32.xlu0 %v5017
    %v5022 = vpop.xlane.xlu0 %5021
    %5023 = vadd.xlane.f32.xlu0 %v5018
    %v5024 = vpop.xlane.xlu0 %5023
    %v5025 = vmul.f32 %v5020, 0.03125
    %v5026 = vmul.f32 %v5022, 0.03125
    %v5027 = vmul.f32 %v5024, 0.03125
    %v5028 = vmul.f32 %v5016, %v5016
    %v5029 = vmul.f32 %v5017, %v5017
    %v5030 = vmul.f32 %v5018, %v5018
    %5031 = vadd.xlane.f32.xlu0 %v5028
    %v5032 = vpop.xlane.xlu0 %5031
    %5033 = vadd.xlane.f32.xlu0 %v5029
    %v5034 = vpop.xlane.xlu0 %5033
    %5035 = vadd.xlane.f32.xlu0 %v5030
    %v5036 = vpop.xlane.xlu0 %5035
    %v5037 = vmul.f32 %v5032, 0.03125
    %v5038 = vmul.f32 %v5034, 0.03125
    %v5039 = vmul.f32 %v5036, 0.03125
    %v5040 = vsub.f32 %v5016, %v5025
    %v5041 = vsub.f32 %v5017, %v5026
    %v5042 = vsub.f32 %v5018, %v5027
    %v5043 = vmul.f32 %v5025, %v5025
    %v5044 = vmul.f32 %v5026, %v5026
    %v5045 = vmul.f32 %v5027, %v5027
    %v5046 = vsub.f32 %v5037, %v5043
    %v5047 = vsub.f32 %v5038, %v5044
    %v5048 = vsub.f32 %v5039, %v5045
    %v5049 = vadd.f32 %v5046, 1e-05
    %v5050 = vadd.f32 %v5047, 1e-05
    %v5051 = vadd.f32 %v5048, 1e-05
    %v5052 = vrsqrt.pop %v5049
    %v5053 = vrsqrt.pop %v5050
    %v5054 = vrsqrt.pop %v5051
    %v5055 = vmul.f32 %v5040, %v5052
    %v5056 = vmul.f32 %v5041, %v5053
    %v5057 = vmul.f32 %v5042, %v5054
    %v5058 = vld [vmem:[%s1 + $0x1e] sm:$0x1]
    %v5059 = vlaneseq
    %v5060 = vshrl.u32 %v5059, 7
    %v5061 = vsub.s32 0, %v5060
    %v5062 = vrot.slane %v5058, %v5061
    %v5063 = vmul.f32 %v5055, %v5062
    %v5064 = vmul.f32 %v5056, %v5062
    %v5065 = vmul.f32 %v5057, %v5062
    %v5066 = vld [vmem:[%s1 + $0x1f] sm:$0x1]
    %v5067 = vlaneseq
    %v5068 = vshrl.u32 %v5067, 7
    %v5069 = vsub.s32 0, %v5068
    %v5070 = vrot.slane %v5066, %v5069
    %v5071 = vadd.f32 %v5063, %v5070
    %v5072 = vadd.f32 %v5064, %v5070
    %v5073 = vadd.f32 %v5065, %v5070
    %v5074 = vld [vmem:[#allocation2 + $0x4c0] sm:$0xf]
    %v5075 = vld [vmem:[#allocation2 + $0x4c4] sm:$0xf]
    %v5076 = vld [vmem:[#allocation2 + $0x4c8] sm:$0xf]
    %v5077 = vld [vmem:[#allocation2 + $0x4cc] sm:$0xf]
    %v5078 = vld [vmem:[#allocation2 + $0x4d0] sm:$0xf]
    %v5079 = vld [vmem:[#allocation2 + $0x4d4] sm:$0xf]
    %v5080 = vld [vmem:[#allocation2 + $0x4d8] sm:$0xf]
    %v5081 = vld [vmem:[#allocation2 + $0x4dc] sm:$0xf]
    %v5082 = vld [vmem:[#allocation2 + $0x4e0] sm:$0xf]
    %v5083 = vld [vmem:[#allocation2 + $0x4e4] sm:$0xf]
    %v5084 = vld [vmem:[#allocation2 + $0x4e8] sm:$0xf]
    %v5085 = vld [vmem:[#allocation2 + $0x4ec] sm:$0xf]
    %v5086 = vld [vmem:[#allocation2 + $0x4f0] sm:$0xf]
    %v5087 = vld [vmem:[#allocation2 + $0x4f4] sm:$0xf]
    %v5088 = vld [vmem:[#allocation2 + $0x4f8] sm:$0xf]
    %v5089 = vld [vmem:[#allocation2 + $0x4fc] sm:$0xf]
    %v5090 = vpack.c.bf16 %v5072, %v5071
    %v5091 = vpack.c.bf16 %v5073, %v5073
    %v5092 = vld [vmem:[%s1 + $0x20] sm:$0x1]
    %v5093 = vlaneseq
    %v5094 = vshrl.u32 %v5093, 7
    %v5095 = vsub.s32 0, %v5094
    %v5096 = vrot.slane %v5092, %v5095
    %v5113 = vunpack.c.l.b16 %v5074
    %v5114 = vunpack.c.l.b16 %v5075
    %v5115 = vunpack.c.l.b16 %v5076
    %v5116 = vunpack.c.l.b16 %v5077
    %v5117 = vunpack.c.l.b16 %v5078
    %v5118 = vunpack.c.l.b16 %v5079
    %v5119 = vunpack.c.l.b16 %v5080
    %v5120 = vunpack.c.l.b16 %v5081
    %v5121 = vunpack.c.l.b16 %v5082
    %v5122 = vunpack.c.l.b16 %v5083
    %v5123 = vunpack.c.l.b16 %v5084
    %v5124 = vunpack.c.l.b16 %v5085
    %v5125 = vunpack.c.l.b16 %v5086
    %v5126 = vunpack.c.l.b16 %v5087
    %v5127 = vunpack.c.l.b16 %v5088
    %v5128 = vunpack.c.l.b16 %v5089
    %v5129 = vpack.c.b16 %v5114, %v5113
    %v5130 = vpack.c.b16 %v5116, %v5115
    %v5131 = vpack.c.b16 %v5118, %v5117
    %v5132 = vpack.c.b16 %v5120, %v5119
    %v5133 = vpack.c.b16 %v5122, %v5121
    %v5134 = vpack.c.b16 %v5124, %v5123
    %v5135 = vpack.c.b16 %v5126, %v5125
    %v5136 = vpack.c.b16 %v5128, %v5127
    %5145 = vmatprep.subr.bf16.mxu0 0
    %5146 = vmatpush1.bf16.msra.mxu0 %v5129
    %5147 = vmatprep.subr.bf16.mxu0 0
    %5148 = vmatpush1.bf16.msra.mxu0 %v5130
    %5149 = vmatprep.subr.bf16.mxu0 0
    %5150 = vmatpush1.bf16.msra.mxu0 %v5131
    %5151 = vmatprep.subr.bf16.mxu0 0
    %5152 = vmatpush1.bf16.msra.mxu0 %v5132
    %5153 = vmatprep.subr.bf16.mxu0 0
    %5154 = vmatpush1.bf16.msra.mxu0 %v5133
    %5155 = vmatprep.subr.bf16.mxu0 0
    %5156 = vmatpush1.bf16.msra.mxu0 %v5134
    %5157 = vmatprep.subr.bf16.mxu0 0
    %5158 = vmatpush1.bf16.msra.mxu0 %v5135
    %5159 = vmatprep.subr.bf16.mxu0 0
    %5160 = vmatpush1.bf16.msra.mxu0 %v5136
    %5161 = vmatprep.subr.bf16.mxu0 0
    %5162 = vmatpush1.bf16.msra.mxu0 0
    %5163 = vmatprep.subr.bf16.mxu0 0
    %5164 = vmatpush1.bf16.msra.mxu0 0
    %5165 = vmatprep.subr.bf16.mxu0 0
    %5166 = vmatpush1.bf16.msra.mxu0 0
    %5167 = vmatprep.subr.bf16.mxu0 0
    %5168 = vmatpush1.bf16.msra.mxu0 0
    %5169 = vmatprep.subr.bf16.mxu0 0
    %5170 = vmatpush1.bf16.msra.mxu0 0
    %5171 = vmatprep.subr.bf16.mxu0 0
    %5172 = vmatpush1.bf16.msra.mxu0 0
    %5173 = vmatprep.subr.bf16.mxu0 0
    %5174 = vmatpush1.bf16.msra.mxu0 0
    %5175 = vmatprep.subr.bf16.mxu0 0
    %5176 = vmatpush1.bf16.msra.mxu0 0
    %5177 = vmatprep.mubr.bf16.mxu0 0
    %5178 = vmatmul.mubr.bf16.gmra.mrb[0].mxu0 %v5090
    %v5179 = vpop.f32.mrb[0].mxu0
    %v5180 = vadd.f32 %v5096, %v5179
    %v5181 = vpop.f32.mrb[0].mxu0
    %v5182 = vpop.f32.mrb[0].mxu0
    %v5183 = vadd.f32 %v5096, %v5182
    %v5184 = vpop.f32.mrb[0].mxu0
    %5185 = vmatprep.mubr.bf16.mxu0 0
    %5186 = vmatmul.mubr.bf16.gmra.mrb[0].mxu0 %v5091
    %v5187 = vpop.f32.mrb[0].mxu0
    %v5188 = vadd.f32 %v5096, %v5187
    %v5189 = vpop.f32.mrb[0].mxu0
    %v5190 = vpop.f32.mrb[0].mxu0
    %v5191 = vpop.f32.mrb[0].mxu0
    %5192 = vdwg.mxu0
    %v5193 = vmul.f32 %v5180, 0.5
    %v5194 = vmul.f32 %v5183, 0.5
    %v5195 = vmul.f32 %v5188, 0.5
    %v5196 = vmul.f32 %v5180, 0.70710677
    %v5197 = vmul.f32 %v5183, 0.70710677
    %v5198 = vmul.f32 %v5188, 0.70710677
    %v5199 = verf.f32.pop %v5196
    %v5200 = verf.f32.pop %v5197
    %v5201 = verf.f32.pop %v5198
    %v5202 = vadd.f32 %v5199, 1.0
    %v5203 = vadd.f32 %v5200, 1.0
    %v5204 = vadd.f32 %v5201, 1.0
    %v5205 = vmul.f32 %v5193, %v5202
    %v5206 = vmul.f32 %v5194, %v5203
    %v5207 = vmul.f32 %v5195, %v5204
    %v5208 = vld [vmem:[#allocation2 + $0x500] sm:$0xf]
    %v5209 = vld [vmem:[#allocation2 + $0x504] sm:$0xf]
    %v5210 = vld [vmem:[#allocation2 + $0x508] sm:$0xf]
    %v5211 = vld [vmem:[#allocation2 + $0x50c] sm:$0xf]
    %v5212 = vld [vmem:[#allocation2 + $0x510] sm:$0xf]
    %v5213 = vld [vmem:[#allocation2 + $0x514] sm:$0xf]
    %v5214 = vld [vmem:[#allocation2 + $0x518] sm:$0xf]
    %v5215 = vld [vmem:[#allocation2 + $0x51c] sm:$0xf]
    %v5216 = vld [vmem:[#allocation2 + $0x520] sm:$0xf]
    %v5217 = vld [vmem:[#allocation2 + $0x524] sm:$0xf]
    %v5218 = vld [vmem:[#allocation2 + $0x528] sm:$0xf]
    %v5219 = vld [vmem:[#allocation2 + $0x52c] sm:$0xf]
    %v5220 = vld [vmem:[#allocation2 + $0x530] sm:$0xf]
    %v5221 = vld [vmem:[#allocation2 + $0x534] sm:$0xf]
    %v5222 = vld [vmem:[#allocation2 + $0x538] sm:$0xf]
    %v5223 = vld [vmem:[#allocation2 + $0x53c] sm:$0xf]
    %v5224 = vpack.c.bf16 %v5206, %v5205
    %v5225 = vpack.c.bf16 %v5207, %v5207
    %v5226 = vld [vmem:[%s1 + $0x21] sm:$0x1]
    %v5227 = vlaneseq
    %v5228 = vshrl.u32 %v5227, 7
    %v5229 = vsub.s32 0, %v5228
    %v5230 = vrot.slane %v5226, %v5229
    %v5247 = vunpack.c.l.b16 %v5208
    %v5248 = vunpack.c.l.b16 %v5209
    %v5249 = vunpack.c.l.b16 %v5210
    %v5250 = vunpack.c.l.b16 %v5211
    %v5251 = vunpack.c.l.b16 %v5212
    %v5252 = vunpack.c.l.b16 %v5213
    %v5253 = vunpack.c.l.b16 %v5214
    %v5254 = vunpack.c.l.b16 %v5215
    %v5255 = vunpack.c.l.b16 %v5216
    %v5256 = vunpack.c.l.b16 %v5217
    %v5257 = vunpack.c.l.b16 %v5218
    %v5258 = vunpack.c.l.b16 %v5219
    %v5259 = vunpack.c.l.b16 %v5220
    %v5260 = vunpack.c.l.b16 %v5221
    %v5261 = vunpack.c.l.b16 %v5222
    %v5262 = vunpack.c.l.b16 %v5223
    %v5263 = vpack.c.b16 %v5248, %v5247
    %v5264 = vpack.c.b16 %v5250, %v5249
    %v5265 = vpack.c.b16 %v5252, %v5251
    %v5266 = vpack.c.b16 %v5254, %v5253
    %v5267 = vpack.c.b16 %v5256, %v5255
    %v5268 = vpack.c.b16 %v5258, %v5257
    %v5269 = vpack.c.b16 %v5260, %v5259
    %v5270 = vpack.c.b16 %v5262, %v5261
    %5279 = vmatprep.subr.bf16.mxu0 0
    %5280 = vmatpush1.bf16.msra.mxu0 %v5263
    %5281 = vmatprep.subr.bf16.mxu0 0
    %5282 = vmatpush1.bf16.msra.mxu0 %v5264
    %5283 = vmatprep.subr.bf16.mxu0 0
    %5284 = vmatpush1.bf16.msra.mxu0 %v5265
    %5285 = vmatprep.subr.bf16.mxu0 0
    %5286 = vmatpush1.bf16.msra.mxu0 %v5266
    %5287 = vmatprep.subr.bf16.mxu0 0
    %5288 = vmatpush1.bf16.msra.mxu0 %v5267
    %5289 = vmatprep.subr.bf16.mxu0 0
    %5290 = vmatpush1.bf16.msra.mxu0 %v5268
    %5291 = vmatprep.subr.bf16.mxu0 0
    %5292 = vmatpush1.bf16.msra.mxu0 %v5269
    %5293 = vmatprep.subr.bf16.mxu0 0
    %5294 = vmatpush1.bf16.msra.mxu0 %v5270
    %5295 = vmatprep.subr.bf16.mxu0 0
    %5296 = vmatpush1.bf16.msra.mxu0 0
    %5297 = vmatprep.subr.bf16.mxu0 0
    %5298 = vmatpush1.bf16.msra.mxu0 0
    %5299 = vmatprep.subr.bf16.mxu0 0
    %5300 = vmatpush1.bf16.msra.mxu0 0
    %5301 = vmatprep.subr.bf16.mxu0 0
    %5302 = vmatpush1.bf16.msra.mxu0 0
    %5303 = vmatprep.subr.bf16.mxu0 0
    %5304 = vmatpush1.bf16.msra.mxu0 0
    %5305 = vmatprep.subr.bf16.mxu0 0
    %5306 = vmatpush1.bf16.msra.mxu0 0
    %5307 = vmatprep.subr.bf16.mxu0 0
    %5308 = vmatpush1.bf16.msra.mxu0 0
    %5309 = vmatprep.subr.bf16.mxu0 0
    %5310 = vmatpush1.bf16.msra.mxu0 0
    %5311 = vmatprep.mubr.bf16.mxu0 0
    %5312 = vmatmul.mubr.bf16.gmra.mrb[0].mxu0 %v5224
    %v5313 = vpop.f32.mrb[0].mxu0
    %v5314 = vadd.f32 %v5230, %v5313
    %v5315 = vpop.f32.mrb[0].mxu0
    %v5316 = vpop.f32.mrb[0].mxu0
    %v5317 = vadd.f32 %v5230, %v5316
    %v5318 = vpop.f32.mrb[0].mxu0
    %5319 = vmatprep.mubr.bf16.mxu0 0
    %5320 = vmatmul.mubr.bf16.gmra.mrb[0].mxu0 %v5225
    %v5321 = vpop.f32.mrb[0].mxu0
    %v5322 = vadd.f32 %v5230, %v5321
    %v5323 = vpop.f32.mrb[0].mxu0
    %v5324 = vpop.f32.mrb[0].mxu0
    %v5325 = vpop.f32.mrb[0].mxu0
    %5326 = vdwg.mxu0
    %v5327 = vadd.f32 %v5071, %v5314
    %v5328 = vadd.f32 %v5072, %v5317
    %v5329 = vadd.f32 %v5073, %v5322
    %5330 = vadd.xlane.f32.xlu0 %v5327
    %v5331 = vpop.xlane.xlu0 %5330
    %5332 = vadd.xlane.f32.xlu0 %v5328
    %v5333 = vpop.xlane.xlu0 %5332
    %5334 = vadd.xlane.f32.xlu0 %v5329
    %v5335 = vpop.xlane.xlu0 %5334
    %v5336 = vmul.f32 %v5331, 0.03125
    %v5337 = vmul.f32 %v5333, 0.03125
    %v5338 = vmul.f32 %v5335, 0.03125
    %v5339 = vmul.f32 %v5327, %v5327
    %v5340 = vmul.f32 %v5328, %v5328
    %v5341 = vmul.f32 %v5329, %v5329
    %5342 = vadd.xlane.f32.xlu0 %v5339
    %v5343 = vpop.xlane.xlu0 %5342
    %5344 = vadd.xlane.f32.xlu0 %v5340
    %v5345 = vpop.xlane.xlu0 %5344
    %5346 = vadd.xlane.f32.xlu0 %v5341
    %v5347 = vpop.xlane.xlu0 %5346
    %v5348 = vmul.f32 %v5343, 0.03125
    %v5349 = vmul.f32 %v5345, 0.03125
    %v5350 = vmul.f32 %v5347, 0.03125
    %v5351 = vsub.f32 %v5327, %v5336
    %v5352 = vsub.f32 %v5328, %v5337
    %v5353 = vsub.f32 %v5329, %v5338
    %v5354 = vmul.f32 %v5336, %v5336
    %v5355 = vmul.f32 %v5337, %v5337
    %v5356 = vmul.f32 %v5338, %v5338
    %v5357 = vsub.f32 %v5348, %v5354
    %v5358 = vsub.f32 %v5349, %v5355
    %v5359 = vsub.f32 %v5350, %v5356
    %v5360 = vadd.f32 %v5357, 1e-05
    %v5361 = vadd.f32 %v5358, 1e-05
    %v5362 = vadd.f32 %v5359, 1e-05
    %v5363 = vrsqrt.pop %v5360
    %v5364 = vrsqrt.pop %v5361
    %v5365 = vrsqrt.pop %v5362
    %v5366 = vmul.f32 %v5351, %v5363
    %v5367 = vmul.f32 %v5352, %v5364
    %v5368 = vmul.f32 %v5353, %v5365
    %v5369 = vld [vmem:[%s1 + $0x22] sm:$0x1]
    %v5370 = vlaneseq
    %v5371 = vshrl.u32 %v5370, 7
    %v5372 = vsub.s32 0, %v5371
    %v5373 = vrot.slane %v5369, %v5372
    %v5374 = vmul.f32 %v5366, %v5373
    %v5375 = vmul.f32 %v5367, %v5373
    %v5376 = vmul.f32 %v5368, %v5373
    %v5377 = vld [vmem:[%s1 + $0x23] sm:$0x1]
    %v5378 = vlaneseq
    %v5379 = vshrl.u32 %v5378, 7
    %v5380 = vsub.s32 0, %v5379
    %v5381 = vrot.slane %v5377, %v5380
    %v5382 = vadd.f32 %v5374, %v5381
    %v5383 = vadd.f32 %v5375, %v5381
    %v5384 = vadd.f32 %v5376, %v5381
    %v5385 = vld [vmem:[#allocation2 + $0x540] sm:$0xf]
    %v5386 = vld [vmem:[#allocation2 + $0x544] sm:$0xf]
    %v5387 = vld [vmem:[#allocation2 + $0x548] sm:$0xf]
    %v5388 = vld [vmem:[#allocation2 + $0x54c] sm:$0xf]
    %v5389 = vld [vmem:[#allocation2 + $0x550] sm:$0xf]
    %v5390 = vld [vmem:[#allocation2 + $0x554] sm:$0xf]
    %v5391 = vld [vmem:[#allocation2 + $0x558] sm:$0xf]
    %v5392 = vld [vmem:[#allocation2 + $0x55c] sm:$0xf]
    %v5393 = vld [vmem:[#allocation2 + $0x560] sm:$0xf]
    %v5394 = vld [vmem:[#allocation2 + $0x564] sm:$0xf]
    %v5395 = vld [vmem:[#allocation2 + $0x568] sm:$0xf]
    %v5396 = vld [vmem:[#allocation2 + $0x56c] sm:$0xf]
    %v5397 = vld [vmem:[#allocation2 + $0x570] sm:$0xf]
    %v5398 = vld [vmem:[#allocation2 + $0x574] sm:$0xf]
    %v5399 = vld [vmem:[#allocation2 + $0x578] sm:$0xf]
    %v5400 = vld [vmem:[#allocation2 + $0x57c] sm:$0xf]
    %v5401 = vpack.c.bf16 %v5383, %v5382
    %v5402 = vpack.c.bf16 %v5384, %v5384
    %v5403 = vld [vmem:[%s1 + $0x24] sm:$0x1]
    %v5404 = vlaneseq
    %v5405 = vshrl.u32 %v5404, 7
    %v5406 = vsub.s32 0, %v5405
    %v5407 = vrot.slane %v5403, %v5406
    %v5424 = vunpack.c.l.b16 %v5385
    %v5425 = vunpack.c.l.b16 %v5386
    %v5426 = vunpack.c.l.b16 %v5387
    %v5427 = vunpack.c.l.b16 %v5388
    %v5428 = vunpack.c.l.b16 %v5389
    %v5429 = vunpack.c.l.b16 %v5390
    %v5430 = vunpack.c.l.b16 %v5391
    %v5431 = vunpack.c.l.b16 %v5392
    %v5432 = vunpack.c.l.b16 %v5393
    %v5433 = vunpack.c.l.b16 %v5394
    %v5434 = vunpack.c.l.b16 %v5395
    %v5435 = vunpack.c.l.b16 %v5396
    %v5436 = vunpack.c.l.b16 %v5397
    %v5437 = vunpack.c.l.b16 %v5398
    %v5438 = vunpack.c.l.b16 %v5399
    %v5439 = vunpack.c.l.b16 %v5400
    %v5440 = vpack.c.b16 %v5425, %v5424
    %v5441 = vpack.c.b16 %v5427, %v5426
    %v5442 = vpack.c.b16 %v5429, %v5428
    %v5443 = vpack.c.b16 %v5431, %v5430
    %v5444 = vpack.c.b16 %v5433, %v5432
    %v5445 = vpack.c.b16 %v5435, %v5434
    %v5446 = vpack.c.b16 %v5437, %v5436
    %v5447 = vpack.c.b16 %v5439, %v5438
    %5456 = vmatprep.subr.bf16.mxu0 0
    %5457 = vmatpush1.bf16.msra.mxu0 %v5440
    %5458 = vmatprep.subr.bf16.mxu0 0
    %5459 = vmatpush1.bf16.msra.mxu0 %v5441
    %5460 = vmatprep.subr.bf16.mxu0 0
    %5461 = vmatpush1.bf16.msra.mxu0 %v5442
    %5462 = vmatprep.subr.bf16.mxu0 0
    %5463 = vmatpush1.bf16.msra.mxu0 %v5443
    %5464 = vmatprep.subr.bf16.mxu0 0
    %5465 = vmatpush1.bf16.msra.mxu0 %v5444
    %5466 = vmatprep.subr.bf16.mxu0 0
    %5467 = vmatpush1.bf16.msra.mxu0 %v5445
    %5468 = vmatprep.subr.bf16.mxu0 0
    %5469 = vmatpush1.bf16.msra.mxu0 %v5446
    %5470 = vmatprep.subr.bf16.mxu0 0
    %5471 = vmatpush1.bf16.msra.mxu0 %v5447
    %5472 = vmatprep.subr.bf16.mxu0 0
    %5473 = vmatpush1.bf16.msra.mxu0 0
    %5474 = vmatprep.subr.bf16.mxu0 0
    %5475 = vmatpush1.bf16.msra.mxu0 0
    %5476 = vmatprep.subr.bf16.mxu0 0
    %5477 = vmatpush1.bf16.msra.mxu0 0
    %5478 = vmatprep.subr.bf16.mxu0 0
    %5479 = vmatpush1.bf16.msra.mxu0 0
    %5480 = vmatprep.subr.bf16.mxu0 0
    %5481 = vmatpush1.bf16.msra.mxu0 0
    %5482 = vmatprep.subr.bf16.mxu0 0
    %5483 = vmatpush1.bf16.msra.mxu0 0
    %5484 = vmatprep.subr.bf16.mxu0 0
    %5485 = vmatpush1.bf16.msra.mxu0 0
    %5486 = vmatprep.subr.bf16.mxu0 0
    %5487 = vmatpush1.bf16.msra.mxu0 0
    %5488 = vmatprep.mubr.bf16.mxu0 0
    %5489 = vmatmul.mubr.bf16.gmra.mrb[0].mxu0 %v5401
    %v5490 = vpop.f32.mrb[0].mxu0
    %v5491 = vadd.f32 %v5407, %v5490
    %v5492 = vpop.f32.mrb[0].mxu0
    %v5493 = vpop.f32.mrb[0].mxu0
    %v5494 = vadd.f32 %v5407, %v5493
    %v5495 = vpop.f32.mrb[0].mxu0
    %5496 = vmatprep.mubr.bf16.mxu0 0
    %5497 = vmatmul.mubr.bf16.gmra.mrb[0].mxu0 %v5402
    %v5498 = vpop.f32.mrb[0].mxu0
    %v5499 = vadd.f32 %v5407, %v5498
    %v5500 = vpop.f32.mrb[0].mxu0
    %v5501 = vpop.f32.mrb[0].mxu0
    %v5502 = vpop.f32.mrb[0].mxu0
    %5503 = vdwg.mxu0
    %5507 = vrot.lane.b32.xlu0 %v5491, 96
    %v5508 = vpop.permute.xlu0 %5507
    %5509 = vrot.lane.b32.xlu0 %v5494, 96
    %v5510 = vpop.permute.xlu0 %5509
    %5511 = vrot.lane.b32.xlu0 %v5499, 96
    %v5512 = vpop.permute.xlu0 %5511
    %5516 = vxpose.xlu0.b32.start [1/16] %v5508, 128
    %5517 = vxpose.xlu0.b32.cont [2/16] %v5510, 128
    %5518 = vxpose.xlu0.b32.cont [3/16] %v5512, 128
    %5519 = vxpose.xlu0.b32.cont [4/16] 0.0, 128
    %5520 = vxpose.xlu0.b32.cont [5/16] 0.0, 128
    %5521 = vxpose.xlu0.b32.cont [6/16] 0.0, 128
    %5522 = vxpose.xlu0.b32.cont [7/16] 0.0, 128
    %5523 = vxpose.xlu0.b32.cont [8/16] 0.0, 128
    %5524 = vxpose.xlu0.b32.cont [9/16] 0.0, 128
    %5525 = vxpose.xlu0.b32.cont [10/16] 0.0, 128
    %5526 = vxpose.xlu0.b32.cont [11/16] 0.0, 128
    %5527 = vxpose.xlu0.b32.cont [12/16] 0.0, 128
    %5528 = vxpose.xlu0.b32.cont [13/16] 0.0, 128
    %5529 = vxpose.xlu0.b32.cont [14/16] 0.0, 128
    %5530 = vxpose.xlu0.b32.cont [15/16] 0.0, 128
    %5531 = vxpose.xlu0.b32.end [16/16] 0.0, 128
    %v5532 = vpop.trf.xlu0
    %v5533 = vpop.trf.xlu0
    %v5534 = vpop.trf.xlu0
    %v5535 = vpop.trf.xlu0
    %v5536 = vpop.trf.xlu0
    %v5537 = vpop.trf.xlu0
    %v5538 = vpop.trf.xlu0
    %v5539 = vpop.trf.xlu0
    %v5540 = vpop.trf.xlu0
    %v5541 = vpop.trf.xlu0
    %v5542 = vpop.trf.xlu0
    %v5543 = vpop.trf.xlu0
    %v5544 = vpop.trf.xlu0
    %v5545 = vpop.trf.xlu0
    %v5546 = vpop.trf.xlu0
    %v5547 = vpop.trf.xlu0
    %v5548 = vpack.c.bf16 %v5494, %v5491
    %v5549 = vpack.c.bf16 %v5499, %v5499
    %v5550 = vpack.c.bf16 %v5532, %v5532
    %v5552 = vsel %vm525, %v5548, 0
    %v5555 = vsel %vm525, %v5549, 0
    %v5558 = vsel %vm790, %v5550, 0
    %5560 = vmatprep.subr.bf16.mxu0 0
    %5561 = vmatpush1.bf16.msra.mxu0 %v5558
    %5562 = vmatprep.subr.bf16.mxu0 0
    %5563 = vmatpush1.bf16.msra.mxu0 0
    %5564 = vmatprep.subr.bf16.mxu0 0
    %5565 = vmatpush1.bf16.msra.mxu0 0
    %5566 = vmatprep.subr.bf16.mxu0 0
    %5567 = vmatpush1.bf16.msra.mxu0 0
    %5568 = vmatprep.subr.bf16.mxu0 0
    %5569 = vmatpush1.bf16.msra.mxu0 0
    %5570 = vmatprep.subr.bf16.mxu0 0
    %5571 = vmatpush1.bf16.msra.mxu0 0
    %5572 = vmatprep.subr.bf16.mxu0 0
    %5573 = vmatpush1.bf16.msra.mxu0 0
    %5574 = vmatprep.subr.bf16.mxu0 0
    %5575 = vmatpush1.bf16.msra.mxu0 0
    %5576 = vmatprep.subr.bf16.mxu0 0
    %5577 = vmatpush1.bf16.msra.mxu0 0
    %5578 = vmatprep.subr.bf16.mxu0 0
    %5579 = vmatpush1.bf16.msra.mxu0 0
    %5580 = vmatprep.subr.bf16.mxu0 0
    %5581 = vmatpush1.bf16.msra.mxu0 0
    %5582 = vmatprep.subr.bf16.mxu0 0
    %5583 = vmatpush1.bf16.msra.mxu0 0
    %5584 = vmatprep.subr.bf16.mxu0 0
    %5585 = vmatpush1.bf16.msra.mxu0 0
    %5586 = vmatprep.subr.bf16.mxu0 0
    %5587 = vmatpush1.bf16.msra.mxu0 0
    %5588 = vmatprep.subr.bf16.mxu0 0
    %5589 = vmatpush1.bf16.msra.mxu0 0
    %5590 = vmatprep.subr.bf16.mxu0 0
    %5591 = vmatpush1.bf16.msra.mxu0 0
    %5592 = vmatprep.mubr.bf16.mxu0 0
    %5593 = vmatmul.mubr.bf16.gmra.mrb[0].mxu0 %v5552
    %v5594 = vpop.f32.mrb[0].mxu0
    %v5595 = vadd.f32 %v130, %v5594
    %v5596 = vpop.f32.mrb[0].mxu0
    %v5597 = vpop.f32.mrb[0].mxu0
    %v5598 = vadd.f32 %v131, %v5597
    %v5599 = vpop.f32.mrb[0].mxu0
    %5600 = vmatprep.mubr.bf16.mxu0 0
    %5601 = vmatmul.mubr.bf16.gmra.mrb[0].mxu0 %v5555
    %v5602 = vpop.f32.mrb[0].mxu0
    %v5603 = vadd.f32 %v132, %v5602
    %v5604 = vpop.f32.mrb[0].mxu0
    %v5605 = vpop.f32.mrb[0].mxu0
    %v5606 = vpop.f32.mrb[0].mxu0
    %5607 = vdwg.mxu0
    %v5608 = vsel %vm842, %v5595, -inf
    %5609 = vmax.xlane.f32.xlu0 %v5608
    %v5610 = vpop.xlane.xlu0 %5609
    %v5611 = vsel %vm842, %v5598, -inf
    %5612 = vmax.xlane.f32.xlu0 %v5611
    %v5613 = vpop.xlane.xlu0 %5612
    %v5614 = vsel %vm842, %v5603, -inf
    %5615 = vmax.xlane.f32.xlu0 %v5614
    %v5616 = vpop.xlane.xlu0 %5615
    %v5617 = vsub.f32 %v5595, %v5610
    %v5618 = vsub.f32 %v5598, %v5613
    %v5619 = vsub.f32 %v5603, %v5616
    %v5620 = vmul.f32 %v5617, 1.442695
    %v5621 = vpow.pop %v5620
    %v5622 = vmul.f32 %v5618, 1.442695
    %v5623 = vpow.pop %v5622
    %v5624 = vmul.f32 %v5619, 1.442695
    %v5625 = vpow.pop %v5624
    %v5626 = vsel %vm842, %v5621, 0.0
    %5627 = vadd.xlane.f32.xlu0 %v5626
    %v5628 = vpop.xlane.xlu0 %5627
    %v5629 = vsel %vm842, %v5623, 0.0
    %5630 = vadd.xlane.f32.xlu0 %v5629
    %v5631 = vpop.xlane.xlu0 %5630
    %v5632 = vsel %vm842, %v5625, 0.0
    %5633 = vadd.xlane.f32.xlu0 %v5632
    %v5634 = vpop.xlane.xlu0 %5633
    %v5635 = vrcp.pop %v5628
    %v5636 = vrcp.pop %v5631
    %v5637 = vrcp.pop %v5634
    %v5638 = vmul.f32 %v5621, %v5635
    %v5639 = vmul.f32 %v5623, %v5636
    %v5640 = vmul.f32 %v5625, %v5637
    %v5641 = vpack.c.bf16 %v5639, %v5638
    %v5642 = vpack.c.bf16 %v5640, %v5640
    %5645 = vrot.lane.b32.xlu0 %v5548, 64
    %v5646 = vpop.permute.xlu0 %5645
    %5647 = vrot.lane.b32.xlu0 %v5549, 64
    %v5648 = vpop.permute.xlu0 %5647
    %v5651 = vsel %vm842, %v5641, 0
    %v5654 = vsel %vm842, %v5642, 0
    %v5657 = vsel %vm790, %v5648, 0
    %5659 = vmatprep.subr.bf16.mxu0 0
    %5660 = vmatpush1.bf16.msra.mxu0 %v5646
    %5661 = vmatprep.subr.bf16.mxu0 0
    %5662 = vmatpush1.bf16.msra.mxu0 %v5657
    %5663 = vmatprep.subr.bf16.mxu0 0
    %5664 = vmatpush1.bf16.msra.mxu0 0
    %5665 = vmatprep.subr.bf16.mxu0 0
    %5666 = vmatpush1.bf16.msra.mxu0 0
    %5667 = vmatprep.subr.bf16.mxu0 0
    %5668 = vmatpush1.bf16.msra.mxu0 0
    %5669 = vmatprep.subr.bf16.mxu0 0
    %5670 = vmatpush1.bf16.msra.mxu0 0
    %5671 = vmatprep.subr.bf16.mxu0 0
    %5672 = vmatpush1.bf16.msra.mxu0 0
    %5673 = vmatprep.subr.bf16.mxu0 0
    %5674 = vmatpush1.bf16.msra.mxu0 0
    %5675 = vmatprep.subr.bf16.mxu0 0
    %5676 = vmatpush1.bf16.msra.mxu0 0
    %5677 = vmatprep.subr.bf16.mxu0 0
    %5678 = vmatpush1.bf16.msra.mxu0 0
    %5679 = vmatprep.subr.bf16.mxu0 0
    %5680 = vmatpush1.bf16.msra.mxu0 0
    %5681 = vmatprep.subr.bf16.mxu0 0
    %5682 = vmatpush1.bf16.msra.mxu0 0
    %5683 = vmatprep.subr.bf16.mxu0 0
    %5684 = vmatpush1.bf16.msra.mxu0 0
    %5685 = vmatprep.subr.bf16.mxu0 0
    %5686 = vmatpush1.bf16.msra.mxu0 0
    %5687 = vmatprep.subr.bf16.mxu0 0
    %5688 = vmatpush1.bf16.msra.mxu0 0
    %5689 = vmatprep.subr.bf16.mxu0 0
    %5690 = vmatpush1.bf16.msra.mxu0 0
    %5691 = vmatprep.mubr.bf16.mxu0 0
    %5692 = vmatmul.mubr.bf16.gmra.mrb[0].mxu0 %v5651
    %v5693 = vpop.f32.mrb[0].mxu0
    %v5694 = vadd.f32 0.0, %v5693
    %v5695 = vpop.f32.mrb[0].mxu0
    %v5696 = vpop.f32.mrb[0].mxu0
    %v5697 = vadd.f32 0.0, %v5696
    %v5698 = vpop.f32.mrb[0].mxu0
    %5699 = vmatprep.mubr.bf16.mxu0 0
    %5700 = vmatmul.mubr.bf16.gmra.mrb[0].mxu0 %v5654
    %v5701 = vpop.f32.mrb[0].mxu0
    %v5702 = vadd.f32 0.0, %v5701
    %v5703 = vpop.f32.mrb[0].mxu0
    %v5704 = vpop.f32.mrb[0].mxu0
    %v5705 = vpop.f32.mrb[0].mxu0
    %5706 = vdwg.mxu0
    %v5707 = vpack.c.bf16 %v5533, %v5533
    %5708 = vrot.lane.b32.xlu0 %v5548, 120
    %v5709 = vpop.permute.xlu0 %5708
    %5710 = vrot.lane.b32.xlu0 %v5549, 120
    %v5711 = vpop.permute.xlu0 %5710
    %v5713 = vsel %vm525, %v5709, 0
    %v5716 = vsel %vm525, %v5711, 0
    %v5719 = vsel %vm790, %v5707, 0
    %5721 = vmatprep.subr.bf16.mxu0 0
    %5722 = vmatpush1.bf16.msra.mxu0 %v5719
    %5723 = vmatprep.subr.bf16.mxu0 0
    %5724 = vmatpush1.bf16.msra.mxu0 0
    %5725 = vmatprep.subr.bf16.mxu0 0
    %5726 = vmatpush1.bf16.msra.mxu0 0
    %5727 = vmatprep.subr.bf16.mxu0 0
    %5728 = vmatpush1.bf16.msra.mxu0 0
    %5729 = vmatprep.subr.bf16.mxu0 0
    %5730 = vmatpush1.bf16.msra.mxu0 0
    %5731 = vmatprep.subr.bf16.mxu0 0
    %5732 = vmatpush1.bf16.msra.mxu0 0
    %5733 = vmatprep.subr.bf16.mxu0 0
    %5734 = vmatpush1.bf16.msra.mxu0 0
    %5735 = vmatprep.subr.bf16.mxu0 0
    %5736 = vmatpush1.bf16.msra.mxu0 0
    %5737 = vmatprep.subr.bf16.mxu0 0
    %5738 = vmatpush1.bf16.msra.mxu0 0
    %5739 = vmatprep.subr.bf16.mxu0 0
    %5740 = vmatpush1.bf16.msra.mxu0 0
    %5741 = vmatprep.subr.bf16.mxu0 0
    %5742 = vmatpush1.bf16.msra.mxu0 0
    %5743 = vmatprep.subr.bf16.mxu0 0
    %5744 = vmatpush1.bf16.msra.mxu0 0
    %5745 = vmatprep.subr.bf16.mxu0 0
    %5746 = vmatpush1.bf16.msra.mxu0 0
    %5747 = vmatprep.subr.bf16.mxu0 0
    %5748 = vmatpush1.bf16.msra.mxu0 0
    %5749 = vmatprep.subr.bf16.mxu0 0
    %5750 = vmatpush1.bf16.msra.mxu0 0
    %5751 = vmatprep.subr.bf16.mxu0 0
    %5752 = vmatpush1.bf16.msra.mxu0 0
    %5753 = vmatprep.mubr.bf16.mxu0 0
    %5754 = vmatmul.mubr.bf16.gmra.mrb[0].mxu0 %v5713
    %v5755 = vpop.f32.mrb[0].mxu0
    %v5756 = vadd.f32 %v130, %v5755
    %v5757 = vpop.f32.mrb[0].mxu0
    %v5758 = vpop.f32.mrb[0].mxu0
    %v5759 = vadd.f32 %v131, %v5758
    %v5760 = vpop.f32.mrb[0].mxu0
    %5761 = vmatprep.mubr.bf16.mxu0 0
    %5762 = vmatmul.mubr.bf16.gmra.mrb[0].mxu0 %v5716
    %v5763 = vpop.f32.mrb[0].mxu0
    %v5764 = vadd.f32 %v132, %v5763
    %v5765 = vpop.f32.mrb[0].mxu0
    %v5766 = vpop.f32.mrb[0].mxu0
    %v5767 = vpop.f32.mrb[0].mxu0
    %5768 = vdwg.mxu0
    %v5769 = vsel %vm842, %v5756, -inf
    %5770 = vmax.xlane.f32.xlu0 %v5769
    %v5771 = vpop.xlane.xlu0 %5770
    %v5772 = vsel %vm842, %v5759, -inf
    %5773 = vmax.xlane.f32.xlu0 %v5772
    %v5774 = vpop.xlane.xlu0 %5773
    %v5775 = vsel %vm842, %v5764, -inf
    %5776 = vmax.xlane.f32.xlu0 %v5775
    %v5777 = vpop.xlane.xlu0 %5776
    %v5778 = vsub.f32 %v5756, %v5771
    %v5779 = vsub.f32 %v5759, %v5774
    %v5780 = vsub.f32 %v5764, %v5777
    %v5781 = vmul.f32 %v5778, 1.442695
    %v5782 = vpow.pop %v5781
    %v5783 = vmul.f32 %v5779, 1.442695
    %v5784 = vpow.pop %v5783
    %v5785 = vmul.f32 %v5780, 1.442695
    %v5786 = vpow.pop %v5785
    %v5787 = vsel %vm842, %v5782, 0.0
    %5788 = vadd.xlane.f32.xlu0 %v5787
    %v5789 = vpop.xlane.xlu0 %5788
    %v5790 = vsel %vm842, %v5784, 0.0
    %5791 = vadd.xlane.f32.xlu0 %v5790
    %v5792 = vpop.xlane.xlu0 %5791
    %v5793 = vsel %vm842, %v5786, 0.0
    %5794 = vadd.xlane.f32.xlu0 %v5793
    %v5795 = vpop.xlane.xlu0 %5794
    %v5796 = vrcp.pop %v5789
    %v5797 = vrcp.pop %v5792
    %v5798 = vrcp.pop %v5795
    %v5799 = vmul.f32 %v5782, %v5796
    %v5800 = vmul.f32 %v5784, %v5797
    %v5801 = vmul.f32 %v5786, %v5798
    %v5802 = vpack.c.bf16 %v5800, %v5799
    %v5803 = vpack.c.bf16 %v5801, %v5801
    %5804 = vrot.lane.b32.xlu0 %v5548, 56
    %v5805 = vpop.permute.xlu0 %5804
    %5806 = vrot.lane.b32.xlu0 %v5549, 56
    %v5807 = vpop.permute.xlu0 %5806
    %v5810 = vsel %vm842, %v5802, 0
    %v5813 = vsel %vm842, %v5803, 0
    %v5816 = vsel %vm790, %v5807, 0
    %5818 = vmatprep.subr.bf16.mxu0 0
    %5819 = vmatpush1.bf16.msra.mxu0 %v5805
    %5820 = vmatprep.subr.bf16.mxu0 0
    %5821 = vmatpush1.bf16.msra.mxu0 %v5816
    %5822 = vmatprep.subr.bf16.mxu0 0
    %5823 = vmatpush1.bf16.msra.mxu0 0
    %5824 = vmatprep.subr.bf16.mxu0 0
    %5825 = vmatpush1.bf16.msra.mxu0 0
    %5826 = vmatprep.subr.bf16.mxu0 0
    %5827 = vmatpush1.bf16.msra.mxu0 0
    %5828 = vmatprep.subr.bf16.mxu0 0
    %5829 = vmatpush1.bf16.msra.mxu0 0
    %5830 = vmatprep.subr.bf16.mxu0 0
    %5831 = vmatpush1.bf16.msra.mxu0 0
    %5832 = vmatprep.subr.bf16.mxu0 0
    %5833 = vmatpush1.bf16.msra.mxu0 0
    %5834 = vmatprep.subr.bf16.mxu0 0
    %5835 = vmatpush1.bf16.msra.mxu0 0
    %5836 = vmatprep.subr.bf16.mxu0 0
    %5837 = vmatpush1.bf16.msra.mxu0 0
    %5838 = vmatprep.subr.bf16.mxu0 0
    %5839 = vmatpush1.bf16.msra.mxu0 0
    %5840 = vmatprep.subr.bf16.mxu0 0
    %5841 = vmatpush1.bf16.msra.mxu0 0
    %5842 = vmatprep.subr.bf16.mxu0 0
    %5843 = vmatpush1.bf16.msra.mxu0 0
    %5844 = vmatprep.subr.bf16.mxu0 0
    %5845 = vmatpush1.bf16.msra.mxu0 0
    %5846 = vmatprep.subr.bf16.mxu0 0
    %5847 = vmatpush1.bf16.msra.mxu0 0
    %5848 = vmatprep.subr.bf16.mxu0 0
    %5849 = vmatpush1.bf16.msra.mxu0 0
    %5850 = vmatprep.mubr.bf16.mxu0 0
    %5851 = vmatmul.mubr.bf16.gmra.mrb[0].mxu0 %v5810
    %v5852 = vpop.f32.mrb[0].mxu0
    %v5853 = vadd.f32 0.0, %v5852
    %v5854 = vpop.f32.mrb[0].mxu0
    %v5855 = vpop.f32.mrb[0].mxu0
    %v5856 = vadd.f32 0.0, %v5855
    %v5857 = vpop.f32.mrb[0].mxu0
    %5858 = vmatprep.mubr.bf16.mxu0 0
    %5859 = vmatmul.mubr.bf16.gmra.mrb[0].mxu0 %v5813
    %v5860 = vpop.f32.mrb[0].mxu0
    %v5861 = vadd.f32 0.0, %v5860
    %v5862 = vpop.f32.mrb[0].mxu0
    %v5863 = vpop.f32.mrb[0].mxu0
    %v5864 = vpop.f32.mrb[0].mxu0
    %5865 = vdwg.mxu0
    %v5866 = vpack.c.bf16 %v5534, %v5534
    %5867 = vrot.lane.b32.xlu0 %v5548, 112
    %v5868 = vpop.permute.xlu0 %5867
    %5869 = vrot.lane.b32.xlu0 %v5549, 112
    %v5870 = vpop.permute.xlu0 %5869
    %v5872 = vsel %vm525, %v5868, 0
    %v5875 = vsel %vm525, %v5870, 0
    %v5878 = vsel %vm790, %v5866, 0
    %5880 = vmatprep.subr.bf16.mxu0 0
    %5881 = vmatpush1.bf16.msra.mxu0 %v5878
    %5882 = vmatprep.subr.bf16.mxu0 0
    %5883 = vmatpush1.bf16.msra.mxu0 0
    %5884 = vmatprep.subr.bf16.mxu0 0
    %5885 = vmatpush1.bf16.msra.mxu0 0
    %5886 = vmatprep.subr.bf16.mxu0 0
    %5887 = vmatpush1.bf16.msra.mxu0 0
    %5888 = vmatprep.subr.bf16.mxu0 0
    %5889 = vmatpush1.bf16.msra.mxu0 0
    %5890 = vmatprep.subr.bf16.mxu0 0
    %5891 = vmatpush1.bf16.msra.mxu0 0
    %5892 = vmatprep.subr.bf16.mxu0 0
    %5893 = vmatpush1.bf16.msra.mxu0 0
    %5894 = vmatprep.subr.bf16.mxu0 0
    %5895 = vmatpush1.bf16.msra.mxu0 0
    %5896 = vmatprep.subr.bf16.mxu0 0
    %5897 = vmatpush1.bf16.msra.mxu0 0
    %5898 = vmatprep.subr.bf16.mxu0 0
    %5899 = vmatpush1.bf16.msra.mxu0 0
    %5900 = vmatprep.subr.bf16.mxu0 0
    %5901 = vmatpush1.bf16.msra.mxu0 0
    %5902 = vmatprep.subr.bf16.mxu0 0
    %5903 = vmatpush1.bf16.msra.mxu0 0
    %5904 = vmatprep.subr.bf16.mxu0 0
    %5905 = vmatpush1.bf16.msra.mxu0 0
    %5906 = vmatprep.subr.bf16.mxu0 0
    %5907 = vmatpush1.bf16.msra.mxu0 0
    %5908 = vmatprep.subr.bf16.mxu0 0
    %5909 = vmatpush1.bf16.msra.mxu0 0
    %5910 = vmatprep.subr.bf16.mxu0 0
    %5911 = vmatpush1.bf16.msra.mxu0 0
    %5912 = vmatprep.mubr.bf16.mxu0 0
    %5913 = vmatmul.mubr.bf16.gmra.mrb[0].mxu0 %v5872
    %v5914 = vpop.f32.mrb[0].mxu0
    %v5915 = vadd.f32 %v130, %v5914
    %v5916 = vpop.f32.mrb[0].mxu0
    %v5917 = vpop.f32.mrb[0].mxu0
    %v5918 = vadd.f32 %v131, %v5917
    %v5919 = vpop.f32.mrb[0].mxu0
    %5920 = vmatprep.mubr.bf16.mxu0 0
    %5921 = vmatmul.mubr.bf16.gmra.mrb[0].mxu0 %v5875
    %v5922 = vpop.f32.mrb[0].mxu0
    %v5923 = vadd.f32 %v132, %v5922
    %v5924 = vpop.f32.mrb[0].mxu0
    %v5925 = vpop.f32.mrb[0].mxu0
    %v5926 = vpop.f32.mrb[0].mxu0
    %5927 = vdwg.mxu0
    %v5928 = vsel %vm842, %v5915, -inf
    %5929 = vmax.xlane.f32.xlu0 %v5928
    %v5930 = vpop.xlane.xlu0 %5929
    %v5931 = vsel %vm842, %v5918, -inf
    %5932 = vmax.xlane.f32.xlu0 %v5931
    %v5933 = vpop.xlane.xlu0 %5932
    %v5934 = vsel %vm842, %v5923, -inf
    %5935 = vmax.xlane.f32.xlu0 %v5934
    %v5936 = vpop.xlane.xlu0 %5935
    %v5937 = vsub.f32 %v5915, %v5930
    %v5938 = vsub.f32 %v5918, %v5933
    %v5939 = vsub.f32 %v5923, %v5936
    %v5940 = vmul.f32 %v5937, 1.442695
    %v5941 = vpow.pop %v5940
    %v5942 = vmul.f32 %v5938, 1.442695
    %v5943 = vpow.pop %v5942
    %v5944 = vmul.f32 %v5939, 1.442695
    %v5945 = vpow.pop %v5944
    %v5946 = vsel %vm842, %v5941, 0.0
    %5947 = vadd.xlane.f32.xlu0 %v5946
    %v5948 = vpop.xlane.xlu0 %5947
    %v5949 = vsel %vm842, %v5943, 0.0
    %5950 = vadd.xlane.f32.xlu0 %v5949
    %v5951 = vpop.xlane.xlu0 %5950
    %v5952 = vsel %vm842, %v5945, 0.0
    %5953 = vadd.xlane.f32.xlu0 %v5952
    %v5954 = vpop.xlane.xlu0 %5953
    %v5955 = vrcp.pop %v5948
    %v5956 = vrcp.pop %v5951
    %v5957 = vrcp.pop %v5954
    %v5958 = vmul.f32 %v5941, %v5955
    %v5959 = vmul.f32 %v5943, %v5956
    %v5960 = vmul.f32 %v5945, %v5957
    %v5961 = vpack.c.bf16 %v5959, %v5958
    %v5962 = vpack.c.bf16 %v5960, %v5960
    %5963 = vrot.lane.b32.xlu0 %v5548, 48
    %v5964 = vpop.permute.xlu0 %5963
    %5965 = vrot.lane.b32.xlu0 %v5549, 48
    %v5966 = vpop.permute.xlu0 %5965
    %v5969 = vsel %vm842, %v5961, 0
    %v5972 = vsel %vm842, %v5962, 0
    %v5975 = vsel %vm790, %v5966, 0
    %5977 = vmatprep.subr.bf16.mxu0 0
    %5978 = vmatpush1.bf16.msra.mxu0 %v5964
    %5979 = vmatprep.subr.bf16.mxu0 0
    %5980 = vmatpush1.bf16.msra.mxu0 %v5975
    %5981 = vmatprep.subr.bf16.mxu0 0
    %5982 = vmatpush1.bf16.msra.mxu0 0
    %5983 = vmatprep.subr.bf16.mxu0 0
    %5984 = vmatpush1.bf16.msra.mxu0 0
    %5985 = vmatprep.subr.bf16.mxu0 0
    %5986 = vmatpush1.bf16.msra.mxu0 0
    %5987 = vmatprep.subr.bf16.mxu0 0
    %5988 = vmatpush1.bf16.msra.mxu0 0
    %5989 = vmatprep.subr.bf16.mxu0 0
    %5990 = vmatpush1.bf16.msra.mxu0 0
    %5991 = vmatprep.subr.bf16.mxu0 0
    %5992 = vmatpush1.bf16.msra.mxu0 0
    %5993 = vmatprep.subr.bf16.mxu0 0
    %5994 = vmatpush1.bf16.msra.mxu0 0
    %5995 = vmatprep.subr.bf16.mxu0 0
    %5996 = vmatpush1.bf16.msra.mxu0 0
    %5997 = vmatprep.subr.bf16.mxu0 0
    %5998 = vmatpush1.bf16.msra.mxu0 0
    %5999 = vmatprep.subr.bf16.mxu0 0
    %6000 = vmatpush1.bf16.msra.mxu0 0
    %6001 = vmatprep.subr.bf16.mxu0 0
    %6002 = vmatpush1.bf16.msra.mxu0 0
    %6003 = vmatprep.subr.bf16.mxu0 0
    %6004 = vmatpush1.bf16.msra.mxu0 0
    %6005 = vmatprep.subr.bf16.mxu0 0
    %6006 = vmatpush1.bf16.msra.mxu0 0
    %6007 = vmatprep.subr.bf16.mxu0 0
    %6008 = vmatpush1.bf16.msra.mxu0 0
    %6009 = vmatprep.mubr.bf16.mxu0 0
    %6010 = vmatmul.mubr.bf16.gmra.mrb[0].mxu0 %v5969
    %v6011 = vpop.f32.mrb[0].mxu0
    %v6012 = vadd.f32 0.0, %v6011
    %v6013 = vpop.f32.mrb[0].mxu0
    %v6014 = vpop.f32.mrb[0].mxu0
    %v6015 = vadd.f32 0.0, %v6014
    %v6016 = vpop.f32.mrb[0].mxu0
    %6017 = vmatprep.mubr.bf16.mxu0 0
    %6018 = vmatmul.mubr.bf16.gmra.mrb[0].mxu0 %v5972
    %v6019 = vpop.f32.mrb[0].mxu0
    %v6020 = vadd.f32 0.0, %v6019
    %v6021 = vpop.f32.mrb[0].mxu0
    %v6022 = vpop.f32.mrb[0].mxu0
    %v6023 = vpop.f32.mrb[0].mxu0
    %6024 = vdwg.mxu0
    %v6025 = vpack.c.bf16 %v5535, %v5535
    %6026 = vrot.lane.b32.xlu0 %v5548, 104
    %v6027 = vpop.permute.xlu0 %6026
    %6028 = vrot.lane.b32.xlu0 %v5549, 104
    %v6029 = vpop.permute.xlu0 %6028
    %v6031 = vsel %vm525, %v6027, 0
    %v6034 = vsel %vm525, %v6029, 0
    %v6037 = vsel %vm790, %v6025, 0
    %6039 = vmatprep.subr.bf16.mxu0 0
    %6040 = vmatpush1.bf16.msra.mxu0 %v6037
    %6041 = vmatprep.subr.bf16.mxu0 0
    %6042 = vmatpush1.bf16.msra.mxu0 0
    %6043 = vmatprep.subr.bf16.mxu0 0
    %6044 = vmatpush1.bf16.msra.mxu0 0
    %6045 = vmatprep.subr.bf16.mxu0 0
    %6046 = vmatpush1.bf16.msra.mxu0 0
    %6047 = vmatprep.subr.bf16.mxu0 0
    %6048 = vmatpush1.bf16.msra.mxu0 0
    %6049 = vmatprep.subr.bf16.mxu0 0
    %6050 = vmatpush1.bf16.msra.mxu0 0
    %6051 = vmatprep.subr.bf16.mxu0 0
    %6052 = vmatpush1.bf16.msra.mxu0 0
    %6053 = vmatprep.subr.bf16.mxu0 0
    %6054 = vmatpush1.bf16.msra.mxu0 0
    %6055 = vmatprep.subr.bf16.mxu0 0
    %6056 = vmatpush1.bf16.msra.mxu0 0
    %6057 = vmatprep.subr.bf16.mxu0 0
    %6058 = vmatpush1.bf16.msra.mxu0 0
    %6059 = vmatprep.subr.bf16.mxu0 0
    %6060 = vmatpush1.bf16.msra.mxu0 0
    %6061 = vmatprep.subr.bf16.mxu0 0
    %6062 = vmatpush1.bf16.msra.mxu0 0
    %6063 = vmatprep.subr.bf16.mxu0 0
    %6064 = vmatpush1.bf16.msra.mxu0 0
    %6065 = vmatprep.subr.bf16.mxu0 0
    %6066 = vmatpush1.bf16.msra.mxu0 0
    %6067 = vmatprep.subr.bf16.mxu0 0
    %6068 = vmatpush1.bf16.msra.mxu0 0
    %6069 = vmatprep.subr.bf16.mxu0 0
    %6070 = vmatpush1.bf16.msra.mxu0 0
    %6071 = vmatprep.mubr.bf16.mxu0 0
    %6072 = vmatmul.mubr.bf16.gmra.mrb[0].mxu0 %v6031
    %v6073 = vpop.f32.mrb[0].mxu0
    %v6074 = vadd.f32 %v130, %v6073
    %v6075 = vpop.f32.mrb[0].mxu0
    %v6076 = vpop.f32.mrb[0].mxu0
    %v6077 = vadd.f32 %v131, %v6076
    %v6078 = vpop.f32.mrb[0].mxu0
    %6079 = vmatprep.mubr.bf16.mxu0 0
    %6080 = vmatmul.mubr.bf16.gmra.mrb[0].mxu0 %v6034
    %v6081 = vpop.f32.mrb[0].mxu0
    %v6082 = vadd.f32 %v132, %v6081
    %v6083 = vpop.f32.mrb[0].mxu0
    %v6084 = vpop.f32.mrb[0].mxu0
    %v6085 = vpop.f32.mrb[0].mxu0
    %6086 = vdwg.mxu0
    %v6087 = vsel %vm842, %v6074, -inf
    %6088 = vmax.xlane.f32.xlu0 %v6087
    %v6089 = vpop.xlane.xlu0 %6088
    %v6090 = vsel %vm842, %v6077, -inf
    %6091 = vmax.xlane.f32.xlu0 %v6090
    %v6092 = vpop.xlane.xlu0 %6091
    %v6093 = vsel %vm842, %v6082, -inf
    %6094 = vmax.xlane.f32.xlu0 %v6093
    %v6095 = vpop.xlane.xlu0 %6094
    %v6096 = vsub.f32 %v6074, %v6089
    %v6097 = vsub.f32 %v6077, %v6092
    %v6098 = vsub.f32 %v6082, %v6095
    %v6099 = vmul.f32 %v6096, 1.442695
    %v6100 = vpow.pop %v6099
    %v6101 = vmul.f32 %v6097, 1.442695
    %v6102 = vpow.pop %v6101
    %v6103 = vmul.f32 %v6098, 1.442695
    %v6104 = vpow.pop %v6103
    %v6105 = vsel %vm842, %v6100, 0.0
    %6106 = vadd.xlane.f32.xlu0 %v6105
    %v6107 = vpop.xlane.xlu0 %6106
    %v6108 = vsel %vm842, %v6102, 0.0
    %6109 = vadd.xlane.f32.xlu0 %v6108
    %v6110 = vpop.xlane.xlu0 %6109
    %v6111 = vsel %vm842, %v6104, 0.0
    %6112 = vadd.xlane.f32.xlu0 %v6111
    %v6113 = vpop.xlane.xlu0 %6112
    %v6114 = vrcp.pop %v6107
    %v6115 = vrcp.pop %v6110
    %v6116 = vrcp.pop %v6113
    %v6117 = vmul.f32 %v6100, %v6114
    %v6118 = vmul.f32 %v6102, %v6115
    %v6119 = vmul.f32 %v6104, %v6116
    %v6120 = vpack.c.bf16 %v6118, %v6117
    %v6121 = vpack.c.bf16 %v6119, %v6119
    %6122 = vrot.lane.b32.xlu0 %v5548, 40
    %v6123 = vpop.permute.xlu0 %6122
    %6124 = vrot.lane.b32.xlu0 %v5549, 40
    %v6125 = vpop.permute.xlu0 %6124
    %v6128 = vsel %vm842, %v6120, 0
    %v6131 = vsel %vm842, %v6121, 0
    %v6134 = vsel %vm790, %v6125, 0
    %6136 = vmatprep.subr.bf16.mxu0 0
    %6137 = vmatpush1.bf16.msra.mxu0 %v6123
    %6138 = vmatprep.subr.bf16.mxu0 0
    %6139 = vmatpush1.bf16.msra.mxu0 %v6134
    %6140 = vmatprep.subr.bf16.mxu0 0
    %6141 = vmatpush1.bf16.msra.mxu0 0
    %6142 = vmatprep.subr.bf16.mxu0 0
    %6143 = vmatpush1.bf16.msra.mxu0 0
    %6144 = vmatprep.subr.bf16.mxu0 0
    %6145 = vmatpush1.bf16.msra.mxu0 0
    %6146 = vmatprep.subr.bf16.mxu0 0
    %6147 = vmatpush1.bf16.msra.mxu0 0
    %6148 = vmatprep.subr.bf16.mxu0 0
    %6149 = vmatpush1.bf16.msra.mxu0 0
    %6150 = vmatprep.subr.bf16.mxu0 0
    %6151 = vmatpush1.bf16.msra.mxu0 0
    %6152 = vmatprep.subr.bf16.mxu0 0
    %6153 = vmatpush1.bf16.msra.mxu0 0
    %6154 = vmatprep.subr.bf16.mxu0 0
    %6155 = vmatpush1.bf16.msra.mxu0 0
    %6156 = vmatprep.subr.bf16.mxu0 0
    %6157 = vmatpush1.bf16.msra.mxu0 0
    %6158 = vmatprep.subr.bf16.mxu0 0
    %6159 = vmatpush1.bf16.msra.mxu0 0
    %6160 = vmatprep.subr.bf16.mxu0 0
    %6161 = vmatpush1.bf16.msra.mxu0 0
    %6162 = vmatprep.subr.bf16.mxu0 0
    %6163 = vmatpush1.bf16.msra.mxu0 0
    %6164 = vmatprep.subr.bf16.mxu0 0
    %6165 = vmatpush1.bf16.msra.mxu0 0
    %6166 = vmatprep.subr.bf16.mxu0 0
    %6167 = vmatpush1.bf16.msra.mxu0 0
    %6168 = vmatprep.mubr.bf16.mxu0 0
    %6169 = vmatmul.mubr.bf16.gmra.mrb[0].mxu0 %v6128
    %v6170 = vpop.f32.mrb[0].mxu0
    %v6171 = vadd.f32 0.0, %v6170
    %v6172 = vpop.f32.mrb[0].mxu0
    %v6173 = vpop.f32.mrb[0].mxu0
    %v6174 = vadd.f32 0.0, %v6173
    %v6175 = vpop.f32.mrb[0].mxu0
    %6176 = vmatprep.mubr.bf16.mxu0 0
    %6177 = vmatmul.mubr.bf16.gmra.mrb[0].mxu0 %v6131
    %v6178 = vpop.f32.mrb[0].mxu0
    %v6179 = vadd.f32 0.0, %v6178
    %v6180 = vpop.f32.mrb[0].mxu0
    %v6181 = vpop.f32.mrb[0].mxu0
    %v6182 = vpop.f32.mrb[0].mxu0
    %6183 = vdwg.mxu0
    %6187 = vrot.lane.b32.xlu0 %v5853, 8
    %v6188 = vpop.permute.xlu0 %6187
    %6189 = vrot.lane.b32.xlu0 %v5856, 8
    %v6190 = vpop.permute.xlu0 %6189
    %6191 = vrot.lane.b32.xlu0 %v5861, 8
    %v6192 = vpop.permute.xlu0 %6191
    %6199 = vrot.lane.b32.xlu0 %v6012, 16
    %v6200 = vpop.permute.xlu0 %6199
    %6201 = vrot.lane.b32.xlu0 %v6015, 16
    %v6202 = vpop.permute.xlu0 %6201
    %6203 = vrot.lane.b32.xlu0 %v6020, 16
    %v6204 = vpop.permute.xlu0 %6203
    %6211 = vrot.lane.b32.xlu0 %v6171, 24
    %v6212 = vpop.permute.xlu0 %6211
    %6213 = vrot.lane.b32.xlu0 %v6174, 24
    %v6214 = vpop.permute.xlu0 %6213
    %6215 = vrot.lane.b32.xlu0 %v6179, 24
    %v6216 = vpop.permute.xlu0 %6215
    %v6220 = vsel %vm525, %v5694, %v6188
    %v6221 = vsel %vm525, %v5697, %v6190
    %v6222 = vsel %vm525, %v5702, %v6192
    %v6223 = vsel %vm1458, %v6220, %v6200
    %v6224 = vsel %vm1458, %v6221, %v6202
    %v6225 = vsel %vm1458, %v6222, %v6204
    %v6226 = vsel %vm842, %v6223, %v6212
    %v6227 = vsel %vm842, %v6224, %v6214
    %v6228 = vsel %vm842, %v6225, %v6216
    %v6229 = vld [vmem:[#allocation2 + $0x580] sm:$0xf]
    %v6230 = vld [vmem:[#allocation2 + $0x584] sm:$0xf]
    %v6231 = vld [vmem:[#allocation2 + $0x588] sm:$0xf]
    %v6232 = vld [vmem:[#allocation2 + $0x58c] sm:$0xf]
    %v6233 = vpack.c.bf16 %v6227, %v6226
    %v6234 = vpack.c.bf16 %v6228, %v6228
    %v6235 = vld [vmem:[%s1 + $0x25] sm:$0x1]
    %v6236 = vlaneseq
    %v6237 = vshrl.u32 %v6236, 7
    %v6238 = vsub.s32 0, %v6237
    %v6239 = vrot.slane %v6235, %v6238
    %v6244 = vunpack.c.l.b16 %v6229
    %v6245 = vunpack.c.l.b16 %v6230
    %v6246 = vunpack.c.l.b16 %v6231
    %v6247 = vunpack.c.l.b16 %v6232
    %v6248 = vpack.c.b16 %v6245, %v6244
    %v6249 = vpack.c.b16 %v6247, %v6246
    %v6253 = vsel %vm1488, %v6233, 0
    %v6256 = vsel %vm1488, %v6234, 0
    %6258 = vmatprep.subr.bf16.mxu0 0
    %6259 = vmatpush1.bf16.msra.mxu0 %v6248
    %6260 = vmatprep.subr.bf16.mxu0 0
    %6261 = vmatpush1.bf16.msra.mxu0 %v6249
    %6262 = vmatprep.subr.bf16.mxu0 0
    %6263 = vmatpush1.bf16.msra.mxu0 0
    %6264 = vmatprep.subr.bf16.mxu0 0
    %6265 = vmatpush1.bf16.msra.mxu0 0
    %6266 = vmatprep.subr.bf16.mxu0 0
    %6267 = vmatpush1.bf16.msra.mxu0 0
    %6268 = vmatprep.subr.bf16.mxu0 0
    %6269 = vmatpush1.bf16.msra.mxu0 0
    %6270 = vmatprep.subr.bf16.mxu0 0
    %6271 = vmatpush1.bf16.msra.mxu0 0
    %6272 = vmatprep.subr.bf16.mxu0 0
    %6273 = vmatpush1.bf16.msra.mxu0 0
    %6274 = vmatprep.subr.bf16.mxu0 0
    %6275 = vmatpush1.bf16.msra.mxu0 0
    %6276 = vmatprep.subr.bf16.mxu0 0
    %6277 = vmatpush1.bf16.msra.mxu0 0
    %6278 = vmatprep.subr.bf16.mxu0 0
    %6279 = vmatpush1.bf16.msra.mxu0 0
    %6280 = vmatprep.subr.bf16.mxu0 0
    %6281 = vmatpush1.bf16.msra.mxu0 0
    %6282 = vmatprep.subr.bf16.mxu0 0
    %6283 = vmatpush1.bf16.msra.mxu0 0
    %6284 = vmatprep.subr.bf16.mxu0 0
    %6285 = vmatpush1.bf16.msra.mxu0 0
    %6286 = vmatprep.subr.bf16.mxu0 0
    %6287 = vmatpush1.bf16.msra.mxu0 0
    %6288 = vmatprep.subr.bf16.mxu0 0
    %6289 = vmatpush1.bf16.msra.mxu0 0
    %6290 = vmatprep.mubr.bf16.mxu0 0
    %6291 = vmatmul.mubr.bf16.gmra.mrb[0].mxu0 %v6253
    %v6292 = vpop.f32.mrb[0].mxu0
    %v6293 = vadd.f32 %v6239, %v6292
    %v6294 = vpop.f32.mrb[0].mxu0
    %v6295 = vpop.f32.mrb[0].mxu0
    %v6296 = vadd.f32 %v6239, %v6295
    %v6297 = vpop.f32.mrb[0].mxu0
    %6298 = vmatprep.mubr.bf16.mxu0 0
    %6299 = vmatmul.mubr.bf16.gmra.mrb[0].mxu0 %v6256
    %v6300 = vpop.f32.mrb[0].mxu0
    %v6301 = vadd.f32 %v6239, %v6300
    %v6302 = vpop.f32.mrb[0].mxu0
    %v6303 = vpop.f32.mrb[0].mxu0
    %v6304 = vpop.f32.mrb[0].mxu0
    %6305 = vdwg.mxu0
    %v6306 = vadd.f32 %v5382, %v6293
    %v6307 = vadd.f32 %v5383, %v6296
    %v6308 = vadd.f32 %v5384, %v6301
    %6309 = vadd.xlane.f32.xlu0 %v6306
    %v6310 = vpop.xlane.xlu0 %6309
    %6311 = vadd.xlane.f32.xlu0 %v6307
    %v6312 = vpop.xlane.xlu0 %6311
    %6313 = vadd.xlane.f32.xlu0 %v6308
    %v6314 = vpop.xlane.xlu0 %6313
    %v6315 = vmul.f32 %v6310, 0.03125
    %v6316 = vmul.f32 %v6312, 0.03125
    %v6317 = vmul.f32 %v6314, 0.03125
    %v6318 = vmul.f32 %v6306, %v6306
    %v6319 = vmul.f32 %v6307, %v6307
    %v6320 = vmul.f32 %v6308, %v6308
    %6321 = vadd.xlane.f32.xlu0 %v6318
    %v6322 = vpop.xlane.xlu0 %6321
    %6323 = vadd.xlane.f32.xlu0 %v6319
    %v6324 = vpop.xlane.xlu0 %6323
    %6325 = vadd.xlane.f32.xlu0 %v6320
    %v6326 = vpop.xlane.xlu0 %6325
    %v6327 = vmul.f32 %v6322, 0.03125
    %v6328 = vmul.f32 %v6324, 0.03125
    %v6329 = vmul.f32 %v6326, 0.03125
    %v6330 = vsub.f32 %v6306, %v6315
    %v6331 = vsub.f32 %v6307, %v6316
    %v6332 = vsub.f32 %v6308, %v6317
    %v6333 = vmul.f32 %v6315, %v6315
    %v6334 = vmul.f32 %v6316, %v6316
    %v6335 = vmul.f32 %v6317, %v6317
    %v6336 = vsub.f32 %v6327, %v6333
    %v6337 = vsub.f32 %v6328, %v6334
    %v6338 = vsub.f32 %v6329, %v6335
    %v6339 = vadd.f32 %v6336, 1e-05
    %v6340 = vadd.f32 %v6337, 1e-05
    %v6341 = vadd.f32 %v6338, 1e-05
    %v6342 = vrsqrt.pop %v6339
    %v6343 = vrsqrt.pop %v6340
    %v6344 = vrsqrt.pop %v6341
    %v6345 = vmul.f32 %v6330, %v6342
    %v6346 = vmul.f32 %v6331, %v6343
    %v6347 = vmul.f32 %v6332, %v6344
    %v6348 = vld [vmem:[%s1 + $0x26] sm:$0x1]
    %v6349 = vlaneseq
    %v6350 = vshrl.u32 %v6349, 7
    %v6351 = vsub.s32 0, %v6350
    %v6352 = vrot.slane %v6348, %v6351
    %v6353 = vmul.f32 %v6345, %v6352
    %v6354 = vmul.f32 %v6346, %v6352
    %v6355 = vmul.f32 %v6347, %v6352
    %v6356 = vld [vmem:[%s1 + $0x27] sm:$0x1]
    %v6357 = vlaneseq
    %v6358 = vshrl.u32 %v6357, 7
    %v6359 = vsub.s32 0, %v6358
    %v6360 = vrot.slane %v6356, %v6359
    %v6361 = vadd.f32 %v6353, %v6360
    %v6362 = vadd.f32 %v6354, %v6360
    %v6363 = vadd.f32 %v6355, %v6360
    %v6364 = vld [vmem:[#allocation2 + $0x5c0] sm:$0xf]
    %v6365 = vld [vmem:[#allocation2 + $0x5c4] sm:$0xf]
    %v6366 = vld [vmem:[#allocation2 + $0x5c8] sm:$0xf]
    %v6367 = vld [vmem:[#allocation2 + $0x5cc] sm:$0xf]
    %v6368 = vld [vmem:[#allocation2 + $0x5d0] sm:$0xf]
    %v6369 = vld [vmem:[#allocation2 + $0x5d4] sm:$0xf]
    %v6370 = vld [vmem:[#allocation2 + $0x5d8] sm:$0xf]
    %v6371 = vld [vmem:[#allocation2 + $0x5dc] sm:$0xf]
    %v6372 = vld [vmem:[#allocation2 + $0x5e0] sm:$0xf]
    %v6373 = vld [vmem:[#allocation2 + $0x5e4] sm:$0xf]
    %v6374 = vld [vmem:[#allocation2 + $0x5e8] sm:$0xf]
    %v6375 = vld [vmem:[#allocation2 + $0x5ec] sm:$0xf]
    %v6376 = vld [vmem:[#allocation2 + $0x5f0] sm:$0xf]
    %v6377 = vld [vmem:[#allocation2 + $0x5f4] sm:$0xf]
    %v6378 = vld [vmem:[#allocation2 + $0x5f8] sm:$0xf]
    %v6379 = vld [vmem:[#allocation2 + $0x5fc] sm:$0xf]
    %v6380 = vld [vmem:[%s1 + $0x28] sm:$0x1]
    %v6381 = vlaneseq
    %v6382 = vshrl.u32 %v6381, 7
    %v6383 = vsub.s32 0, %v6382
    %v6384 = vrot.slane %v6380, %v6383
    %v6401 = vunpack.c.l.b16 %v6364
    %v6402 = vunpack.c.l.b16 %v6365
    %v6403 = vunpack.c.l.b16 %v6366
    %v6404 = vunpack.c.l.b16 %v6367
    %v6405 = vunpack.c.l.b16 %v6368
    %v6406 = vunpack.c.l.b16 %v6369
    %v6407 = vunpack.c.l.b16 %v6370
    %v6408 = vunpack.c.l.b16 %v6371
    %v6409 = vunpack.c.l.b16 %v6372
    %v6410 = vunpack.c.l.b16 %v6373
    %v6411 = vunpack.c.l.b16 %v6374
    %v6412 = vunpack.c.l.b16 %v6375
    %v6413 = vunpack.c.l.b16 %v6376
    %v6414 = vunpack.c.l.b16 %v6377
    %v6415 = vunpack.c.l.b16 %v6378
    %v6416 = vunpack.c.l.b16 %v6379
    %v6417 = vpack.c.b16 %v6402, %v6401
    %v6418 = vpack.c.b16 %v6404, %v6403
    %v6419 = vpack.c.b16 %v6406, %v6405
    %v6420 = vpack.c.b16 %v6408, %v6407
    %v6421 = vpack.c.b16 %v6410, %v6409
    %v6422 = vpack.c.b16 %v6412, %v6411
    %v6423 = vpack.c.b16 %v6414, %v6413
    %v6424 = vpack.c.b16 %v6416, %v6415
    %6433 = vmatprep.subr.bf16.mxu0 0
    %6434 = vmatpush1.bf16.msra.mxu0 %v6417
    %6435 = vmatprep.subr.bf16.mxu0 0
    %6436 = vmatpush1.bf16.msra.mxu0 %v6418
    %6437 = vmatprep.subr.bf16.mxu0 0
    %6438 = vmatpush1.bf16.msra.mxu0 %v6419
    %6439 = vmatprep.subr.bf16.mxu0 0
    %6440 = vmatpush1.bf16.msra.mxu0 %v6420
    %6441 = vmatprep.subr.bf16.mxu0 0
    %6442 = vmatpush1.bf16.msra.mxu0 %v6421
    %6443 = vmatprep.subr.bf16.mxu0 0
    %6444 = vmatpush1.bf16.msra.mxu0 %v6422
    %6445 = vmatprep.subr.bf16.mxu0 0
    %6446 = vmatpush1.bf16.msra.mxu0 %v6423
    %6447 = vmatprep.subr.bf16.mxu0 0
    %6448 = vmatpush1.bf16.msra.mxu0 %v6424
    %6449 = vmatprep.subr.bf16.mxu0 0
    %6450 = vmatpush1.bf16.msra.mxu0 0
    %6451 = vmatprep.subr.bf16.mxu0 0
    %6452 = vmatpush1.bf16.msra.mxu0 0
    %6453 = vmatprep.subr.bf16.mxu0 0
    %6454 = vmatpush1.bf16.msra.mxu0 0
    %6455 = vmatprep.subr.bf16.mxu0 0
    %6456 = vmatpush1.bf16.msra.mxu0 0
    %6457 = vmatprep.subr.bf16.mxu0 0
    %6458 = vmatpush1.bf16.msra.mxu0 0
    %6459 = vmatprep.subr.bf16.mxu0 0
    %6460 = vmatpush1.bf16.msra.mxu0 0
    %6461 = vmatprep.subr.bf16.mxu0 0
    %6462 = vmatpush1.bf16.msra.mxu0 0
    %6463 = vmatprep.subr.bf16.mxu0 0
    %6464 = vmatpush1.bf16.msra.mxu0 0
    %6465 = vmatprep.mubr.bf16.mxu0 0
    %6466 = vmatmul.mubr.bf16.gmra.mrb[0].mxu0 %v4723
    %v6467 = vpop.f32.mrb[0].mxu0
    %v6468 = vadd.f32 %v6384, %v6467
    %v6469 = vpop.f32.mrb[0].mxu0
    %v6470 = vpop.f32.mrb[0].mxu0
    %v6471 = vpop.f32.mrb[0].mxu0
    %6472 = vdwg.mxu0
    %v6473 = vld [vmem:[#allocation2 + $0x600] sm:$0xf]
    %v6474 = vld [vmem:[#allocation2 + $0x604] sm:$0xf]
    %v6475 = vld [vmem:[#allocation2 + $0x608] sm:$0xf]
    %v6476 = vld [vmem:[#allocation2 + $0x60c] sm:$0xf]
    %v6477 = vld [vmem:[#allocation2 + $0x610] sm:$0xf]
    %v6478 = vld [vmem:[#allocation2 + $0x614] sm:$0xf]
    %v6479 = vld [vmem:[#allocation2 + $0x618] sm:$0xf]
    %v6480 = vld [vmem:[#allocation2 + $0x61c] sm:$0xf]
    %v6481 = vld [vmem:[#allocation2 + $0x620] sm:$0xf]
    %v6482 = vld [vmem:[#allocation2 + $0x624] sm:$0xf]
    %v6483 = vld [vmem:[#allocation2 + $0x628] sm:$0xf]
    %v6484 = vld [vmem:[#allocation2 + $0x62c] sm:$0xf]
    %v6485 = vld [vmem:[#allocation2 + $0x630] sm:$0xf]
    %v6486 = vld [vmem:[#allocation2 + $0x634] sm:$0xf]
    %v6487 = vld [vmem:[#allocation2 + $0x638] sm:$0xf]
    %v6488 = vld [vmem:[#allocation2 + $0x63c] sm:$0xf]
    %v6489 = vpack.c.bf16 %v6468, %v6468
    %v6490 = vld [vmem:[%s1 + $0x29] sm:$0x1]
    %v6491 = vlaneseq
    %v6492 = vshrl.u32 %v6491, 7
    %v6493 = vsub.s32 0, %v6492
    %v6494 = vrot.slane %v6490, %v6493
    %v6511 = vunpack.c.l.b16 %v6473
    %v6512 = vunpack.c.l.b16 %v6474
    %v6513 = vunpack.c.l.b16 %v6475
    %v6514 = vunpack.c.l.b16 %v6476
    %v6515 = vunpack.c.l.b16 %v6477
    %v6516 = vunpack.c.l.b16 %v6478
    %v6517 = vunpack.c.l.b16 %v6479
    %v6518 = vunpack.c.l.b16 %v6480
    %v6519 = vunpack.c.l.b16 %v6481
    %v6520 = vunpack.c.l.b16 %v6482
    %v6521 = vunpack.c.l.b16 %v6483
    %v6522 = vunpack.c.l.b16 %v6484
    %v6523 = vunpack.c.l.b16 %v6485
    %v6524 = vunpack.c.l.b16 %v6486
    %v6525 = vunpack.c.l.b16 %v6487
    %v6526 = vunpack.c.l.b16 %v6488
    %v6527 = vpack.c.b16 %v6512, %v6511
    %v6528 = vpack.c.b16 %v6514, %v6513
    %v6529 = vpack.c.b16 %v6516, %v6515
    %v6530 = vpack.c.b16 %v6518, %v6517
    %v6531 = vpack.c.b16 %v6520, %v6519
    %v6532 = vpack.c.b16 %v6522, %v6521
    %v6533 = vpack.c.b16 %v6524, %v6523
    %v6534 = vpack.c.b16 %v6526, %v6525
    %6543 = vmatprep.subr.bf16.mxu0 0
    %6544 = vmatpush1.bf16.msra.mxu0 %v6527
    %6545 = vmatprep.subr.bf16.mxu0 0
    %6546 = vmatpush1.bf16.msra.mxu0 %v6528
    %6547 = vmatprep.subr.bf16.mxu0 0
    %6548 = vmatpush1.bf16.msra.mxu0 %v6529
    %6549 = vmatprep.subr.bf16.mxu0 0
    %6550 = vmatpush1.bf16.msra.mxu0 %v6530
    %6551 = vmatprep.subr.bf16.mxu0 0
    %6552 = vmatpush1.bf16.msra.mxu0 %v6531
    %6553 = vmatprep.subr.bf16.mxu0 0
    %6554 = vmatpush1.bf16.msra.mxu0 %v6532
    %6555 = vmatprep.subr.bf16.mxu0 0
    %6556 = vmatpush1.bf16.msra.mxu0 %v6533
    %6557 = vmatprep.subr.bf16.mxu0 0
    %6558 = vmatpush1.bf16.msra.mxu0 %v6534
    %6559 = vmatprep.subr.bf16.mxu0 0
    %6560 = vmatpush1.bf16.msra.mxu0 0
    %6561 = vmatprep.subr.bf16.mxu0 0
    %6562 = vmatpush1.bf16.msra.mxu0 0
    %6563 = vmatprep.subr.bf16.mxu0 0
    %6564 = vmatpush1.bf16.msra.mxu0 0
    %6565 = vmatprep.subr.bf16.mxu0 0
    %6566 = vmatpush1.bf16.msra.mxu0 0
    %6567 = vmatprep.subr.bf16.mxu0 0
    %6568 = vmatpush1.bf16.msra.mxu0 0
    %6569 = vmatprep.subr.bf16.mxu0 0
    %6570 = vmatpush1.bf16.msra.mxu0 0
    %6571 = vmatprep.subr.bf16.mxu0 0
    %6572 = vmatpush1.bf16.msra.mxu0 0
    %6573 = vmatprep.subr.bf16.mxu0 0
    %6574 = vmatpush1.bf16.msra.mxu0 0
    %6575 = vmatprep.mubr.bf16.mxu0 0
    %6576 = vmatmul.mubr.bf16.gmra.mrb[0].mxu0 %v6489
    %v6577 = vpop.f32.mrb[0].mxu0
    %v6578 = vadd.f32 %v6494, %v6577
    %v6579 = vpop.f32.mrb[0].mxu0
    %v6580 = vpop.f32.mrb[0].mxu0
    %v6581 = vpop.f32.mrb[0].mxu0
    %6582 = vdwg.mxu0
    %6583 = vmatprep.subr.mxu0 0.0
    %6584 = vmatpush1.msra.mxu0 %v6578
    %6585 = vmatprep.subr.mxu0 0.0
    %6586 = vmatpush1.msra.mxu0 0.0
    %6587 = vmatprep.subr.mxu0 0.0
    %6588 = vmatpush1.msra.mxu0 0.0
    %6589 = vmatprep.subr.mxu0 0.0
    %6590 = vmatpush1.msra.mxu0 0.0
    %6591 = vmatprep.subr.mxu0 0.0
    %6592 = vmatpush1.msra.mxu0 0.0
    %6593 = vmatprep.subr.mxu0 0.0
    %6594 = vmatpush1.msra.mxu0 0.0
    %6595 = vmatprep.subr.mxu0 0.0
    %6596 = vmatpush1.msra.mxu0 0.0
    %6597 = vmatprep.subr.mxu0 0.0
    %6598 = vmatpush1.msra.mxu0 0.0
    %6599 = vmatprep.subr.mxu0 0.0
    %6600 = vmatpush1.msra.mxu0 0.0
    %6601 = vmatprep.subr.mxu0 0.0
    %6602 = vmatpush1.msra.mxu0 0.0
    %6603 = vmatprep.subr.mxu0 0.0
    %6604 = vmatpush1.msra.mxu0 0.0
    %6605 = vmatprep.subr.mxu0 0.0
    %6606 = vmatpush1.msra.mxu0 0.0
    %6607 = vmatprep.subr.mxu0 0.0
    %6608 = vmatpush1.msra.mxu0 0.0
    %6609 = vmatprep.subr.mxu0 0.0
    %6610 = vmatpush1.msra.mxu0 0.0
    %6611 = vmatprep.subr.mxu0 0.0
    %6612 = vmatpush1.msra.mxu0 0.0
    %6613 = vmatprep.subr.mxu0 0.0
    %6614 = vmatpush1.msra.mxu0 0.0
    %6615 = vmatprep.subr.mxu0 0.0
    %6616 = vmatpush1.msra.mxu0 0.0
    %6617 = vmatprep.subr.mxu0 0.0
    %6618 = vmatpush1.msra.mxu0 0.0
    %6619 = vmatprep.subr.mxu0 0.0
    %6620 = vmatpush1.msra.mxu0 0.0
    %6621 = vmatprep.subr.mxu0 0.0
    %6622 = vmatpush1.msra.mxu0 0.0
    %6623 = vmatprep.subr.mxu0 0.0
    %6624 = vmatpush1.msra.mxu0 0.0
    %6625 = vmatprep.subr.mxu0 0.0
    %6626 = vmatpush1.msra.mxu0 0.0
    %6627 = vmatprep.subr.mxu0 0.0
    %6628 = vmatpush1.msra.mxu0 0.0
    %6629 = vmatprep.subr.mxu0 0.0
    %6630 = vmatpush1.msra.mxu0 0.0
    %6631 = vmatprep.subr.mxu0 0.0
    %6632 = vmatpush1.msra.mxu0 0.0
    %6633 = vmatprep.subr.mxu0 0.0
    %6634 = vmatpush1.msra.mxu0 0.0
    %6635 = vmatprep.subr.mxu0 0.0
    %6636 = vmatpush1.msra.mxu0 0.0
    %6637 = vmatprep.subr.mxu0 0.0
    %6638 = vmatpush1.msra.mxu0 0.0
    %6639 = vmatprep.subr.mxu0 0.0
    %6640 = vmatpush1.msra.mxu0 0.0
    %6641 = vmatprep.subr.mxu0 0.0
    %6642 = vmatpush1.msra.mxu0 0.0
    %6643 = vmatprep.subr.mxu0 0.0
    %6644 = vmatpush1.msra.mxu0 0.0
    %6645 = vmatprep.subr.mxu0 0.0
    %6646 = vmatpush1.msra.mxu0 0.0
    %6647 = vmatprep.mubr.f32.mxu0 0.0
    %6648 = vmatmul.mubr.f32.gmra.mrb[0].mxu0 %v4928
    %v6649 = vpop.f32.mrb[0].mxu0
    %v6650 = vadd.f32 0.0, %v6649
    %v6651 = vpop.f32.mrb[0].mxu0
    %6652 = vmatprep.mubr.f32.mxu0 0.0
    %6653 = vmatmul.mubr.f32.gmra.mrb[0].mxu0 %v4931
    %v6654 = vpop.f32.mrb[0].mxu0
    %v6655 = vadd.f32 0.0, %v6654
    %v6656 = vpop.f32.mrb[0].mxu0
    %6657 = vmatprep.mubr.f32.mxu0 0.0
    %6658 = vmatmul.mubr.f32.gmra.mrb[0].mxu0 %v4934
    %v6659 = vpop.f32.mrb[0].mxu0
    %v6660 = vadd.f32 0.0, %v6659
    %v6661 = vpop.f32.mrb[0].mxu0
    %6662 = vdwg.mxu0
    %v6663 = vadd.f32 %v6361, %v6650
    %v6664 = vadd.f32 %v6362, %v6655
    %v6665 = vadd.f32 %v6363, %v6660
    %6666 = vadd.xlane.f32.xlu0 %v6663
    %v6667 = vpop.xlane.xlu0 %6666
    %6668 = vadd.xlane.f32.xlu0 %v6664
    %v6669 = vpop.xlane.xlu0 %6668
    %6670 = vadd.xlane.f32.xlu0 %v6665
    %v6671 = vpop.xlane.xlu0 %6670
    %v6672 = vmul.f32 %v6667, 0.03125
    %v6673 = vmul.f32 %v6669, 0.03125
    %v6674 = vmul.f32 %v6671, 0.03125
    %v6675 = vmul.f32 %v6663, %v6663
    %v6676 = vmul.f32 %v6664, %v6664
    %v6677 = vmul.f32 %v6665, %v6665
    %6678 = vadd.xlane.f32.xlu0 %v6675
    %v6679 = vpop.xlane.xlu0 %6678
    %6680 = vadd.xlane.f32.xlu0 %v6676
    %v6681 = vpop.xlane.xlu0 %6680
    %6682 = vadd.xlane.f32.xlu0 %v6677
    %v6683 = vpop.xlane.xlu0 %6682
    %v6684 = vmul.f32 %v6679, 0.03125
    %v6685 = vmul.f32 %v6681, 0.03125
    %v6686 = vmul.f32 %v6683, 0.03125
    %v6687 = vsub.f32 %v6663, %v6672
    %v6688 = vsub.f32 %v6664, %v6673
    %v6689 = vsub.f32 %v6665, %v6674
    %v6690 = vmul.f32 %v6672, %v6672
    %v6691 = vmul.f32 %v6673, %v6673
    %v6692 = vmul.f32 %v6674, %v6674
    %v6693 = vsub.f32 %v6684, %v6690
    %v6694 = vsub.f32 %v6685, %v6691
    %v6695 = vsub.f32 %v6686, %v6692
    %v6696 = vadd.f32 %v6693, 1e-05
    %v6697 = vadd.f32 %v6694, 1e-05
    %v6698 = vadd.f32 %v6695, 1e-05
    %v6699 = vrsqrt.pop %v6696
    %v6700 = vrsqrt.pop %v6697
    %v6701 = vrsqrt.pop %v6698
    %v6702 = vmul.f32 %v6687, %v6699
    %v6703 = vmul.f32 %v6688, %v6700
    %v6704 = vmul.f32 %v6689, %v6701
    %v6705 = vld [vmem:[%s1 + $0x2a] sm:$0x1]
    %v6706 = vlaneseq
    %v6707 = vshrl.u32 %v6706, 7
    %v6708 = vsub.s32 0, %v6707
    %v6709 = vrot.slane %v6705, %v6708
    %v6710 = vmul.f32 %v6702, %v6709
    %v6711 = vmul.f32 %v6703, %v6709
    %v6712 = vmul.f32 %v6704, %v6709
    %v6713 = vld [vmem:[%s1 + $0x2b] sm:$0x1]
    %v6714 = vlaneseq
    %v6715 = vshrl.u32 %v6714, 7
    %v6716 = vsub.s32 0, %v6715
    %v6717 = vrot.slane %v6713, %v6716
    %v6718 = vadd.f32 %v6710, %v6717
    %v6719 = vadd.f32 %v6711, %v6717
    %v6720 = vadd.f32 %v6712, %v6717
    %v6721 = vld [vmem:[#allocation2 + $0x640] sm:$0xf]
    %v6722 = vld [vmem:[#allocation2 + $0x644] sm:$0xf]
    %v6723 = vld [vmem:[#allocation2 + $0x648] sm:$0xf]
    %v6724 = vld [vmem:[#allocation2 + $0x64c] sm:$0xf]
    %v6725 = vld [vmem:[#allocation2 + $0x650] sm:$0xf]
    %v6726 = vld [vmem:[#allocation2 + $0x654] sm:$0xf]
    %v6727 = vld [vmem:[#allocation2 + $0x658] sm:$0xf]
    %v6728 = vld [vmem:[#allocation2 + $0x65c] sm:$0xf]
    %v6729 = vld [vmem:[#allocation2 + $0x660] sm:$0xf]
    %v6730 = vld [vmem:[#allocation2 + $0x664] sm:$0xf]
    %v6731 = vld [vmem:[#allocation2 + $0x668] sm:$0xf]
    %v6732 = vld [vmem:[#allocation2 + $0x66c] sm:$0xf]
    %v6733 = vld [vmem:[#allocation2 + $0x670] sm:$0xf]
    %v6734 = vld [vmem:[#allocation2 + $0x674] sm:$0xf]
    %v6735 = vld [vmem:[#allocation2 + $0x678] sm:$0xf]
    %v6736 = vld [vmem:[#allocation2 + $0x67c] sm:$0xf]
    %v6737 = vpack.c.bf16 %v6719, %v6718
    %v6738 = vpack.c.bf16 %v6720, %v6720
    %v6739 = vld [vmem:[%s1 + $0x2c] sm:$0x1]
    %v6740 = vlaneseq
    %v6741 = vshrl.u32 %v6740, 7
    %v6742 = vsub.s32 0, %v6741
    %v6743 = vrot.slane %v6739, %v6742
    %v6760 = vunpack.c.l.b16 %v6721
    %v6761 = vunpack.c.l.b16 %v6722
    %v6762 = vunpack.c.l.b16 %v6723
    %v6763 = vunpack.c.l.b16 %v6724
    %v6764 = vunpack.c.l.b16 %v6725
    %v6765 = vunpack.c.l.b16 %v6726
    %v6766 = vunpack.c.l.b16 %v6727
    %v6767 = vunpack.c.l.b16 %v6728
    %v6768 = vunpack.c.l.b16 %v6729
    %v6769 = vunpack.c.l.b16 %v6730
    %v6770 = vunpack.c.l.b16 %v6731
    %v6771 = vunpack.c.l.b16 %v6732
    %v6772 = vunpack.c.l.b16 %v6733
    %v6773 = vunpack.c.l.b16 %v6734
    %v6774 = vunpack.c.l.b16 %v6735
    %v6775 = vunpack.c.l.b16 %v6736
    %v6776 = vpack.c.b16 %v6761, %v6760
    %v6777 = vpack.c.b16 %v6763, %v6762
    %v6778 = vpack.c.b16 %v6765, %v6764
    %v6779 = vpack.c.b16 %v6767, %v6766
    %v6780 = vpack.c.b16 %v6769, %v6768
    %v6781 = vpack.c.b16 %v6771, %v6770
    %v6782 = vpack.c.b16 %v6773, %v6772
    %v6783 = vpack.c.b16 %v6775, %v6774
    %6792 = vmatprep.subr.bf16.mxu0 0
    %6793 = vmatpush1.bf16.msra.mxu0 %v6776
    %6794 = vmatprep.subr.bf16.mxu0 0
    %6795 = vmatpush1.bf16.msra.mxu0 %v6777
    %6796 = vmatprep.subr.bf16.mxu0 0
    %6797 = vmatpush1.bf16.msra.mxu0 %v6778
    %6798 = vmatprep.subr.bf16.mxu0 0
    %6799 = vmatpush1.bf16.msra.mxu0 %v6779
    %6800 = vmatprep.subr.bf16.mxu0 0
    %6801 = vmatpush1.bf16.msra.mxu0 %v6780
    %6802 = vmatprep.subr.bf16.mxu0 0
    %6803 = vmatpush1.bf16.msra.mxu0 %v6781
    %6804 = vmatprep.subr.bf16.mxu0 0
    %6805 = vmatpush1.bf16.msra.mxu0 %v6782
    %6806 = vmatprep.subr.bf16.mxu0 0
    %6807 = vmatpush1.bf16.msra.mxu0 %v6783
    %6808 = vmatprep.subr.bf16.mxu0 0
    %6809 = vmatpush1.bf16.msra.mxu0 0
    %6810 = vmatprep.subr.bf16.mxu0 0
    %6811 = vmatpush1.bf16.msra.mxu0 0
    %6812 = vmatprep.subr.bf16.mxu0 0
    %6813 = vmatpush1.bf16.msra.mxu0 0
    %6814 = vmatprep.subr.bf16.mxu0 0
    %6815 = vmatpush1.bf16.msra.mxu0 0
    %6816 = vmatprep.subr.bf16.mxu0 0
    %6817 = vmatpush1.bf16.msra.mxu0 0
    %6818 = vmatprep.subr.bf16.mxu0 0
    %6819 = vmatpush1.bf16.msra.mxu0 0
    %6820 = vmatprep.subr.bf16.mxu0 0
    %6821 = vmatpush1.bf16.msra.mxu0 0
    %6822 = vmatprep.subr.bf16.mxu0 0
    %6823 = vmatpush1.bf16.msra.mxu0 0
    %6824 = vmatprep.mubr.bf16.mxu0 0
    %6825 = vmatmul.mubr.bf16.gmra.mrb[0].mxu0 %v6737
    %v6826 = vpop.f32.mrb[0].mxu0
    %v6827 = vadd.f32 %v6743, %v6826
    %v6828 = vpop.f32.mrb[0].mxu0
    %v6829 = vpop.f32.mrb[0].mxu0
    %v6830 = vadd.f32 %v6743, %v6829
    %v6831 = vpop.f32.mrb[0].mxu0
    %6832 = vmatprep.mubr.bf16.mxu0 0
    %6833 = vmatmul.mubr.bf16.gmra.mrb[0].mxu0 %v6738
    %v6834 = vpop.f32.mrb[0].mxu0
    %v6835 = vadd.f32 %v6743, %v6834
    %v6836 = vpop.f32.mrb[0].mxu0
    %v6837 = vpop.f32.mrb[0].mxu0
    %v6838 = vpop.f32.mrb[0].mxu0
    %6839 = vdwg.mxu0
    %v6840 = vmul.f32 %v6827, 0.5
    %v6841 = vmul.f32 %v6830, 0.5
    %v6842 = vmul.f32 %v6835, 0.5
    %v6843 = vmul.f32 %v6827, 0.70710677
    %v6844 = vmul.f32 %v6830, 0.70710677
    %v6845 = vmul.f32 %v6835, 0.70710677
    %v6846 = verf.f32.pop %v6843
    %v6847 = verf.f32.pop %v6844
    %v6848 = verf.f32.pop %v6845
    %v6849 = vadd.f32 %v6846, 1.0
    %v6850 = vadd.f32 %v6847, 1.0
    %v6851 = vadd.f32 %v6848, 1.0
    %v6852 = vmul.f32 %v6840, %v6849
    %v6853 = vmul.f32 %v6841, %v6850
    %v6854 = vmul.f32 %v6842, %v6851
    %v6855 = vld [vmem:[#allocation2 + $0x680] sm:$0xf]
    %v6856 = vld [vmem:[#allocation2 + $0x684] sm:$0xf]
    %v6857 = vld [vmem:[#allocation2 + $0x688] sm:$0xf]
    %v6858 = vld [vmem:[#allocation2 + $0x68c] sm:$0xf]
    %v6859 = vld [vmem:[#allocation2 + $0x690] sm:$0xf]
    %v6860 = vld [vmem:[#allocation2 + $0x694] sm:$0xf]
    %v6861 = vld [vmem:[#allocation2 + $0x698] sm:$0xf]
    %v6862 = vld [vmem:[#allocation2 + $0x69c] sm:$0xf]
    %v6863 = vld [vmem:[#allocation2 + $0x6a0] sm:$0xf]
    %v6864 = vld [vmem:[#allocation2 + $0x6a4] sm:$0xf]
    %v6865 = vld [vmem:[#allocation2 + $0x6a8] sm:$0xf]
    %v6866 = vld [vmem:[#allocation2 + $0x6ac] sm:$0xf]
    %v6867 = vld [vmem:[#allocation2 + $0x6b0] sm:$0xf]
    %v6868 = vld [vmem:[#allocation2 + $0x6b4] sm:$0xf]
    %v6869 = vld [vmem:[#allocation2 + $0x6b8] sm:$0xf]
    %v6870 = vld [vmem:[#allocation2 + $0x6bc] sm:$0xf]
    %v6871 = vpack.c.bf16 %v6853, %v6852
    %v6872 = vpack.c.bf16 %v6854, %v6854
    %v6873 = vld [vmem:[%s1 + $0x2d] sm:$0x1]
    %v6874 = vlaneseq
    %v6875 = vshrl.u32 %v6874, 7
    %v6876 = vsub.s32 0, %v6875
    %v6877 = vrot.slane %v6873, %v6876
    %v6894 = vunpack.c.l.b16 %v6855
    %v6895 = vunpack.c.l.b16 %v6856
    %v6896 = vunpack.c.l.b16 %v6857
    %v6897 = vunpack.c.l.b16 %v6858
    %v6898 = vunpack.c.l.b16 %v6859
    %v6899 = vunpack.c.l.b16 %v6860
    %v6900 = vunpack.c.l.b16 %v6861
    %v6901 = vunpack.c.l.b16 %v6862
    %v6902 = vunpack.c.l.b16 %v6863
    %v6903 = vunpack.c.l.b16 %v6864
    %v6904 = vunpack.c.l.b16 %v6865
    %v6905 = vunpack.c.l.b16 %v6866
    %v6906 = vunpack.c.l.b16 %v6867
    %v6907 = vunpack.c.l.b16 %v6868
    %v6908 = vunpack.c.l.b16 %v6869
    %v6909 = vunpack.c.l.b16 %v6870
    %v6910 = vpack.c.b16 %v6895, %v6894
    %v6911 = vpack.c.b16 %v6897, %v6896
    %v6912 = vpack.c.b16 %v6899, %v6898
    %v6913 = vpack.c.b16 %v6901, %v6900
    %v6914 = vpack.c.b16 %v6903, %v6902
    %v6915 = vpack.c.b16 %v6905, %v6904
    %v6916 = vpack.c.b16 %v6907, %v6906
    %v6917 = vpack.c.b16 %v6909, %v6908
    %6926 = vmatprep.subr.bf16.mxu0 0
    %6927 = vmatpush1.bf16.msra.mxu0 %v6910
    %6928 = vmatprep.subr.bf16.mxu0 0
    %6929 = vmatpush1.bf16.msra.mxu0 %v6911
    %6930 = vmatprep.subr.bf16.mxu0 0
    %6931 = vmatpush1.bf16.msra.mxu0 %v6912
    %6932 = vmatprep.subr.bf16.mxu0 0
    %6933 = vmatpush1.bf16.msra.mxu0 %v6913
    %6934 = vmatprep.subr.bf16.mxu0 0
    %6935 = vmatpush1.bf16.msra.mxu0 %v6914
    %6936 = vmatprep.subr.bf16.mxu0 0
    %6937 = vmatpush1.bf16.msra.mxu0 %v6915
    %6938 = vmatprep.subr.bf16.mxu0 0
    %6939 = vmatpush1.bf16.msra.mxu0 %v6916
    %6940 = vmatprep.subr.bf16.mxu0 0
    %6941 = vmatpush1.bf16.msra.mxu0 %v6917
    %6942 = vmatprep.subr.bf16.mxu0 0
    %6943 = vmatpush1.bf16.msra.mxu0 0
    %6944 = vmatprep.subr.bf16.mxu0 0
    %6945 = vmatpush1.bf16.msra.mxu0 0
    %6946 = vmatprep.subr.bf16.mxu0 0
    %6947 = vmatpush1.bf16.msra.mxu0 0
    %6948 = vmatprep.subr.bf16.mxu0 0
    %6949 = vmatpush1.bf16.msra.mxu0 0
    %6950 = vmatprep.subr.bf16.mxu0 0
    %6951 = vmatpush1.bf16.msra.mxu0 0
    %6952 = vmatprep.subr.bf16.mxu0 0
    %6953 = vmatpush1.bf16.msra.mxu0 0
    %6954 = vmatprep.subr.bf16.mxu0 0
    %6955 = vmatpush1.bf16.msra.mxu0 0
    %6956 = vmatprep.subr.bf16.mxu0 0
    %6957 = vmatpush1.bf16.msra.mxu0 0
    %6958 = vmatprep.mubr.bf16.mxu0 0
    %6959 = vmatmul.mubr.bf16.gmra.mrb[0].mxu0 %v6871
    %v6960 = vpop.f32.mrb[0].mxu0
    %v6961 = vadd.f32 %v6877, %v6960
    %v6962 = vpop.f32.mrb[0].mxu0
    %v6963 = vpop.f32.mrb[0].mxu0
    %v6964 = vadd.f32 %v6877, %v6963
    %v6965 = vpop.f32.mrb[0].mxu0
    %6966 = vmatprep.mubr.bf16.mxu0 0
    %6967 = vmatmul.mubr.bf16.gmra.mrb[0].mxu0 %v6872
    %v6968 = vpop.f32.mrb[0].mxu0
    %v6969 = vadd.f32 %v6877, %v6968
    %v6970 = vpop.f32.mrb[0].mxu0
    %v6971 = vpop.f32.mrb[0].mxu0
    %v6972 = vpop.f32.mrb[0].mxu0
    %6973 = vdwg.mxu0
    %v6974 = vadd.f32 %v6718, %v6961
    %v6975 = vadd.f32 %v6719, %v6964
    %v6976 = vadd.f32 %v6720, %v6969
    %6977 = vadd.xlane.f32.xlu0 %v6974
    %v6978 = vpop.xlane.xlu0 %6977
    %6979 = vadd.xlane.f32.xlu0 %v6975
    %v6980 = vpop.xlane.xlu0 %6979
    %6981 = vadd.xlane.f32.xlu0 %v6976
    %v6982 = vpop.xlane.xlu0 %6981
    %v6983 = vmul.f32 %v6978, 0.03125
    %v6984 = vmul.f32 %v6980, 0.03125
    %v6985 = vmul.f32 %v6982, 0.03125
    %v6986 = vmul.f32 %v6974, %v6974
    %v6987 = vmul.f32 %v6975, %v6975
    %v6988 = vmul.f32 %v6976, %v6976
    %6989 = vadd.xlane.f32.xlu0 %v6986
    %v6990 = vpop.xlane.xlu0 %6989
    %6991 = vadd.xlane.f32.xlu0 %v6987
    %v6992 = vpop.xlane.xlu0 %6991
    %6993 = vadd.xlane.f32.xlu0 %v6988
    %v6994 = vpop.xlane.xlu0 %6993
    %v6995 = vmul.f32 %v6990, 0.03125
    %v6996 = vmul.f32 %v6992, 0.03125
    %v6997 = vmul.f32 %v6994, 0.03125
    %v6998 = vsub.f32 %v6974, %v6983
    %v6999 = vsub.f32 %v6975, %v6984
    %v7000 = vsub.f32 %v6976, %v6985
    %v7001 = vmul.f32 %v6983, %v6983
    %v7002 = vmul.f32 %v6984, %v6984
    %v7003 = vmul.f32 %v6985, %v6985
    %v7004 = vsub.f32 %v6995, %v7001
    %v7005 = vsub.f32 %v6996, %v7002
    %v7006 = vsub.f32 %v6997, %v7003
    %v7007 = vadd.f32 %v7004, 1e-05
    %v7008 = vadd.f32 %v7005, 1e-05
    %v7009 = vadd.f32 %v7006, 1e-05
    %v7010 = vrsqrt.pop %v7007
    %v7011 = vrsqrt.pop %v7008
    %v7012 = vrsqrt.pop %v7009
    %v7013 = vmul.f32 %v6998, %v7010
    %v7014 = vmul.f32 %v6999, %v7011
    %v7015 = vmul.f32 %v7000, %v7012
    %v7016 = vld [vmem:[%s1 + $0x2e] sm:$0x1]
    %v7017 = vlaneseq
    %v7018 = vshrl.u32 %v7017, 7
    %v7019 = vsub.s32 0, %v7018
    %v7020 = vrot.slane %v7016, %v7019
    %v7021 = vmul.f32 %v7013, %v7020
    %v7022 = vmul.f32 %v7014, %v7020
    %v7023 = vmul.f32 %v7015, %v7020
    %v7024 = vld [vmem:[%s1 + $0x2f] sm:$0x1]
    %v7025 = vlaneseq
    %v7026 = vshrl.u32 %v7025, 7
    %v7027 = vsub.s32 0, %v7026
    %v7028 = vrot.slane %v7024, %v7027
    %v7029 = vadd.f32 %v7021, %v7028
    %v7030 = vadd.f32 %v7022, %v7028
    %v7031 = vadd.f32 %v7023, %v7028
    %v7032 = vld [vmem:[#allocation2 + $0x6c0] sm:$0xf]
    %v7033 = vld [vmem:[#allocation2 + $0x6c4] sm:$0xf]
    %v7034 = vld [vmem:[#allocation2 + $0x6c8] sm:$0xf]
    %v7035 = vld [vmem:[#allocation2 + $0x6cc] sm:$0xf]
    %v7036 = vld [vmem:[#allocation2 + $0x6d0] sm:$0xf]
    %v7037 = vld [vmem:[#allocation2 + $0x6d4] sm:$0xf]
    %v7038 = vld [vmem:[#allocation2 + $0x6d8] sm:$0xf]
    %v7039 = vld [vmem:[#allocation2 + $0x6dc] sm:$0xf]
    %v7040 = vld [vmem:[#allocation2 + $0x6e0] sm:$0xf]
    %v7041 = vld [vmem:[#allocation2 + $0x6e4] sm:$0xf]
    %v7042 = vld [vmem:[#allocation2 + $0x6e8] sm:$0xf]
    %v7043 = vld [vmem:[#allocation2 + $0x6ec] sm:$0xf]
    %v7044 = vld [vmem:[#allocation2 + $0x6f0] sm:$0xf]
    %v7045 = vld [vmem:[#allocation2 + $0x6f4] sm:$0xf]
    %v7046 = vld [vmem:[#allocation2 + $0x6f8] sm:$0xf]
    %v7047 = vld [vmem:[#allocation2 + $0x6fc] sm:$0xf]
    %v7048 = vpack.c.bf16 %v7030, %v7029
    %v7049 = vpack.c.bf16 %v7031, %v7031
    %v7050 = vld [vmem:[%s1 + $0x30] sm:$0x1]
    %v7051 = vlaneseq
    %v7052 = vshrl.u32 %v7051, 7
    %v7053 = vsub.s32 0, %v7052
    %v7054 = vrot.slane %v7050, %v7053
    %v7071 = vunpack.c.l.b16 %v7032
    %v7072 = vunpack.c.l.b16 %v7033
    %v7073 = vunpack.c.l.b16 %v7034
    %v7074 = vunpack.c.l.b16 %v7035
    %v7075 = vunpack.c.l.b16 %v7036
    %v7076 = vunpack.c.l.b16 %v7037
    %v7077 = vunpack.c.l.b16 %v7038
    %v7078 = vunpack.c.l.b16 %v7039
    %v7079 = vunpack.c.l.b16 %v7040
    %v7080 = vunpack.c.l.b16 %v7041
    %v7081 = vunpack.c.l.b16 %v7042
    %v7082 = vunpack.c.l.b16 %v7043
    %v7083 = vunpack.c.l.b16 %v7044
    %v7084 = vunpack.c.l.b16 %v7045
    %v7085 = vunpack.c.l.b16 %v7046
    %v7086 = vunpack.c.l.b16 %v7047
    %v7087 = vpack.c.b16 %v7072, %v7071
    %v7088 = vpack.c.b16 %v7074, %v7073
    %v7089 = vpack.c.b16 %v7076, %v7075
    %v7090 = vpack.c.b16 %v7078, %v7077
    %v7091 = vpack.c.b16 %v7080, %v7079
    %v7092 = vpack.c.b16 %v7082, %v7081
    %v7093 = vpack.c.b16 %v7084, %v7083
    %v7094 = vpack.c.b16 %v7086, %v7085
    %7103 = vmatprep.subr.bf16.mxu0 0
    %7104 = vmatpush1.bf16.msra.mxu0 %v7087
    %7105 = vmatprep.subr.bf16.mxu0 0
    %7106 = vmatpush1.bf16.msra.mxu0 %v7088
    %7107 = vmatprep.subr.bf16.mxu0 0
    %7108 = vmatpush1.bf16.msra.mxu0 %v7089
    %7109 = vmatprep.subr.bf16.mxu0 0
    %7110 = vmatpush1.bf16.msra.mxu0 %v7090
    %7111 = vmatprep.subr.bf16.mxu0 0
    %7112 = vmatpush1.bf16.msra.mxu0 %v7091
    %7113 = vmatprep.subr.bf16.mxu0 0
    %7114 = vmatpush1.bf16.msra.mxu0 %v7092
    %7115 = vmatprep.subr.bf16.mxu0 0
    %7116 = vmatpush1.bf16.msra.mxu0 %v7093
    %7117 = vmatprep.subr.bf16.mxu0 0
    %7118 = vmatpush1.bf16.msra.mxu0 %v7094
    %7119 = vmatprep.subr.bf16.mxu0 0
    %7120 = vmatpush1.bf16.msra.mxu0 0
    %7121 = vmatprep.subr.bf16.mxu0 0
    %7122 = vmatpush1.bf16.msra.mxu0 0
    %7123 = vmatprep.subr.bf16.mxu0 0
    %7124 = vmatpush1.bf16.msra.mxu0 0
    %7125 = vmatprep.subr.bf16.mxu0 0
    %7126 = vmatpush1.bf16.msra.mxu0 0
    %7127 = vmatprep.subr.bf16.mxu0 0
    %7128 = vmatpush1.bf16.msra.mxu0 0
    %7129 = vmatprep.subr.bf16.mxu0 0
    %7130 = vmatpush1.bf16.msra.mxu0 0
    %7131 = vmatprep.subr.bf16.mxu0 0
    %7132 = vmatpush1.bf16.msra.mxu0 0
    %7133 = vmatprep.subr.bf16.mxu0 0
    %7134 = vmatpush1.bf16.msra.mxu0 0
    %7135 = vmatprep.mubr.bf16.mxu0 0
    %7136 = vmatmul.mubr.bf16.gmra.mrb[0].mxu0 %v7048
    %v7137 = vpop.f32.mrb[0].mxu0
    %v7138 = vadd.f32 %v7054, %v7137
    %v7139 = vpop.f32.mrb[0].mxu0
    %v7140 = vpop.f32.mrb[0].mxu0
    %v7141 = vadd.f32 %v7054, %v7140
    %v7142 = vpop.f32.mrb[0].mxu0
    %7143 = vmatprep.mubr.bf16.mxu0 0
    %7144 = vmatmul.mubr.bf16.gmra.mrb[0].mxu0 %v7049
    %v7145 = vpop.f32.mrb[0].mxu0
    %v7146 = vadd.f32 %v7054, %v7145
    %v7147 = vpop.f32.mrb[0].mxu0
    %v7148 = vpop.f32.mrb[0].mxu0
    %v7149 = vpop.f32.mrb[0].mxu0
    %7150 = vdwg.mxu0
    %7151 = vst [vmem:[#allocation11] sm:$0xff] %v7138
    %7152 = vst [vmem:[#allocation11 + $0x8] sm:$0xff] %v7141
    %7153 = vst [vmem:[#allocation11 + $0x10] sm:$0xff] %v7146
    // Predicated region
    $region50: #{tpu_custom_call.1} parent=1 // pred_check
      _
    $region51: #{tpu_custom_call.1} parent=1 // pred_check_branch
      %7155 = sbr.rel (0) target = $region53
    $region52: #{tpu_custom_call.1} parent=1 // pred_region
      %s7157 = ssub.s32 128, 128
      %7158 = vsyncadd [#allocation4], %s7157
      %s7160 = sshll.u32 [#allocation8], 4
      %s7161 = int_to_ptr.vmem [resolvable:$true] %s7160
      %7163 = dma.vmem_to_hbm [thread:$0]  %s7161, 128, %s9, [#allocation4]
    $region53: #{tpu_custom_call.1} parent=1 // pred_fallthru
      _
    // Predicated region
    $region54: #{tpu_custom_call.1} parent=1 // pred_check
      _
    $region55: #{tpu_custom_call.1} parent=1 // pred_check_branch
      %7165 = sbr.rel (0) target = $region57
    $region56: #{tpu_custom_call.1} parent=1 // pred_region
      %s7167 = ssub.s32 128, 128
      %7168 = vsyncadd [#allocation10], %s7167
      %s7170 = sshll.u32 [#allocation9], 4
      %s7171 = int_to_ptr.vmem [resolvable:$true] %s7170
      %7173 = dma.vmem_to_hbm [thread:$0]  %s7171, 128, %s10, [#allocation10]
    $region57: #{tpu_custom_call.1} parent=1 // pred_fallthru
      _
    // Predicated region
    $region58: #{tpu_custom_call.1} parent=1 // pred_check
      _
    $region59: #{tpu_custom_call.1} parent=1 // pred_check_branch
      %7175 = sbr.rel (0) target = $region61
    $region60: #{tpu_custom_call.1} parent=1 // pred_region
      %s7177 = ssub.s32 384, 384
      %7178 = vsyncadd [#allocation10], %s7177
      %s7179 = sshll.u32 [#allocation11], 4
      %s7180 = int_to_ptr.vmem [resolvable:$true] %s7179
      %7185 = dma.vmem_to_hbm [thread:$0]  %s7180, 384, %s11, [#allocation10], 128, 128, 8
    $region61: #{tpu_custom_call.1} parent=1 // pred_fallthru
      _
    // Predicated region
    $region62: #{tpu_custom_call.1} parent=1 // pred_check
      _
    $region63: #{tpu_custom_call.1} parent=1 // pred_check_branch
      %7187 = sbr.rel (0) target = $region65
    $region64: #{tpu_custom_call.1} parent=1 // pred_region
      %7188 = dma.done [#allocation4], 128
    $region65: #{tpu_custom_call.1} parent=1 // pred_fallthru
      _
    // Predicated region
    $region66: #{tpu_custom_call.1} parent=1 // pred_check
      _
    $region67: #{tpu_custom_call.1} parent=1 // pred_check_branch
      %7190 = sbr.rel (0) target = $region69
    $region68: #{tpu_custom_call.1} parent=1 // pred_region
      %7191 = dma.done [#allocation10], 128
    $region69: #{tpu_custom_call.1} parent=1 // pred_fallthru
      _
    // Predicated region
    $region70: #{tpu_custom_call.1} parent=1 // pred_check
      _
    $region71: #{tpu_custom_call.1} parent=1 // pred_check_branch
      %7193 = sbr.rel (0) target = $region73
    $region72: #{tpu_custom_call.1} parent=1 // pred_region
      %7194 = dma.done [#allocation10], 384
    $region73: #{tpu_custom_call.1} parent=1 // pred_fallthru
      _
    %7195 = vsyncpa [#allocation3], 1
    %7196 = vsyncpa [#allocation6], 1
    %7197 = vsyncpa [#allocation4], 1
    %7198 = vsyncpa [#allocation10], 1

</llo_original>
